<compile_context>
chip_gen: v7x
topology: tpu7x:2x2x1
jax: 0.10.0
libtpu: 0.0.40
codegen_flags: <defaults>
</compile_context>

<pallas_src>
import math
import functools
import numpy as np
import jax
import jax.numpy as jnp
from jax.experimental import pallas as pl
from jax.experimental.pallas import tpu as pltpu

MIN_BIN_WIDTH = 1e-3
MIN_BIN_HEIGHT = 1e-3
MIN_DERIVATIVE = 1e-3


def _softplus(x):
    # numerically stable softplus from exp/log/max (safe Mosaic lowering)
    return jnp.maximum(x, 0.0) + jnp.log(1.0 + jnp.exp(-jnp.abs(x)))


def _exclusive_cumsum_mxu(v, tri):
    """Exclusive cumsum along lanes via a strict-upper-triangular MXU matmul.

    The operand is split into a bf16-exact part plus a small residual so the
    result stays f32-accurate regardless of whether the f32 matmul lowering
    uses truncating bf16 passes (tri is 0/1, hence always exact)."""
    hi = v.astype(jnp.bfloat16).astype(jnp.float32)
    lo = v - hi
    return (jnp.dot(hi, tri, preferred_element_type=jnp.float32)
            + jnp.dot(lo, tri, preferred_element_type=jnp.float32))


# ----------------------------------------------------------------------------
# Fused kernel: grid = (batch_tile b, autoregressive dim d).  For each (b, d):
# trig-transform the prefix of the batch tile, run the conditioner FCNN, apply
# the forward rational-quadratic spline to x[:, d], scatter z into lane d of
# the resident (TB, dim) block and accumulate log-det into the (TB, 1) block.
# ----------------------------------------------------------------------------
def nsf_ar_fused_kernel(K, B,
                        x2_ref, xt_ref, coef_ref, phase_ref, lanek_ref,
                        laned_ref, tri_ref,
                        w1_ref, b1_ref, w2_ref, b2_ref, w3_ref, b3_ref,
                        z_ref, ld_ref):
    f32 = jnp.float32
    bf16 = jnp.bfloat16
    d = pl.program_id(1)
    left, right, bottom, top = -B, B, -B, B
    span = right - left

    # ---- periodic trig transform of the autoregressive prefix (fused cos) ----
    # coef = pi/B on real prefix lanes and 0 elsewhere; phase = 0 on the cos
    # half, -pi/2 on the sin half, so cos(x*coef + phase) is cos(pi x / B) /
    # sin(pi x / B) on the prefix and 1 / 0 on masked lanes, which multiply
    # zero weight rows (and reproduce the zeros(N, 1) input of layer 0).
    inp = jnp.cos(x2_ref[...] * coef_ref[...] + phase_ref[...])      # (TB, 2P)
    x = xt_ref[...]                                                  # (TB, 1) = x[:, d]

    # ---- conditioner FCNN (bf16 MXU operands, f32 accumulation) ----
    h = jnp.tanh(jnp.dot(inp.astype(bf16), w1_ref[...],
                         preferred_element_type=f32) + b1_ref[...])
    h = jnp.tanh(jnp.dot(h.astype(bf16), w2_ref[...],
                         preferred_element_type=f32) + b2_ref[...])
    logits = jnp.dot(h.astype(bf16), w3_ref[...],
                     preferred_element_type=f32) + b3_ref[...]       # (TB, HP)
    W_logits = logits[:, 0:K]
    H_logits = logits[:, K:2 * K]
    D_logits = logits[:, 2 * K:3 * K]     # lane K-1 is zero padding (never used)

    # ---- NSF_AR.forward post-processing (RQS re-applies softmax/softplus) ----
    def softmax_sub(v):                   # raw logits: keep max subtraction
        e = jnp.exp(v - jnp.max(v, axis=-1, keepdims=True))
        return e / jnp.sum(e, axis=-1, keepdims=True)

    def softmax_nosub(v):                 # inputs bounded in [0, 2B]: skip max
        e = jnp.exp(v)
        return e / jnp.sum(e, axis=-1, keepdims=True)

    Wn = (2.0 * B) * softmax_sub(W_logits)
    Hn = (2.0 * B) * softmax_sub(H_logits)
    Dn = _softplus(D_logits)

    # ---- rational-quadratic spline (forward) ----
    widths = MIN_BIN_WIDTH + (1.0 - MIN_BIN_WIDTH * K) * softmax_nosub(Wn)
    heights = MIN_BIN_HEIGHT + (1.0 - MIN_BIN_HEIGHT * K) * softmax_nosub(Hn)

    tri = tri_ref[...]                    # (K, K) strict upper triangular
    lane = lanek_ref[...]                 # (1, K) float lane iota
    is_last = lane == float(K - 1)

    cw_left = span * _exclusive_cumsum_mxu(widths, tri) + left
    ch_left = span * _exclusive_cumsum_mxu(heights, tri) + bottom
    cw_right = jnp.where(is_last, right, cw_left + span * widths)   # last knot == right
    ch_right = jnp.where(is_last, top, ch_left + span * heights)    # last knot == top
    bin_w = cw_right - cw_left
    bin_h = ch_right - ch_left
    delta = bin_h / bin_w

    # derivatives: forward already applied softplus; RQS pads with a boundary
    # constant whose (min_derivative + softplus) is exactly 1.
    d_inner = MIN_DERIVATIVE + _softplus(Dn)      # lane K-1 is garbage, masked below
    const = math.log(math.exp(1.0 - MIN_DERIVATIVE) - 1.0)
    d_const = MIN_DERIVATIVE + math.log1p(math.exp(const))   # == 1.0

    # ---- bucketize x over the K left bin edges ----
    x_in = jnp.clip(x, left, right)
    ge = (x_in >= cw_left).astype(f32)
    bin_idx = jnp.sum(ge, axis=-1, keepdims=True) - 1.0      # float index in [0, K-1]
    onehot = (lane == bin_idx).astype(f32)
    onehot_m1 = (lane == (bin_idx - 1.0)).astype(f32)

    def gather(v, oh):
        return jnp.sum(v * oh, axis=-1, keepdims=True)

    in_cw = gather(cw_left, onehot)
    in_bw = gather(bin_w, onehot)
    in_ch = gather(ch_left, onehot)
    in_bh = gather(bin_h, onehot)
    in_delta = gather(delta, onehot)
    in_d = jnp.where(bin_idx == 0.0, d_const, gather(d_inner, onehot_m1))
    in_d_p1 = jnp.where(bin_idx == float(K - 1), d_const, gather(d_inner, onehot))

    theta = (x_in - in_cw) / in_bw
    t1mt = theta * (1.0 - theta)
    numerator = in_bh * (in_delta * theta * theta + in_d * t1mt)
    denominator = in_delta + (in_d + in_d_p1 - 2.0 * in_delta) * t1mt
    y = in_ch + numerator / denominator
    dnum = (in_delta * in_delta) * (in_d_p1 * theta * theta
                                    + 2.0 * in_delta * t1mt
                                    + in_d * (1.0 - theta) * (1.0 - theta))
    ld = jnp.log(dnum / (denominator * denominator))          # fused single log

    inside = (x >= left) & (x <= right)
    zcol = jnp.where(inside, y, x)            # identity tails outside [-B, B]
    ldcol = jnp.where(inside, ld, 0.0)

    # scatter z into lane d of the resident (TB, dim) block; accumulate log-det.
    zvals = jnp.where(laned_ref[...] == d, zcol, 0.0)         # (TB, dim)

    @pl.when(d == 0)
    def _init():
        z_ref[...] = zvals
        ld_ref[...] = ldcol

    @pl.when(d > 0)
    def _accumulate():
        z_ref[...] += zvals
        ld_ref[...] += ldcol


# ----------------------------------------------------------------------------
# Parameter init (torch nn.Linear-style uniform), stacked along a leading dim
# axis; matmul weights stored in bf16 (MXU-native), biases in f32.
# ----------------------------------------------------------------------------
def init_params(key, dim, K, hidden_dim):
    P_pad = max(8, ((dim + 7) // 8) * 8)            # padded per-half prefix width
    HP = ((3 * K + 127) // 128) * 128               # fused W|H|D head width (lane-dense)

    w1s, b1s, w2s, b2s, w3s, b3s = [], [], [], [], [], []
    for i in range(dim):
        in_dim = 2 if i == 0 else 2 * i             # trig transform doubles input dim
        p = max(i, 1)                               # cos-half / sin-half width

        def lin(k, fan_in, fan_out):
            bound = 1.0 / math.sqrt(fan_in)
            kw, kb = jax.random.split(k)
            w = jax.random.uniform(kw, (fan_in, fan_out), jnp.float32, -bound, bound)
            b = jax.random.uniform(kb, (1, fan_out), jnp.float32, -bound, bound)
            return w, b

        key, k1, k2, k3 = jax.random.split(key, 4)
        w1, b1 = lin(k1, in_dim, hidden_dim)
        w2, b2 = lin(k2, hidden_dim, hidden_dim)
        w3, b3 = lin(k3, hidden_dim, 3 * K - 1)

        # layer 1: scatter cos rows to [0:p] and sin rows to [P_pad:P_pad+p]
        w1_full = jnp.zeros((2 * P_pad, hidden_dim), jnp.float32)
        w1_full = w1_full.at[:p].set(w1[:p])
        w1_full = w1_full.at[P_pad:P_pad + p].set(w1[p:])
        # fused head: W | H | D (3K-1 real cols), zero padded to HP lanes
        w3_full = jnp.zeros((hidden_dim, HP), jnp.float32).at[:, :3 * K - 1].set(w3)
        b3_full = jnp.zeros((1, HP), jnp.float32).at[:, :3 * K - 1].set(b3)

        w1s.append(w1_full); b1s.append(b1)
        w2s.append(w2); b2s.append(b2)
        w3s.append(w3_full); b3s.append(b3_full)

    stack_bf16 = lambda xs: jnp.stack(xs, axis=0).astype(jnp.bfloat16)
    stack_f32 = lambda xs: jnp.stack(xs, axis=0)
    return dict(w1=stack_bf16(w1s), b1=stack_f32(b1s),
                w2=stack_bf16(w2s), b2=stack_f32(b2s),
                w3=stack_bf16(w3s), b3=stack_f32(b3s))


# ----------------------------------------------------------------------------
# NSF_AR.forward: one pallas_call over grid = (batch_tiles, dim)
# ----------------------------------------------------------------------------
def nsf_ar_forward(params, x, K, B, batch_tile=128):
    # batch_tile=128 saturates the v5e MXU and is safe everywhere; use 256 on
    # v6e/v7x at larger batches.  VMEM per step here is ~100 KB, far below the
    # 32 MiB scoped default (and v7x's 64 MiB physical).
    n, dim = x.shape
    P_pad = params["w1"].shape[1] // 2
    H = params["w2"].shape[1]
    HP = params["w3"].shape[2]
    TB = batch_tile
    pn = ((n + TB - 1) // TB) * TB                   # batch padded to tile multiple

    xf = x.astype(jnp.float32)
    x_rows = jnp.pad(xf, ((0, pn - n), (0, 0)))                       # (pn, dim)
    x_lanes = jnp.pad(x_rows, ((0, 0), (0, P_pad - dim)))             # (pn, P_pad)
    x2 = jnp.concatenate([x_lanes, x_lanes], axis=-1)                 # (pn, 2*P_pad)
    xt = jnp.transpose(x_rows)[:, :, None]                            # (dim, pn, 1)

    # host-precomputed constants
    pos = np.concatenate([np.arange(P_pad), np.arange(P_pad)])        # (2P,)
    coef = ((np.pi / B) * (pos[None, :] < np.arange(dim)[:, None])
            ).astype(np.float32)[:, None, :]                          # (dim, 1, 2P)
    phase = np.concatenate([np.zeros(P_pad), np.full(P_pad, -0.5 * np.pi)]
                           ).astype(np.float32)[None, :]              # (1, 2P)
    lane_k = np.arange(K, dtype=np.float32)[None, :]                  # (1, K)
    lane_dim = np.arange(dim, dtype=np.int32)[None, :]                # (1, dim)
    r = np.arange(K)
    tri = (r[:, None] < r[None, :]).astype(np.float32)                # (K, K)

    kernel = functools.partial(nsf_ar_fused_kernel, K, float(B))
    grid = (pn // TB, dim)

    def dim_spec(shape):   # per-dim stacked arrays (weights, coef)
        return pl.BlockSpec((None,) + shape, lambda b, d: (d, 0, 0))

    def const_spec(shape):
        return pl.BlockSpec(shape, lambda b, d: (0, 0))

    z_full, ld_full = pl.pallas_call(
        kernel,
        grid=grid,
        out_shape=(jax.ShapeDtypeStruct((pn, dim), jnp.float32),
                   jax.ShapeDtypeStruct((pn, 1), jnp.float32)),
        in_specs=[
            pl.BlockSpec((TB, 2 * P_pad), lambda b, d: (b, 0)),       # x2 per batch tile
            pl.BlockSpec((None, TB, 1), lambda b, d: (d, b, 0)),      # x[:, d]
            dim_spec((1, 2 * P_pad)),                                 # coef
            const_spec((1, 2 * P_pad)),                               # phase
            const_spec((1, K)),                                       # lane_k
            const_spec((1, dim)),                                     # lane_dim
            const_spec((K, K)),                                       # tri (excl. cumsum)
            dim_spec((2 * P_pad, H)),                                 # w1 (bf16)
            dim_spec((1, H)),                                         # b1
            dim_spec((H, H)),                                         # w2 (bf16)
            dim_spec((1, H)),                                         # b2
            dim_spec((H, HP)),                                        # w3 (bf16 fused head)
            dim_spec((1, HP)),                                        # b3
        ],
        out_specs=(pl.BlockSpec((TB, dim), lambda b, d: (b, 0)),      # z (resident per tile)
                   pl.BlockSpec((TB, 1), lambda b, d: (b, 0))),       # log-det accumulator
        compiler_params=pltpu.CompilerParams(
            dimension_semantics=("parallel", "arbitrary")),
    )(x2, xt, jnp.asarray(coef), jnp.asarray(phase), jnp.asarray(lane_k),
      jnp.asarray(lane_dim), jnp.asarray(tri),
      params["w1"], params["b1"], params["w2"], params["b2"],
      params["w3"], params["b3"])

    return z_full[:n], ld_full[:n, 0]


# ----------------------------------------------------------------------------
# Pure-JAX reference mirroring the PyTorch code path (same bf16 MXU operand
# precision as the kernel so the comparison is apples-to-apples).
# ----------------------------------------------------------------------------
def _rqs_ref(x, Wn, Hn, Dn, B, K):
    mbw, mbh, md = MIN_BIN_WIDTH, MIN_BIN_HEIGHT, MIN_DERIVATIVE
    inside = (x >= -B) & (x <= B)
    const = math.log(math.exp(1.0 - md) - 1.0)
    Dpad = jnp.pad(Dn, ((0, 0), (1, 1)), constant_values=const)

    widths = mbw + (1 - mbw * K) * jax.nn.softmax(Wn, axis=-1)
    cumw = jnp.pad(jnp.cumsum(widths, axis=-1), ((0, 0), (1, 0)))
    cumw = 2 * B * cumw - B
    cumw = cumw.at[:, 0].set(-B).at[:, -1].set(B)
    widths = cumw[:, 1:] - cumw[:, :-1]

    derivs = md + jax.nn.softplus(Dpad)

    heights = mbh + (1 - mbh * K) * jax.nn.softmax(Hn, axis=-1)
    cumh = jnp.pad(jnp.cumsum(heights, axis=-1), ((0, 0), (1, 0)))
    cumh = 2 * B * cumh - B
    cumh = cumh.at[:, 0].set(-B).at[:, -1].set(B)
    heights = cumh[:, 1:] - cumh[:, :-1]

    x_in = jnp.clip(x, -B, B)
    locs = cumw.at[:, -1].add(1e-6)
    bin_idx = (jnp.sum((x_in[:, None] >= locs).astype(jnp.int32), axis=-1) - 1)[:, None]
    g = lambda a: jnp.take_along_axis(a, bin_idx, axis=-1)[:, 0]

    in_cw, in_bw, in_ch, in_bh = g(cumw), g(widths), g(cumh), g(heights)
    in_delta = g(heights / widths)
    in_d, in_d1 = g(derivs), g(derivs[:, 1:])

    theta = (x_in - in_cw) / in_bw
    t1 = theta * (1 - theta)
    num = in_bh * (in_delta * theta ** 2 + in_d * t1)
    den = in_delta + (in_d + in_d1 - 2 * in_delta) * t1
    y = in_ch + num / den
    dn = in_delta ** 2 * (in_d1 * theta ** 2 + 2 * in_delta * t1 + in_d * (1 - theta) ** 2)
    ld = jnp.log(dn) - 2 * jnp.log(den)        # standard RQS logabsdet
    return jnp.where(inside, y, x), jnp.where(inside, ld, 0.0)


def reference_forward(params, x, K, B):
    n, dim = x.shape
    P_pad = params["w1"].shape[1] // 2
    f32, bf16 = jnp.float32, jnp.bfloat16
    z_cols = []
    log_det = jnp.zeros((n,), f32)
    for i in range(dim):
        p = max(i, 1)
        w1 = jnp.concatenate([params["w1"][i, :p], params["w1"][i, P_pad:P_pad + p]], axis=0)
        b1 = params["b1"][i]
        w2, b2 = params["w2"][i], params["b2"][i]
        w3 = params["w3"][i][:, :3 * K - 1]
        b3 = params["b3"][i][:, :3 * K - 1]

        prefix = jnp.zeros((n, 1), f32) if i == 0 else x[:, :i]
        arg = (np.pi / B) * prefix
        inp = jnp.concatenate([jnp.cos(arg), jnp.sin(arg)], axis=-1)
        # mirror the kernel's bf16 MXU operands (f32 accumulation)
        h = jnp.tanh(jnp.dot(inp.astype(bf16), w1, preferred_element_type=f32) + b1)
        h = jnp.tanh(jnp.dot(h.astype(bf16), w2, preferred_element_type=f32) + b2)
        out = jnp.dot(h.astype(bf16), w3, preferred_element_type=f32) + b3
        Wl, Hl, Dl = out[:, :K], out[:, K:2 * K], out[:, 2 * K:]
        Wn = 2 * B * jax.nn.softmax(Wl, axis=-1)
        Hn = 2 * B * jax.nn.softmax(Hl, axis=-1)
        Dn = jax.nn.softplus(Dl)
        zi, ld = _rqs_ref(x[:, i], Wn, Hn, Dn, B, K)
        z_cols.append(zi[:, None])
        log_det = log_det + ld
    return jnp.concatenate(z_cols, axis=1), log_det


if __name__ == "__main__":
    # TODO(synk): inverse() path (spline root finding) is not implemented; forward only.
    DIM, K, B, HIDDEN, BATCH = 4, 32, 3.0, 64, 8   # small-shape NSF_AR(dim=4, K=32, B=3)
    key = jax.random.PRNGKey(0)
    kp, kx = jax.random.split(key)
    params = init_params(kp, DIM, K, HIDDEN)
    x = jax.random.normal(kx, (BATCH, DIM), jnp.float32) * 2.5  # inside + tail paths

    z, log_det = nsf_ar_forward(params, x, K, B, batch_tile=128)
    jax.block_until_ready((z, log_det))

    z_exp, ld_exp = reference_forward(params, x, K, B)
    # tolerance covers transcendental-impl / accumulation-order / MXU-cumsum ULPs
    np.testing.assert_allclose(np.asarray(z), np.asarray(z_exp), rtol=5e-3, atol=5e-3)
    np.testing.assert_allclose(np.asarray(log_det), np.asarray(ld_exp), rtol=5e-3, atol=5e-3)
    print("KERNEL_OK")
</pallas_src>

<mosaic_0001>
module attributes {stable_mosaic.version = 11 : i64} {
  func.func @nsf_ar_fused_kernel(%arg0: i32, %arg1: i32, %arg2: memref<128x16xf32, #tpu.memory_space<vmem>>, %arg3: memref<1x128x1xf32, #tpu.memory_space<vmem>>, %arg4: memref<1x1x16xf32, #tpu.memory_space<vmem>>, %arg5: memref<1x16xf32, #tpu.memory_space<vmem>>, %arg6: memref<1x32xf32, #tpu.memory_space<vmem>>, %arg7: memref<1x4xi32, #tpu.memory_space<vmem>>, %arg8: memref<32x32xf32, #tpu.memory_space<vmem>>, %arg9: memref<1x16x64xbf16, #tpu.memory_space<vmem>>, %arg10: memref<1x1x64xf32, #tpu.memory_space<vmem>>, %arg11: memref<1x64x64xbf16, #tpu.memory_space<vmem>>, %arg12: memref<1x1x64xf32, #tpu.memory_space<vmem>>, %arg13: memref<1x64x128xbf16, #tpu.memory_space<vmem>>, %arg14: memref<1x1x128xf32, #tpu.memory_space<vmem>>, %arg15: memref<128x4xf32, #tpu.memory_space<vmem>>, %arg16: memref<128x1xf32, #tpu.memory_space<vmem>>) attributes {dimension_semantics = [#tpu.dimension_semantics<parallel>, #tpu.dimension_semantics<arbitrary>], iteration_bounds = array<i64: 1, 4>, scalar_prefetch = 0 : i64, scratch_operands = 0 : i64, tpu.core_type = #tpu.core_type<tc>, window_params = [{transform_indices = @transform_0, window_bounds = array<i64: 128, 16>}, {transform_indices = @transform_1, window_bounds = array<i64: 1, 128, 1>}, {transform_indices = @transform_2, window_bounds = array<i64: 1, 1, 16>}, {pipeline_mode = #tpu.pipeline_mode<synchronous>, transform_indices = @transform_3, window_bounds = array<i64: 1, 16>}, {pipeline_mode = #tpu.pipeline_mode<synchronous>, transform_indices = @transform_4, window_bounds = array<i64: 1, 32>}, {pipeline_mode = #tpu.pipeline_mode<synchronous>, transform_indices = @transform_5, window_bounds = array<i64: 1, 4>}, {pipeline_mode = #tpu.pipeline_mode<synchronous>, transform_indices = @transform_6, window_bounds = array<i64: 32, 32>}, {transform_indices = @transform_7, window_bounds = array<i64: 1, 16, 64>}, {transform_indices = @transform_8, window_bounds = array<i64: 1, 1, 64>}, {transform_indices = @transform_9, window_bounds = array<i64: 1, 64, 64>}, {transform_indices = @transform_10, window_bounds = array<i64: 1, 1, 64>}, {transform_indices = @transform_11, window_bounds = array<i64: 1, 64, 128>}, {transform_indices = @transform_12, window_bounds = array<i64: 1, 1, 128>}, {transform_indices = @transform_13, window_bounds = array<i64: 128, 4>}, {transform_indices = @transform_14, window_bounds = array<i64: 128, 1>}]} {
    %c0 = arith.constant 0 : index
    %c0_0 = arith.constant 0 : index
    %0 = vector.load %arg2[%c0, %c0_0] : memref<128x16xf32, #tpu.memory_space<vmem>>, vector<128x16xf32>
    %c0_1 = arith.constant 0 : index
    %c0_2 = arith.constant 0 : index
    %c0_3 = arith.constant 0 : index
    %1 = vector.load %arg4[%c0_1, %c0_2, %c0_3] : memref<1x1x16xf32, #tpu.memory_space<vmem>>, vector<1x1x16xf32>
    %2 = vector.shape_cast %1 : vector<1x1x16xf32> to vector<1x16xf32>
    %3 = vector.broadcast %2 : vector<1x16xf32> to vector<128x16xf32>
    %4 = arith.mulf %0, %3 : vector<128x16xf32>
    %c0_4 = arith.constant 0 : index
    %c0_5 = arith.constant 0 : index
    %5 = vector.load %arg5[%c0_4, %c0_5] : memref<1x16xf32, #tpu.memory_space<vmem>>, vector<1x16xf32>
    %6 = vector.broadcast %5 : vector<1x16xf32> to vector<128x16xf32>
    %7 = arith.addf %4, %6 : vector<128x16xf32>
    %8 = math.cos %7 : vector<128x16xf32>
    %c0_6 = arith.constant 0 : index
    %c0_7 = arith.constant 0 : index
    %c0_8 = arith.constant 0 : index
    %9 = vector.load %arg3[%c0_6, %c0_7, %c0_8] : memref<1x128x1xf32, #tpu.memory_space<vmem>>, vector<1x128x1xf32>
    %10 = vector.shape_cast %9 : vector<1x128x1xf32> to vector<128x1xf32>
    %11 = arith.truncf %8 : vector<128x16xf32> to vector<128x16xbf16>
    %c0_9 = arith.constant 0 : index
    %c0_10 = arith.constant 0 : index
    %c0_11 = arith.constant 0 : index
    %12 = vector.load %arg9[%c0_9, %c0_10, %c0_11] : memref<1x16x64xbf16, #tpu.memory_space<vmem>>, vector<1x16x64xbf16>
    %13 = vector.shape_cast %12 : vector<1x16x64xbf16> to vector<16x64xbf16>
    %cst = arith.constant dense<0.000000e+00> : vector<128x64xf32>
    %14 = tpu.matmul %11, %13, %cst {dimension_numbers = #tpu.dot_dimension_numbers<[1], [0], [0], [1], [0, 0, 1, 1], [], []>} : vector<128x16xbf16>, vector<16x64xbf16>, vector<128x64xf32> -> vector<128x64xf32>
    %c0_12 = arith.constant 0 : index
    %c0_13 = arith.constant 0 : index
    %c0_14 = arith.constant 0 : index
    %15 = vector.load %arg10[%c0_12, %c0_13, %c0_14] : memref<1x1x64xf32, #tpu.memory_space<vmem>>, vector<1x1x64xf32>
    %16 = vector.shape_cast %15 : vector<1x1x64xf32> to vector<1x64xf32>
    %17 = vector.broadcast %16 : vector<1x64xf32> to vector<128x64xf32>
    %18 = arith.addf %14, %17 : vector<128x64xf32>
    %19 = math.tanh %18 : vector<128x64xf32>
    %20 = arith.truncf %19 : vector<128x64xf32> to vector<128x64xbf16>
    %c0_15 = arith.constant 0 : index
    %c0_16 = arith.constant 0 : index
    %c0_17 = arith.constant 0 : index
    %21 = vector.load %arg11[%c0_15, %c0_16, %c0_17] : memref<1x64x64xbf16, #tpu.memory_space<vmem>>, vector<1x64x64xbf16>
    %22 = vector.shape_cast %21 : vector<1x64x64xbf16> to vector<64x64xbf16>
    %cst_18 = arith.constant dense<0.000000e+00> : vector<128x64xf32>
    %23 = tpu.matmul %20, %22, %cst_18 {dimension_numbers = #tpu.dot_dimension_numbers<[1], [0], [0], [1], [0, 0, 1, 1], [], []>} : vector<128x64xbf16>, vector<64x64xbf16>, vector<128x64xf32> -> vector<128x64xf32>
    %c0_19 = arith.constant 0 : index
    %c0_20 = arith.constant 0 : index
    %c0_21 = arith.constant 0 : index
    %24 = vector.load %arg12[%c0_19, %c0_20, %c0_21] : memref<1x1x64xf32, #tpu.memory_space<vmem>>, vector<1x1x64xf32>
    %25 = vector.shape_cast %24 : vector<1x1x64xf32> to vector<1x64xf32>
    %26 = vector.broadcast %25 : vector<1x64xf32> to vector<128x64xf32>
    %27 = arith.addf %23, %26 : vector<128x64xf32>
    %28 = math.tanh %27 : vector<128x64xf32>
    %29 = arith.truncf %28 : vector<128x64xf32> to vector<128x64xbf16>
    %c0_22 = arith.constant 0 : index
    %c0_23 = arith.constant 0 : index
    %c0_24 = arith.constant 0 : index
    %30 = vector.load %arg13[%c0_22, %c0_23, %c0_24] : memref<1x64x128xbf16, #tpu.memory_space<vmem>>, vector<1x64x128xbf16>
    %31 = vector.shape_cast %30 : vector<1x64x128xbf16> to vector<64x128xbf16>
    %cst_25 = arith.constant dense<0.000000e+00> : vector<128x128xf32>
    %32 = tpu.matmul %29, %31, %cst_25 {dimension_numbers = #tpu.dot_dimension_numbers<[1], [0], [0], [1], [0, 0, 1, 1], [], []>} : vector<128x64xbf16>, vector<64x128xbf16>, vector<128x128xf32> -> vector<128x128xf32>
    %c0_26 = arith.constant 0 : index
    %c0_27 = arith.constant 0 : index
    %c0_28 = arith.constant 0 : index
    %33 = vector.load %arg14[%c0_26, %c0_27, %c0_28] : memref<1x1x128xf32, #tpu.memory_space<vmem>>, vector<1x1x128xf32>
    %34 = vector.shape_cast %33 : vector<1x1x128xf32> to vector<1x128xf32>
    %35 = vector.broadcast %34 : vector<1x128xf32> to vector<128x128xf32>
    %36 = arith.addf %32, %35 : vector<128x128xf32>
    %37 = vector.extract_strided_slice %36 {offsets = [0, 0], sizes = [128, 32], strides = [1, 1]} : vector<128x128xf32> to vector<128x32xf32>
    %38 = vector.extract_strided_slice %36 {offsets = [0, 32], sizes = [128, 32], strides = [1, 1]} : vector<128x128xf32> to vector<128x32xf32>
    %39 = vector.extract_strided_slice %36 {offsets = [0, 64], sizes = [128, 32], strides = [1, 1]} : vector<128x128xf32> to vector<128x32xf32>
    %cst_29 = arith.constant dense<0xFF800000> : vector<128xf32>
    %40 = vector.multi_reduction <maximumf>, %37, %cst_29 [1] : vector<128x32xf32> to vector<128xf32>
    %41 = vector.shape_cast %40 : vector<128xf32> to vector<128x1xf32>
    %42 = vector.broadcast %41 : vector<128x1xf32> to vector<128x32xf32>
    %43 = arith.subf %37, %42 : vector<128x32xf32>
    %44 = math.exp %43 : vector<128x32xf32>
    %cst_30 = arith.constant dense<0.000000e+00> : vector<128xf32>
    %45 = vector.multi_reduction <add>, %44, %cst_30 [1] : vector<128x32xf32> to vector<128xf32>
    %46 = vector.shape_cast %45 : vector<128xf32> to vector<128x1xf32>
    %47 = vector.broadcast %46 : vector<128x1xf32> to vector<128x32xf32>
    %48 = arith.divf %44, %47 : vector<128x32xf32>
    %cst_31 = arith.constant 6.000000e+00 : f32
    %49 = vector.broadcast %cst_31 : f32 to vector<128x32xf32>
    %50 = arith.mulf %49, %48 : vector<128x32xf32>
    %cst_32 = arith.constant dense<0xFF800000> : vector<128xf32>
    %51 = vector.multi_reduction <maximumf>, %38, %cst_32 [1] : vector<128x32xf32> to vector<128xf32>
    %52 = vector.shape_cast %51 : vector<128xf32> to vector<128x1xf32>
    %53 = vector.broadcast %52 : vector<128x1xf32> to vector<128x32xf32>
    %54 = arith.subf %38, %53 : vector<128x32xf32>
    %55 = math.exp %54 : vector<128x32xf32>
    %cst_33 = arith.constant dense<0.000000e+00> : vector<128xf32>
    %56 = vector.multi_reduction <add>, %55, %cst_33 [1] : vector<128x32xf32> to vector<128xf32>
    %57 = vector.shape_cast %56 : vector<128xf32> to vector<128x1xf32>
    %58 = vector.broadcast %57 : vector<128x1xf32> to vector<128x32xf32>
    %59 = arith.divf %55, %58 : vector<128x32xf32>
    %cst_34 = arith.constant 6.000000e+00 : f32
    %60 = vector.broadcast %cst_34 : f32 to vector<128x32xf32>
    %61 = arith.mulf %60, %59 : vector<128x32xf32>
    %cst_35 = arith.constant 0.000000e+00 : f32
    %62 = vector.broadcast %cst_35 : f32 to vector<128x32xf32>
    %63 = arith.maximumf %39, %62 : vector<128x32xf32>
    %64 = math.absf %39 : vector<128x32xf32>
    %cst_36 = arith.constant 0.000000e+00 : f32
    %65 = vector.broadcast %cst_36 : f32 to vector<128x32xf32>
    %66 = arith.subf %65, %64 : vector<128x32xf32>
    %67 = math.exp %66 : vector<128x32xf32>
    %cst_37 = arith.constant 1.000000e+00 : f32
    %68 = vector.broadcast %cst_37 : f32 to vector<128x32xf32>
    %69 = arith.addf %68, %67 : vector<128x32xf32>
    %70 = math.log %69 : vector<128x32xf32>
    %71 = arith.addf %63, %70 : vector<128x32xf32>
    %72 = math.exp %50 : vector<128x32xf32>
    %cst_38 = arith.constant dense<0.000000e+00> : vector<128xf32>
    %73 = vector.multi_reduction <add>, %72, %cst_38 [1] : vector<128x32xf32> to vector<128xf32>
    %74 = vector.shape_cast %73 : vector<128xf32> to vector<128x1xf32>
    %75 = vector.broadcast %74 : vector<128x1xf32> to vector<128x32xf32>
    %76 = arith.divf %72, %75 : vector<128x32xf32>
    %cst_39 = arith.constant 0.967999994 : f32
    %77 = vector.broadcast %cst_39 : f32 to vector<128x32xf32>
    %78 = arith.mulf %77, %76 : vector<128x32xf32>
    %cst_40 = arith.constant 1.000000e-03 : f32
    %79 = vector.broadcast %cst_40 : f32 to vector<128x32xf32>
    %80 = arith.addf %79, %78 : vector<128x32xf32>
    %81 = math.exp %61 : vector<128x32xf32>
    %cst_41 = arith.constant dense<0.000000e+00> : vector<128xf32>
    %82 = vector.multi_reduction <add>, %81, %cst_41 [1] : vector<128x32xf32> to vector<128xf32>
    %83 = vector.shape_cast %82 : vector<128xf32> to vector<128x1xf32>
    %84 = vector.broadcast %83 : vector<128x1xf32> to vector<128x32xf32>
    %85 = arith.divf %81, %84 : vector<128x32xf32>
    %cst_42 = arith.constant 0.967999994 : f32
    %86 = vector.broadcast %cst_42 : f32 to vector<128x32xf32>
    %87 = arith.mulf %86, %85 : vector<128x32xf32>
    %cst_43 = arith.constant 1.000000e-03 : f32
    %88 = vector.broadcast %cst_43 : f32 to vector<128x32xf32>
    %89 = arith.addf %88, %87 : vector<128x32xf32>
    %c0_44 = arith.constant 0 : index
    %c0_45 = arith.constant 0 : index
    %90 = vector.load %arg8[%c0_44, %c0_45] : memref<32x32xf32, #tpu.memory_space<vmem>>, vector<32x32xf32>
    %c0_46 = arith.constant 0 : index
    %c0_47 = arith.constant 0 : index
    %91 = vector.load %arg6[%c0_46, %c0_47] : memref<1x32xf32, #tpu.memory_space<vmem>>, vector<1x32xf32>
    %cst_48 = arith.constant 3.100000e+01 : f32
    %92 = vector.broadcast %cst_48 : f32 to vector<1x32xf32>
    %93 = arith.cmpf oeq, %91, %92 : vector<1x32xf32>
    %94 = arith.truncf %80 : vector<128x32xf32> to vector<128x32xbf16>
    %95 = arith.extf %94 : vector<128x32xbf16> to vector<128x32xf32>
    %96 = arith.subf %80, %95 : vector<128x32xf32>
    %cst_49 = arith.constant dense<0.000000e+00> : vector<128x32xf32>
    %97 = tpu.matmul %95, %90, %cst_49 {dimension_numbers = #tpu.dot_dimension_numbers<[1], [0], [0], [1], [0, 0, 1, 1], [], []>} : vector<128x32xf32>, vector<32x32xf32>, vector<128x32xf32> -> vector<128x32xf32>
    %cst_50 = arith.constant dense<0.000000e+00> : vector<128x32xf32>
    %98 = tpu.matmul %96, %90, %cst_50 {dimension_numbers = #tpu.dot_dimension_numbers<[1], [0], [0], [1], [0, 0, 1, 1], [], []>} : vector<128x32xf32>, vector<32x32xf32>, vector<128x32xf32> -> vector<128x32xf32>
    %99 = arith.addf %97, %98 : vector<128x32xf32>
    %cst_51 = arith.constant 6.000000e+00 : f32
    %100 = vector.broadcast %cst_51 : f32 to vector<128x32xf32>
    %101 = arith.mulf %100, %99 : vector<128x32xf32>
    %cst_52 = arith.constant -3.000000e+00 : f32
    %102 = vector.broadcast %cst_52 : f32 to vector<128x32xf32>
    %103 = arith.addf %101, %102 : vector<128x32xf32>
    %104 = arith.truncf %89 : vector<128x32xf32> to vector<128x32xbf16>
    %105 = arith.extf %104 : vector<128x32xbf16> to vector<128x32xf32>
    %106 = arith.subf %89, %105 : vector<128x32xf32>
    %cst_53 = arith.constant dense<0.000000e+00> : vector<128x32xf32>
    %107 = tpu.matmul %105, %90, %cst_53 {dimension_numbers = #tpu.dot_dimension_numbers<[1], [0], [0], [1], [0, 0, 1, 1], [], []>} : vector<128x32xf32>, vector<32x32xf32>, vector<128x32xf32> -> vector<128x32xf32>
    %cst_54 = arith.constant dense<0.000000e+00> : vector<128x32xf32>
    %108 = tpu.matmul %106, %90, %cst_54 {dimension_numbers = #tpu.dot_dimension_numbers<[1], [0], [0], [1], [0, 0, 1, 1], [], []>} : vector<128x32xf32>, vector<32x32xf32>, vector<128x32xf32> -> vector<128x32xf32>
    %109 = arith.addf %107, %108 : vector<128x32xf32>
    %cst_55 = arith.constant 6.000000e+00 : f32
    %110 = vector.broadcast %cst_55 : f32 to vector<128x32xf32>
    %111 = arith.mulf %110, %109 : vector<128x32xf32>
    %cst_56 = arith.constant -3.000000e+00 : f32
    %112 = vector.broadcast %cst_56 : f32 to vector<128x32xf32>
    %113 = arith.addf %111, %112 : vector<128x32xf32>
    %cst_57 = arith.constant 6.000000e+00 : f32
    %114 = vector.broadcast %cst_57 : f32 to vector<128x32xf32>
    %115 = arith.mulf %114, %80 : vector<128x32xf32>
    %116 = arith.addf %103, %115 : vector<128x32xf32>
    %cst_58 = arith.constant 3.000000e+00 : f32
    %117 = vector.shape_cast %93 : vector<1x32xi1> to vector<1x32xi1>
    %118 = vector.broadcast %117 : vector<1x32xi1> to vector<128x32xi1>
    %119 = vector.broadcast %cst_58 : f32 to vector<128x32xf32>
    %120 = arith.select %118, %119, %116 : vector<128x32xi1>, vector<128x32xf32>
    %cst_59 = arith.constant 6.000000e+00 : f32
    %121 = vector.broadcast %cst_59 : f32 to vector<128x32xf32>
    %122 = arith.mulf %121, %89 : vector<128x32xf32>
    %123 = arith.addf %113, %122 : vector<128x32xf32>
    %cst_60 = arith.constant 3.000000e+00 : f32
    %124 = vector.shape_cast %93 : vector<1x32xi1> to vector<1x32xi1>
    %125 = vector.broadcast %124 : vector<1x32xi1> to vector<128x32xi1>
    %126 = vector.broadcast %cst_60 : f32 to vector<128x32xf32>
    %127 = arith.select %125, %126, %123 : vector<128x32xi1>, vector<128x32xf32>
    %128 = arith.subf %120, %103 : vector<128x32xf32>
    %129 = arith.subf %127, %113 : vector<128x32xf32>
    %130 = arith.divf %129, %128 : vector<128x32xf32>
    %cst_61 = arith.constant 0.000000e+00 : f32
    %131 = vector.broadcast %cst_61 : f32 to vector<128x32xf32>
    %132 = arith.maximumf %71, %131 : vector<128x32xf32>
    %133 = math.absf %71 : vector<128x32xf32>
    %cst_62 = arith.constant 0.000000e+00 : f32
    %134 = vector.broadcast %cst_62 : f32 to vector<128x32xf32>
    %135 = arith.subf %134, %133 : vector<128x32xf32>
    %136 = math.exp %135 : vector<128x32xf32>
    %cst_63 = arith.constant 1.000000e+00 : f32
    %137 = vector.broadcast %cst_63 : f32 to vector<128x32xf32>
    %138 = arith.addf %137, %136 : vector<128x32xf32>
    %139 = math.log %138 : vector<128x32xf32>
    %140 = arith.addf %132, %139 : vector<128x32xf32>
    %cst_64 = arith.constant 1.000000e-03 : f32
    %141 = vector.broadcast %cst_64 : f32 to vector<128x32xf32>
    %142 = arith.addf %141, %140 : vector<128x32xf32>
    %cst_65 = arith.constant -3.000000e+00 : f32
    %cst_66 = arith.constant 3.000000e+00 : f32
    %143 = vector.broadcast %cst_65 : f32 to vector<128x1xf32>
    %144 = arith.maximumf %143, %10 : vector<128x1xf32>
    %145 = vector.broadcast %cst_66 : f32 to vector<128x1xf32>
    %146 = arith.minimumf %145, %144 : vector<128x1xf32>
    %147 = vector.broadcast %146 : vector<128x1xf32> to vector<128x32xf32>
    %148 = arith.cmpf oge, %147, %103 : vector<128x32xf32>
    %149 = arith.extui %148 : vector<128x32xi1> to vector<128x32xi32>
    %150 = arith.sitofp %149 : vector<128x32xi32> to vector<128x32xf32>
    %cst_67 = arith.constant dense<0.000000e+00> : vector<128xf32>
    %151 = vector.multi_reduction <add>, %150, %cst_67 [1] : vector<128x32xf32> to vector<128xf32>
    %152 = vector.shape_cast %151 : vector<128xf32> to vector<128x1xf32>
    %cst_68 = arith.constant 1.000000e+00 : f32
    %153 = vector.broadcast %cst_68 : f32 to vector<128x1xf32>
    %154 = arith.subf %152, %153 : vector<128x1xf32>
    %155 = vector.broadcast %91 : vector<1x32xf32> to vector<128x32xf32>
    %156 = vector.broadcast %154 : vector<128x1xf32> to vector<128x32xf32>
    %157 = arith.cmpf oeq, %155, %156 : vector<128x32xf32>
    %158 = arith.extui %157 : vector<128x32xi1> to vector<128x32xi32>
    %159 = arith.sitofp %158 : vector<128x32xi32> to vector<128x32xf32>
    %cst_69 = arith.constant 1.000000e+00 : f32
    %160 = vector.broadcast %cst_69 : f32 to vector<128x1xf32>
    %161 = arith.subf %154, %160 : vector<128x1xf32>
    %162 = vector.broadcast %91 : vector<1x32xf32> to vector<128x32xf32>
    %163 = vector.broadcast %161 : vector<128x1xf32> to vector<128x32xf32>
    %164 = arith.cmpf oeq, %162, %163 : vector<128x32xf32>
    %165 = arith.extui %164 : vector<128x32xi1> to vector<128x32xi32>
    %166 = arith.sitofp %165 : vector<128x32xi32> to vector<128x32xf32>
    %167 = arith.mulf %103, %159 : vector<128x32xf32>
    %cst_70 = arith.constant dense<0.000000e+00> : vector<128xf32>
    %168 = vector.multi_reduction <add>, %167, %cst_70 [1] : vector<128x32xf32> to vector<128xf32>
    %169 = vector.shape_cast %168 : vector<128xf32> to vector<128x1xf32>
    %170 = arith.mulf %128, %159 : vector<128x32xf32>
    %cst_71 = arith.constant dense<0.000000e+00> : vector<128xf32>
    %171 = vector.multi_reduction <add>, %170, %cst_71 [1] : vector<128x32xf32> to vector<128xf32>
    %172 = vector.shape_cast %171 : vector<128xf32> to vector<128x1xf32>
    %173 = arith.mulf %113, %159 : vector<128x32xf32>
    %cst_72 = arith.constant dense<0.000000e+00> : vector<128xf32>
    %174 = vector.multi_reduction <add>, %173, %cst_72 [1] : vector<128x32xf32> to vector<128xf32>
    %175 = vector.shape_cast %174 : vector<128xf32> to vector<128x1xf32>
    %176 = arith.mulf %129, %159 : vector<128x32xf32>
    %cst_73 = arith.constant dense<0.000000e+00> : vector<128xf32>
    %177 = vector.multi_reduction <add>, %176, %cst_73 [1] : vector<128x32xf32> to vector<128xf32>
    %178 = vector.shape_cast %177 : vector<128xf32> to vector<128x1xf32>
    %179 = arith.mulf %130, %159 : vector<128x32xf32>
    %cst_74 = arith.constant dense<0.000000e+00> : vector<128xf32>
    %180 = vector.multi_reduction <add>, %179, %cst_74 [1] : vector<128x32xf32> to vector<128xf32>
    %181 = vector.shape_cast %180 : vector<128xf32> to vector<128x1xf32>
    %cst_75 = arith.constant 0.000000e+00 : f32
    %182 = vector.broadcast %cst_75 : f32 to vector<128x1xf32>
    %183 = arith.cmpf oeq, %154, %182 : vector<128x1xf32>
    %184 = arith.mulf %142, %166 : vector<128x32xf32>
    %cst_76 = arith.constant dense<0.000000e+00> : vector<128xf32>
    %185 = vector.multi_reduction <add>, %184, %cst_76 [1] : vector<128x32xf32> to vector<128xf32>
    %186 = vector.shape_cast %185 : vector<128xf32> to vector<128x1xf32>
    %cst_77 = arith.constant 1.000000e+00 : f32
    %187 = vector.broadcast %cst_77 : f32 to vector<128x1xf32>
    %188 = arith.select %183, %187, %186 : vector<128x1xi1>, vector<128x1xf32>
    %cst_78 = arith.constant 3.100000e+01 : f32
    %189 = vector.broadcast %cst_78 : f32 to vector<128x1xf32>
    %190 = arith.cmpf oeq, %154, %189 : vector<128x1xf32>
    %191 = arith.mulf %142, %159 : vector<128x32xf32>
    %cst_79 = arith.constant dense<0.000000e+00> : vector<128xf32>
    %192 = vector.multi_reduction <add>, %191, %cst_79 [1] : vector<128x32xf32> to vector<128xf32>
    %193 = vector.shape_cast %192 : vector<128xf32> to vector<128x1xf32>
    %cst_80 = arith.constant 1.000000e+00 : f32
    %194 = vector.broadcast %cst_80 : f32 to vector<128x1xf32>
    %195 = arith.select %190, %194, %193 : vector<128x1xi1>, vector<128x1xf32>
    %196 = arith.subf %146, %169 : vector<128x1xf32>
    %197 = arith.divf %196, %172 : vector<128x1xf32>
    %cst_81 = arith.constant 1.000000e+00 : f32
    %198 = vector.broadcast %cst_81 : f32 to vector<128x1xf32>
    %199 = arith.subf %198, %197 : vector<128x1xf32>
    %200 = arith.mulf %197, %199 : vector<128x1xf32>
    %201 = arith.mulf %181, %197 : vector<128x1xf32>
    %202 = arith.mulf %201, %197 : vector<128x1xf32>
    %203 = arith.mulf %188, %200 : vector<128x1xf32>
    %204 = arith.addf %202, %203 : vector<128x1xf32>
    %205 = arith.mulf %178, %204 : vector<128x1xf32>
    %206 = arith.addf %188, %195 : vector<128x1xf32>
    %cst_82 = arith.constant 2.000000e+00 : f32
    %207 = vector.broadcast %cst_82 : f32 to vector<128x1xf32>
    %208 = arith.mulf %207, %181 : vector<128x1xf32>
    %209 = arith.subf %206, %208 : vector<128x1xf32>
    %210 = arith.mulf %209, %200 : vector<128x1xf32>
    %211 = arith.addf %181, %210 : vector<128x1xf32>
    %212 = arith.divf %205, %211 : vector<128x1xf32>
    %213 = arith.addf %175, %212 : vector<128x1xf32>
    %214 = arith.mulf %181, %181 : vector<128x1xf32>
    %215 = arith.mulf %195, %197 : vector<128x1xf32>
    %216 = arith.mulf %215, %197 : vector<128x1xf32>
    %cst_83 = arith.constant 2.000000e+00 : f32
    %217 = vector.broadcast %cst_83 : f32 to vector<128x1xf32>
    %218 = arith.mulf %217, %181 : vector<128x1xf32>
    %219 = arith.mulf %218, %200 : vector<128x1xf32>
    %220 = arith.addf %216, %219 : vector<128x1xf32>
    %cst_84 = arith.constant 1.000000e+00 : f32
    %221 = vector.broadcast %cst_84 : f32 to vector<128x1xf32>
    %222 = arith.subf %221, %197 : vector<128x1xf32>
    %223 = arith.mulf %188, %222 : vector<128x1xf32>
    %cst_85 = arith.constant 1.000000e+00 : f32
    %224 = vector.broadcast %cst_85 : f32 to vector<128x1xf32>
    %225 = arith.subf %224, %197 : vector<128x1xf32>
    %226 = arith.mulf %223, %225 : vector<128x1xf32>
    %227 = arith.addf %220, %226 : vector<128x1xf32>
    %228 = arith.mulf %214, %227 : vector<128x1xf32>
    %229 = arith.mulf %211, %211 : vector<128x1xf32>
    %230 = arith.divf %228, %229 : vector<128x1xf32>
    %231 = math.log %230 : vector<128x1xf32>
    %cst_86 = arith.constant -3.000000e+00 : f32
    %232 = vector.broadcast %cst_86 : f32 to vector<128x1xf32>
    %233 = arith.cmpf oge, %10, %232 : vector<128x1xf32>
    %cst_87 = arith.constant 3.000000e+00 : f32
    %234 = vector.broadcast %cst_87 : f32 to vector<128x1xf32>
    %235 = arith.cmpf ole, %10, %234 : vector<128x1xf32>
    %236 = arith.andi %233, %235 : vector<128x1xi1>
    %237 = arith.select %236, %213, %10 : vector<128x1xi1>, vector<128x1xf32>
    %cst_88 = arith.constant 0.000000e+00 : f32
    %238 = vector.broadcast %cst_88 : f32 to vector<128x1xf32>
    %239 = arith.select %236, %231, %238 : vector<128x1xi1>, vector<128x1xf32>
    %c0_89 = arith.constant 0 : index
    %c0_90 = arith.constant 0 : index
    %240 = vector.load %arg7[%c0_89, %c0_90] : memref<1x4xi32, #tpu.memory_space<vmem>>, vector<1x4xi32>
    %241 = vector.broadcast %arg1 : i32 to vector<1x4xi32>
    %242 = arith.cmpi eq, %240, %241 : vector<1x4xi32>
    %cst_91 = arith.constant 0.000000e+00 : f32
    %243 = vector.shape_cast %242 : vector<1x4xi1> to vector<1x4xi1>
    %244 = vector.broadcast %243 : vector<1x4xi1> to vector<128x4xi1>
    %245 = vector.shape_cast %237 : vector<128x1xf32> to vector<128x1xf32>
    %246 = vector.broadcast %245 : vector<128x1xf32> to vector<128x4xf32>
    %247 = vector.broadcast %cst_91 : f32 to vector<128x4xf32>
    %248 = arith.select %244, %246, %247 : vector<128x4xi1>, vector<128x4xf32>
    %c0_i32 = arith.constant 0 : i32
    %249 = arith.cmpi eq, %arg1, %c0_i32 : i32
    %250 = arith.extui %249 : i1 to i32
    %c0_i32_92 = arith.constant 0 : i32
    %251 = arith.cmpi ne, %250, %c0_i32_92 : i32
    scf.if %251 {
      %c0_95 = arith.constant 0 : index
      %c0_96 = arith.constant 0 : index
      %255 = vector.load %arg15[%c0_95, %c0_96] : memref<128x4xf32, #tpu.memory_space<vmem>>, vector<128x4xf32>
      tpu.vector_store %arg15[%c0_95, %c0_96], %248 {strides = array<i32>} : memref<128x4xf32, #tpu.memory_space<vmem>>, vector<128x4xf32>,
      %c0_97 = arith.constant 0 : index
      %c0_98 = arith.constant 0 : index
      %256 = vector.load %arg16[%c0_97, %c0_98] : memref<128x1xf32, #tpu.memory_space<vmem>>, vector<128x1xf32>
      tpu.vector_store %arg16[%c0_97, %c0_98], %239 {strides = array<i32>} : memref<128x1xf32, #tpu.memory_space<vmem>>, vector<128x1xf32>,
    } else {
    }
    %c0_i32_93 = arith.constant 0 : i32
    %252 = arith.cmpi sgt, %arg1, %c0_i32_93 : i32
    %253 = arith.extui %252 : i1 to i32
    %c0_i32_94 = arith.constant 0 : i32
    %254 = arith.cmpi ne, %253, %c0_i32_94 : i32
    scf.if %254 {
      %c0_95 = arith.constant 0 : index
      %c0_96 = arith.constant 0 : index
      %255 = vector.load %arg15[%c0_95, %c0_96] : memref<128x4xf32, #tpu.memory_space<vmem>>, vector<128x4xf32>
      %256 = arith.addf %255, %248 : vector<128x4xf32>
      %c0_97 = arith.constant 0 : index
      %c0_98 = arith.constant 0 : index
      %257 = vector.load %arg15[%c0_97, %c0_98] : memref<128x4xf32, #tpu.memory_space<vmem>>, vector<128x4xf32>
      tpu.vector_store %arg15[%c0_97, %c0_98], %256 {strides = array<i32>} : memref<128x4xf32, #tpu.memory_space<vmem>>, vector<128x4xf32>,
      %c0_99 = arith.constant 0 : index
      %c0_100 = arith.constant 0 : index
      %258 = vector.load %arg16[%c0_99, %c0_100] : memref<128x1xf32, #tpu.memory_space<vmem>>, vector<128x1xf32>
      %259 = arith.addf %258, %239 : vector<128x1xf32>
      %c0_101 = arith.constant 0 : index
      %c0_102 = arith.constant 0 : index
      %260 = vector.load %arg16[%c0_101, %c0_102] : memref<128x1xf32, #tpu.memory_space<vmem>>, vector<128x1xf32>
      tpu.vector_store %arg16[%c0_101, %c0_102], %259 {strides = array<i32>} : memref<128x1xf32, #tpu.memory_space<vmem>>, vector<128x1xf32>,
    } else {
    }
    return
  }
  func.func @transform_0(%arg0: i32, %arg1: i32) -> (i32, i32) {
    %c0_i32 = arith.constant 0 : i32
    %c0_i32_0 = arith.constant 0 : i32
    return %arg0, %c0_i32 : i32, i32
  }
  func.func @transform_1(%arg0: i32, %arg1: i32) -> (i32, i32, i32) {
    %c0_i32 = arith.constant 0 : i32
    %c0_i32_0 = arith.constant 0 : i32
    return %arg1, %arg0, %c0_i32 : i32, i32, i32
  }
  func.func @transform_2(%arg0: i32, %arg1: i32) -> (i32, i32, i32) {
    %c0_i32 = arith.constant 0 : i32
    %c0_i32_0 = arith.constant 0 : i32
    %c0_i32_1 = arith.constant 0 : i32
    return %arg1, %c0_i32, %c0_i32_0 : i32, i32, i32
  }
  func.func @transform_3(%arg0: i32, %arg1: i32) -> (i32, i32) {
    %c0_i32 = arith.constant 0 : i32
    %c0_i32_0 = arith.constant 0 : i32
    %c0_i32_1 = arith.constant 0 : i32
    return %c0_i32, %c0_i32_0 : i32, i32
  }
  func.func @transform_4(%arg0: i32, %arg1: i32) -> (i32, i32) {
    %c0_i32 = arith.constant 0 : i32
    %c0_i32_0 = arith.constant 0 : i32
    %c0_i32_1 = arith.constant 0 : i32
    return %c0_i32, %c0_i32_0 : i32, i32
  }
  func.func @transform_5(%arg0: i32, %arg1: i32) -> (i32, i32) {
    %c0_i32 = arith.constant 0 : i32
    %c0_i32_0 = arith.constant 0 : i32
    %c0_i32_1 = arith.constant 0 : i32
    return %c0_i32, %c0_i32_0 : i32, i32
  }
  func.func @transform_6(%arg0: i32, %arg1: i32) -> (i32, i32) {
    %c0_i32 = arith.constant 0 : i32
    %c0_i32_0 = arith.constant 0 : i32
    %c0_i32_1 = arith.constant 0 : i32
    return %c0_i32, %c0_i32_0 : i32, i32
  }
  func.func @transform_7(%arg0: i32, %arg1: i32) -> (i32, i32, i32) {
    %c0_i32 = arith.constant 0 : i32
    %c0_i32_0 = arith.constant 0 : i32
    %c0_i32_1 = arith.constant 0 : i32
    return %arg1, %c0_i32, %c0_i32_0 : i32, i32, i32
  }
  func.func @transform_8(%arg0: i32, %arg1: i32) -> (i32, i32, i32) {
    %c0_i32 = arith.constant 0 : i32
    %c0_i32_0 = arith.constant 0 : i32
    %c0_i32_1 = arith.constant 0 : i32
    return %arg1, %c0_i32, %c0_i32_0 : i32, i32, i32
  }
  func.func @transform_9(%arg0: i32, %arg1: i32) -> (i32, i32, i32) {
    %c0_i32 = arith.constant 0 : i32
    %c0_i32_0 = arith.constant 0 : i32
    %c0_i32_1 = arith.constant 0 : i32
    return %arg1, %c0_i32, %c0_i32_0 : i32, i32, i32
  }
  func.func @transform_10(%arg0: i32, %arg1: i32) -> (i32, i32, i32) {
    %c0_i32 = arith.constant 0 : i32
    %c0_i32_0 = arith.constant 0 : i32
    %c0_i32_1 = arith.constant 0 : i32
    return %arg1, %c0_i32, %c0_i32_0 : i32, i32, i32
  }
  func.func @transform_11(%arg0: i32, %arg1: i32) -> (i32, i32, i32) {
    %c0_i32 = arith.constant 0 : i32
    %c0_i32_0 = arith.constant 0 : i32
    %c0_i32_1 = arith.constant 0 : i32
    return %arg1, %c0_i32, %c0_i32_0 : i32, i32, i32
  }
  func.func @transform_12(%arg0: i32, %arg1: i32) -> (i32, i32, i32) {
    %c0_i32 = arith.constant 0 : i32
    %c0_i32_0 = arith.constant 0 : i32
    %c0_i32_1 = arith.constant 0 : i32
    return %arg1, %c0_i32, %c0_i32_0 : i32, i32, i32
  }
  func.func @transform_13(%arg0: i32, %arg1: i32) -> (i32, i32) {
    %c0_i32 = arith.constant 0 : i32
    %c0_i32_0 = arith.constant 0 : i32
    return %arg0, %c0_i32 : i32, i32
  }
  func.func @transform_14(%arg0: i32, %arg1: i32) -> (i32, i32) {
    %c0_i32 = arith.constant 0 : i32
    %c0_i32_0 = arith.constant 0 : i32
    return %arg0, %c0_i32 : i32, i32
  }
}

</mosaic_0001>

<llo_original>
// kernel: tpu_custom_call.1
$region0: #{tpu_custom_call.1}
  #allocation0 [shape = 'u32[]', space=smem, size = 0x4, offset = 0x4, fixed_abs, tag = 'smem constant byte address 0x4 - core index']
  #allocation1 [shape = 'u32[144,128]{1,0:T(1,128)}', space=vmem, size = 0x12000, scoped, tag = 'internal scratch']
  %s0 = inlined_call_operand.vmem [shape: f32[128,16], index: 0, kind: input, shape index: {}]
  %s1 = inlined_call_operand.vmem [shape: f32[4,128,1], index: 1, kind: input, shape index: {}]
  %s2 = inlined_call_operand.vmem [shape: f32[4,1,16], index: 2, kind: input, shape index: {}]
  %s3 = inlined_call_operand.vmem [shape: f32[1,16], index: 3, kind: input, shape index: {}]
  %s4 = inlined_call_operand.vmem [shape: f32[1,32], index: 4, kind: input, shape index: {}]
  %s5 = inlined_call_operand.vmem [shape: s32[1,4], index: 5, kind: input, shape index: {}]
  %s6 = inlined_call_operand.vmem [shape: f32[32,32], index: 6, kind: input, shape index: {}]
  %s7 = inlined_call_operand.vmem [shape: bf16[4,16,64], index: 7, kind: input, shape index: {}]
  %s8 = inlined_call_operand.vmem [shape: f32[4,1,64], index: 8, kind: input, shape index: {}]
  %s9 = inlined_call_operand.vmem [shape: bf16[4,64,64], index: 9, kind: input, shape index: {}]
  %s10 = inlined_call_operand.vmem [shape: f32[4,1,64], index: 10, kind: input, shape index: {}]
  %s11 = inlined_call_operand.vmem [shape: bf16[4,64,128], index: 11, kind: input, shape index: {}]
  %s12 = inlined_call_operand.vmem [shape: f32[4,1,128], index: 12, kind: input, shape index: {}]
  %s13 = inlined_call_operand.vmem [shape: f32[128,4], index: 13, kind: output, shape index: {0}]
  %s14 = inlined_call_operand.vmem [shape: f32[128,1], index: 14, kind: output, shape index: {1}]
  %15 = xla_tuple %s13, %s14
  %s16 = sld [smem:[#allocation0]]
  $region101: #{tpu_custom_call.1} parent=0
    _
  %s18 = ssub.s32 1, %s16
  %s19 = scalar_select 0, %s18, %s16
  loop: start=0, step=1, limit=6
  $region2: #{tpu_custom_call.1} parent=0 // loop_pre_header
    _
  $region3: #{tpu_custom_call.1} parent=0 // loop_header
    %s21 = sphi 0, %s25
    %p22 = scmp.ge.s32.totalorder %s21, 6
    %s28 = sphi 0, %s40
    %s29 = sphi 0, %s36
    %s30 = sphi 0, %s28
    %s31 = sphi 0, %s29
    %s32 = sphi 0, %s30
    %s33 = sphi 0, %s31
    %s43 = sphi 0, %s45
    %s46 = sphi 0, %s43
    %s47 = sphi 0, %s46
    %s63 = sphi 0, %s47
    %s71 = sphi 0, %s73
    %s74 = sphi 0, %s71
    %s75 = sphi 0, %s74
    %s91 = sphi 0, %s75
    %s97 = sphi 0, %s99
    %s100 = sphi 0, %s97
    %s101 = sphi 0, %s100
    %s117 = sphi 0, %s101
    %s121 = sphi 0, %s121
    %s123 = sphi 0, %s121
    %s124 = sphi 0, %s123
    %s138 = sphi 0, %s124
    %s142 = sphi 0, %s142
    %s144 = sphi 0, %s142
    %s145 = sphi 0, %s144
    %s159 = sphi 0, %s145
    %s163 = sphi 0, %s163
    %s165 = sphi 0, %s163
    %s166 = sphi 0, %s165
    %s180 = sphi 0, %s166
    %s184 = sphi 0, %s184
    %s186 = sphi 0, %s184
    %s187 = sphi 0, %s186
    %s201 = sphi 0, %s187
    %s207 = sphi 0, %s209
    %s210 = sphi 0, %s207
    %s211 = sphi 0, %s210
    %s227 = sphi 0, %s211
    %s233 = sphi 0, %s235
    %s236 = sphi 0, %s233
    %s237 = sphi 0, %s236
    %s253 = sphi 0, %s237
    %s259 = sphi 0, %s261
    %s262 = sphi 0, %s259
    %s263 = sphi 0, %s262
    %s279 = sphi 0, %s263
    %s285 = sphi 0, %s287
    %s288 = sphi 0, %s285
    %s289 = sphi 0, %s288
    %s305 = sphi 0, %s289
    %s311 = sphi 0, %s313
    %s314 = sphi 0, %s311
    %s315 = sphi 0, %s314
    %s331 = sphi 0, %s315
    %s337 = sphi 0, %s339
    %s340 = sphi 0, %s337
    %s341 = sphi 0, %s340
    %s357 = sphi 0, %s341
    %s363 = sphi 0, %s365
    %s366 = sphi 0, %s363
    %s367 = sphi 0, %s366
    %s383 = sphi 0, %s367
    %s389 = sphi 0, %s391
    %s392 = sphi 0, %s389
    %s393 = sphi 0, %s392
    %s409 = sphi 0, %s393
  $region4: #{tpu_custom_call.1} parent=0 // loop_header_branch
    %24 = sbr.rel (%p22) target = $region8
  $region5: #{tpu_custom_call.1} parent=0 // loop_body
    %s26 = ssub.s32 %s21, 1
    %s27 = ssub.s32 %s21, 2
    %s34 = sadd.s32 1, %s29
    %p35 = scmp.ge.s32.totalorder %s34, 4
    %s36 = scalar_select %p35, 0, %s34
    %s37 = sadd.s32 1, %s28
    %s38 = scalar_select %p35, %s37, %s28
    %p39 = scmp.ge.s32.totalorder %s38, 1
    %s40 = scalar_select %p39, 0, %s38
    %s41 = ssub.s32 %s28, %s40
    %p42 = scmp.eq.s32.totalorder %s41, 0
    %s44 = sadd.s32 %s43, 1
    %s45 = scalar_select %p42, %s43, %s44
    %p48 = pneg %p42
    %p49 = scmp.eq.s32.totalorder %s21, 3
    %p50 = por %p48, %p49
    %p51 = scmp.ne.s32.totalorder %s43, %s46
    %p52 = scmp.eq.s32.totalorder %s21, 0
    %p53 = por %p51, %p52
    %p54 = scmp.ne.s32.totalorder %s43, %s46
    %p55 = scmp.eq.s32.totalorder %s26, 3
    %p56 = por %p54, %p55
    %p57 = scmp.ne.s32.totalorder %s46, %s47
    %p58 = scmp.eq.s32.totalorder %s26, 0
    %p59 = por %p57, %p58
    %p60 = scmp.ne.s32.totalorder %s46, %s47
    %p61 = scmp.eq.s32.totalorder %s27, 3
    %p62 = por %p60, %p61
    %p64 = scmp.ne.s32.totalorder %s47, %s63
    %p65 = scmp.eq.s32.totalorder %s27, 0
    %p66 = por %p64, %p65
    %s67 = ssub.s32 %s29, %s36
    %s68 = ssub.s32 %s28, %s40
    %s69 = sor.u32 %s67, %s68
    %p70 = scmp.eq.s32.totalorder %s69, 0
    %s72 = sadd.s32 %s71, 1
    %s73 = scalar_select %p70, %s71, %s72
    %p76 = pneg %p70
    %p77 = scmp.eq.s32.totalorder %s21, 3
    %p78 = por %p76, %p77
    %p79 = scmp.ne.s32.totalorder %s71, %s74
    %p80 = scmp.eq.s32.totalorder %s21, 0
    %p81 = por %p79, %p80
    %p82 = scmp.ne.s32.totalorder %s71, %s74
    %p83 = scmp.eq.s32.totalorder %s26, 3
    %p84 = por %p82, %p83
    %p85 = scmp.ne.s32.totalorder %s74, %s75
    %p86 = scmp.eq.s32.totalorder %s26, 0
    %p87 = por %p85, %p86
    %p88 = scmp.ne.s32.totalorder %s74, %s75
    %p89 = scmp.eq.s32.totalorder %s27, 3
    %p90 = por %p88, %p89
    %p92 = scmp.ne.s32.totalorder %s75, %s91
    %p93 = scmp.eq.s32.totalorder %s27, 0
    %p94 = por %p92, %p93
    %s95 = ssub.s32 %s29, %s36
    %p96 = scmp.eq.s32.totalorder %s95, 0
    %s98 = sadd.s32 %s97, 1
    %s99 = scalar_select %p96, %s97, %s98
    %p102 = pneg %p96
    %p103 = scmp.eq.s32.totalorder %s21, 3
    %p104 = por %p102, %p103
    %p105 = scmp.ne.s32.totalorder %s97, %s100
    %p106 = scmp.eq.s32.totalorder %s21, 0
    %p107 = por %p105, %p106
    %p108 = scmp.ne.s32.totalorder %s97, %s100
    %p109 = scmp.eq.s32.totalorder %s26, 3
    %p110 = por %p108, %p109
    %p111 = scmp.ne.s32.totalorder %s100, %s101
    %p112 = scmp.eq.s32.totalorder %s26, 0
    %p113 = por %p111, %p112
    %p114 = scmp.ne.s32.totalorder %s100, %s101
    %p115 = scmp.eq.s32.totalorder %s27, 3
    %p116 = por %p114, %p115
    %p118 = scmp.ne.s32.totalorder %s101, %s117
    %p119 = scmp.eq.s32.totalorder %s27, 0
    %p120 = por %p118, %p119
    %s122 = sadd.s32 %s121, 1
    %p125 = scmp.eq.s32.totalorder %s21, 3
    %p126 = scmp.ne.s32.totalorder %s121, %s123
    %p127 = scmp.eq.s32.totalorder %s21, 0
    %p128 = por %p126, %p127
    %p129 = scmp.ne.s32.totalorder %s121, %s123
    %p130 = scmp.eq.s32.totalorder %s26, 3
    %p131 = por %p129, %p130
    %p132 = scmp.ne.s32.totalorder %s123, %s124
    %p133 = scmp.eq.s32.totalorder %s26, 0
    %p134 = por %p132, %p133
    %p135 = scmp.ne.s32.totalorder %s123, %s124
    %p136 = scmp.eq.s32.totalorder %s27, 3
    %p137 = por %p135, %p136
    %p139 = scmp.ne.s32.totalorder %s124, %s138
    %p140 = scmp.eq.s32.totalorder %s27, 0
    %p141 = por %p139, %p140
    %s143 = sadd.s32 %s142, 1
    %p146 = scmp.eq.s32.totalorder %s21, 3
    %p147 = scmp.ne.s32.totalorder %s142, %s144
    %p148 = scmp.eq.s32.totalorder %s21, 0
    %p149 = por %p147, %p148
    %p150 = scmp.ne.s32.totalorder %s142, %s144
    %p151 = scmp.eq.s32.totalorder %s26, 3
    %p152 = por %p150, %p151
    %p153 = scmp.ne.s32.totalorder %s144, %s145
    %p154 = scmp.eq.s32.totalorder %s26, 0
    %p155 = por %p153, %p154
    %p156 = scmp.ne.s32.totalorder %s144, %s145
    %p157 = scmp.eq.s32.totalorder %s27, 3
    %p158 = por %p156, %p157
    %p160 = scmp.ne.s32.totalorder %s145, %s159
    %p161 = scmp.eq.s32.totalorder %s27, 0
    %p162 = por %p160, %p161
    %s164 = sadd.s32 %s163, 1
    %p167 = scmp.eq.s32.totalorder %s21, 3
    %p168 = scmp.ne.s32.totalorder %s163, %s165
    %p169 = scmp.eq.s32.totalorder %s21, 0
    %p170 = por %p168, %p169
    %p171 = scmp.ne.s32.totalorder %s163, %s165
    %p172 = scmp.eq.s32.totalorder %s26, 3
    %p173 = por %p171, %p172
    %p174 = scmp.ne.s32.totalorder %s165, %s166
    %p175 = scmp.eq.s32.totalorder %s26, 0
    %p176 = por %p174, %p175
    %p177 = scmp.ne.s32.totalorder %s165, %s166
    %p178 = scmp.eq.s32.totalorder %s27, 3
    %p179 = por %p177, %p178
    %p181 = scmp.ne.s32.totalorder %s166, %s180
    %p182 = scmp.eq.s32.totalorder %s27, 0
    %p183 = por %p181, %p182
    %s185 = sadd.s32 %s184, 1
    %p188 = scmp.eq.s32.totalorder %s21, 3
    %p189 = scmp.ne.s32.totalorder %s184, %s186
    %p190 = scmp.eq.s32.totalorder %s21, 0
    %p191 = por %p189, %p190
    %p192 = scmp.ne.s32.totalorder %s184, %s186
    %p193 = scmp.eq.s32.totalorder %s26, 3
    %p194 = por %p192, %p193
    %p195 = scmp.ne.s32.totalorder %s186, %s187
    %p196 = scmp.eq.s32.totalorder %s26, 0
    %p197 = por %p195, %p196
    %p198 = scmp.ne.s32.totalorder %s186, %s187
    %p199 = scmp.eq.s32.totalorder %s27, 3
    %p200 = por %p198, %p199
    %p202 = scmp.ne.s32.totalorder %s187, %s201
    %p203 = scmp.eq.s32.totalorder %s27, 0
    %p204 = por %p202, %p203
    %s205 = ssub.s32 %s29, %s36
    %p206 = scmp.eq.s32.totalorder %s205, 0
    %s208 = sadd.s32 %s207, 1
    %s209 = scalar_select %p206, %s207, %s208
    %p212 = pneg %p206
    %p213 = scmp.eq.s32.totalorder %s21, 3
    %p214 = por %p212, %p213
    %p215 = scmp.ne.s32.totalorder %s207, %s210
    %p216 = scmp.eq.s32.totalorder %s21, 0
    %p217 = por %p215, %p216
    %p218 = scmp.ne.s32.totalorder %s207, %s210
    %p219 = scmp.eq.s32.totalorder %s26, 3
    %p220 = por %p218, %p219
    %p221 = scmp.ne.s32.totalorder %s210, %s211
    %p222 = scmp.eq.s32.totalorder %s26, 0
    %p223 = por %p221, %p222
    %p224 = scmp.ne.s32.totalorder %s210, %s211
    %p225 = scmp.eq.s32.totalorder %s27, 3
    %p226 = por %p224, %p225
    %p228 = scmp.ne.s32.totalorder %s211, %s227
    %p229 = scmp.eq.s32.totalorder %s27, 0
    %p230 = por %p228, %p229
    %s231 = ssub.s32 %s29, %s36
    %p232 = scmp.eq.s32.totalorder %s231, 0
    %s234 = sadd.s32 %s233, 1
    %s235 = scalar_select %p232, %s233, %s234
    %p238 = pneg %p232
    %p239 = scmp.eq.s32.totalorder %s21, 3
    %p240 = por %p238, %p239
    %p241 = scmp.ne.s32.totalorder %s233, %s236
    %p242 = scmp.eq.s32.totalorder %s21, 0
    %p243 = por %p241, %p242
    %p244 = scmp.ne.s32.totalorder %s233, %s236
    %p245 = scmp.eq.s32.totalorder %s26, 3
    %p246 = por %p244, %p245
    %p247 = scmp.ne.s32.totalorder %s236, %s237
    %p248 = scmp.eq.s32.totalorder %s26, 0
    %p249 = por %p247, %p248
    %p250 = scmp.ne.s32.totalorder %s236, %s237
    %p251 = scmp.eq.s32.totalorder %s27, 3
    %p252 = por %p250, %p251
    %p254 = scmp.ne.s32.totalorder %s237, %s253
    %p255 = scmp.eq.s32.totalorder %s27, 0
    %p256 = por %p254, %p255
    %s257 = ssub.s32 %s29, %s36
    %p258 = scmp.eq.s32.totalorder %s257, 0
    %s260 = sadd.s32 %s259, 1
    %s261 = scalar_select %p258, %s259, %s260
    %p264 = pneg %p258
    %p265 = scmp.eq.s32.totalorder %s21, 3
    %p266 = por %p264, %p265
    %p267 = scmp.ne.s32.totalorder %s259, %s262
    %p268 = scmp.eq.s32.totalorder %s21, 0
    %p269 = por %p267, %p268
    %p270 = scmp.ne.s32.totalorder %s259, %s262
    %p271 = scmp.eq.s32.totalorder %s26, 3
    %p272 = por %p270, %p271
    %p273 = scmp.ne.s32.totalorder %s262, %s263
    %p274 = scmp.eq.s32.totalorder %s26, 0
    %p275 = por %p273, %p274
    %p276 = scmp.ne.s32.totalorder %s262, %s263
    %p277 = scmp.eq.s32.totalorder %s27, 3
    %p278 = por %p276, %p277
    %p280 = scmp.ne.s32.totalorder %s263, %s279
    %p281 = scmp.eq.s32.totalorder %s27, 0
    %p282 = por %p280, %p281
    %s283 = ssub.s32 %s29, %s36
    %p284 = scmp.eq.s32.totalorder %s283, 0
    %s286 = sadd.s32 %s285, 1
    %s287 = scalar_select %p284, %s285, %s286
    %p290 = pneg %p284
    %p291 = scmp.eq.s32.totalorder %s21, 3
    %p292 = por %p290, %p291
    %p293 = scmp.ne.s32.totalorder %s285, %s288
    %p294 = scmp.eq.s32.totalorder %s21, 0
    %p295 = por %p293, %p294
    %p296 = scmp.ne.s32.totalorder %s285, %s288
    %p297 = scmp.eq.s32.totalorder %s26, 3
    %p298 = por %p296, %p297
    %p299 = scmp.ne.s32.totalorder %s288, %s289
    %p300 = scmp.eq.s32.totalorder %s26, 0
    %p301 = por %p299, %p300
    %p302 = scmp.ne.s32.totalorder %s288, %s289
    %p303 = scmp.eq.s32.totalorder %s27, 3
    %p304 = por %p302, %p303
    %p306 = scmp.ne.s32.totalorder %s289, %s305
    %p307 = scmp.eq.s32.totalorder %s27, 0
    %p308 = por %p306, %p307
    %s309 = ssub.s32 %s29, %s36
    %p310 = scmp.eq.s32.totalorder %s309, 0
    %s312 = sadd.s32 %s311, 1
    %s313 = scalar_select %p310, %s311, %s312
    %p316 = pneg %p310
    %p317 = scmp.eq.s32.totalorder %s21, 3
    %p318 = por %p316, %p317
    %p319 = scmp.ne.s32.totalorder %s311, %s314
    %p320 = scmp.eq.s32.totalorder %s21, 0
    %p321 = por %p319, %p320
    %p322 = scmp.ne.s32.totalorder %s311, %s314
    %p323 = scmp.eq.s32.totalorder %s26, 3
    %p324 = por %p322, %p323
    %p325 = scmp.ne.s32.totalorder %s314, %s315
    %p326 = scmp.eq.s32.totalorder %s26, 0
    %p327 = por %p325, %p326
    %p328 = scmp.ne.s32.totalorder %s314, %s315
    %p329 = scmp.eq.s32.totalorder %s27, 3
    %p330 = por %p328, %p329
    %p332 = scmp.ne.s32.totalorder %s315, %s331
    %p333 = scmp.eq.s32.totalorder %s27, 0
    %p334 = por %p332, %p333
    %s335 = ssub.s32 %s29, %s36
    %p336 = scmp.eq.s32.totalorder %s335, 0
    %s338 = sadd.s32 %s337, 1
    %s339 = scalar_select %p336, %s337, %s338
    %p342 = pneg %p336
    %p343 = scmp.eq.s32.totalorder %s21, 3
    %p344 = por %p342, %p343
    %p345 = scmp.ne.s32.totalorder %s337, %s340
    %p346 = scmp.eq.s32.totalorder %s21, 0
    %p347 = por %p345, %p346
    %p348 = scmp.ne.s32.totalorder %s337, %s340
    %p349 = scmp.eq.s32.totalorder %s26, 3
    %p350 = por %p348, %p349
    %p351 = scmp.ne.s32.totalorder %s340, %s341
    %p352 = scmp.eq.s32.totalorder %s26, 0
    %p353 = por %p351, %p352
    %p354 = scmp.ne.s32.totalorder %s340, %s341
    %p355 = scmp.eq.s32.totalorder %s27, 3
    %p356 = por %p354, %p355
    %p358 = scmp.ne.s32.totalorder %s341, %s357
    %p359 = scmp.eq.s32.totalorder %s27, 0
    %p360 = por %p358, %p359
    %s361 = ssub.s32 %s28, %s40
    %p362 = scmp.eq.s32.totalorder %s361, 0
    %s364 = sadd.s32 %s363, 1
    %s365 = scalar_select %p362, %s363, %s364
    %p368 = pneg %p362
    %p369 = scmp.eq.s32.totalorder %s21, 3
    %p370 = por %p368, %p369
    %p371 = scmp.ne.s32.totalorder %s363, %s366
    %p372 = scmp.eq.s32.totalorder %s21, 0
    %p373 = por %p371, %p372
    %p374 = scmp.ne.s32.totalorder %s363, %s366
    %p375 = scmp.eq.s32.totalorder %s26, 3
    %p376 = por %p374, %p375
    %p377 = scmp.ne.s32.totalorder %s366, %s367
    %p378 = scmp.eq.s32.totalorder %s26, 0
    %p379 = por %p377, %p378
    %p380 = scmp.ne.s32.totalorder %s366, %s367
    %p381 = scmp.eq.s32.totalorder %s27, 3
    %p382 = por %p380, %p381
    %p384 = scmp.ne.s32.totalorder %s367, %s383
    %p385 = scmp.eq.s32.totalorder %s27, 0
    %p386 = por %p384, %p385
    %s387 = ssub.s32 %s28, %s40
    %p388 = scmp.eq.s32.totalorder %s387, 0
    %s390 = sadd.s32 %s389, 1
    %s391 = scalar_select %p388, %s389, %s390
    %p394 = pneg %p388
    %p395 = scmp.eq.s32.totalorder %s21, 3
    %p396 = por %p394, %p395
    %p397 = scmp.ne.s32.totalorder %s389, %s392
    %p398 = scmp.eq.s32.totalorder %s21, 0
    %p399 = por %p397, %p398
    %p400 = scmp.ne.s32.totalorder %s389, %s392
    %p401 = scmp.eq.s32.totalorder %s26, 3
    %p402 = por %p400, %p401
    %p403 = scmp.ne.s32.totalorder %s392, %s393
    %p404 = scmp.eq.s32.totalorder %s26, 0
    %p405 = por %p403, %p404
    %p406 = scmp.ne.s32.totalorder %s392, %s393
    %p407 = scmp.eq.s32.totalorder %s27, 3
    %p408 = por %p406, %p407
    %p410 = scmp.ne.s32.totalorder %s393, %s409
    %p411 = scmp.eq.s32.totalorder %s27, 0
    %p412 = por %p410, %p411
    %p413 = scmp.le.s32.totalorder 1, %s21
    %p414 = scmp.lt.s32.totalorder %s21, 5
    %p415 = pnand %p413, %p414
    %p416 = pneg %p415
    // Predicated region
    $region9: #{tpu_custom_call.1} parent=5 // pred_check
      _
    $region10: #{tpu_custom_call.1} parent=5 // pred_check_branch
      %418 = sbr.rel (%p415) target = $region12
    $region11: #{tpu_custom_call.1} parent=5 // pred_region
      %s419 = ssub.s32 %s21, 1
      // Predicated region
      $region13: #{tpu_custom_call.1} parent=11 // pred_check
        %p420 = pneg %p59
      $region14: #{tpu_custom_call.1} parent=11 // pred_check_branch
        %422 = sbr.rel (%p420) target = $region16
      $region15: #{tpu_custom_call.1} parent=11 // pred_region
        %s423 = smul.u32 16, %s30
        %p424 = scmp.lt.s32.totalorder %s423, 15
        %s425 = scalar_select %p424, %s423, 15
        %s426 = smul.addr %s425, 8
        %s427 = scalar_lea.vmem %s0, %s426
        %s428 = smul.u32 16, %s30
      $region16: #{tpu_custom_call.1} parent=11 // pred_fallthru
        _
      // Predicated region
      $region17: #{tpu_custom_call.1} parent=11 // pred_check
        %p429 = pneg %p134
      $region18: #{tpu_custom_call.1} parent=11 // pred_check_branch
        %431 = sbr.rel (%p429) target = $region20
      $region19: #{tpu_custom_call.1} parent=11 // pred_region
        _
      $region20: #{tpu_custom_call.1} parent=11 // pred_fallthru
        _
      // Predicated region
      $region21: #{tpu_custom_call.1} parent=11 // pred_check
        %p432 = pneg %p155
      $region22: #{tpu_custom_call.1} parent=11 // pred_check_branch
        %434 = sbr.rel (%p432) target = $region24
      $region23: #{tpu_custom_call.1} parent=11 // pred_region
        _
      $region24: #{tpu_custom_call.1} parent=11 // pred_fallthru
        _
      // Predicated region
      $region25: #{tpu_custom_call.1} parent=11 // pred_check
        %p435 = pneg %p176
      $region26: #{tpu_custom_call.1} parent=11 // pred_check_branch
        %437 = sbr.rel (%p435) target = $region28
      $region27: #{tpu_custom_call.1} parent=11 // pred_region
        _
      $region28: #{tpu_custom_call.1} parent=11 // pred_fallthru
        _
      // Predicated region
      $region29: #{tpu_custom_call.1} parent=11 // pred_check
        %p438 = pneg %p197
      $region30: #{tpu_custom_call.1} parent=11 // pred_check_branch
        %440 = sbr.rel (%p438) target = $region32
      $region31: #{tpu_custom_call.1} parent=11 // pred_region
        _
      $region32: #{tpu_custom_call.1} parent=11 // pred_fallthru
        _
    $region12: #{tpu_custom_call.1} parent=5 // pred_fallthru
      _
    %p441 = scmp.lt.s32.totalorder %s21, 4
    // Predicated region
    $region33: #{tpu_custom_call.1} parent=5 // pred_check
      %p442 = pneg %p441
    $region34: #{tpu_custom_call.1} parent=5 // pred_check_branch
      %444 = sbr.rel (%p442) target = $region36
    $region35: #{tpu_custom_call.1} parent=5 // pred_region
      // Predicated region
      $region37: #{tpu_custom_call.1} parent=35 // pred_check
        %p445 = pneg %p81
      $region38: #{tpu_custom_call.1} parent=35 // pred_check_branch
        %447 = sbr.rel (%p445) target = $region40
      $region39: #{tpu_custom_call.1} parent=35 // pred_region
        %s448 = smul.u32 16, %s28
        %p449 = scmp.lt.s32.totalorder %s29, 3
        %s450 = scalar_select %p449, %s29, 3
        %p451 = scmp.lt.s32.totalorder %s448, 15
        %s452 = scalar_select %p451, %s448, 15
        %s453 = smul.addr %s450, 16
        %s454 = sadd.s32 %s452, %s453
        %s455 = smul.addr %s454, 8
        %s456 = scalar_lea.vmem %s1, %s455
        %s457 = smul.u32 16, %s28
      $region40: #{tpu_custom_call.1} parent=35 // pred_fallthru
        _
      // Predicated region
      $region41: #{tpu_custom_call.1} parent=35 // pred_check
        %p458 = pneg %p107
      $region42: #{tpu_custom_call.1} parent=35 // pred_check_branch
        %460 = sbr.rel (%p458) target = $region44
      $region43: #{tpu_custom_call.1} parent=35 // pred_region
        %p461 = scmp.lt.s32.totalorder %s29, 3
        %s462 = scalar_select %p461, %s29, 3
        %s463 = scalar_lea.vmem %s2, %s462
      $region44: #{tpu_custom_call.1} parent=35 // pred_fallthru
        _
      // Predicated region
      $region45: #{tpu_custom_call.1} parent=35 // pred_check
        %p464 = pneg %p217
      $region46: #{tpu_custom_call.1} parent=35 // pred_check_branch
        %466 = sbr.rel (%p464) target = $region48
      $region47: #{tpu_custom_call.1} parent=35 // pred_region
        %p467 = scmp.lt.s32.totalorder %s29, 3
        %s468 = scalar_select %p467, %s29, 3
        %s469 = smul.addr %s468, 2
        %s470 = smul.addr %s469, 4
        %s471 = scalar_lea.vmem %s7, %s470
      $region48: #{tpu_custom_call.1} parent=35 // pred_fallthru
        _
      // Predicated region
      $region49: #{tpu_custom_call.1} parent=35 // pred_check
        %p472 = pneg %p243
      $region50: #{tpu_custom_call.1} parent=35 // pred_check_branch
        %474 = sbr.rel (%p472) target = $region52
      $region51: #{tpu_custom_call.1} parent=35 // pred_region
        %p475 = scmp.lt.s32.totalorder %s29, 3
        %s476 = scalar_select %p475, %s29, 3
        %s477 = scalar_lea.vmem %s8, %s476
      $region52: #{tpu_custom_call.1} parent=35 // pred_fallthru
        _
      // Predicated region
      $region53: #{tpu_custom_call.1} parent=35 // pred_check
        %p478 = pneg %p269
      $region54: #{tpu_custom_call.1} parent=35 // pred_check_branch
        %480 = sbr.rel (%p478) target = $region56
      $region55: #{tpu_custom_call.1} parent=35 // pred_region
        %p481 = scmp.lt.s32.totalorder %s29, 3
        %s482 = scalar_select %p481, %s29, 3
        %s483 = smul.addr %s482, 8
        %s484 = smul.addr %s483, 4
        %s485 = scalar_lea.vmem %s9, %s484
      $region56: #{tpu_custom_call.1} parent=35 // pred_fallthru
        _
      // Predicated region
      $region57: #{tpu_custom_call.1} parent=35 // pred_check
        %p486 = pneg %p295
      $region58: #{tpu_custom_call.1} parent=35 // pred_check_branch
        %488 = sbr.rel (%p486) target = $region60
      $region59: #{tpu_custom_call.1} parent=35 // pred_region
        %p489 = scmp.lt.s32.totalorder %s29, 3
        %s490 = scalar_select %p489, %s29, 3
        %s491 = scalar_lea.vmem %s10, %s490
      $region60: #{tpu_custom_call.1} parent=35 // pred_fallthru
        _
      // Predicated region
      $region61: #{tpu_custom_call.1} parent=35 // pred_check
        %p492 = pneg %p321
      $region62: #{tpu_custom_call.1} parent=35 // pred_check_branch
        %494 = sbr.rel (%p492) target = $region64
      $region63: #{tpu_custom_call.1} parent=35 // pred_region
        %p495 = scmp.lt.s32.totalorder %s29, 3
        %s496 = scalar_select %p495, %s29, 3
        %s497 = smul.addr %s496, 8
        %s498 = smul.addr %s497, 4
        %s499 = scalar_lea.vmem %s11, %s498
      $region64: #{tpu_custom_call.1} parent=35 // pred_fallthru
        _
      // Predicated region
      $region65: #{tpu_custom_call.1} parent=35 // pred_check
        %p500 = pneg %p347
      $region66: #{tpu_custom_call.1} parent=35 // pred_check_branch
        %502 = sbr.rel (%p500) target = $region68
      $region67: #{tpu_custom_call.1} parent=35 // pred_region
        %p503 = scmp.lt.s32.totalorder %s29, 3
        %s504 = scalar_select %p503, %s29, 3
        %s505 = scalar_lea.vmem %s12, %s504
      $region68: #{tpu_custom_call.1} parent=35 // pred_fallthru
        _
    $region36: #{tpu_custom_call.1} parent=5 // pred_fallthru
      _
    %p506 = scmp.le.s32.totalorder 1, %s21
    %p507 = scmp.lt.s32.totalorder %s21, 5
    %p508 = pnand %p506, %p507
    %p509 = pneg %p508
    // Predicated region
    $region69: #{tpu_custom_call.1} parent=5 // pred_check
      _
    $region70: #{tpu_custom_call.1} parent=5 // pred_check_branch
      %511 = sbr.rel (%p508) target = $region72
    $region71: #{tpu_custom_call.1} parent=5 // pred_region
      %s512 = ssub.s32 %s21, 1
      %s513 = smul.u32 16, %s30
      %p514 = scmp.lt.s32.totalorder %s513, 15
      %s515 = scalar_select %p514, %s513, 15
      %s516 = smul.addr %s515, 8
      %s517 = scalar_lea.vmem %s0, %s516
      %p518 = pneg %p59
      %p519 = pneg %p56
      %s520 = smul.u32 16, %s30
      %p521 = scmp.lt.s32.totalorder %s31, 3
      %s522 = scalar_select %p521, %s31, 3
      %p523 = scmp.lt.s32.totalorder %s520, 15
      %s524 = scalar_select %p523, %s520, 15
      %s525 = smul.addr %s522, 16
      %s526 = sadd.s32 %s524, %s525
      %s527 = smul.addr %s526, 8
      %s528 = scalar_lea.vmem %s1, %s527
      %p529 = pneg %p87
      %p530 = pneg %p84
      %p531 = scmp.lt.s32.totalorder %s31, 3
      %s532 = scalar_select %p531, %s31, 3
      %s533 = scalar_lea.vmem %s2, %s532
      %p534 = pneg %p113
      %p535 = pneg %p110
      %p536 = pneg %p134
      %p537 = pneg %p131
      %p538 = pneg %p155
      %p539 = pneg %p152
      %p540 = pneg %p176
      %p541 = pneg %p173
      %p542 = pneg %p197
      %p543 = pneg %p194
      %p544 = scmp.lt.s32.totalorder %s31, 3
      %s545 = scalar_select %p544, %s31, 3
      %s546 = smul.addr %s545, 2
      %s547 = smul.addr %s546, 4
      %s548 = scalar_lea.vmem %s7, %s547
      %p549 = pneg %p223
      %p550 = pneg %p220
      %p551 = scmp.lt.s32.totalorder %s31, 3
      %s552 = scalar_select %p551, %s31, 3
      %s553 = scalar_lea.vmem %s8, %s552
      %p554 = pneg %p249
      %p555 = pneg %p246
      %p556 = scmp.lt.s32.totalorder %s31, 3
      %s557 = scalar_select %p556, %s31, 3
      %s558 = smul.addr %s557, 8
      %s559 = smul.addr %s558, 4
      %s560 = scalar_lea.vmem %s9, %s559
      %p561 = pneg %p275
      %p562 = pneg %p272
      %p563 = scmp.lt.s32.totalorder %s31, 3
      %s564 = scalar_select %p563, %s31, 3
      %s565 = scalar_lea.vmem %s10, %s564
      %p566 = pneg %p301
      %p567 = pneg %p298
      %p568 = scmp.lt.s32.totalorder %s31, 3
      %s569 = scalar_select %p568, %s31, 3
      %s570 = smul.addr %s569, 8
      %s571 = smul.addr %s570, 4
      %s572 = scalar_lea.vmem %s11, %s571
      %p573 = pneg %p327
      %p574 = pneg %p324
      %p575 = scmp.lt.s32.totalorder %s31, 3
      %s576 = scalar_select %p575, %s31, 3
      %s577 = scalar_lea.vmem %s12, %s576
      %p578 = pneg %p353
      %p579 = pneg %p350
      %p580 = pneg %p379
      %p581 = pneg %p376
      %s582 = smul.u32 16, %s30
      %p583 = scmp.lt.s32.totalorder %s582, 15
      %s584 = scalar_select %p583, %s582, 15
      %s585 = smul.addr %s584, 8
      %s586 = scalar_lea.vmem %s13, %s585
      %p587 = pneg %p405
      %p588 = pneg %p402
      %s589 = smul.u32 16, %s30
      %p590 = scmp.lt.s32.totalorder %s589, 15
      %s591 = scalar_select %p590, %s589, 15
      %s592 = smul.addr %s591, 8
      %s593 = scalar_lea.vmem %s14, %s592
      %s594 = smul.u32 16, %s30
      %p595 = scmp.lt.s32.totalorder %s594, 15
      %s596 = scalar_select %p595, %s594, 15
      %s597 = smul.addr %s596, 8
      %s598 = scalar_lea.vmem %s0, %s597
      %s599 = smul.u32 16, %s30
      %s600 = smul.u32 16, %s30
      %p601 = scmp.lt.s32.totalorder %s31, 3
      %s602 = scalar_select %p601, %s31, 3
      %p603 = scmp.lt.s32.totalorder %s600, 15
      %s604 = scalar_select %p603, %s600, 15
      %s605 = smul.addr %s602, 16
      %s606 = sadd.s32 %s604, %s605
      %s607 = smul.addr %s606, 8
      %s608 = scalar_lea.vmem %s1, %s607
      %s609 = smul.u32 16, %s30
      %p610 = scmp.lt.s32.totalorder %s31, 3
      %s611 = scalar_select %p610, %s31, 3
      %s612 = scalar_lea.vmem %s2, %s611
      %p613 = scmp.lt.s32.totalorder %s31, 3
      %s614 = scalar_select %p613, %s31, 3
      %s615 = smul.addr %s614, 2
      %s616 = smul.addr %s615, 4
      %s617 = scalar_lea.vmem %s7, %s616
      %p618 = scmp.lt.s32.totalorder %s31, 3
      %s619 = scalar_select %p618, %s31, 3
      %s620 = scalar_lea.vmem %s8, %s619
      %p621 = scmp.lt.s32.totalorder %s31, 3
      %s622 = scalar_select %p621, %s31, 3
      %s623 = smul.addr %s622, 8
      %s624 = smul.addr %s623, 4
      %s625 = scalar_lea.vmem %s9, %s624
      %p626 = scmp.lt.s32.totalorder %s31, 3
      %s627 = scalar_select %p626, %s31, 3
      %s628 = scalar_lea.vmem %s10, %s627
      %p629 = scmp.lt.s32.totalorder %s31, 3
      %s630 = scalar_select %p629, %s31, 3
      %s631 = smul.addr %s630, 8
      %s632 = smul.addr %s631, 4
      %s633 = scalar_lea.vmem %s11, %s632
      %p634 = scmp.lt.s32.totalorder %s31, 3
      %s635 = scalar_select %p634, %s31, 3
      %s636 = scalar_lea.vmem %s12, %s635
      %s637 = smul.u32 16, %s30
      %p638 = scmp.lt.s32.totalorder %s637, 15
      %s639 = scalar_select %p638, %s637, 15
      %s640 = smul.addr %s639, 8
      %s641 = scalar_lea.vmem %s13, %s640
      %s642 = smul.u32 16, %s30
      %s643 = smul.u32 16, %s30
      %p644 = scmp.lt.s32.totalorder %s643, 15
      %s645 = scalar_select %p644, %s643, 15
      %s646 = smul.addr %s645, 8
      %s647 = scalar_lea.vmem %s14, %s646
      %s648 = smul.u32 16, %s30
      %v650 = vld [vmem:[%s598] sm:$0xff]
      %v651 = vld [vmem:[%s598 + $0x8] sm:$0xff]
      %v652 = vld [vmem:[%s598 + $0x10] sm:$0xff]
      %v653 = vld [vmem:[%s598 + $0x18] sm:$0xff]
      %v654 = vld [vmem:[%s598 + $0x20] sm:$0xff]
      %v655 = vld [vmem:[%s598 + $0x28] sm:$0xff]
      %v656 = vld [vmem:[%s598 + $0x30] sm:$0xff]
      %v657 = vld [vmem:[%s598 + $0x38] sm:$0xff]
      %v658 = vld [vmem:[%s598 + $0x40] sm:$0xff]
      %v659 = vld [vmem:[%s598 + $0x48] sm:$0xff]
      %v660 = vld [vmem:[%s598 + $0x50] sm:$0xff]
      %v661 = vld [vmem:[%s598 + $0x58] sm:$0xff]
      %v662 = vld [vmem:[%s598 + $0x60] sm:$0xff]
      %v663 = vld [vmem:[%s598 + $0x68] sm:$0xff]
      %v664 = vld [vmem:[%s598 + $0x70] sm:$0xff]
      %v665 = vld [vmem:[%s598 + $0x78] sm:$0xff]
      %v666 = vld [vmem:[%s612] sm:$0x1]
      %v668 = vlaneseq
      %v669 = vshrl.u32 %v668, 7
      %v670 = vsub.s32 0, %v669
      %v671 = vrot.slane %v666, %v670
      %v673 = vmul.f32 %v650, %v671
      %v674 = vmul.f32 %v651, %v671
      %v675 = vmul.f32 %v652, %v671
      %v676 = vmul.f32 %v653, %v671
      %v677 = vmul.f32 %v654, %v671
      %v678 = vmul.f32 %v655, %v671
      %v679 = vmul.f32 %v656, %v671
      %v680 = vmul.f32 %v657, %v671
      %v681 = vmul.f32 %v658, %v671
      %v682 = vmul.f32 %v659, %v671
      %v683 = vmul.f32 %v660, %v671
      %v684 = vmul.f32 %v661, %v671
      %v685 = vmul.f32 %v662, %v671
      %v686 = vmul.f32 %v663, %v671
      %v687 = vmul.f32 %v664, %v671
      %v688 = vmul.f32 %v665, %v671
      %v689 = vld [vmem:[%s3] sm:$0x1]
      %v691 = vlaneseq
      %v692 = vshrl.u32 %v691, 7
      %v693 = vsub.s32 0, %v692
      %v694 = vrot.slane %v689, %v693
      %v696 = vadd.f32 %v673, %v694
      %v697 = vadd.f32 %v674, %v694
      %v698 = vadd.f32 %v675, %v694
      %v699 = vadd.f32 %v676, %v694
      %v700 = vadd.f32 %v677, %v694
      %v701 = vadd.f32 %v678, %v694
      %v702 = vadd.f32 %v679, %v694
      %v703 = vadd.f32 %v680, %v694
      %v704 = vadd.f32 %v681, %v694
      %v705 = vadd.f32 %v682, %v694
      %v706 = vadd.f32 %v683, %v694
      %v707 = vadd.f32 %v684, %v694
      %v708 = vadd.f32 %v685, %v694
      %v709 = vadd.f32 %v686, %v694
      %v710 = vadd.f32 %v687, %v694
      %v711 = vadd.f32 %v688, %v694
      %v712 = vand.u32 2147483647, %v696
      %vm713 = vcmp.le.f32.partialorder %v712, 0.7853982
      %vm714 = vcmp.lt.s32.totalorder %v696, 0
      %v715 = vand.u32 %v696, 2139095040
      %v716 = vshrl.u32 %v715, 23
      %v717 = vsub.s32 %v716, 127
      %v718 = vand.u32 2147483647, %v696
      %v719 = vand.u32 %v718, 8388607
      %v720 = vor.u32 %v719, 8388608
      %v721 = vsub.s32 0, %v720
      %v722 = vadd.s32 %v717, 1
      %vm723 = vcmp.gt.s32.totalorder %v722, 0
      %v724 = vsel %vm723, %v722, 0
      %v725 = vshrl.u32 %v724, 5
      %v726 = vand.u32 %v724, 31
      %v727 = vsub.s32 32, %v726
      %v728 = vshrl.u32 683565275, %v727
      %v729 = vshll.u32 683565275, %v726
      %v730 = vshrl.u32 2475754826, %v727
      %v731 = vor.u32 %v729, %v730
      %v732 = vshll.u32 2475754826, %v726
      %v733 = vshrl.u32 2131351028, %v727
      %v734 = vor.u32 %v732, %v733
      %v735 = vshll.u32 2131351028, %v726
      %v736 = vshrl.u32 2102212464, %v727
      %v737 = vor.u32 %v735, %v736
      %v738 = vshll.u32 2102212464, %v726
      %v739 = vshrl.u32 920167782, %v727
      %v740 = vor.u32 %v738, %v739
      %v741 = vshll.u32 920167782, %v726
      %v742 = vshrl.u32 1326507024, %v727
      %v743 = vor.u32 %v741, %v742
      %vm744 = vcmp.lt.s32.totalorder %v725, 1
      %vm745 = vcmp.lt.s32.totalorder %v725, 2
      %vm746 = vcmp.lt.s32.totalorder %v725, 3
      %vm747 = vcmp.lt.s32.totalorder %v725, 4
      %v748 = vsel %vm744, %v728, %v731
      %v749 = vsel %vm747, %v737, 2102212464
      %v750 = vsel %vm746, %v734, %v749
      %v751 = vsel %vm745, %v748, %v750
      %v752 = vsel %vm744, %v731, %v734
      %v753 = vsel %vm747, %v740, 920167782
      %v754 = vsel %vm746, %v737, %v753
      %v755 = vsel %vm745, %v752, %v754
      %v756 = vsel %vm744, %v734, %v737
      %v757 = vsel %vm747, %v743, 1326507024
      %v758 = vsel %vm746, %v740, %v757
      %v759 = vsel %vm745, %v756, %v758
      %v760 = vshll.u32 %v720, 8
      %v761 = vmul.u32.u64.compose %v760, %v759
      %v762 = vextract.low.u32 %v761
      %v763 = vextract.high.u32 %v761
      %v764 = vmul.u32.u64.compose %v760, %v755
      %v765 = vextract.low.u32 %v764
      %v766 = vextract.high.u32 %v764
      %v767 = vmul.u32 %v760, %v751
      %v768 = vadd.s32 %v763, %v765
      %vm769 = vc.u32 %v763, %v765
      %v770 = vadd.s32 %v766, 1
      %v771 = vsel %vm769, %v770, %v766
      %v772 = vadd.s32 %v767, %v771
      %v773 = vadd.s32 %v772, 536870912
      %v774 = vshrl.u32 %v773, 30
      %v775 = vshll.u32 %v774, 30
      %v776 = vsub.s32 %v772, %v775
      %vm777 = vcmp.lt.s32.totalorder %v776, 0
      %v778 = vsub.s32 0, %v776
      %v779 = vsel %vm777, %v778, %v776
      %v780 = vclz %v779
      %v781 = vsub.s32 %v780, 2
      %vm782 = vcmp.gt.s32.totalorder 0, %v781
      %v783 = vsel %vm782, 0, %v781
      %v784 = vsub.s32 32, %v783
      %v785 = vshll.u32 %v776, %v783
      %v786 = vshrl.u32 %v768, %v784
      %v787 = vor.u32 %v785, %v786
      %v788 = vsub.s32 4294967266, %v783
      %v789 = vadd.s32 %v788, 127
      %v790 = vshll.u32 %v789, 23
      %v791 = vor.u32 4788187, %v790
      %v792 = vand.u32 2147483647, %v791
      %v794 = vcvt.s32.f32 %v787
      %v795 = vmul.f32 %v794, %v792
      %v796 = vxor.u32 %v795, 2147483648
      %v797 = vsel %vm714, %v796, %v795
      %v798 = vsub.s32 4, %v774
      %v799 = vsel %vm714, %v798, %v774
      %v800 = vsel %vm713, %v696, %v797
      %v801 = vsel %vm713, 0, %v799
      %v802 = vcosq.f32.pop %v800
      %v803 = vsinq.f32.pop %v800
      %vm804 = vweird.f32 %v696
      %v805 = vand.u32 %v801, 3
      %vm806 = vcmp.lt.s32.totalorder %v805, 2
      %vm807 = vcmp.eq.s32.totalorder %v805, 0
      %v808 = vxor.u32 %v803, 2147483648
      %v809 = vsel %vm807, %v802, %v808
      %vm810 = vcmp.eq.s32.totalorder %v805, 2
      %v811 = vxor.u32 %v802, 2147483648
      %v812 = vsel %vm810, %v811, %v803
      %v813 = vsel %vm806, %v809, %v812
      %v814 = vsel %vm804, nan, %v813
      %v815 = vand.u32 2147483647, %v697
      %vm816 = vcmp.le.f32.partialorder %v815, 0.7853982
      %vm817 = vcmp.lt.s32.totalorder %v697, 0
      %v818 = vand.u32 %v697, 2139095040
      %v819 = vshrl.u32 %v818, 23
      %v820 = vsub.s32 %v819, 127
      %v821 = vand.u32 2147483647, %v697
      %v822 = vand.u32 %v821, 8388607
      %v823 = vor.u32 %v822, 8388608
      %v824 = vsub.s32 0, %v823
      %v825 = vadd.s32 %v820, 1
      %vm826 = vcmp.gt.s32.totalorder %v825, 0
      %v827 = vsel %vm826, %v825, 0
      %v828 = vshrl.u32 %v827, 5
      %v829 = vand.u32 %v827, 31
      %v830 = vsub.s32 32, %v829
      %v831 = vshrl.u32 683565275, %v830
      %v832 = vshll.u32 683565275, %v829
      %v833 = vshrl.u32 2475754826, %v830
      %v834 = vor.u32 %v832, %v833
      %v835 = vshll.u32 2475754826, %v829
      %v836 = vshrl.u32 2131351028, %v830
      %v837 = vor.u32 %v835, %v836
      %v838 = vshll.u32 2131351028, %v829
      %v839 = vshrl.u32 2102212464, %v830
      %v840 = vor.u32 %v838, %v839
      %v841 = vshll.u32 2102212464, %v829
      %v842 = vshrl.u32 920167782, %v830
      %v843 = vor.u32 %v841, %v842
      %v844 = vshll.u32 920167782, %v829
      %v845 = vshrl.u32 1326507024, %v830
      %v846 = vor.u32 %v844, %v845
      %vm847 = vcmp.lt.s32.totalorder %v828, 1
      %vm848 = vcmp.lt.s32.totalorder %v828, 2
      %vm849 = vcmp.lt.s32.totalorder %v828, 3
      %vm850 = vcmp.lt.s32.totalorder %v828, 4
      %v851 = vsel %vm847, %v831, %v834
      %v852 = vsel %vm850, %v840, 2102212464
      %v853 = vsel %vm849, %v837, %v852
      %v854 = vsel %vm848, %v851, %v853
      %v855 = vsel %vm847, %v834, %v837
      %v856 = vsel %vm850, %v843, 920167782
      %v857 = vsel %vm849, %v840, %v856
      %v858 = vsel %vm848, %v855, %v857
      %v859 = vsel %vm847, %v837, %v840
      %v860 = vsel %vm850, %v846, 1326507024
      %v861 = vsel %vm849, %v843, %v860
      %v862 = vsel %vm848, %v859, %v861
      %v863 = vshll.u32 %v823, 8
      %v864 = vmul.u32.u64.compose %v863, %v862
      %v865 = vextract.low.u32 %v864
      %v866 = vextract.high.u32 %v864
      %v867 = vmul.u32.u64.compose %v863, %v858
      %v868 = vextract.low.u32 %v867
      %v869 = vextract.high.u32 %v867
      %v870 = vmul.u32 %v863, %v854
      %v871 = vadd.s32 %v866, %v868
      %vm872 = vc.u32 %v866, %v868
      %v873 = vadd.s32 %v869, 1
      %v874 = vsel %vm872, %v873, %v869
      %v875 = vadd.s32 %v870, %v874
      %v876 = vadd.s32 %v875, 536870912
      %v877 = vshrl.u32 %v876, 30
      %v878 = vshll.u32 %v877, 30
      %v879 = vsub.s32 %v875, %v878
      %vm880 = vcmp.lt.s32.totalorder %v879, 0
      %v881 = vsub.s32 0, %v879
      %v882 = vsel %vm880, %v881, %v879
      %v883 = vclz %v882
      %v884 = vsub.s32 %v883, 2
      %vm885 = vcmp.gt.s32.totalorder 0, %v884
      %v886 = vsel %vm885, 0, %v884
      %v887 = vsub.s32 32, %v886
      %v888 = vshll.u32 %v879, %v886
      %v889 = vshrl.u32 %v871, %v887
      %v890 = vor.u32 %v888, %v889
      %v891 = vsub.s32 4294967266, %v886
      %v892 = vadd.s32 %v891, 127
      %v893 = vshll.u32 %v892, 23
      %v894 = vor.u32 4788187, %v893
      %v895 = vand.u32 2147483647, %v894
      %v897 = vcvt.s32.f32 %v890
      %v898 = vmul.f32 %v897, %v895
      %v899 = vxor.u32 %v898, 2147483648
      %v900 = vsel %vm817, %v899, %v898
      %v901 = vsub.s32 4, %v877
      %v902 = vsel %vm817, %v901, %v877
      %v903 = vsel %vm816, %v697, %v900
      %v904 = vsel %vm816, 0, %v902
      %v905 = vcosq.f32.pop %v903
      %v906 = vsinq.f32.pop %v903
      %vm907 = vweird.f32 %v697
      %v908 = vand.u32 %v904, 3
      %vm909 = vcmp.lt.s32.totalorder %v908, 2
      %vm910 = vcmp.eq.s32.totalorder %v908, 0
      %v911 = vxor.u32 %v906, 2147483648
      %v912 = vsel %vm910, %v905, %v911
      %vm913 = vcmp.eq.s32.totalorder %v908, 2
      %v914 = vxor.u32 %v905, 2147483648
      %v915 = vsel %vm913, %v914, %v906
      %v916 = vsel %vm909, %v912, %v915
      %v917 = vsel %vm907, nan, %v916
      %v918 = vand.u32 2147483647, %v698
      %vm919 = vcmp.le.f32.partialorder %v918, 0.7853982
      %vm920 = vcmp.lt.s32.totalorder %v698, 0
      %v921 = vand.u32 %v698, 2139095040
      %v922 = vshrl.u32 %v921, 23
      %v923 = vsub.s32 %v922, 127
      %v924 = vand.u32 2147483647, %v698
      %v925 = vand.u32 %v924, 8388607
      %v926 = vor.u32 %v925, 8388608
      %v927 = vsub.s32 0, %v926
      %v928 = vadd.s32 %v923, 1
      %vm929 = vcmp.gt.s32.totalorder %v928, 0
      %v930 = vsel %vm929, %v928, 0
      %v931 = vshrl.u32 %v930, 5
      %v932 = vand.u32 %v930, 31
      %v933 = vsub.s32 32, %v932
      %v934 = vshrl.u32 683565275, %v933
      %v935 = vshll.u32 683565275, %v932
      %v936 = vshrl.u32 2475754826, %v933
      %v937 = vor.u32 %v935, %v936
      %v938 = vshll.u32 2475754826, %v932
      %v939 = vshrl.u32 2131351028, %v933
      %v940 = vor.u32 %v938, %v939
      %v941 = vshll.u32 2131351028, %v932
      %v942 = vshrl.u32 2102212464, %v933
      %v943 = vor.u32 %v941, %v942
      %v944 = vshll.u32 2102212464, %v932
      %v945 = vshrl.u32 920167782, %v933
      %v946 = vor.u32 %v944, %v945
      %v947 = vshll.u32 920167782, %v932
      %v948 = vshrl.u32 1326507024, %v933
      %v949 = vor.u32 %v947, %v948
      %vm950 = vcmp.lt.s32.totalorder %v931, 1
      %vm951 = vcmp.lt.s32.totalorder %v931, 2
      %vm952 = vcmp.lt.s32.totalorder %v931, 3
      %vm953 = vcmp.lt.s32.totalorder %v931, 4
      %v954 = vsel %vm950, %v934, %v937
      %v955 = vsel %vm953, %v943, 2102212464
      %v956 = vsel %vm952, %v940, %v955
      %v957 = vsel %vm951, %v954, %v956
      %v958 = vsel %vm950, %v937, %v940
      %v959 = vsel %vm953, %v946, 920167782
      %v960 = vsel %vm952, %v943, %v959
      %v961 = vsel %vm951, %v958, %v960
      %v962 = vsel %vm950, %v940, %v943
      %v963 = vsel %vm953, %v949, 1326507024
      %v964 = vsel %vm952, %v946, %v963
      %v965 = vsel %vm951, %v962, %v964
      %v966 = vshll.u32 %v926, 8
      %v967 = vmul.u32.u64.compose %v966, %v965
      %v968 = vextract.low.u32 %v967
      %v969 = vextract.high.u32 %v967
      %v970 = vmul.u32.u64.compose %v966, %v961
      %v971 = vextract.low.u32 %v970
      %v972 = vextract.high.u32 %v970
      %v973 = vmul.u32 %v966, %v957
      %v974 = vadd.s32 %v969, %v971
      %vm975 = vc.u32 %v969, %v971
      %v976 = vadd.s32 %v972, 1
      %v977 = vsel %vm975, %v976, %v972
      %v978 = vadd.s32 %v973, %v977
      %v979 = vadd.s32 %v978, 536870912
      %v980 = vshrl.u32 %v979, 30
      %v981 = vshll.u32 %v980, 30
      %v982 = vsub.s32 %v978, %v981
      %vm983 = vcmp.lt.s32.totalorder %v982, 0
      %v984 = vsub.s32 0, %v982
      %v985 = vsel %vm983, %v984, %v982
      %v986 = vclz %v985
      %v987 = vsub.s32 %v986, 2
      %vm988 = vcmp.gt.s32.totalorder 0, %v987
      %v989 = vsel %vm988, 0, %v987
      %v990 = vsub.s32 32, %v989
      %v991 = vshll.u32 %v982, %v989
      %v992 = vshrl.u32 %v974, %v990
      %v993 = vor.u32 %v991, %v992
      %v994 = vsub.s32 4294967266, %v989
      %v995 = vadd.s32 %v994, 127
      %v996 = vshll.u32 %v995, 23
      %v997 = vor.u32 4788187, %v996
      %v998 = vand.u32 2147483647, %v997
      %v1000 = vcvt.s32.f32 %v993
      %v1001 = vmul.f32 %v1000, %v998
      %v1002 = vxor.u32 %v1001, 2147483648
      %v1003 = vsel %vm920, %v1002, %v1001
      %v1004 = vsub.s32 4, %v980
      %v1005 = vsel %vm920, %v1004, %v980
      %v1006 = vsel %vm919, %v698, %v1003
      %v1007 = vsel %vm919, 0, %v1005
      %v1008 = vcosq.f32.pop %v1006
      %v1009 = vsinq.f32.pop %v1006
      %vm1010 = vweird.f32 %v698
      %v1011 = vand.u32 %v1007, 3
      %vm1012 = vcmp.lt.s32.totalorder %v1011, 2
      %vm1013 = vcmp.eq.s32.totalorder %v1011, 0
      %v1014 = vxor.u32 %v1009, 2147483648
      %v1015 = vsel %vm1013, %v1008, %v1014
      %vm1016 = vcmp.eq.s32.totalorder %v1011, 2
      %v1017 = vxor.u32 %v1008, 2147483648
      %v1018 = vsel %vm1016, %v1017, %v1009
      %v1019 = vsel %vm1012, %v1015, %v1018
      %v1020 = vsel %vm1010, nan, %v1019
      %v1021 = vand.u32 2147483647, %v699
      %vm1022 = vcmp.le.f32.partialorder %v1021, 0.7853982
      %vm1023 = vcmp.lt.s32.totalorder %v699, 0
      %v1024 = vand.u32 %v699, 2139095040
      %v1025 = vshrl.u32 %v1024, 23
      %v1026 = vsub.s32 %v1025, 127
      %v1027 = vand.u32 2147483647, %v699
      %v1028 = vand.u32 %v1027, 8388607
      %v1029 = vor.u32 %v1028, 8388608
      %v1030 = vsub.s32 0, %v1029
      %v1031 = vadd.s32 %v1026, 1
      %vm1032 = vcmp.gt.s32.totalorder %v1031, 0
      %v1033 = vsel %vm1032, %v1031, 0
      %v1034 = vshrl.u32 %v1033, 5
      %v1035 = vand.u32 %v1033, 31
      %v1036 = vsub.s32 32, %v1035
      %v1037 = vshrl.u32 683565275, %v1036
      %v1038 = vshll.u32 683565275, %v1035
      %v1039 = vshrl.u32 2475754826, %v1036
      %v1040 = vor.u32 %v1038, %v1039
      %v1041 = vshll.u32 2475754826, %v1035
      %v1042 = vshrl.u32 2131351028, %v1036
      %v1043 = vor.u32 %v1041, %v1042
      %v1044 = vshll.u32 2131351028, %v1035
      %v1045 = vshrl.u32 2102212464, %v1036
      %v1046 = vor.u32 %v1044, %v1045
      %v1047 = vshll.u32 2102212464, %v1035
      %v1048 = vshrl.u32 920167782, %v1036
      %v1049 = vor.u32 %v1047, %v1048
      %v1050 = vshll.u32 920167782, %v1035
      %v1051 = vshrl.u32 1326507024, %v1036
      %v1052 = vor.u32 %v1050, %v1051
      %vm1053 = vcmp.lt.s32.totalorder %v1034, 1
      %vm1054 = vcmp.lt.s32.totalorder %v1034, 2
      %vm1055 = vcmp.lt.s32.totalorder %v1034, 3
      %vm1056 = vcmp.lt.s32.totalorder %v1034, 4
      %v1057 = vsel %vm1053, %v1037, %v1040
      %v1058 = vsel %vm1056, %v1046, 2102212464
      %v1059 = vsel %vm1055, %v1043, %v1058
      %v1060 = vsel %vm1054, %v1057, %v1059
      %v1061 = vsel %vm1053, %v1040, %v1043
      %v1062 = vsel %vm1056, %v1049, 920167782
      %v1063 = vsel %vm1055, %v1046, %v1062
      %v1064 = vsel %vm1054, %v1061, %v1063
      %v1065 = vsel %vm1053, %v1043, %v1046
      %v1066 = vsel %vm1056, %v1052, 1326507024
      %v1067 = vsel %vm1055, %v1049, %v1066
      %v1068 = vsel %vm1054, %v1065, %v1067
      %v1069 = vshll.u32 %v1029, 8
      %v1070 = vmul.u32.u64.compose %v1069, %v1068
      %v1071 = vextract.low.u32 %v1070
      %v1072 = vextract.high.u32 %v1070
      %v1073 = vmul.u32.u64.compose %v1069, %v1064
      %v1074 = vextract.low.u32 %v1073
      %v1075 = vextract.high.u32 %v1073
      %v1076 = vmul.u32 %v1069, %v1060
      %v1077 = vadd.s32 %v1072, %v1074
      %vm1078 = vc.u32 %v1072, %v1074
      %v1079 = vadd.s32 %v1075, 1
      %v1080 = vsel %vm1078, %v1079, %v1075
      %v1081 = vadd.s32 %v1076, %v1080
      %v1082 = vadd.s32 %v1081, 536870912
      %v1083 = vshrl.u32 %v1082, 30
      %v1084 = vshll.u32 %v1083, 30
      %v1085 = vsub.s32 %v1081, %v1084
      %vm1086 = vcmp.lt.s32.totalorder %v1085, 0
      %v1087 = vsub.s32 0, %v1085
      %v1088 = vsel %vm1086, %v1087, %v1085
      %v1089 = vclz %v1088
      %v1090 = vsub.s32 %v1089, 2
      %vm1091 = vcmp.gt.s32.totalorder 0, %v1090
      %v1092 = vsel %vm1091, 0, %v1090
      %v1093 = vsub.s32 32, %v1092
      %v1094 = vshll.u32 %v1085, %v1092
      %v1095 = vshrl.u32 %v1077, %v1093
      %v1096 = vor.u32 %v1094, %v1095
      %v1097 = vsub.s32 4294967266, %v1092
      %v1098 = vadd.s32 %v1097, 127
      %v1099 = vshll.u32 %v1098, 23
      %v1100 = vor.u32 4788187, %v1099
      %v1101 = vand.u32 2147483647, %v1100
      %v1103 = vcvt.s32.f32 %v1096
      %v1104 = vmul.f32 %v1103, %v1101
      %v1105 = vxor.u32 %v1104, 2147483648
      %v1106 = vsel %vm1023, %v1105, %v1104
      %v1107 = vsub.s32 4, %v1083
      %v1108 = vsel %vm1023, %v1107, %v1083
      %v1109 = vsel %vm1022, %v699, %v1106
      %v1110 = vsel %vm1022, 0, %v1108
      %v1111 = vcosq.f32.pop %v1109
      %v1112 = vsinq.f32.pop %v1109
      %vm1113 = vweird.f32 %v699
      %v1114 = vand.u32 %v1110, 3
      %vm1115 = vcmp.lt.s32.totalorder %v1114, 2
      %vm1116 = vcmp.eq.s32.totalorder %v1114, 0
      %v1117 = vxor.u32 %v1112, 2147483648
      %v1118 = vsel %vm1116, %v1111, %v1117
      %vm1119 = vcmp.eq.s32.totalorder %v1114, 2
      %v1120 = vxor.u32 %v1111, 2147483648
      %v1121 = vsel %vm1119, %v1120, %v1112
      %v1122 = vsel %vm1115, %v1118, %v1121
      %v1123 = vsel %vm1113, nan, %v1122
      %v1124 = vand.u32 2147483647, %v700
      %vm1125 = vcmp.le.f32.partialorder %v1124, 0.7853982
      %vm1126 = vcmp.lt.s32.totalorder %v700, 0
      %v1127 = vand.u32 %v700, 2139095040
      %v1128 = vshrl.u32 %v1127, 23
      %v1129 = vsub.s32 %v1128, 127
      %v1130 = vand.u32 2147483647, %v700
      %v1131 = vand.u32 %v1130, 8388607
      %v1132 = vor.u32 %v1131, 8388608
      %v1133 = vsub.s32 0, %v1132
      %v1134 = vadd.s32 %v1129, 1
      %vm1135 = vcmp.gt.s32.totalorder %v1134, 0
      %v1136 = vsel %vm1135, %v1134, 0
      %v1137 = vshrl.u32 %v1136, 5
      %v1138 = vand.u32 %v1136, 31
      %v1139 = vsub.s32 32, %v1138
      %v1140 = vshrl.u32 683565275, %v1139
      %v1141 = vshll.u32 683565275, %v1138
      %v1142 = vshrl.u32 2475754826, %v1139
      %v1143 = vor.u32 %v1141, %v1142
      %v1144 = vshll.u32 2475754826, %v1138
      %v1145 = vshrl.u32 2131351028, %v1139
      %v1146 = vor.u32 %v1144, %v1145
      %v1147 = vshll.u32 2131351028, %v1138
      %v1148 = vshrl.u32 2102212464, %v1139
      %v1149 = vor.u32 %v1147, %v1148
      %v1150 = vshll.u32 2102212464, %v1138
      %v1151 = vshrl.u32 920167782, %v1139
      %v1152 = vor.u32 %v1150, %v1151
      %v1153 = vshll.u32 920167782, %v1138
      %v1154 = vshrl.u32 1326507024, %v1139
      %v1155 = vor.u32 %v1153, %v1154
      %vm1156 = vcmp.lt.s32.totalorder %v1137, 1
      %vm1157 = vcmp.lt.s32.totalorder %v1137, 2
      %vm1158 = vcmp.lt.s32.totalorder %v1137, 3
      %vm1159 = vcmp.lt.s32.totalorder %v1137, 4
      %v1160 = vsel %vm1156, %v1140, %v1143
      %v1161 = vsel %vm1159, %v1149, 2102212464
      %v1162 = vsel %vm1158, %v1146, %v1161
      %v1163 = vsel %vm1157, %v1160, %v1162
      %v1164 = vsel %vm1156, %v1143, %v1146
      %v1165 = vsel %vm1159, %v1152, 920167782
      %v1166 = vsel %vm1158, %v1149, %v1165
      %v1167 = vsel %vm1157, %v1164, %v1166
      %v1168 = vsel %vm1156, %v1146, %v1149
      %v1169 = vsel %vm1159, %v1155, 1326507024
      %v1170 = vsel %vm1158, %v1152, %v1169
      %v1171 = vsel %vm1157, %v1168, %v1170
      %v1172 = vshll.u32 %v1132, 8
      %v1173 = vmul.u32.u64.compose %v1172, %v1171
      %v1174 = vextract.low.u32 %v1173
      %v1175 = vextract.high.u32 %v1173
      %v1176 = vmul.u32.u64.compose %v1172, %v1167
      %v1177 = vextract.low.u32 %v1176
      %v1178 = vextract.high.u32 %v1176
      %v1179 = vmul.u32 %v1172, %v1163
      %v1180 = vadd.s32 %v1175, %v1177
      %vm1181 = vc.u32 %v1175, %v1177
      %v1182 = vadd.s32 %v1178, 1
      %v1183 = vsel %vm1181, %v1182, %v1178
      %v1184 = vadd.s32 %v1179, %v1183
      %v1185 = vadd.s32 %v1184, 536870912
      %v1186 = vshrl.u32 %v1185, 30
      %v1187 = vshll.u32 %v1186, 30
      %v1188 = vsub.s32 %v1184, %v1187
      %vm1189 = vcmp.lt.s32.totalorder %v1188, 0
      %v1190 = vsub.s32 0, %v1188
      %v1191 = vsel %vm1189, %v1190, %v1188
      %v1192 = vclz %v1191
      %v1193 = vsub.s32 %v1192, 2
      %vm1194 = vcmp.gt.s32.totalorder 0, %v1193
      %v1195 = vsel %vm1194, 0, %v1193
      %v1196 = vsub.s32 32, %v1195
      %v1197 = vshll.u32 %v1188, %v1195
      %v1198 = vshrl.u32 %v1180, %v1196
      %v1199 = vor.u32 %v1197, %v1198
      %v1200 = vsub.s32 4294967266, %v1195
      %v1201 = vadd.s32 %v1200, 127
      %v1202 = vshll.u32 %v1201, 23
      %v1203 = vor.u32 4788187, %v1202
      %v1204 = vand.u32 2147483647, %v1203
      %v1206 = vcvt.s32.f32 %v1199
      %v1207 = vmul.f32 %v1206, %v1204
      %v1208 = vxor.u32 %v1207, 2147483648
      %v1209 = vsel %vm1126, %v1208, %v1207
      %v1210 = vsub.s32 4, %v1186
      %v1211 = vsel %vm1126, %v1210, %v1186
      %v1212 = vsel %vm1125, %v700, %v1209
      %v1213 = vsel %vm1125, 0, %v1211
      %v1214 = vcosq.f32.pop %v1212
      %v1215 = vsinq.f32.pop %v1212
      %vm1216 = vweird.f32 %v700
      %v1217 = vand.u32 %v1213, 3
      %vm1218 = vcmp.lt.s32.totalorder %v1217, 2
      %vm1219 = vcmp.eq.s32.totalorder %v1217, 0
      %v1220 = vxor.u32 %v1215, 2147483648
      %v1221 = vsel %vm1219, %v1214, %v1220
      %vm1222 = vcmp.eq.s32.totalorder %v1217, 2
      %v1223 = vxor.u32 %v1214, 2147483648
      %v1224 = vsel %vm1222, %v1223, %v1215
      %v1225 = vsel %vm1218, %v1221, %v1224
      %v1226 = vsel %vm1216, nan, %v1225
      %v1227 = vand.u32 2147483647, %v701
      %vm1228 = vcmp.le.f32.partialorder %v1227, 0.7853982
      %vm1229 = vcmp.lt.s32.totalorder %v701, 0
      %v1230 = vand.u32 %v701, 2139095040
      %v1231 = vshrl.u32 %v1230, 23
      %v1232 = vsub.s32 %v1231, 127
      %v1233 = vand.u32 2147483647, %v701
      %v1234 = vand.u32 %v1233, 8388607
      %v1235 = vor.u32 %v1234, 8388608
      %v1236 = vsub.s32 0, %v1235
      %v1237 = vadd.s32 %v1232, 1
      %vm1238 = vcmp.gt.s32.totalorder %v1237, 0
      %v1239 = vsel %vm1238, %v1237, 0
      %v1240 = vshrl.u32 %v1239, 5
      %v1241 = vand.u32 %v1239, 31
      %v1242 = vsub.s32 32, %v1241
      %v1243 = vshrl.u32 683565275, %v1242
      %v1244 = vshll.u32 683565275, %v1241
      %v1245 = vshrl.u32 2475754826, %v1242
      %v1246 = vor.u32 %v1244, %v1245
      %v1247 = vshll.u32 2475754826, %v1241
      %v1248 = vshrl.u32 2131351028, %v1242
      %v1249 = vor.u32 %v1247, %v1248
      %v1250 = vshll.u32 2131351028, %v1241
      %v1251 = vshrl.u32 2102212464, %v1242
      %v1252 = vor.u32 %v1250, %v1251
      %v1253 = vshll.u32 2102212464, %v1241
      %v1254 = vshrl.u32 920167782, %v1242
      %v1255 = vor.u32 %v1253, %v1254
      %v1256 = vshll.u32 920167782, %v1241
      %v1257 = vshrl.u32 1326507024, %v1242
      %v1258 = vor.u32 %v1256, %v1257
      %vm1259 = vcmp.lt.s32.totalorder %v1240, 1
      %vm1260 = vcmp.lt.s32.totalorder %v1240, 2
      %vm1261 = vcmp.lt.s32.totalorder %v1240, 3
      %vm1262 = vcmp.lt.s32.totalorder %v1240, 4
      %v1263 = vsel %vm1259, %v1243, %v1246
      %v1264 = vsel %vm1262, %v1252, 2102212464
      %v1265 = vsel %vm1261, %v1249, %v1264
      %v1266 = vsel %vm1260, %v1263, %v1265
      %v1267 = vsel %vm1259, %v1246, %v1249
      %v1268 = vsel %vm1262, %v1255, 920167782
      %v1269 = vsel %vm1261, %v1252, %v1268
      %v1270 = vsel %vm1260, %v1267, %v1269
      %v1271 = vsel %vm1259, %v1249, %v1252
      %v1272 = vsel %vm1262, %v1258, 1326507024
      %v1273 = vsel %vm1261, %v1255, %v1272
      %v1274 = vsel %vm1260, %v1271, %v1273
      %v1275 = vshll.u32 %v1235, 8
      %v1276 = vmul.u32.u64.compose %v1275, %v1274
      %v1277 = vextract.low.u32 %v1276
      %v1278 = vextract.high.u32 %v1276
      %v1279 = vmul.u32.u64.compose %v1275, %v1270
      %v1280 = vextract.low.u32 %v1279
      %v1281 = vextract.high.u32 %v1279
      %v1282 = vmul.u32 %v1275, %v1266
      %v1283 = vadd.s32 %v1278, %v1280
      %vm1284 = vc.u32 %v1278, %v1280
      %v1285 = vadd.s32 %v1281, 1
      %v1286 = vsel %vm1284, %v1285, %v1281
      %v1287 = vadd.s32 %v1282, %v1286
      %v1288 = vadd.s32 %v1287, 536870912
      %v1289 = vshrl.u32 %v1288, 30
      %v1290 = vshll.u32 %v1289, 30
      %v1291 = vsub.s32 %v1287, %v1290
      %vm1292 = vcmp.lt.s32.totalorder %v1291, 0
      %v1293 = vsub.s32 0, %v1291
      %v1294 = vsel %vm1292, %v1293, %v1291
      %v1295 = vclz %v1294
      %v1296 = vsub.s32 %v1295, 2
      %vm1297 = vcmp.gt.s32.totalorder 0, %v1296
      %v1298 = vsel %vm1297, 0, %v1296
      %v1299 = vsub.s32 32, %v1298
      %v1300 = vshll.u32 %v1291, %v1298
      %v1301 = vshrl.u32 %v1283, %v1299
      %v1302 = vor.u32 %v1300, %v1301
      %v1303 = vsub.s32 4294967266, %v1298
      %v1304 = vadd.s32 %v1303, 127
      %v1305 = vshll.u32 %v1304, 23
      %v1306 = vor.u32 4788187, %v1305
      %v1307 = vand.u32 2147483647, %v1306
      %v1309 = vcvt.s32.f32 %v1302
      %v1310 = vmul.f32 %v1309, %v1307
      %v1311 = vxor.u32 %v1310, 2147483648
      %v1312 = vsel %vm1229, %v1311, %v1310
      %v1313 = vsub.s32 4, %v1289
      %v1314 = vsel %vm1229, %v1313, %v1289
      %v1315 = vsel %vm1228, %v701, %v1312
      %v1316 = vsel %vm1228, 0, %v1314
      %v1317 = vcosq.f32.pop %v1315
      %v1318 = vsinq.f32.pop %v1315
      %vm1319 = vweird.f32 %v701
      %v1320 = vand.u32 %v1316, 3
      %vm1321 = vcmp.lt.s32.totalorder %v1320, 2
      %vm1322 = vcmp.eq.s32.totalorder %v1320, 0
      %v1323 = vxor.u32 %v1318, 2147483648
      %v1324 = vsel %vm1322, %v1317, %v1323
      %vm1325 = vcmp.eq.s32.totalorder %v1320, 2
      %v1326 = vxor.u32 %v1317, 2147483648
      %v1327 = vsel %vm1325, %v1326, %v1318
      %v1328 = vsel %vm1321, %v1324, %v1327
      %v1329 = vsel %vm1319, nan, %v1328
      %v1330 = vand.u32 2147483647, %v702
      %vm1331 = vcmp.le.f32.partialorder %v1330, 0.7853982
      %vm1332 = vcmp.lt.s32.totalorder %v702, 0
      %v1333 = vand.u32 %v702, 2139095040
      %v1334 = vshrl.u32 %v1333, 23
      %v1335 = vsub.s32 %v1334, 127
      %v1336 = vand.u32 2147483647, %v702
      %v1337 = vand.u32 %v1336, 8388607
      %v1338 = vor.u32 %v1337, 8388608
      %v1339 = vsub.s32 0, %v1338
      %v1340 = vadd.s32 %v1335, 1
      %vm1341 = vcmp.gt.s32.totalorder %v1340, 0
      %v1342 = vsel %vm1341, %v1340, 0
      %v1343 = vshrl.u32 %v1342, 5
      %v1344 = vand.u32 %v1342, 31
      %v1345 = vsub.s32 32, %v1344
      %v1346 = vshrl.u32 683565275, %v1345
      %v1347 = vshll.u32 683565275, %v1344
      %v1348 = vshrl.u32 2475754826, %v1345
      %v1349 = vor.u32 %v1347, %v1348
      %v1350 = vshll.u32 2475754826, %v1344
      %v1351 = vshrl.u32 2131351028, %v1345
      %v1352 = vor.u32 %v1350, %v1351
      %v1353 = vshll.u32 2131351028, %v1344
      %v1354 = vshrl.u32 2102212464, %v1345
      %v1355 = vor.u32 %v1353, %v1354
      %v1356 = vshll.u32 2102212464, %v1344
      %v1357 = vshrl.u32 920167782, %v1345
      %v1358 = vor.u32 %v1356, %v1357
      %v1359 = vshll.u32 920167782, %v1344
      %v1360 = vshrl.u32 1326507024, %v1345
      %v1361 = vor.u32 %v1359, %v1360
      %vm1362 = vcmp.lt.s32.totalorder %v1343, 1
      %vm1363 = vcmp.lt.s32.totalorder %v1343, 2
      %vm1364 = vcmp.lt.s32.totalorder %v1343, 3
      %vm1365 = vcmp.lt.s32.totalorder %v1343, 4
      %v1366 = vsel %vm1362, %v1346, %v1349
      %v1367 = vsel %vm1365, %v1355, 2102212464
      %v1368 = vsel %vm1364, %v1352, %v1367
      %v1369 = vsel %vm1363, %v1366, %v1368
      %v1370 = vsel %vm1362, %v1349, %v1352
      %v1371 = vsel %vm1365, %v1358, 920167782
      %v1372 = vsel %vm1364, %v1355, %v1371
      %v1373 = vsel %vm1363, %v1370, %v1372
      %v1374 = vsel %vm1362, %v1352, %v1355
      %v1375 = vsel %vm1365, %v1361, 1326507024
      %v1376 = vsel %vm1364, %v1358, %v1375
      %v1377 = vsel %vm1363, %v1374, %v1376
      %v1378 = vshll.u32 %v1338, 8
      %v1379 = vmul.u32.u64.compose %v1378, %v1377
      %v1380 = vextract.low.u32 %v1379
      %v1381 = vextract.high.u32 %v1379
      %v1382 = vmul.u32.u64.compose %v1378, %v1373
      %v1383 = vextract.low.u32 %v1382
      %v1384 = vextract.high.u32 %v1382
      %v1385 = vmul.u32 %v1378, %v1369
      %v1386 = vadd.s32 %v1381, %v1383
      %vm1387 = vc.u32 %v1381, %v1383
      %v1388 = vadd.s32 %v1384, 1
      %v1389 = vsel %vm1387, %v1388, %v1384
      %v1390 = vadd.s32 %v1385, %v1389
      %v1391 = vadd.s32 %v1390, 536870912
      %v1392 = vshrl.u32 %v1391, 30
      %v1393 = vshll.u32 %v1392, 30
      %v1394 = vsub.s32 %v1390, %v1393
      %vm1395 = vcmp.lt.s32.totalorder %v1394, 0
      %v1396 = vsub.s32 0, %v1394
      %v1397 = vsel %vm1395, %v1396, %v1394
      %v1398 = vclz %v1397
      %v1399 = vsub.s32 %v1398, 2
      %vm1400 = vcmp.gt.s32.totalorder 0, %v1399
      %v1401 = vsel %vm1400, 0, %v1399
      %v1402 = vsub.s32 32, %v1401
      %v1403 = vshll.u32 %v1394, %v1401
      %v1404 = vshrl.u32 %v1386, %v1402
      %v1405 = vor.u32 %v1403, %v1404
      %v1406 = vsub.s32 4294967266, %v1401
      %v1407 = vadd.s32 %v1406, 127
      %v1408 = vshll.u32 %v1407, 23
      %v1409 = vor.u32 4788187, %v1408
      %v1410 = vand.u32 2147483647, %v1409
      %v1412 = vcvt.s32.f32 %v1405
      %v1413 = vmul.f32 %v1412, %v1410
      %v1414 = vxor.u32 %v1413, 2147483648
      %v1415 = vsel %vm1332, %v1414, %v1413
      %v1416 = vsub.s32 4, %v1392
      %v1417 = vsel %vm1332, %v1416, %v1392
      %v1418 = vsel %vm1331, %v702, %v1415
      %v1419 = vsel %vm1331, 0, %v1417
      %v1420 = vcosq.f32.pop %v1418
      %v1421 = vsinq.f32.pop %v1418
      %vm1422 = vweird.f32 %v702
      %v1423 = vand.u32 %v1419, 3
      %vm1424 = vcmp.lt.s32.totalorder %v1423, 2
      %vm1425 = vcmp.eq.s32.totalorder %v1423, 0
      %v1426 = vxor.u32 %v1421, 2147483648
      %v1427 = vsel %vm1425, %v1420, %v1426
      %vm1428 = vcmp.eq.s32.totalorder %v1423, 2
      %v1429 = vxor.u32 %v1420, 2147483648
      %v1430 = vsel %vm1428, %v1429, %v1421
      %v1431 = vsel %vm1424, %v1427, %v1430
      %v1432 = vsel %vm1422, nan, %v1431
      %v1433 = vand.u32 2147483647, %v703
      %vm1434 = vcmp.le.f32.partialorder %v1433, 0.7853982
      %vm1435 = vcmp.lt.s32.totalorder %v703, 0
      %v1436 = vand.u32 %v703, 2139095040
      %v1437 = vshrl.u32 %v1436, 23
      %v1438 = vsub.s32 %v1437, 127
      %v1439 = vand.u32 2147483647, %v703
      %v1440 = vand.u32 %v1439, 8388607
      %v1441 = vor.u32 %v1440, 8388608
      %v1442 = vsub.s32 0, %v1441
      %v1443 = vadd.s32 %v1438, 1
      %vm1444 = vcmp.gt.s32.totalorder %v1443, 0
      %v1445 = vsel %vm1444, %v1443, 0
      %v1446 = vshrl.u32 %v1445, 5
      %v1447 = vand.u32 %v1445, 31
      %v1448 = vsub.s32 32, %v1447
      %v1449 = vshrl.u32 683565275, %v1448
      %v1450 = vshll.u32 683565275, %v1447
      %v1451 = vshrl.u32 2475754826, %v1448
      %v1452 = vor.u32 %v1450, %v1451
      %v1453 = vshll.u32 2475754826, %v1447
      %v1454 = vshrl.u32 2131351028, %v1448
      %v1455 = vor.u32 %v1453, %v1454
      %v1456 = vshll.u32 2131351028, %v1447
      %v1457 = vshrl.u32 2102212464, %v1448
      %v1458 = vor.u32 %v1456, %v1457
      %v1459 = vshll.u32 2102212464, %v1447
      %v1460 = vshrl.u32 920167782, %v1448
      %v1461 = vor.u32 %v1459, %v1460
      %v1462 = vshll.u32 920167782, %v1447
      %v1463 = vshrl.u32 1326507024, %v1448
      %v1464 = vor.u32 %v1462, %v1463
      %vm1465 = vcmp.lt.s32.totalorder %v1446, 1
      %vm1466 = vcmp.lt.s32.totalorder %v1446, 2
      %vm1467 = vcmp.lt.s32.totalorder %v1446, 3
      %vm1468 = vcmp.lt.s32.totalorder %v1446, 4
      %v1469 = vsel %vm1465, %v1449, %v1452
      %v1470 = vsel %vm1468, %v1458, 2102212464
      %v1471 = vsel %vm1467, %v1455, %v1470
      %v1472 = vsel %vm1466, %v1469, %v1471
      %v1473 = vsel %vm1465, %v1452, %v1455
      %v1474 = vsel %vm1468, %v1461, 920167782
      %v1475 = vsel %vm1467, %v1458, %v1474
      %v1476 = vsel %vm1466, %v1473, %v1475
      %v1477 = vsel %vm1465, %v1455, %v1458
      %v1478 = vsel %vm1468, %v1464, 1326507024
      %v1479 = vsel %vm1467, %v1461, %v1478
      %v1480 = vsel %vm1466, %v1477, %v1479
      %v1481 = vshll.u32 %v1441, 8
      %v1482 = vmul.u32.u64.compose %v1481, %v1480
      %v1483 = vextract.low.u32 %v1482
      %v1484 = vextract.high.u32 %v1482
      %v1485 = vmul.u32.u64.compose %v1481, %v1476
      %v1486 = vextract.low.u32 %v1485
      %v1487 = vextract.high.u32 %v1485
      %v1488 = vmul.u32 %v1481, %v1472
      %v1489 = vadd.s32 %v1484, %v1486
      %vm1490 = vc.u32 %v1484, %v1486
      %v1491 = vadd.s32 %v1487, 1
      %v1492 = vsel %vm1490, %v1491, %v1487
      %v1493 = vadd.s32 %v1488, %v1492
      %v1494 = vadd.s32 %v1493, 536870912
      %v1495 = vshrl.u32 %v1494, 30
      %v1496 = vshll.u32 %v1495, 30
      %v1497 = vsub.s32 %v1493, %v1496
      %vm1498 = vcmp.lt.s32.totalorder %v1497, 0
      %v1499 = vsub.s32 0, %v1497
      %v1500 = vsel %vm1498, %v1499, %v1497
      %v1501 = vclz %v1500
      %v1502 = vsub.s32 %v1501, 2
      %vm1503 = vcmp.gt.s32.totalorder 0, %v1502
      %v1504 = vsel %vm1503, 0, %v1502
      %v1505 = vsub.s32 32, %v1504
      %v1506 = vshll.u32 %v1497, %v1504
      %v1507 = vshrl.u32 %v1489, %v1505
      %v1508 = vor.u32 %v1506, %v1507
      %v1509 = vsub.s32 4294967266, %v1504
      %v1510 = vadd.s32 %v1509, 127
      %v1511 = vshll.u32 %v1510, 23
      %v1512 = vor.u32 4788187, %v1511
      %v1513 = vand.u32 2147483647, %v1512
      %v1515 = vcvt.s32.f32 %v1508
      %v1516 = vmul.f32 %v1515, %v1513
      %v1517 = vxor.u32 %v1516, 2147483648
      %v1518 = vsel %vm1435, %v1517, %v1516
      %v1519 = vsub.s32 4, %v1495
      %v1520 = vsel %vm1435, %v1519, %v1495
      %v1521 = vsel %vm1434, %v703, %v1518
      %v1522 = vsel %vm1434, 0, %v1520
      %v1523 = vcosq.f32.pop %v1521
      %v1524 = vsinq.f32.pop %v1521
      %vm1525 = vweird.f32 %v703
      %v1526 = vand.u32 %v1522, 3
      %vm1527 = vcmp.lt.s32.totalorder %v1526, 2
      %vm1528 = vcmp.eq.s32.totalorder %v1526, 0
      %v1529 = vxor.u32 %v1524, 2147483648
      %v1530 = vsel %vm1528, %v1523, %v1529
      %vm1531 = vcmp.eq.s32.totalorder %v1526, 2
      %v1532 = vxor.u32 %v1523, 2147483648
      %v1533 = vsel %vm1531, %v1532, %v1524
      %v1534 = vsel %vm1527, %v1530, %v1533
      %v1535 = vsel %vm1525, nan, %v1534
      %v1536 = vand.u32 2147483647, %v704
      %vm1537 = vcmp.le.f32.partialorder %v1536, 0.7853982
      %vm1538 = vcmp.lt.s32.totalorder %v704, 0
      %v1539 = vand.u32 %v704, 2139095040
      %v1540 = vshrl.u32 %v1539, 23
      %v1541 = vsub.s32 %v1540, 127
      %v1542 = vand.u32 2147483647, %v704
      %v1543 = vand.u32 %v1542, 8388607
      %v1544 = vor.u32 %v1543, 8388608
      %v1545 = vsub.s32 0, %v1544
      %v1546 = vadd.s32 %v1541, 1
      %vm1547 = vcmp.gt.s32.totalorder %v1546, 0
      %v1548 = vsel %vm1547, %v1546, 0
      %v1549 = vshrl.u32 %v1548, 5
      %v1550 = vand.u32 %v1548, 31
      %v1551 = vsub.s32 32, %v1550
      %v1552 = vshrl.u32 683565275, %v1551
      %v1553 = vshll.u32 683565275, %v1550
      %v1554 = vshrl.u32 2475754826, %v1551
      %v1555 = vor.u32 %v1553, %v1554
      %v1556 = vshll.u32 2475754826, %v1550
      %v1557 = vshrl.u32 2131351028, %v1551
      %v1558 = vor.u32 %v1556, %v1557
      %v1559 = vshll.u32 2131351028, %v1550
      %v1560 = vshrl.u32 2102212464, %v1551
      %v1561 = vor.u32 %v1559, %v1560
      %v1562 = vshll.u32 2102212464, %v1550
      %v1563 = vshrl.u32 920167782, %v1551
      %v1564 = vor.u32 %v1562, %v1563
      %v1565 = vshll.u32 920167782, %v1550
      %v1566 = vshrl.u32 1326507024, %v1551
      %v1567 = vor.u32 %v1565, %v1566
      %vm1568 = vcmp.lt.s32.totalorder %v1549, 1
      %vm1569 = vcmp.lt.s32.totalorder %v1549, 2
      %vm1570 = vcmp.lt.s32.totalorder %v1549, 3
      %vm1571 = vcmp.lt.s32.totalorder %v1549, 4
      %v1572 = vsel %vm1568, %v1552, %v1555
      %v1573 = vsel %vm1571, %v1561, 2102212464
      %v1574 = vsel %vm1570, %v1558, %v1573
      %v1575 = vsel %vm1569, %v1572, %v1574
      %v1576 = vsel %vm1568, %v1555, %v1558
      %v1577 = vsel %vm1571, %v1564, 920167782
      %v1578 = vsel %vm1570, %v1561, %v1577
      %v1579 = vsel %vm1569, %v1576, %v1578
      %v1580 = vsel %vm1568, %v1558, %v1561
      %v1581 = vsel %vm1571, %v1567, 1326507024
      %v1582 = vsel %vm1570, %v1564, %v1581
      %v1583 = vsel %vm1569, %v1580, %v1582
      %v1584 = vshll.u32 %v1544, 8
      %v1585 = vmul.u32.u64.compose %v1584, %v1583
      %v1586 = vextract.low.u32 %v1585
      %v1587 = vextract.high.u32 %v1585
      %v1588 = vmul.u32.u64.compose %v1584, %v1579
      %v1589 = vextract.low.u32 %v1588
      %v1590 = vextract.high.u32 %v1588
      %v1591 = vmul.u32 %v1584, %v1575
      %v1592 = vadd.s32 %v1587, %v1589
      %vm1593 = vc.u32 %v1587, %v1589
      %v1594 = vadd.s32 %v1590, 1
      %v1595 = vsel %vm1593, %v1594, %v1590
      %v1596 = vadd.s32 %v1591, %v1595
      %v1597 = vadd.s32 %v1596, 536870912
      %v1598 = vshrl.u32 %v1597, 30
      %v1599 = vshll.u32 %v1598, 30
      %v1600 = vsub.s32 %v1596, %v1599
      %vm1601 = vcmp.lt.s32.totalorder %v1600, 0
      %v1602 = vsub.s32 0, %v1600
      %v1603 = vsel %vm1601, %v1602, %v1600
      %v1604 = vclz %v1603
      %v1605 = vsub.s32 %v1604, 2
      %vm1606 = vcmp.gt.s32.totalorder 0, %v1605
      %v1607 = vsel %vm1606, 0, %v1605
      %v1608 = vsub.s32 32, %v1607
      %v1609 = vshll.u32 %v1600, %v1607
      %v1610 = vshrl.u32 %v1592, %v1608
      %v1611 = vor.u32 %v1609, %v1610
      %v1612 = vsub.s32 4294967266, %v1607
      %v1613 = vadd.s32 %v1612, 127
      %v1614 = vshll.u32 %v1613, 23
      %v1615 = vor.u32 4788187, %v1614
      %v1616 = vand.u32 2147483647, %v1615
      %v1618 = vcvt.s32.f32 %v1611
      %v1619 = vmul.f32 %v1618, %v1616
      %v1620 = vxor.u32 %v1619, 2147483648
      %v1621 = vsel %vm1538, %v1620, %v1619
      %v1622 = vsub.s32 4, %v1598
      %v1623 = vsel %vm1538, %v1622, %v1598
      %v1624 = vsel %vm1537, %v704, %v1621
      %v1625 = vsel %vm1537, 0, %v1623
      %v1626 = vcosq.f32.pop %v1624
      %v1627 = vsinq.f32.pop %v1624
      %vm1628 = vweird.f32 %v704
      %v1629 = vand.u32 %v1625, 3
      %vm1630 = vcmp.lt.s32.totalorder %v1629, 2
      %vm1631 = vcmp.eq.s32.totalorder %v1629, 0
      %v1632 = vxor.u32 %v1627, 2147483648
      %v1633 = vsel %vm1631, %v1626, %v1632
      %vm1634 = vcmp.eq.s32.totalorder %v1629, 2
      %v1635 = vxor.u32 %v1626, 2147483648
      %v1636 = vsel %vm1634, %v1635, %v1627
      %v1637 = vsel %vm1630, %v1633, %v1636
      %v1638 = vsel %vm1628, nan, %v1637
      %v1639 = vand.u32 2147483647, %v705
      %vm1640 = vcmp.le.f32.partialorder %v1639, 0.7853982
      %vm1641 = vcmp.lt.s32.totalorder %v705, 0
      %v1642 = vand.u32 %v705, 2139095040
      %v1643 = vshrl.u32 %v1642, 23
      %v1644 = vsub.s32 %v1643, 127
      %v1645 = vand.u32 2147483647, %v705
      %v1646 = vand.u32 %v1645, 8388607
      %v1647 = vor.u32 %v1646, 8388608
      %v1648 = vsub.s32 0, %v1647
      %v1649 = vadd.s32 %v1644, 1
      %vm1650 = vcmp.gt.s32.totalorder %v1649, 0
      %v1651 = vsel %vm1650, %v1649, 0
      %v1652 = vshrl.u32 %v1651, 5
      %v1653 = vand.u32 %v1651, 31
      %v1654 = vsub.s32 32, %v1653
      %v1655 = vshrl.u32 683565275, %v1654
      %v1656 = vshll.u32 683565275, %v1653
      %v1657 = vshrl.u32 2475754826, %v1654
      %v1658 = vor.u32 %v1656, %v1657
      %v1659 = vshll.u32 2475754826, %v1653
      %v1660 = vshrl.u32 2131351028, %v1654
      %v1661 = vor.u32 %v1659, %v1660
      %v1662 = vshll.u32 2131351028, %v1653
      %v1663 = vshrl.u32 2102212464, %v1654
      %v1664 = vor.u32 %v1662, %v1663
      %v1665 = vshll.u32 2102212464, %v1653
      %v1666 = vshrl.u32 920167782, %v1654
      %v1667 = vor.u32 %v1665, %v1666
      %v1668 = vshll.u32 920167782, %v1653
      %v1669 = vshrl.u32 1326507024, %v1654
      %v1670 = vor.u32 %v1668, %v1669
      %vm1671 = vcmp.lt.s32.totalorder %v1652, 1
      %vm1672 = vcmp.lt.s32.totalorder %v1652, 2
      %vm1673 = vcmp.lt.s32.totalorder %v1652, 3
      %vm1674 = vcmp.lt.s32.totalorder %v1652, 4
      %v1675 = vsel %vm1671, %v1655, %v1658
      %v1676 = vsel %vm1674, %v1664, 2102212464
      %v1677 = vsel %vm1673, %v1661, %v1676
      %v1678 = vsel %vm1672, %v1675, %v1677
      %v1679 = vsel %vm1671, %v1658, %v1661
      %v1680 = vsel %vm1674, %v1667, 920167782
      %v1681 = vsel %vm1673, %v1664, %v1680
      %v1682 = vsel %vm1672, %v1679, %v1681
      %v1683 = vsel %vm1671, %v1661, %v1664
      %v1684 = vsel %vm1674, %v1670, 1326507024
      %v1685 = vsel %vm1673, %v1667, %v1684
      %v1686 = vsel %vm1672, %v1683, %v1685
      %v1687 = vshll.u32 %v1647, 8
      %v1688 = vmul.u32.u64.compose %v1687, %v1686
      %v1689 = vextract.low.u32 %v1688
      %v1690 = vextract.high.u32 %v1688
      %v1691 = vmul.u32.u64.compose %v1687, %v1682
      %v1692 = vextract.low.u32 %v1691
      %v1693 = vextract.high.u32 %v1691
      %v1694 = vmul.u32 %v1687, %v1678
      %v1695 = vadd.s32 %v1690, %v1692
      %vm1696 = vc.u32 %v1690, %v1692
      %v1697 = vadd.s32 %v1693, 1
      %v1698 = vsel %vm1696, %v1697, %v1693
      %v1699 = vadd.s32 %v1694, %v1698
      %v1700 = vadd.s32 %v1699, 536870912
      %v1701 = vshrl.u32 %v1700, 30
      %v1702 = vshll.u32 %v1701, 30
      %v1703 = vsub.s32 %v1699, %v1702
      %vm1704 = vcmp.lt.s32.totalorder %v1703, 0
      %v1705 = vsub.s32 0, %v1703
      %v1706 = vsel %vm1704, %v1705, %v1703
      %v1707 = vclz %v1706
      %v1708 = vsub.s32 %v1707, 2
      %vm1709 = vcmp.gt.s32.totalorder 0, %v1708
      %v1710 = vsel %vm1709, 0, %v1708
      %v1711 = vsub.s32 32, %v1710
      %v1712 = vshll.u32 %v1703, %v1710
      %v1713 = vshrl.u32 %v1695, %v1711
      %v1714 = vor.u32 %v1712, %v1713
      %v1715 = vsub.s32 4294967266, %v1710
      %v1716 = vadd.s32 %v1715, 127
      %v1717 = vshll.u32 %v1716, 23
      %v1718 = vor.u32 4788187, %v1717
      %v1719 = vand.u32 2147483647, %v1718
      %v1721 = vcvt.s32.f32 %v1714
      %v1722 = vmul.f32 %v1721, %v1719
      %v1723 = vxor.u32 %v1722, 2147483648
      %v1724 = vsel %vm1641, %v1723, %v1722
      %v1725 = vsub.s32 4, %v1701
      %v1726 = vsel %vm1641, %v1725, %v1701
      %v1727 = vsel %vm1640, %v705, %v1724
      %v1728 = vsel %vm1640, 0, %v1726
      %v1729 = vcosq.f32.pop %v1727
      %v1730 = vsinq.f32.pop %v1727
      %vm1731 = vweird.f32 %v705
      %v1732 = vand.u32 %v1728, 3
      %vm1733 = vcmp.lt.s32.totalorder %v1732, 2
      %vm1734 = vcmp.eq.s32.totalorder %v1732, 0
      %v1735 = vxor.u32 %v1730, 2147483648
      %v1736 = vsel %vm1734, %v1729, %v1735
      %vm1737 = vcmp.eq.s32.totalorder %v1732, 2
      %v1738 = vxor.u32 %v1729, 2147483648
      %v1739 = vsel %vm1737, %v1738, %v1730
      %v1740 = vsel %vm1733, %v1736, %v1739
      %v1741 = vsel %vm1731, nan, %v1740
      %v1742 = vand.u32 2147483647, %v706
      %vm1743 = vcmp.le.f32.partialorder %v1742, 0.7853982
      %vm1744 = vcmp.lt.s32.totalorder %v706, 0
      %v1745 = vand.u32 %v706, 2139095040
      %v1746 = vshrl.u32 %v1745, 23
      %v1747 = vsub.s32 %v1746, 127
      %v1748 = vand.u32 2147483647, %v706
      %v1749 = vand.u32 %v1748, 8388607
      %v1750 = vor.u32 %v1749, 8388608
      %v1751 = vsub.s32 0, %v1750
      %v1752 = vadd.s32 %v1747, 1
      %vm1753 = vcmp.gt.s32.totalorder %v1752, 0
      %v1754 = vsel %vm1753, %v1752, 0
      %v1755 = vshrl.u32 %v1754, 5
      %v1756 = vand.u32 %v1754, 31
      %v1757 = vsub.s32 32, %v1756
      %v1758 = vshrl.u32 683565275, %v1757
      %v1759 = vshll.u32 683565275, %v1756
      %v1760 = vshrl.u32 2475754826, %v1757
      %v1761 = vor.u32 %v1759, %v1760
      %v1762 = vshll.u32 2475754826, %v1756
      %v1763 = vshrl.u32 2131351028, %v1757
      %v1764 = vor.u32 %v1762, %v1763
      %v1765 = vshll.u32 2131351028, %v1756
      %v1766 = vshrl.u32 2102212464, %v1757
      %v1767 = vor.u32 %v1765, %v1766
      %v1768 = vshll.u32 2102212464, %v1756
      %v1769 = vshrl.u32 920167782, %v1757
      %v1770 = vor.u32 %v1768, %v1769
      %v1771 = vshll.u32 920167782, %v1756
      %v1772 = vshrl.u32 1326507024, %v1757
      %v1773 = vor.u32 %v1771, %v1772
      %vm1774 = vcmp.lt.s32.totalorder %v1755, 1
      %vm1775 = vcmp.lt.s32.totalorder %v1755, 2
      %vm1776 = vcmp.lt.s32.totalorder %v1755, 3
      %vm1777 = vcmp.lt.s32.totalorder %v1755, 4
      %v1778 = vsel %vm1774, %v1758, %v1761
      %v1779 = vsel %vm1777, %v1767, 2102212464
      %v1780 = vsel %vm1776, %v1764, %v1779
      %v1781 = vsel %vm1775, %v1778, %v1780
      %v1782 = vsel %vm1774, %v1761, %v1764
      %v1783 = vsel %vm1777, %v1770, 920167782
      %v1784 = vsel %vm1776, %v1767, %v1783
      %v1785 = vsel %vm1775, %v1782, %v1784
      %v1786 = vsel %vm1774, %v1764, %v1767
      %v1787 = vsel %vm1777, %v1773, 1326507024
      %v1788 = vsel %vm1776, %v1770, %v1787
      %v1789 = vsel %vm1775, %v1786, %v1788
      %v1790 = vshll.u32 %v1750, 8
      %v1791 = vmul.u32.u64.compose %v1790, %v1789
      %v1792 = vextract.low.u32 %v1791
      %v1793 = vextract.high.u32 %v1791
      %v1794 = vmul.u32.u64.compose %v1790, %v1785
      %v1795 = vextract.low.u32 %v1794
      %v1796 = vextract.high.u32 %v1794
      %v1797 = vmul.u32 %v1790, %v1781
      %v1798 = vadd.s32 %v1793, %v1795
      %vm1799 = vc.u32 %v1793, %v1795
      %v1800 = vadd.s32 %v1796, 1
      %v1801 = vsel %vm1799, %v1800, %v1796
      %v1802 = vadd.s32 %v1797, %v1801
      %v1803 = vadd.s32 %v1802, 536870912
      %v1804 = vshrl.u32 %v1803, 30
      %v1805 = vshll.u32 %v1804, 30
      %v1806 = vsub.s32 %v1802, %v1805
      %vm1807 = vcmp.lt.s32.totalorder %v1806, 0
      %v1808 = vsub.s32 0, %v1806
      %v1809 = vsel %vm1807, %v1808, %v1806
      %v1810 = vclz %v1809
      %v1811 = vsub.s32 %v1810, 2
      %vm1812 = vcmp.gt.s32.totalorder 0, %v1811
      %v1813 = vsel %vm1812, 0, %v1811
      %v1814 = vsub.s32 32, %v1813
      %v1815 = vshll.u32 %v1806, %v1813
      %v1816 = vshrl.u32 %v1798, %v1814
      %v1817 = vor.u32 %v1815, %v1816
      %v1818 = vsub.s32 4294967266, %v1813
      %v1819 = vadd.s32 %v1818, 127
      %v1820 = vshll.u32 %v1819, 23
      %v1821 = vor.u32 4788187, %v1820
      %v1822 = vand.u32 2147483647, %v1821
      %v1824 = vcvt.s32.f32 %v1817
      %v1825 = vmul.f32 %v1824, %v1822
      %v1826 = vxor.u32 %v1825, 2147483648
      %v1827 = vsel %vm1744, %v1826, %v1825
      %v1828 = vsub.s32 4, %v1804
      %v1829 = vsel %vm1744, %v1828, %v1804
      %v1830 = vsel %vm1743, %v706, %v1827
      %v1831 = vsel %vm1743, 0, %v1829
      %v1832 = vcosq.f32.pop %v1830
      %v1833 = vsinq.f32.pop %v1830
      %vm1834 = vweird.f32 %v706
      %v1835 = vand.u32 %v1831, 3
      %vm1836 = vcmp.lt.s32.totalorder %v1835, 2
      %vm1837 = vcmp.eq.s32.totalorder %v1835, 0
      %v1838 = vxor.u32 %v1833, 2147483648
      %v1839 = vsel %vm1837, %v1832, %v1838
      %vm1840 = vcmp.eq.s32.totalorder %v1835, 2
      %v1841 = vxor.u32 %v1832, 2147483648
      %v1842 = vsel %vm1840, %v1841, %v1833
      %v1843 = vsel %vm1836, %v1839, %v1842
      %v1844 = vsel %vm1834, nan, %v1843
      %v1845 = vand.u32 2147483647, %v707
      %vm1846 = vcmp.le.f32.partialorder %v1845, 0.7853982
      %vm1847 = vcmp.lt.s32.totalorder %v707, 0
      %v1848 = vand.u32 %v707, 2139095040
      %v1849 = vshrl.u32 %v1848, 23
      %v1850 = vsub.s32 %v1849, 127
      %v1851 = vand.u32 2147483647, %v707
      %v1852 = vand.u32 %v1851, 8388607
      %v1853 = vor.u32 %v1852, 8388608
      %v1854 = vsub.s32 0, %v1853
      %v1855 = vadd.s32 %v1850, 1
      %vm1856 = vcmp.gt.s32.totalorder %v1855, 0
      %v1857 = vsel %vm1856, %v1855, 0
      %v1858 = vshrl.u32 %v1857, 5
      %v1859 = vand.u32 %v1857, 31
      %v1860 = vsub.s32 32, %v1859
      %v1861 = vshrl.u32 683565275, %v1860
      %v1862 = vshll.u32 683565275, %v1859
      %v1863 = vshrl.u32 2475754826, %v1860
      %v1864 = vor.u32 %v1862, %v1863
      %v1865 = vshll.u32 2475754826, %v1859
      %v1866 = vshrl.u32 2131351028, %v1860
      %v1867 = vor.u32 %v1865, %v1866
      %v1868 = vshll.u32 2131351028, %v1859
      %v1869 = vshrl.u32 2102212464, %v1860
      %v1870 = vor.u32 %v1868, %v1869
      %v1871 = vshll.u32 2102212464, %v1859
      %v1872 = vshrl.u32 920167782, %v1860
      %v1873 = vor.u32 %v1871, %v1872
      %v1874 = vshll.u32 920167782, %v1859
      %v1875 = vshrl.u32 1326507024, %v1860
      %v1876 = vor.u32 %v1874, %v1875
      %vm1877 = vcmp.lt.s32.totalorder %v1858, 1
      %vm1878 = vcmp.lt.s32.totalorder %v1858, 2
      %vm1879 = vcmp.lt.s32.totalorder %v1858, 3
      %vm1880 = vcmp.lt.s32.totalorder %v1858, 4
      %v1881 = vsel %vm1877, %v1861, %v1864
      %v1882 = vsel %vm1880, %v1870, 2102212464
      %v1883 = vsel %vm1879, %v1867, %v1882
      %v1884 = vsel %vm1878, %v1881, %v1883
      %v1885 = vsel %vm1877, %v1864, %v1867
      %v1886 = vsel %vm1880, %v1873, 920167782
      %v1887 = vsel %vm1879, %v1870, %v1886
      %v1888 = vsel %vm1878, %v1885, %v1887
      %v1889 = vsel %vm1877, %v1867, %v1870
      %v1890 = vsel %vm1880, %v1876, 1326507024
      %v1891 = vsel %vm1879, %v1873, %v1890
      %v1892 = vsel %vm1878, %v1889, %v1891
      %v1893 = vshll.u32 %v1853, 8
      %v1894 = vmul.u32.u64.compose %v1893, %v1892
      %v1895 = vextract.low.u32 %v1894
      %v1896 = vextract.high.u32 %v1894
      %v1897 = vmul.u32.u64.compose %v1893, %v1888
      %v1898 = vextract.low.u32 %v1897
      %v1899 = vextract.high.u32 %v1897
      %v1900 = vmul.u32 %v1893, %v1884
      %v1901 = vadd.s32 %v1896, %v1898
      %vm1902 = vc.u32 %v1896, %v1898
      %v1903 = vadd.s32 %v1899, 1
      %v1904 = vsel %vm1902, %v1903, %v1899
      %v1905 = vadd.s32 %v1900, %v1904
      %v1906 = vadd.s32 %v1905, 536870912
      %v1907 = vshrl.u32 %v1906, 30
      %v1908 = vshll.u32 %v1907, 30
      %v1909 = vsub.s32 %v1905, %v1908
      %vm1910 = vcmp.lt.s32.totalorder %v1909, 0
      %v1911 = vsub.s32 0, %v1909
      %v1912 = vsel %vm1910, %v1911, %v1909
      %v1913 = vclz %v1912
      %v1914 = vsub.s32 %v1913, 2
      %vm1915 = vcmp.gt.s32.totalorder 0, %v1914
      %v1916 = vsel %vm1915, 0, %v1914
      %v1917 = vsub.s32 32, %v1916
      %v1918 = vshll.u32 %v1909, %v1916
      %v1919 = vshrl.u32 %v1901, %v1917
      %v1920 = vor.u32 %v1918, %v1919
      %v1921 = vsub.s32 4294967266, %v1916
      %v1922 = vadd.s32 %v1921, 127
      %v1923 = vshll.u32 %v1922, 23
      %v1924 = vor.u32 4788187, %v1923
      %v1925 = vand.u32 2147483647, %v1924
      %v1927 = vcvt.s32.f32 %v1920
      %v1928 = vmul.f32 %v1927, %v1925
      %v1929 = vxor.u32 %v1928, 2147483648
      %v1930 = vsel %vm1847, %v1929, %v1928
      %v1931 = vsub.s32 4, %v1907
      %v1932 = vsel %vm1847, %v1931, %v1907
      %v1933 = vsel %vm1846, %v707, %v1930
      %v1934 = vsel %vm1846, 0, %v1932
      %v1935 = vcosq.f32.pop %v1933
      %v1936 = vsinq.f32.pop %v1933
      %vm1937 = vweird.f32 %v707
      %v1938 = vand.u32 %v1934, 3
      %vm1939 = vcmp.lt.s32.totalorder %v1938, 2
      %vm1940 = vcmp.eq.s32.totalorder %v1938, 0
      %v1941 = vxor.u32 %v1936, 2147483648
      %v1942 = vsel %vm1940, %v1935, %v1941
      %vm1943 = vcmp.eq.s32.totalorder %v1938, 2
      %v1944 = vxor.u32 %v1935, 2147483648
      %v1945 = vsel %vm1943, %v1944, %v1936
      %v1946 = vsel %vm1939, %v1942, %v1945
      %v1947 = vsel %vm1937, nan, %v1946
      %v1948 = vand.u32 2147483647, %v708
      %vm1949 = vcmp.le.f32.partialorder %v1948, 0.7853982
      %vm1950 = vcmp.lt.s32.totalorder %v708, 0
      %v1951 = vand.u32 %v708, 2139095040
      %v1952 = vshrl.u32 %v1951, 23
      %v1953 = vsub.s32 %v1952, 127
      %v1954 = vand.u32 2147483647, %v708
      %v1955 = vand.u32 %v1954, 8388607
      %v1956 = vor.u32 %v1955, 8388608
      %v1957 = vsub.s32 0, %v1956
      %v1958 = vadd.s32 %v1953, 1
      %vm1959 = vcmp.gt.s32.totalorder %v1958, 0
      %v1960 = vsel %vm1959, %v1958, 0
      %v1961 = vshrl.u32 %v1960, 5
      %v1962 = vand.u32 %v1960, 31
      %v1963 = vsub.s32 32, %v1962
      %v1964 = vshrl.u32 683565275, %v1963
      %v1965 = vshll.u32 683565275, %v1962
      %v1966 = vshrl.u32 2475754826, %v1963
      %v1967 = vor.u32 %v1965, %v1966
      %v1968 = vshll.u32 2475754826, %v1962
      %v1969 = vshrl.u32 2131351028, %v1963
      %v1970 = vor.u32 %v1968, %v1969
      %v1971 = vshll.u32 2131351028, %v1962
      %v1972 = vshrl.u32 2102212464, %v1963
      %v1973 = vor.u32 %v1971, %v1972
      %v1974 = vshll.u32 2102212464, %v1962
      %v1975 = vshrl.u32 920167782, %v1963
      %v1976 = vor.u32 %v1974, %v1975
      %v1977 = vshll.u32 920167782, %v1962
      %v1978 = vshrl.u32 1326507024, %v1963
      %v1979 = vor.u32 %v1977, %v1978
      %vm1980 = vcmp.lt.s32.totalorder %v1961, 1
      %vm1981 = vcmp.lt.s32.totalorder %v1961, 2
      %vm1982 = vcmp.lt.s32.totalorder %v1961, 3
      %vm1983 = vcmp.lt.s32.totalorder %v1961, 4
      %v1984 = vsel %vm1980, %v1964, %v1967
      %v1985 = vsel %vm1983, %v1973, 2102212464
      %v1986 = vsel %vm1982, %v1970, %v1985
      %v1987 = vsel %vm1981, %v1984, %v1986
      %v1988 = vsel %vm1980, %v1967, %v1970
      %v1989 = vsel %vm1983, %v1976, 920167782
      %v1990 = vsel %vm1982, %v1973, %v1989
      %v1991 = vsel %vm1981, %v1988, %v1990
      %v1992 = vsel %vm1980, %v1970, %v1973
      %v1993 = vsel %vm1983, %v1979, 1326507024
      %v1994 = vsel %vm1982, %v1976, %v1993
      %v1995 = vsel %vm1981, %v1992, %v1994
      %v1996 = vshll.u32 %v1956, 8
      %v1997 = vmul.u32.u64.compose %v1996, %v1995
      %v1998 = vextract.low.u32 %v1997
      %v1999 = vextract.high.u32 %v1997
      %v2000 = vmul.u32.u64.compose %v1996, %v1991
      %v2001 = vextract.low.u32 %v2000
      %v2002 = vextract.high.u32 %v2000
      %v2003 = vmul.u32 %v1996, %v1987
      %v2004 = vadd.s32 %v1999, %v2001
      %vm2005 = vc.u32 %v1999, %v2001
      %v2006 = vadd.s32 %v2002, 1
      %v2007 = vsel %vm2005, %v2006, %v2002
      %v2008 = vadd.s32 %v2003, %v2007
      %v2009 = vadd.s32 %v2008, 536870912
      %v2010 = vshrl.u32 %v2009, 30
      %v2011 = vshll.u32 %v2010, 30
      %v2012 = vsub.s32 %v2008, %v2011
      %vm2013 = vcmp.lt.s32.totalorder %v2012, 0
      %v2014 = vsub.s32 0, %v2012
      %v2015 = vsel %vm2013, %v2014, %v2012
      %v2016 = vclz %v2015
      %v2017 = vsub.s32 %v2016, 2
      %vm2018 = vcmp.gt.s32.totalorder 0, %v2017
      %v2019 = vsel %vm2018, 0, %v2017
      %v2020 = vsub.s32 32, %v2019
      %v2021 = vshll.u32 %v2012, %v2019
      %v2022 = vshrl.u32 %v2004, %v2020
      %v2023 = vor.u32 %v2021, %v2022
      %v2024 = vsub.s32 4294967266, %v2019
      %v2025 = vadd.s32 %v2024, 127
      %v2026 = vshll.u32 %v2025, 23
      %v2027 = vor.u32 4788187, %v2026
      %v2028 = vand.u32 2147483647, %v2027
      %v2030 = vcvt.s32.f32 %v2023
      %v2031 = vmul.f32 %v2030, %v2028
      %v2032 = vxor.u32 %v2031, 2147483648
      %v2033 = vsel %vm1950, %v2032, %v2031
      %v2034 = vsub.s32 4, %v2010
      %v2035 = vsel %vm1950, %v2034, %v2010
      %v2036 = vsel %vm1949, %v708, %v2033
      %v2037 = vsel %vm1949, 0, %v2035
      %v2038 = vcosq.f32.pop %v2036
      %v2039 = vsinq.f32.pop %v2036
      %vm2040 = vweird.f32 %v708
      %v2041 = vand.u32 %v2037, 3
      %vm2042 = vcmp.lt.s32.totalorder %v2041, 2
      %vm2043 = vcmp.eq.s32.totalorder %v2041, 0
      %v2044 = vxor.u32 %v2039, 2147483648
      %v2045 = vsel %vm2043, %v2038, %v2044
      %vm2046 = vcmp.eq.s32.totalorder %v2041, 2
      %v2047 = vxor.u32 %v2038, 2147483648
      %v2048 = vsel %vm2046, %v2047, %v2039
      %v2049 = vsel %vm2042, %v2045, %v2048
      %v2050 = vsel %vm2040, nan, %v2049
      %v2051 = vand.u32 2147483647, %v709
      %vm2052 = vcmp.le.f32.partialorder %v2051, 0.7853982
      %vm2053 = vcmp.lt.s32.totalorder %v709, 0
      %v2054 = vand.u32 %v709, 2139095040
      %v2055 = vshrl.u32 %v2054, 23
      %v2056 = vsub.s32 %v2055, 127
      %v2057 = vand.u32 2147483647, %v709
      %v2058 = vand.u32 %v2057, 8388607
      %v2059 = vor.u32 %v2058, 8388608
      %v2060 = vsub.s32 0, %v2059
      %v2061 = vadd.s32 %v2056, 1
      %vm2062 = vcmp.gt.s32.totalorder %v2061, 0
      %v2063 = vsel %vm2062, %v2061, 0
      %v2064 = vshrl.u32 %v2063, 5
      %v2065 = vand.u32 %v2063, 31
      %v2066 = vsub.s32 32, %v2065
      %v2067 = vshrl.u32 683565275, %v2066
      %v2068 = vshll.u32 683565275, %v2065
      %v2069 = vshrl.u32 2475754826, %v2066
      %v2070 = vor.u32 %v2068, %v2069
      %v2071 = vshll.u32 2475754826, %v2065
      %v2072 = vshrl.u32 2131351028, %v2066
      %v2073 = vor.u32 %v2071, %v2072
      %v2074 = vshll.u32 2131351028, %v2065
      %v2075 = vshrl.u32 2102212464, %v2066
      %v2076 = vor.u32 %v2074, %v2075
      %v2077 = vshll.u32 2102212464, %v2065
      %v2078 = vshrl.u32 920167782, %v2066
      %v2079 = vor.u32 %v2077, %v2078
      %v2080 = vshll.u32 920167782, %v2065
      %v2081 = vshrl.u32 1326507024, %v2066
      %v2082 = vor.u32 %v2080, %v2081
      %vm2083 = vcmp.lt.s32.totalorder %v2064, 1
      %vm2084 = vcmp.lt.s32.totalorder %v2064, 2
      %vm2085 = vcmp.lt.s32.totalorder %v2064, 3
      %vm2086 = vcmp.lt.s32.totalorder %v2064, 4
      %v2087 = vsel %vm2083, %v2067, %v2070
      %v2088 = vsel %vm2086, %v2076, 2102212464
      %v2089 = vsel %vm2085, %v2073, %v2088
      %v2090 = vsel %vm2084, %v2087, %v2089
      %v2091 = vsel %vm2083, %v2070, %v2073
      %v2092 = vsel %vm2086, %v2079, 920167782
      %v2093 = vsel %vm2085, %v2076, %v2092
      %v2094 = vsel %vm2084, %v2091, %v2093
      %v2095 = vsel %vm2083, %v2073, %v2076
      %v2096 = vsel %vm2086, %v2082, 1326507024
      %v2097 = vsel %vm2085, %v2079, %v2096
      %v2098 = vsel %vm2084, %v2095, %v2097
      %v2099 = vshll.u32 %v2059, 8
      %v2100 = vmul.u32.u64.compose %v2099, %v2098
      %v2101 = vextract.low.u32 %v2100
      %v2102 = vextract.high.u32 %v2100
      %v2103 = vmul.u32.u64.compose %v2099, %v2094
      %v2104 = vextract.low.u32 %v2103
      %v2105 = vextract.high.u32 %v2103
      %v2106 = vmul.u32 %v2099, %v2090
      %v2107 = vadd.s32 %v2102, %v2104
      %vm2108 = vc.u32 %v2102, %v2104
      %v2109 = vadd.s32 %v2105, 1
      %v2110 = vsel %vm2108, %v2109, %v2105
      %v2111 = vadd.s32 %v2106, %v2110
      %v2112 = vadd.s32 %v2111, 536870912
      %v2113 = vshrl.u32 %v2112, 30
      %v2114 = vshll.u32 %v2113, 30
      %v2115 = vsub.s32 %v2111, %v2114
      %vm2116 = vcmp.lt.s32.totalorder %v2115, 0
      %v2117 = vsub.s32 0, %v2115
      %v2118 = vsel %vm2116, %v2117, %v2115
      %v2119 = vclz %v2118
      %v2120 = vsub.s32 %v2119, 2
      %vm2121 = vcmp.gt.s32.totalorder 0, %v2120
      %v2122 = vsel %vm2121, 0, %v2120
      %v2123 = vsub.s32 32, %v2122
      %v2124 = vshll.u32 %v2115, %v2122
      %v2125 = vshrl.u32 %v2107, %v2123
      %v2126 = vor.u32 %v2124, %v2125
      %v2127 = vsub.s32 4294967266, %v2122
      %v2128 = vadd.s32 %v2127, 127
      %v2129 = vshll.u32 %v2128, 23
      %v2130 = vor.u32 4788187, %v2129
      %v2131 = vand.u32 2147483647, %v2130
      %v2133 = vcvt.s32.f32 %v2126
      %v2134 = vmul.f32 %v2133, %v2131
      %v2135 = vxor.u32 %v2134, 2147483648
      %v2136 = vsel %vm2053, %v2135, %v2134
      %v2137 = vsub.s32 4, %v2113
      %v2138 = vsel %vm2053, %v2137, %v2113
      %v2139 = vsel %vm2052, %v709, %v2136
      %v2140 = vsel %vm2052, 0, %v2138
      %v2141 = vcosq.f32.pop %v2139
      %v2142 = vsinq.f32.pop %v2139
      %vm2143 = vweird.f32 %v709
      %v2144 = vand.u32 %v2140, 3
      %vm2145 = vcmp.lt.s32.totalorder %v2144, 2
      %vm2146 = vcmp.eq.s32.totalorder %v2144, 0
      %v2147 = vxor.u32 %v2142, 2147483648
      %v2148 = vsel %vm2146, %v2141, %v2147
      %vm2149 = vcmp.eq.s32.totalorder %v2144, 2
      %v2150 = vxor.u32 %v2141, 2147483648
      %v2151 = vsel %vm2149, %v2150, %v2142
      %v2152 = vsel %vm2145, %v2148, %v2151
      %v2153 = vsel %vm2143, nan, %v2152
      %v2154 = vand.u32 2147483647, %v710
      %vm2155 = vcmp.le.f32.partialorder %v2154, 0.7853982
      %vm2156 = vcmp.lt.s32.totalorder %v710, 0
      %v2157 = vand.u32 %v710, 2139095040
      %v2158 = vshrl.u32 %v2157, 23
      %v2159 = vsub.s32 %v2158, 127
      %v2160 = vand.u32 2147483647, %v710
      %v2161 = vand.u32 %v2160, 8388607
      %v2162 = vor.u32 %v2161, 8388608
      %v2163 = vsub.s32 0, %v2162
      %v2164 = vadd.s32 %v2159, 1
      %vm2165 = vcmp.gt.s32.totalorder %v2164, 0
      %v2166 = vsel %vm2165, %v2164, 0
      %v2167 = vshrl.u32 %v2166, 5
      %v2168 = vand.u32 %v2166, 31
      %v2169 = vsub.s32 32, %v2168
      %v2170 = vshrl.u32 683565275, %v2169
      %v2171 = vshll.u32 683565275, %v2168
      %v2172 = vshrl.u32 2475754826, %v2169
      %v2173 = vor.u32 %v2171, %v2172
      %v2174 = vshll.u32 2475754826, %v2168
      %v2175 = vshrl.u32 2131351028, %v2169
      %v2176 = vor.u32 %v2174, %v2175
      %v2177 = vshll.u32 2131351028, %v2168
      %v2178 = vshrl.u32 2102212464, %v2169
      %v2179 = vor.u32 %v2177, %v2178
      %v2180 = vshll.u32 2102212464, %v2168
      %v2181 = vshrl.u32 920167782, %v2169
      %v2182 = vor.u32 %v2180, %v2181
      %v2183 = vshll.u32 920167782, %v2168
      %v2184 = vshrl.u32 1326507024, %v2169
      %v2185 = vor.u32 %v2183, %v2184
      %vm2186 = vcmp.lt.s32.totalorder %v2167, 1
      %vm2187 = vcmp.lt.s32.totalorder %v2167, 2
      %vm2188 = vcmp.lt.s32.totalorder %v2167, 3
      %vm2189 = vcmp.lt.s32.totalorder %v2167, 4
      %v2190 = vsel %vm2186, %v2170, %v2173
      %v2191 = vsel %vm2189, %v2179, 2102212464
      %v2192 = vsel %vm2188, %v2176, %v2191
      %v2193 = vsel %vm2187, %v2190, %v2192
      %v2194 = vsel %vm2186, %v2173, %v2176
      %v2195 = vsel %vm2189, %v2182, 920167782
      %v2196 = vsel %vm2188, %v2179, %v2195
      %v2197 = vsel %vm2187, %v2194, %v2196
      %v2198 = vsel %vm2186, %v2176, %v2179
      %v2199 = vsel %vm2189, %v2185, 1326507024
      %v2200 = vsel %vm2188, %v2182, %v2199
      %v2201 = vsel %vm2187, %v2198, %v2200
      %v2202 = vshll.u32 %v2162, 8
      %v2203 = vmul.u32.u64.compose %v2202, %v2201
      %v2204 = vextract.low.u32 %v2203
      %v2205 = vextract.high.u32 %v2203
      %v2206 = vmul.u32.u64.compose %v2202, %v2197
      %v2207 = vextract.low.u32 %v2206
      %v2208 = vextract.high.u32 %v2206
      %v2209 = vmul.u32 %v2202, %v2193
      %v2210 = vadd.s32 %v2205, %v2207
      %vm2211 = vc.u32 %v2205, %v2207
      %v2212 = vadd.s32 %v2208, 1
      %v2213 = vsel %vm2211, %v2212, %v2208
      %v2214 = vadd.s32 %v2209, %v2213
      %v2215 = vadd.s32 %v2214, 536870912
      %v2216 = vshrl.u32 %v2215, 30
      %v2217 = vshll.u32 %v2216, 30
      %v2218 = vsub.s32 %v2214, %v2217
      %vm2219 = vcmp.lt.s32.totalorder %v2218, 0
      %v2220 = vsub.s32 0, %v2218
      %v2221 = vsel %vm2219, %v2220, %v2218
      %v2222 = vclz %v2221
      %v2223 = vsub.s32 %v2222, 2
      %vm2224 = vcmp.gt.s32.totalorder 0, %v2223
      %v2225 = vsel %vm2224, 0, %v2223
      %v2226 = vsub.s32 32, %v2225
      %v2227 = vshll.u32 %v2218, %v2225
      %v2228 = vshrl.u32 %v2210, %v2226
      %v2229 = vor.u32 %v2227, %v2228
      %v2230 = vsub.s32 4294967266, %v2225
      %v2231 = vadd.s32 %v2230, 127
      %v2232 = vshll.u32 %v2231, 23
      %v2233 = vor.u32 4788187, %v2232
      %v2234 = vand.u32 2147483647, %v2233
      %v2236 = vcvt.s32.f32 %v2229
      %v2237 = vmul.f32 %v2236, %v2234
      %v2238 = vxor.u32 %v2237, 2147483648
      %v2239 = vsel %vm2156, %v2238, %v2237
      %v2240 = vsub.s32 4, %v2216
      %v2241 = vsel %vm2156, %v2240, %v2216
      %v2242 = vsel %vm2155, %v710, %v2239
      %v2243 = vsel %vm2155, 0, %v2241
      %v2244 = vcosq.f32.pop %v2242
      %v2245 = vsinq.f32.pop %v2242
      %vm2246 = vweird.f32 %v710
      %v2247 = vand.u32 %v2243, 3
      %vm2248 = vcmp.lt.s32.totalorder %v2247, 2
      %vm2249 = vcmp.eq.s32.totalorder %v2247, 0
      %v2250 = vxor.u32 %v2245, 2147483648
      %v2251 = vsel %vm2249, %v2244, %v2250
      %vm2252 = vcmp.eq.s32.totalorder %v2247, 2
      %v2253 = vxor.u32 %v2244, 2147483648
      %v2254 = vsel %vm2252, %v2253, %v2245
      %v2255 = vsel %vm2248, %v2251, %v2254
      %v2256 = vsel %vm2246, nan, %v2255
      %v2257 = vand.u32 2147483647, %v711
      %vm2258 = vcmp.le.f32.partialorder %v2257, 0.7853982
      %vm2259 = vcmp.lt.s32.totalorder %v711, 0
      %v2260 = vand.u32 %v711, 2139095040
      %v2261 = vshrl.u32 %v2260, 23
      %v2262 = vsub.s32 %v2261, 127
      %v2263 = vand.u32 2147483647, %v711
      %v2264 = vand.u32 %v2263, 8388607
      %v2265 = vor.u32 %v2264, 8388608
      %v2266 = vsub.s32 0, %v2265
      %v2267 = vadd.s32 %v2262, 1
      %vm2268 = vcmp.gt.s32.totalorder %v2267, 0
      %v2269 = vsel %vm2268, %v2267, 0
      %v2270 = vshrl.u32 %v2269, 5
      %v2271 = vand.u32 %v2269, 31
      %v2272 = vsub.s32 32, %v2271
      %v2273 = vshrl.u32 683565275, %v2272
      %v2274 = vshll.u32 683565275, %v2271
      %v2275 = vshrl.u32 2475754826, %v2272
      %v2276 = vor.u32 %v2274, %v2275
      %v2277 = vshll.u32 2475754826, %v2271
      %v2278 = vshrl.u32 2131351028, %v2272
      %v2279 = vor.u32 %v2277, %v2278
      %v2280 = vshll.u32 2131351028, %v2271
      %v2281 = vshrl.u32 2102212464, %v2272
      %v2282 = vor.u32 %v2280, %v2281
      %v2283 = vshll.u32 2102212464, %v2271
      %v2284 = vshrl.u32 920167782, %v2272
      %v2285 = vor.u32 %v2283, %v2284
      %v2286 = vshll.u32 920167782, %v2271
      %v2287 = vshrl.u32 1326507024, %v2272
      %v2288 = vor.u32 %v2286, %v2287
      %vm2289 = vcmp.lt.s32.totalorder %v2270, 1
      %vm2290 = vcmp.lt.s32.totalorder %v2270, 2
      %vm2291 = vcmp.lt.s32.totalorder %v2270, 3
      %vm2292 = vcmp.lt.s32.totalorder %v2270, 4
      %v2293 = vsel %vm2289, %v2273, %v2276
      %v2294 = vsel %vm2292, %v2282, 2102212464
      %v2295 = vsel %vm2291, %v2279, %v2294
      %v2296 = vsel %vm2290, %v2293, %v2295
      %v2297 = vsel %vm2289, %v2276, %v2279
      %v2298 = vsel %vm2292, %v2285, 920167782
      %v2299 = vsel %vm2291, %v2282, %v2298
      %v2300 = vsel %vm2290, %v2297, %v2299
      %v2301 = vsel %vm2289, %v2279, %v2282
      %v2302 = vsel %vm2292, %v2288, 1326507024
      %v2303 = vsel %vm2291, %v2285, %v2302
      %v2304 = vsel %vm2290, %v2301, %v2303
      %v2305 = vshll.u32 %v2265, 8
      %v2306 = vmul.u32.u64.compose %v2305, %v2304
      %v2307 = vextract.low.u32 %v2306
      %v2308 = vextract.high.u32 %v2306
      %v2309 = vmul.u32.u64.compose %v2305, %v2300
      %v2310 = vextract.low.u32 %v2309
      %v2311 = vextract.high.u32 %v2309
      %v2312 = vmul.u32 %v2305, %v2296
      %v2313 = vadd.s32 %v2308, %v2310
      %vm2314 = vc.u32 %v2308, %v2310
      %v2315 = vadd.s32 %v2311, 1
      %v2316 = vsel %vm2314, %v2315, %v2311
      %v2317 = vadd.s32 %v2312, %v2316
      %v2318 = vadd.s32 %v2317, 536870912
      %v2319 = vshrl.u32 %v2318, 30
      %v2320 = vshll.u32 %v2319, 30
      %v2321 = vsub.s32 %v2317, %v2320
      %vm2322 = vcmp.lt.s32.totalorder %v2321, 0
      %v2323 = vsub.s32 0, %v2321
      %v2324 = vsel %vm2322, %v2323, %v2321
      %v2325 = vclz %v2324
      %v2326 = vsub.s32 %v2325, 2
      %vm2327 = vcmp.gt.s32.totalorder 0, %v2326
      %v2328 = vsel %vm2327, 0, %v2326
      %v2329 = vsub.s32 32, %v2328
      %v2330 = vshll.u32 %v2321, %v2328
      %v2331 = vshrl.u32 %v2313, %v2329
      %v2332 = vor.u32 %v2330, %v2331
      %v2333 = vsub.s32 4294967266, %v2328
      %v2334 = vadd.s32 %v2333, 127
      %v2335 = vshll.u32 %v2334, 23
      %v2336 = vor.u32 4788187, %v2335
      %v2337 = vand.u32 2147483647, %v2336
      %v2339 = vcvt.s32.f32 %v2332
      %v2340 = vmul.f32 %v2339, %v2337
      %v2341 = vxor.u32 %v2340, 2147483648
      %v2342 = vsel %vm2259, %v2341, %v2340
      %v2343 = vsub.s32 4, %v2319
      %v2344 = vsel %vm2259, %v2343, %v2319
      %v2345 = vsel %vm2258, %v711, %v2342
      %v2346 = vsel %vm2258, 0, %v2344
      %v2347 = vcosq.f32.pop %v2345
      %v2348 = vsinq.f32.pop %v2345
      %vm2349 = vweird.f32 %v711
      %v2350 = vand.u32 %v2346, 3
      %vm2351 = vcmp.lt.s32.totalorder %v2350, 2
      %vm2352 = vcmp.eq.s32.totalorder %v2350, 0
      %v2353 = vxor.u32 %v2348, 2147483648
      %v2354 = vsel %vm2352, %v2347, %v2353
      %vm2355 = vcmp.eq.s32.totalorder %v2350, 2
      %v2356 = vxor.u32 %v2347, 2147483648
      %v2357 = vsel %vm2355, %v2356, %v2348
      %v2358 = vsel %vm2351, %v2354, %v2357
      %v2359 = vsel %vm2349, nan, %v2358
      %v2360 = vld [vmem:[%s608] sm:$0xff]
      %v2361 = vld [vmem:[%s608 + $0x8] sm:$0xff]
      %v2362 = vld [vmem:[%s608 + $0x10] sm:$0xff]
      %v2363 = vld [vmem:[%s608 + $0x18] sm:$0xff]
      %v2364 = vld [vmem:[%s608 + $0x20] sm:$0xff]
      %v2365 = vld [vmem:[%s608 + $0x28] sm:$0xff]
      %v2366 = vld [vmem:[%s608 + $0x30] sm:$0xff]
      %v2367 = vld [vmem:[%s608 + $0x38] sm:$0xff]
      %v2368 = vld [vmem:[%s608 + $0x40] sm:$0xff]
      %v2369 = vld [vmem:[%s608 + $0x48] sm:$0xff]
      %v2370 = vld [vmem:[%s608 + $0x50] sm:$0xff]
      %v2371 = vld [vmem:[%s608 + $0x58] sm:$0xff]
      %v2372 = vld [vmem:[%s608 + $0x60] sm:$0xff]
      %v2373 = vld [vmem:[%s608 + $0x68] sm:$0xff]
      %v2374 = vld [vmem:[%s608 + $0x70] sm:$0xff]
      %v2375 = vld [vmem:[%s608 + $0x78] sm:$0xff]
      %v2376 = vpack.c.bf16 %v917, %v814
      %v2377 = vpack.c.bf16 %v1123, %v1020
      %v2378 = vpack.c.bf16 %v1329, %v1226
      %v2379 = vpack.c.bf16 %v1535, %v1432
      %v2380 = vpack.c.bf16 %v1741, %v1638
      %v2381 = vpack.c.bf16 %v1947, %v1844
      %v2382 = vpack.c.bf16 %v2153, %v2050
      %v2383 = vpack.c.bf16 %v2359, %v2256
      %v2384 = vld [vmem:[%s617] sm:$0xf]
      %v2385 = vld [vmem:[%s617 + $0x4] sm:$0xf]
      %v2386 = vld [vmem:[%s620] sm:$0x1]
      %v2388 = vlaneseq
      %v2389 = vshrl.u32 %v2388, 7
      %v2390 = vsub.s32 0, %v2389
      %v2391 = vrot.slane %v2386, %v2390
      %v2395 = vunpack.c.l.b16 %v2384
      %v2396 = vunpack.c.l.b16 %v2385
      %v2397 = vpack.c.b16 %v2396, %v2395
      %vm2399 = vcmask 130048
      %v2401 = vsel %vm2399, %v2376, 0
      %v2404 = vsel %vm2399, %v2377, 0
      %v2407 = vsel %vm2399, %v2378, 0
      %v2410 = vsel %vm2399, %v2379, 0
      %v2413 = vsel %vm2399, %v2380, 0
      %v2416 = vsel %vm2399, %v2381, 0
      %v2419 = vsel %vm2399, %v2382, 0
      %v2422 = vsel %vm2399, %v2383, 0
      %2424 = vmatprep.subr.bf16.mxu0 0
      %2425 = vmatpush1.bf16.msra.mxu0 %v2397
      %2426 = vmatprep.subr.bf16.mxu0 0
      %2427 = vmatpush1.bf16.msra.mxu0 0
      %2428 = vmatprep.subr.bf16.mxu0 0
      %2429 = vmatpush1.bf16.msra.mxu0 0
      %2430 = vmatprep.subr.bf16.mxu0 0
      %2431 = vmatpush1.bf16.msra.mxu0 0
      %2432 = vmatprep.subr.bf16.mxu0 0
      %2433 = vmatpush1.bf16.msra.mxu0 0
      %2434 = vmatprep.subr.bf16.mxu0 0
      %2435 = vmatpush1.bf16.msra.mxu0 0
      %2436 = vmatprep.subr.bf16.mxu0 0
      %2437 = vmatpush1.bf16.msra.mxu0 0
      %2438 = vmatprep.subr.bf16.mxu0 0
      %2439 = vmatpush1.bf16.msra.mxu0 0
      %2440 = vmatprep.subr.bf16.mxu0 0
      %2441 = vmatpush1.bf16.msra.mxu0 0
      %2442 = vmatprep.subr.bf16.mxu0 0
      %2443 = vmatpush1.bf16.msra.mxu0 0
      %2444 = vmatprep.subr.bf16.mxu0 0
      %2445 = vmatpush1.bf16.msra.mxu0 0
      %2446 = vmatprep.subr.bf16.mxu0 0
      %2447 = vmatpush1.bf16.msra.mxu0 0
      %2448 = vmatprep.subr.bf16.mxu0 0
      %2449 = vmatpush1.bf16.msra.mxu0 0
      %2450 = vmatprep.subr.bf16.mxu0 0
      %2451 = vmatpush1.bf16.msra.mxu0 0
      %2452 = vmatprep.subr.bf16.mxu0 0
      %2453 = vmatpush1.bf16.msra.mxu0 0
      %2454 = vmatprep.subr.bf16.mxu0 0
      %2455 = vmatpush1.bf16.msra.mxu0 0
      %2456 = vmatprep.mubr.bf16.mxu0 0
      %2457 = vmatmul.mubr.bf16.gmra.mrb[0].mxu0 %v2401
      %v2458 = vpop.f32.mrb[0].mxu0
      %v2459 = vadd.f32 %v2391, %v2458
      %v2460 = vpop.f32.mrb[0].mxu0
      %v2461 = vpop.f32.mrb[0].mxu0
      %v2462 = vadd.f32 %v2391, %v2461
      %v2463 = vpop.f32.mrb[0].mxu0
      %2464 = vmatprep.mubr.bf16.mxu0 0
      %2465 = vmatmul.mubr.bf16.gmra.mrb[0].mxu0 %v2404
      %v2466 = vpop.f32.mrb[0].mxu0
      %v2467 = vadd.f32 %v2391, %v2466
      %v2468 = vpop.f32.mrb[0].mxu0
      %v2469 = vpop.f32.mrb[0].mxu0
      %v2470 = vadd.f32 %v2391, %v2469
      %v2471 = vpop.f32.mrb[0].mxu0
      %2472 = vmatprep.mubr.bf16.mxu0 0
      %2473 = vmatmul.mubr.bf16.gmra.mrb[0].mxu0 %v2407
      %v2474 = vpop.f32.mrb[0].mxu0
      %v2475 = vadd.f32 %v2391, %v2474
      %v2476 = vpop.f32.mrb[0].mxu0
      %v2477 = vpop.f32.mrb[0].mxu0
      %v2478 = vadd.f32 %v2391, %v2477
      %v2479 = vpop.f32.mrb[0].mxu0
      %2480 = vmatprep.mubr.bf16.mxu0 0
      %2481 = vmatmul.mubr.bf16.gmra.mrb[0].mxu0 %v2410
      %v2482 = vpop.f32.mrb[0].mxu0
      %v2483 = vadd.f32 %v2391, %v2482
      %v2484 = vpop.f32.mrb[0].mxu0
      %v2485 = vpop.f32.mrb[0].mxu0
      %v2486 = vadd.f32 %v2391, %v2485
      %v2487 = vpop.f32.mrb[0].mxu0
      %2488 = vmatprep.mubr.bf16.mxu0 0
      %2489 = vmatmul.mubr.bf16.gmra.mrb[0].mxu0 %v2413
      %v2490 = vpop.f32.mrb[0].mxu0
      %v2491 = vadd.f32 %v2391, %v2490
      %v2492 = vpop.f32.mrb[0].mxu0
      %v2493 = vpop.f32.mrb[0].mxu0
      %v2494 = vadd.f32 %v2391, %v2493
      %v2495 = vpop.f32.mrb[0].mxu0
      %2496 = vmatprep.mubr.bf16.mxu0 0
      %2497 = vmatmul.mubr.bf16.gmra.mrb[0].mxu0 %v2416
      %v2498 = vpop.f32.mrb[0].mxu0
      %v2499 = vadd.f32 %v2391, %v2498
      %v2500 = vpop.f32.mrb[0].mxu0
      %v2501 = vpop.f32.mrb[0].mxu0
      %v2502 = vadd.f32 %v2391, %v2501
      %v2503 = vpop.f32.mrb[0].mxu0
      %2504 = vmatprep.mubr.bf16.mxu0 0
      %2505 = vmatmul.mubr.bf16.gmra.mrb[0].mxu0 %v2419
      %v2506 = vpop.f32.mrb[0].mxu0
      %v2507 = vadd.f32 %v2391, %v2506
      %v2508 = vpop.f32.mrb[0].mxu0
      %v2509 = vpop.f32.mrb[0].mxu0
      %v2510 = vadd.f32 %v2391, %v2509
      %v2511 = vpop.f32.mrb[0].mxu0
      %2512 = vmatprep.mubr.bf16.mxu0 0
      %2513 = vmatmul.mubr.bf16.gmra.mrb[0].mxu0 %v2422
      %v2514 = vpop.f32.mrb[0].mxu0
      %v2515 = vadd.f32 %v2391, %v2514
      %v2516 = vpop.f32.mrb[0].mxu0
      %v2517 = vpop.f32.mrb[0].mxu0
      %v2518 = vadd.f32 %v2391, %v2517
      %v2519 = vpop.f32.mrb[0].mxu0
      %2520 = vdwg.mxu0
      %v2521 = vtanh.pop %v2459
      %v2522 = vtanh.pop %v2462
      %v2523 = vtanh.pop %v2467
      %v2524 = vtanh.pop %v2470
      %v2525 = vtanh.pop %v2475
      %v2526 = vtanh.pop %v2478
      %v2527 = vtanh.pop %v2483
      %v2528 = vtanh.pop %v2486
      %v2529 = vtanh.pop %v2491
      %v2530 = vtanh.pop %v2494
      %v2531 = vtanh.pop %v2499
      %v2532 = vtanh.pop %v2502
      %v2533 = vtanh.pop %v2507
      %v2534 = vtanh.pop %v2510
      %v2535 = vtanh.pop %v2515
      %v2536 = vtanh.pop %v2518
      %v2537 = vpack.c.bf16 %v2522, %v2521
      %v2538 = vpack.c.bf16 %v2524, %v2523
      %v2539 = vpack.c.bf16 %v2526, %v2525
      %v2540 = vpack.c.bf16 %v2528, %v2527
      %v2541 = vpack.c.bf16 %v2530, %v2529
      %v2542 = vpack.c.bf16 %v2532, %v2531
      %v2543 = vpack.c.bf16 %v2534, %v2533
      %v2544 = vpack.c.bf16 %v2536, %v2535
      %v2545 = vld [vmem:[%s625] sm:$0xf]
      %v2546 = vld [vmem:[%s625 + $0x4] sm:$0xf]
      %v2547 = vld [vmem:[%s625 + $0x8] sm:$0xf]
      %v2548 = vld [vmem:[%s625 + $0xc] sm:$0xf]
      %v2549 = vld [vmem:[%s625 + $0x10] sm:$0xf]
      %v2550 = vld [vmem:[%s625 + $0x14] sm:$0xf]
      %v2551 = vld [vmem:[%s625 + $0x18] sm:$0xf]
      %v2552 = vld [vmem:[%s625 + $0x1c] sm:$0xf]
      %v2553 = vld [vmem:[%s628] sm:$0x1]
      %v2555 = vlaneseq
      %v2556 = vshrl.u32 %v2555, 7
      %v2557 = vsub.s32 0, %v2556
      %v2558 = vrot.slane %v2553, %v2557
      %v2568 = vunpack.c.l.b16 %v2545
      %v2569 = vunpack.c.l.b16 %v2546
      %v2570 = vunpack.c.l.b16 %v2547
      %v2571 = vunpack.c.l.b16 %v2548
      %v2572 = vunpack.c.l.b16 %v2549
      %v2573 = vunpack.c.l.b16 %v2550
      %v2574 = vunpack.c.l.b16 %v2551
      %v2575 = vunpack.c.l.b16 %v2552
      %v2576 = vpack.c.b16 %v2569, %v2568
      %v2577 = vpack.c.b16 %v2571, %v2570
      %v2578 = vpack.c.b16 %v2573, %v2572
      %v2579 = vpack.c.b16 %v2575, %v2574
      %vm2584 = vcmask 523264
      %v2586 = vsel %vm2584, %v2537, 0
      %v2589 = vsel %vm2584, %v2538, 0
      %v2592 = vsel %vm2584, %v2539, 0
      %v2595 = vsel %vm2584, %v2540, 0
      %v2598 = vsel %vm2584, %v2541, 0
      %v2601 = vsel %vm2584, %v2542, 0
      %v2604 = vsel %vm2584, %v2543, 0
      %v2607 = vsel %vm2584, %v2544, 0
      %2609 = vmatprep.subr.bf16.mxu0 0
      %2610 = vmatpush1.bf16.msra.mxu0 %v2576
      %2611 = vmatprep.subr.bf16.mxu0 0
      %2612 = vmatpush1.bf16.msra.mxu0 %v2577
      %2613 = vmatprep.subr.bf16.mxu0 0
      %2614 = vmatpush1.bf16.msra.mxu0 %v2578
      %2615 = vmatprep.subr.bf16.mxu0 0
      %2616 = vmatpush1.bf16.msra.mxu0 %v2579
      %2617 = vmatprep.subr.bf16.mxu0 0
      %2618 = vmatpush1.bf16.msra.mxu0 0
      %2619 = vmatprep.subr.bf16.mxu0 0
      %2620 = vmatpush1.bf16.msra.mxu0 0
      %2621 = vmatprep.subr.bf16.mxu0 0
      %2622 = vmatpush1.bf16.msra.mxu0 0
      %2623 = vmatprep.subr.bf16.mxu0 0
      %2624 = vmatpush1.bf16.msra.mxu0 0
      %2625 = vmatprep.subr.bf16.mxu0 0
      %2626 = vmatpush1.bf16.msra.mxu0 0
      %2627 = vmatprep.subr.bf16.mxu0 0
      %2628 = vmatpush1.bf16.msra.mxu0 0
      %2629 = vmatprep.subr.bf16.mxu0 0
      %2630 = vmatpush1.bf16.msra.mxu0 0
      %2631 = vmatprep.subr.bf16.mxu0 0
      %2632 = vmatpush1.bf16.msra.mxu0 0
      %2633 = vmatprep.subr.bf16.mxu0 0
      %2634 = vmatpush1.bf16.msra.mxu0 0
      %2635 = vmatprep.subr.bf16.mxu0 0
      %2636 = vmatpush1.bf16.msra.mxu0 0
      %2637 = vmatprep.subr.bf16.mxu0 0
      %2638 = vmatpush1.bf16.msra.mxu0 0
      %2639 = vmatprep.subr.bf16.mxu0 0
      %2640 = vmatpush1.bf16.msra.mxu0 0
      %2641 = vmatprep.mubr.bf16.mxu0 0
      %2642 = vmatmul.mubr.bf16.gmra.mrb[0].mxu0 %v2586
      %v2643 = vpop.f32.mrb[0].mxu0
      %v2644 = vadd.f32 %v2558, %v2643
      %v2645 = vpop.f32.mrb[0].mxu0
      %v2646 = vpop.f32.mrb[0].mxu0
      %v2647 = vadd.f32 %v2558, %v2646
      %v2648 = vpop.f32.mrb[0].mxu0
      %2649 = vmatprep.mubr.bf16.mxu0 0
      %2650 = vmatmul.mubr.bf16.gmra.mrb[0].mxu0 %v2589
      %v2651 = vpop.f32.mrb[0].mxu0
      %v2652 = vadd.f32 %v2558, %v2651
      %v2653 = vpop.f32.mrb[0].mxu0
      %v2654 = vpop.f32.mrb[0].mxu0
      %v2655 = vadd.f32 %v2558, %v2654
      %v2656 = vpop.f32.mrb[0].mxu0
      %2657 = vmatprep.mubr.bf16.mxu0 0
      %2658 = vmatmul.mubr.bf16.gmra.mrb[0].mxu0 %v2592
      %v2659 = vpop.f32.mrb[0].mxu0
      %v2660 = vadd.f32 %v2558, %v2659
      %v2661 = vpop.f32.mrb[0].mxu0
      %v2662 = vpop.f32.mrb[0].mxu0
      %v2663 = vadd.f32 %v2558, %v2662
      %v2664 = vpop.f32.mrb[0].mxu0
      %2665 = vmatprep.mubr.bf16.mxu0 0
      %2666 = vmatmul.mubr.bf16.gmra.mrb[0].mxu0 %v2595
      %v2667 = vpop.f32.mrb[0].mxu0
      %v2668 = vadd.f32 %v2558, %v2667
      %v2669 = vpop.f32.mrb[0].mxu0
      %v2670 = vpop.f32.mrb[0].mxu0
      %v2671 = vadd.f32 %v2558, %v2670
      %v2672 = vpop.f32.mrb[0].mxu0
      %2673 = vmatprep.mubr.bf16.mxu0 0
      %2674 = vmatmul.mubr.bf16.gmra.mrb[0].mxu0 %v2598
      %v2675 = vpop.f32.mrb[0].mxu0
      %v2676 = vadd.f32 %v2558, %v2675
      %v2677 = vpop.f32.mrb[0].mxu0
      %v2678 = vpop.f32.mrb[0].mxu0
      %v2679 = vadd.f32 %v2558, %v2678
      %v2680 = vpop.f32.mrb[0].mxu0
      %2681 = vmatprep.mubr.bf16.mxu0 0
      %2682 = vmatmul.mubr.bf16.gmra.mrb[0].mxu0 %v2601
      %v2683 = vpop.f32.mrb[0].mxu0
      %v2684 = vadd.f32 %v2558, %v2683
      %v2685 = vpop.f32.mrb[0].mxu0
      %v2686 = vpop.f32.mrb[0].mxu0
      %v2687 = vadd.f32 %v2558, %v2686
      %v2688 = vpop.f32.mrb[0].mxu0
      %2689 = vmatprep.mubr.bf16.mxu0 0
      %2690 = vmatmul.mubr.bf16.gmra.mrb[0].mxu0 %v2604
      %v2691 = vpop.f32.mrb[0].mxu0
      %v2692 = vadd.f32 %v2558, %v2691
      %v2693 = vpop.f32.mrb[0].mxu0
      %v2694 = vpop.f32.mrb[0].mxu0
      %v2695 = vadd.f32 %v2558, %v2694
      %v2696 = vpop.f32.mrb[0].mxu0
      %2697 = vmatprep.mubr.bf16.mxu0 0
      %2698 = vmatmul.mubr.bf16.gmra.mrb[0].mxu0 %v2607
      %v2699 = vpop.f32.mrb[0].mxu0
      %v2700 = vadd.f32 %v2558, %v2699
      %v2701 = vpop.f32.mrb[0].mxu0
      %v2702 = vpop.f32.mrb[0].mxu0
      %v2703 = vadd.f32 %v2558, %v2702
      %v2704 = vpop.f32.mrb[0].mxu0
      %2705 = vdwg.mxu0
      %v2706 = vtanh.pop %v2644
      %v2707 = vtanh.pop %v2647
      %v2708 = vtanh.pop %v2652
      %v2709 = vtanh.pop %v2655
      %v2710 = vtanh.pop %v2660
      %v2711 = vtanh.pop %v2663
      %v2712 = vtanh.pop %v2668
      %v2713 = vtanh.pop %v2671
      %v2714 = vtanh.pop %v2676
      %v2715 = vtanh.pop %v2679
      %v2716 = vtanh.pop %v2684
      %v2717 = vtanh.pop %v2687
      %v2718 = vtanh.pop %v2692
      %v2719 = vtanh.pop %v2695
      %v2720 = vtanh.pop %v2700
      %v2721 = vtanh.pop %v2703
      %v2722 = vpack.c.bf16 %v2707, %v2706
      %v2723 = vpack.c.bf16 %v2709, %v2708
      %v2724 = vpack.c.bf16 %v2711, %v2710
      %v2725 = vpack.c.bf16 %v2713, %v2712
      %v2726 = vpack.c.bf16 %v2715, %v2714
      %v2727 = vpack.c.bf16 %v2717, %v2716
      %v2728 = vpack.c.bf16 %v2719, %v2718
      %v2729 = vpack.c.bf16 %v2721, %v2720
      %v2730 = vld [vmem:[%s633] sm:$0xf]
      %v2731 = vld [vmem:[%s633 + $0x4] sm:$0xf]
      %v2732 = vld [vmem:[%s633 + $0x8] sm:$0xf]
      %v2733 = vld [vmem:[%s633 + $0xc] sm:$0xf]
      %v2734 = vld [vmem:[%s633 + $0x10] sm:$0xf]
      %v2735 = vld [vmem:[%s633 + $0x14] sm:$0xf]
      %v2736 = vld [vmem:[%s633 + $0x18] sm:$0xf]
      %v2737 = vld [vmem:[%s633 + $0x1c] sm:$0xf]
      %v2738 = vld [vmem:[%s636] sm:$0x1]
      %v2740 = vlaneseq
      %v2741 = vshrl.u32 %v2740, 7
      %v2742 = vsub.s32 0, %v2741
      %v2743 = vrot.slane %v2738, %v2742
      %v2753 = vunpack.c.l.b16 %v2730
      %v2754 = vunpack.c.l.b16 %v2731
      %v2755 = vunpack.c.l.b16 %v2732
      %v2756 = vunpack.c.l.b16 %v2733
      %v2757 = vunpack.c.l.b16 %v2734
      %v2758 = vunpack.c.l.b16 %v2735
      %v2759 = vunpack.c.l.b16 %v2736
      %v2760 = vunpack.c.l.b16 %v2737
      %v2761 = vpack.c.b16 %v2754, %v2753
      %v2762 = vpack.c.b16 %v2756, %v2755
      %v2763 = vpack.c.b16 %v2758, %v2757
      %v2764 = vpack.c.b16 %v2760, %v2759
      %v2770 = vsel %vm2584, %v2722, 0
      %v2773 = vsel %vm2584, %v2723, 0
      %v2776 = vsel %vm2584, %v2724, 0
      %v2779 = vsel %vm2584, %v2725, 0
      %v2782 = vsel %vm2584, %v2726, 0
      %v2785 = vsel %vm2584, %v2727, 0
      %v2788 = vsel %vm2584, %v2728, 0
      %v2791 = vsel %vm2584, %v2729, 0
      %2793 = vmatprep.subr.bf16.mxu0 0
      %2794 = vmatpush1.bf16.msra.mxu0 %v2761
      %2795 = vmatprep.subr.bf16.mxu0 0
      %2796 = vmatpush1.bf16.msra.mxu0 %v2762
      %2797 = vmatprep.subr.bf16.mxu0 0
      %2798 = vmatpush1.bf16.msra.mxu0 %v2763
      %2799 = vmatprep.subr.bf16.mxu0 0
      %2800 = vmatpush1.bf16.msra.mxu0 %v2764
      %2801 = vmatprep.subr.bf16.mxu0 0
      %2802 = vmatpush1.bf16.msra.mxu0 0
      %2803 = vmatprep.subr.bf16.mxu0 0
      %2804 = vmatpush1.bf16.msra.mxu0 0
      %2805 = vmatprep.subr.bf16.mxu0 0
      %2806 = vmatpush1.bf16.msra.mxu0 0
      %2807 = vmatprep.subr.bf16.mxu0 0
      %2808 = vmatpush1.bf16.msra.mxu0 0
      %2809 = vmatprep.subr.bf16.mxu0 0
      %2810 = vmatpush1.bf16.msra.mxu0 0
      %2811 = vmatprep.subr.bf16.mxu0 0
      %2812 = vmatpush1.bf16.msra.mxu0 0
      %2813 = vmatprep.subr.bf16.mxu0 0
      %2814 = vmatpush1.bf16.msra.mxu0 0
      %2815 = vmatprep.subr.bf16.mxu0 0
      %2816 = vmatpush1.bf16.msra.mxu0 0
      %2817 = vmatprep.subr.bf16.mxu0 0
      %2818 = vmatpush1.bf16.msra.mxu0 0
      %2819 = vmatprep.subr.bf16.mxu0 0
      %2820 = vmatpush1.bf16.msra.mxu0 0
      %2821 = vmatprep.subr.bf16.mxu0 0
      %2822 = vmatpush1.bf16.msra.mxu0 0
      %2823 = vmatprep.subr.bf16.mxu0 0
      %2824 = vmatpush1.bf16.msra.mxu0 0
      %2825 = vmatprep.mubr.bf16.mxu0 0
      %2826 = vmatmul.mubr.bf16.gmra.mrb[0].mxu0 %v2770
      %v2827 = vpop.f32.mrb[0].mxu0
      %v2828 = vadd.f32 %v2743, %v2827
      %v2829 = vpop.f32.mrb[0].mxu0
      %v2830 = vpop.f32.mrb[0].mxu0
      %v2831 = vadd.f32 %v2743, %v2830
      %v2832 = vpop.f32.mrb[0].mxu0
      %2833 = vmatprep.mubr.bf16.mxu0 0
      %2834 = vmatmul.mubr.bf16.gmra.mrb[0].mxu0 %v2773
      %v2835 = vpop.f32.mrb[0].mxu0
      %v2836 = vadd.f32 %v2743, %v2835
      %v2837 = vpop.f32.mrb[0].mxu0
      %v2838 = vpop.f32.mrb[0].mxu0
      %v2839 = vadd.f32 %v2743, %v2838
      %v2840 = vpop.f32.mrb[0].mxu0
      %2841 = vmatprep.mubr.bf16.mxu0 0
      %2842 = vmatmul.mubr.bf16.gmra.mrb[0].mxu0 %v2776
      %v2843 = vpop.f32.mrb[0].mxu0
      %v2844 = vadd.f32 %v2743, %v2843
      %v2845 = vpop.f32.mrb[0].mxu0
      %v2846 = vpop.f32.mrb[0].mxu0
      %v2847 = vadd.f32 %v2743, %v2846
      %v2848 = vpop.f32.mrb[0].mxu0
      %2849 = vmatprep.mubr.bf16.mxu0 0
      %2850 = vmatmul.mubr.bf16.gmra.mrb[0].mxu0 %v2779
      %v2851 = vpop.f32.mrb[0].mxu0
      %v2852 = vadd.f32 %v2743, %v2851
      %v2853 = vpop.f32.mrb[0].mxu0
      %v2854 = vpop.f32.mrb[0].mxu0
      %v2855 = vadd.f32 %v2743, %v2854
      %v2856 = vpop.f32.mrb[0].mxu0
      %2857 = vmatprep.mubr.bf16.mxu0 0
      %2858 = vmatmul.mubr.bf16.gmra.mrb[0].mxu0 %v2782
      %v2859 = vpop.f32.mrb[0].mxu0
      %v2860 = vadd.f32 %v2743, %v2859
      %v2861 = vpop.f32.mrb[0].mxu0
      %v2862 = vpop.f32.mrb[0].mxu0
      %v2863 = vadd.f32 %v2743, %v2862
      %v2864 = vpop.f32.mrb[0].mxu0
      %2865 = vmatprep.mubr.bf16.mxu0 0
      %2866 = vmatmul.mubr.bf16.gmra.mrb[0].mxu0 %v2785
      %v2867 = vpop.f32.mrb[0].mxu0
      %v2868 = vadd.f32 %v2743, %v2867
      %v2869 = vpop.f32.mrb[0].mxu0
      %v2870 = vpop.f32.mrb[0].mxu0
      %v2871 = vadd.f32 %v2743, %v2870
      %v2872 = vpop.f32.mrb[0].mxu0
      %2873 = vmatprep.mubr.bf16.mxu0 0
      %2874 = vmatmul.mubr.bf16.gmra.mrb[0].mxu0 %v2788
      %v2875 = vpop.f32.mrb[0].mxu0
      %v2876 = vadd.f32 %v2743, %v2875
      %v2877 = vpop.f32.mrb[0].mxu0
      %v2878 = vpop.f32.mrb[0].mxu0
      %v2879 = vadd.f32 %v2743, %v2878
      %v2880 = vpop.f32.mrb[0].mxu0
      %2881 = vmatprep.mubr.bf16.mxu0 0
      %2882 = vmatmul.mubr.bf16.gmra.mrb[0].mxu0 %v2791
      %v2883 = vpop.f32.mrb[0].mxu0
      %v2884 = vadd.f32 %v2743, %v2883
      %v2885 = vpop.f32.mrb[0].mxu0
      %v2886 = vpop.f32.mrb[0].mxu0
      %v2887 = vadd.f32 %v2743, %v2886
      %v2888 = vpop.f32.mrb[0].mxu0
      %2889 = vdwg.mxu0
      %vm2890 = vcmask 261120
      %v2891 = vsel %vm2890, %v2828, -inf
      %2892 = vmax.xlane.f32.xlu0 %v2891
      %v2893 = vpop.xlane.xlu0 %2892
      %v2894 = vsel %vm2890, %v2831, -inf
      %2895 = vmax.xlane.f32.xlu0 %v2894
      %v2896 = vpop.xlane.xlu0 %2895
      %v2897 = vsel %vm2890, %v2836, -inf
      %2898 = vmax.xlane.f32.xlu0 %v2897
      %v2899 = vpop.xlane.xlu0 %2898
      %v2900 = vsel %vm2890, %v2839, -inf
      %2901 = vmax.xlane.f32.xlu0 %v2900
      %v2902 = vpop.xlane.xlu0 %2901
      %v2903 = vsel %vm2890, %v2844, -inf
      %2904 = vmax.xlane.f32.xlu0 %v2903
      %v2905 = vpop.xlane.xlu0 %2904
      %v2906 = vsel %vm2890, %v2847, -inf
      %2907 = vmax.xlane.f32.xlu0 %v2906
      %v2908 = vpop.xlane.xlu0 %2907
      %v2909 = vsel %vm2890, %v2852, -inf
      %2910 = vmax.xlane.f32.xlu0 %v2909
      %v2911 = vpop.xlane.xlu0 %2910
      %v2912 = vsel %vm2890, %v2855, -inf
      %2913 = vmax.xlane.f32.xlu0 %v2912
      %v2914 = vpop.xlane.xlu0 %2913
      %v2915 = vsel %vm2890, %v2860, -inf
      %2916 = vmax.xlane.f32.xlu0 %v2915
      %v2917 = vpop.xlane.xlu0 %2916
      %v2918 = vsel %vm2890, %v2863, -inf
      %2919 = vmax.xlane.f32.xlu0 %v2918
      %v2920 = vpop.xlane.xlu0 %2919
      %v2921 = vsel %vm2890, %v2868, -inf
      %2922 = vmax.xlane.f32.xlu0 %v2921
      %v2923 = vpop.xlane.xlu0 %2922
      %v2924 = vsel %vm2890, %v2871, -inf
      %2925 = vmax.xlane.f32.xlu0 %v2924
      %v2926 = vpop.xlane.xlu0 %2925
      %v2927 = vsel %vm2890, %v2876, -inf
      %2928 = vmax.xlane.f32.xlu0 %v2927
      %v2929 = vpop.xlane.xlu0 %2928
      %v2930 = vsel %vm2890, %v2879, -inf
      %2931 = vmax.xlane.f32.xlu0 %v2930
      %v2932 = vpop.xlane.xlu0 %2931
      %v2933 = vsel %vm2890, %v2884, -inf
      %2934 = vmax.xlane.f32.xlu0 %v2933
      %v2935 = vpop.xlane.xlu0 %2934
      %v2936 = vsel %vm2890, %v2887, -inf
      %2937 = vmax.xlane.f32.xlu0 %v2936
      %v2938 = vpop.xlane.xlu0 %2937
      %v2939 = vsub.f32 %v2828, %v2893
      %v2940 = vsub.f32 %v2831, %v2896
      %v2941 = vsub.f32 %v2836, %v2899
      %v2942 = vsub.f32 %v2839, %v2902
      %v2943 = vsub.f32 %v2844, %v2905
      %v2944 = vsub.f32 %v2847, %v2908
      %v2945 = vsub.f32 %v2852, %v2911
      %v2946 = vsub.f32 %v2855, %v2914
      %v2947 = vsub.f32 %v2860, %v2917
      %v2948 = vsub.f32 %v2863, %v2920
      %v2949 = vsub.f32 %v2868, %v2923
      %v2950 = vsub.f32 %v2871, %v2926
      %v2951 = vsub.f32 %v2876, %v2929
      %v2952 = vsub.f32 %v2879, %v2932
      %v2953 = vsub.f32 %v2884, %v2935
      %v2954 = vsub.f32 %v2887, %v2938
      %v2955 = vmul.f32 %v2939, 1.442695
      %v2956 = vpow.pop %v2955
      %v2957 = vmul.f32 %v2940, 1.442695
      %v2958 = vpow.pop %v2957
      %v2959 = vmul.f32 %v2941, 1.442695
      %v2960 = vpow.pop %v2959
      %v2961 = vmul.f32 %v2942, 1.442695
      %v2962 = vpow.pop %v2961
      %v2963 = vmul.f32 %v2943, 1.442695
      %v2964 = vpow.pop %v2963
      %v2965 = vmul.f32 %v2944, 1.442695
      %v2966 = vpow.pop %v2965
      %v2967 = vmul.f32 %v2945, 1.442695
      %v2968 = vpow.pop %v2967
      %v2969 = vmul.f32 %v2946, 1.442695
      %v2970 = vpow.pop %v2969
      %v2971 = vmul.f32 %v2947, 1.442695
      %v2972 = vpow.pop %v2971
      %v2973 = vmul.f32 %v2948, 1.442695
      %v2974 = vpow.pop %v2973
      %v2975 = vmul.f32 %v2949, 1.442695
      %v2976 = vpow.pop %v2975
      %v2977 = vmul.f32 %v2950, 1.442695
      %v2978 = vpow.pop %v2977
      %v2979 = vmul.f32 %v2951, 1.442695
      %v2980 = vpow.pop %v2979
      %v2981 = vmul.f32 %v2952, 1.442695
      %v2982 = vpow.pop %v2981
      %v2983 = vmul.f32 %v2953, 1.442695
      %v2984 = vpow.pop %v2983
      %v2985 = vmul.f32 %v2954, 1.442695
      %v2986 = vpow.pop %v2985
      %v2987 = vsel %vm2890, %v2956, 0.0
      %2988 = vadd.xlane.f32.xlu0 %v2987
      %v2989 = vpop.xlane.xlu0 %2988
      %v2990 = vsel %vm2890, %v2958, 0.0
      %2991 = vadd.xlane.f32.xlu0 %v2990
      %v2992 = vpop.xlane.xlu0 %2991
      %v2993 = vsel %vm2890, %v2960, 0.0
      %2994 = vadd.xlane.f32.xlu0 %v2993
      %v2995 = vpop.xlane.xlu0 %2994
      %v2996 = vsel %vm2890, %v2962, 0.0
      %2997 = vadd.xlane.f32.xlu0 %v2996
      %v2998 = vpop.xlane.xlu0 %2997
      %v2999 = vsel %vm2890, %v2964, 0.0
      %3000 = vadd.xlane.f32.xlu0 %v2999
      %v3001 = vpop.xlane.xlu0 %3000
      %v3002 = vsel %vm2890, %v2966, 0.0
      %3003 = vadd.xlane.f32.xlu0 %v3002
      %v3004 = vpop.xlane.xlu0 %3003
      %v3005 = vsel %vm2890, %v2968, 0.0
      %3006 = vadd.xlane.f32.xlu0 %v3005
      %v3007 = vpop.xlane.xlu0 %3006
      %v3008 = vsel %vm2890, %v2970, 0.0
      %3009 = vadd.xlane.f32.xlu0 %v3008
      %v3010 = vpop.xlane.xlu0 %3009
      %v3011 = vsel %vm2890, %v2972, 0.0
      %3012 = vadd.xlane.f32.xlu0 %v3011
      %v3013 = vpop.xlane.xlu0 %3012
      %v3014 = vsel %vm2890, %v2974, 0.0
      %3015 = vadd.xlane.f32.xlu0 %v3014
      %v3016 = vpop.xlane.xlu0 %3015
      %v3017 = vsel %vm2890, %v2976, 0.0
      %3018 = vadd.xlane.f32.xlu0 %v3017
      %v3019 = vpop.xlane.xlu0 %3018
      %v3020 = vsel %vm2890, %v2978, 0.0
      %3021 = vadd.xlane.f32.xlu0 %v3020
      %v3022 = vpop.xlane.xlu0 %3021
      %v3023 = vsel %vm2890, %v2980, 0.0
      %3024 = vadd.xlane.f32.xlu0 %v3023
      %v3025 = vpop.xlane.xlu0 %3024
      %v3026 = vsel %vm2890, %v2982, 0.0
      %3027 = vadd.xlane.f32.xlu0 %v3026
      %v3028 = vpop.xlane.xlu0 %3027
      %v3029 = vsel %vm2890, %v2984, 0.0
      %3030 = vadd.xlane.f32.xlu0 %v3029
      %v3031 = vpop.xlane.xlu0 %3030
      %v3032 = vsel %vm2890, %v2986, 0.0
      %3033 = vadd.xlane.f32.xlu0 %v3032
      %v3034 = vpop.xlane.xlu0 %3033
      %v3035 = vrcp.pop %v2989
      %v3036 = vmul.f32 %v2956, %v3035
      %v3037 = vrcp.pop %v2992
      %v3038 = vmul.f32 %v2958, %v3037
      %v3039 = vrcp.pop %v2995
      %v3040 = vmul.f32 %v2960, %v3039
      %v3041 = vrcp.pop %v2998
      %v3042 = vmul.f32 %v2962, %v3041
      %v3043 = vrcp.pop %v3001
      %v3044 = vmul.f32 %v2964, %v3043
      %v3045 = vrcp.pop %v3004
      %v3046 = vmul.f32 %v2966, %v3045
      %v3047 = vrcp.pop %v3007
      %v3048 = vmul.f32 %v2968, %v3047
      %v3049 = vrcp.pop %v3010
      %v3050 = vmul.f32 %v2970, %v3049
      %v3051 = vrcp.pop %v3013
      %v3052 = vmul.f32 %v2972, %v3051
      %v3053 = vrcp.pop %v3016
      %v3054 = vmul.f32 %v2974, %v3053
      %v3055 = vrcp.pop %v3019
      %v3056 = vmul.f32 %v2976, %v3055
      %v3057 = vrcp.pop %v3022
      %v3058 = vmul.f32 %v2978, %v3057
      %v3059 = vrcp.pop %v3025
      %v3060 = vmul.f32 %v2980, %v3059
      %v3061 = vrcp.pop %v3028
      %v3062 = vmul.f32 %v2982, %v3061
      %v3063 = vrcp.pop %v3031
      %v3064 = vmul.f32 %v2984, %v3063
      %v3065 = vrcp.pop %v3034
      %v3066 = vmul.f32 %v2986, %v3065
      %v3067 = vmul.f32 %v3036, 6.0
      %v3068 = vmul.f32 %v3038, 6.0
      %v3069 = vmul.f32 %v3040, 6.0
      %v3070 = vmul.f32 %v3042, 6.0
      %v3071 = vmul.f32 %v3044, 6.0
      %v3072 = vmul.f32 %v3046, 6.0
      %v3073 = vmul.f32 %v3048, 6.0
      %v3074 = vmul.f32 %v3050, 6.0
      %v3075 = vmul.f32 %v3052, 6.0
      %v3076 = vmul.f32 %v3054, 6.0
      %v3077 = vmul.f32 %v3056, 6.0
      %v3078 = vmul.f32 %v3058, 6.0
      %v3079 = vmul.f32 %v3060, 6.0
      %v3080 = vmul.f32 %v3062, 6.0
      %v3081 = vmul.f32 %v3064, 6.0
      %v3082 = vmul.f32 %v3066, 6.0
      %vm3083 = vcmask 523520
      %v3084 = vsel %vm3083, %v2828, -inf
      %3085 = vmax.xlane.f32.xlu0 %v3084
      %v3086 = vpop.xlane.xlu0 %3085
      %v3087 = vsel %vm3083, %v2831, -inf
      %3088 = vmax.xlane.f32.xlu0 %v3087
      %v3089 = vpop.xlane.xlu0 %3088
      %v3090 = vsel %vm3083, %v2836, -inf
      %3091 = vmax.xlane.f32.xlu0 %v3090
      %v3092 = vpop.xlane.xlu0 %3091
      %v3093 = vsel %vm3083, %v2839, -inf
      %3094 = vmax.xlane.f32.xlu0 %v3093
      %v3095 = vpop.xlane.xlu0 %3094
      %v3096 = vsel %vm3083, %v2844, -inf
      %3097 = vmax.xlane.f32.xlu0 %v3096
      %v3098 = vpop.xlane.xlu0 %3097
      %v3099 = vsel %vm3083, %v2847, -inf
      %3100 = vmax.xlane.f32.xlu0 %v3099
      %v3101 = vpop.xlane.xlu0 %3100
      %v3102 = vsel %vm3083, %v2852, -inf
      %3103 = vmax.xlane.f32.xlu0 %v3102
      %v3104 = vpop.xlane.xlu0 %3103
      %v3105 = vsel %vm3083, %v2855, -inf
      %3106 = vmax.xlane.f32.xlu0 %v3105
      %v3107 = vpop.xlane.xlu0 %3106
      %v3108 = vsel %vm3083, %v2860, -inf
      %3109 = vmax.xlane.f32.xlu0 %v3108
      %v3110 = vpop.xlane.xlu0 %3109
      %v3111 = vsel %vm3083, %v2863, -inf
      %3112 = vmax.xlane.f32.xlu0 %v3111
      %v3113 = vpop.xlane.xlu0 %3112
      %v3114 = vsel %vm3083, %v2868, -inf
      %3115 = vmax.xlane.f32.xlu0 %v3114
      %v3116 = vpop.xlane.xlu0 %3115
      %v3117 = vsel %vm3083, %v2871, -inf
      %3118 = vmax.xlane.f32.xlu0 %v3117
      %v3119 = vpop.xlane.xlu0 %3118
      %v3120 = vsel %vm3083, %v2876, -inf
      %3121 = vmax.xlane.f32.xlu0 %v3120
      %v3122 = vpop.xlane.xlu0 %3121
      %v3123 = vsel %vm3083, %v2879, -inf
      %3124 = vmax.xlane.f32.xlu0 %v3123
      %v3125 = vpop.xlane.xlu0 %3124
      %v3126 = vsel %vm3083, %v2884, -inf
      %3127 = vmax.xlane.f32.xlu0 %v3126
      %v3128 = vpop.xlane.xlu0 %3127
      %v3129 = vsel %vm3083, %v2887, -inf
      %3130 = vmax.xlane.f32.xlu0 %v3129
      %v3131 = vpop.xlane.xlu0 %3130
      %v3132 = vsub.f32 %v2828, %v3086
      %v3133 = vsub.f32 %v2831, %v3089
      %v3134 = vsub.f32 %v2836, %v3092
      %v3135 = vsub.f32 %v2839, %v3095
      %v3136 = vsub.f32 %v2844, %v3098
      %v3137 = vsub.f32 %v2847, %v3101
      %v3138 = vsub.f32 %v2852, %v3104
      %v3139 = vsub.f32 %v2855, %v3107
      %v3140 = vsub.f32 %v2860, %v3110
      %v3141 = vsub.f32 %v2863, %v3113
      %v3142 = vsub.f32 %v2868, %v3116
      %v3143 = vsub.f32 %v2871, %v3119
      %v3144 = vsub.f32 %v2876, %v3122
      %v3145 = vsub.f32 %v2879, %v3125
      %v3146 = vsub.f32 %v2884, %v3128
      %v3147 = vsub.f32 %v2887, %v3131
      %v3148 = vmul.f32 %v3132, 1.442695
      %v3149 = vpow.pop %v3148
      %v3150 = vmul.f32 %v3133, 1.442695
      %v3151 = vpow.pop %v3150
      %v3152 = vmul.f32 %v3134, 1.442695
      %v3153 = vpow.pop %v3152
      %v3154 = vmul.f32 %v3135, 1.442695
      %v3155 = vpow.pop %v3154
      %v3156 = vmul.f32 %v3136, 1.442695
      %v3157 = vpow.pop %v3156
      %v3158 = vmul.f32 %v3137, 1.442695
      %v3159 = vpow.pop %v3158
      %v3160 = vmul.f32 %v3138, 1.442695
      %v3161 = vpow.pop %v3160
      %v3162 = vmul.f32 %v3139, 1.442695
      %v3163 = vpow.pop %v3162
      %v3164 = vmul.f32 %v3140, 1.442695
      %v3165 = vpow.pop %v3164
      %v3166 = vmul.f32 %v3141, 1.442695
      %v3167 = vpow.pop %v3166
      %v3168 = vmul.f32 %v3142, 1.442695
      %v3169 = vpow.pop %v3168
      %v3170 = vmul.f32 %v3143, 1.442695
      %v3171 = vpow.pop %v3170
      %v3172 = vmul.f32 %v3144, 1.442695
      %v3173 = vpow.pop %v3172
      %v3174 = vmul.f32 %v3145, 1.442695
      %v3175 = vpow.pop %v3174
      %v3176 = vmul.f32 %v3146, 1.442695
      %v3177 = vpow.pop %v3176
      %v3178 = vmul.f32 %v3147, 1.442695
      %v3179 = vpow.pop %v3178
      %3196 = vrot.lane.b32.xlu0 %v3149, 96
      %v3197 = vpop.permute.xlu0 %3196
      %3198 = vrot.lane.b32.xlu0 %v3151, 96
      %v3199 = vpop.permute.xlu0 %3198
      %3200 = vrot.lane.b32.xlu0 %v3153, 96
      %v3201 = vpop.permute.xlu0 %3200
      %3202 = vrot.lane.b32.xlu0 %v3155, 96
      %v3203 = vpop.permute.xlu0 %3202
      %3204 = vrot.lane.b32.xlu0 %v3157, 96
      %v3205 = vpop.permute.xlu0 %3204
      %3206 = vrot.lane.b32.xlu0 %v3159, 96
      %v3207 = vpop.permute.xlu0 %3206
      %3208 = vrot.lane.b32.xlu0 %v3161, 96
      %v3209 = vpop.permute.xlu0 %3208
      %3210 = vrot.lane.b32.xlu0 %v3163, 96
      %v3211 = vpop.permute.xlu0 %3210
      %3212 = vrot.lane.b32.xlu0 %v3165, 96
      %v3213 = vpop.permute.xlu0 %3212
      %3214 = vrot.lane.b32.xlu0 %v3167, 96
      %v3215 = vpop.permute.xlu0 %3214
      %3216 = vrot.lane.b32.xlu0 %v3169, 96
      %v3217 = vpop.permute.xlu0 %3216
      %3218 = vrot.lane.b32.xlu0 %v3171, 96
      %v3219 = vpop.permute.xlu0 %3218
      %3220 = vrot.lane.b32.xlu0 %v3173, 96
      %v3221 = vpop.permute.xlu0 %3220
      %3222 = vrot.lane.b32.xlu0 %v3175, 96
      %v3223 = vpop.permute.xlu0 %3222
      %3224 = vrot.lane.b32.xlu0 %v3177, 96
      %v3225 = vpop.permute.xlu0 %3224
      %3226 = vrot.lane.b32.xlu0 %v3179, 96
      %v3227 = vpop.permute.xlu0 %3226
      %v3244 = vsel %vm2890, %v3197, 0.0
      %3245 = vadd.xlane.f32.xlu0 %v3244
      %v3246 = vpop.xlane.xlu0 %3245
      %v3247 = vsel %vm2890, %v3199, 0.0
      %3248 = vadd.xlane.f32.xlu0 %v3247
      %v3249 = vpop.xlane.xlu0 %3248
      %v3250 = vsel %vm2890, %v3201, 0.0
      %3251 = vadd.xlane.f32.xlu0 %v3250
      %v3252 = vpop.xlane.xlu0 %3251
      %v3253 = vsel %vm2890, %v3203, 0.0
      %3254 = vadd.xlane.f32.xlu0 %v3253
      %v3255 = vpop.xlane.xlu0 %3254
      %v3256 = vsel %vm2890, %v3205, 0.0
      %3257 = vadd.xlane.f32.xlu0 %v3256
      %v3258 = vpop.xlane.xlu0 %3257
      %v3259 = vsel %vm2890, %v3207, 0.0
      %3260 = vadd.xlane.f32.xlu0 %v3259
      %v3261 = vpop.xlane.xlu0 %3260
      %v3262 = vsel %vm2890, %v3209, 0.0
      %3263 = vadd.xlane.f32.xlu0 %v3262
      %v3264 = vpop.xlane.xlu0 %3263
      %v3265 = vsel %vm2890, %v3211, 0.0
      %3266 = vadd.xlane.f32.xlu0 %v3265
      %v3267 = vpop.xlane.xlu0 %3266
      %v3268 = vsel %vm2890, %v3213, 0.0
      %3269 = vadd.xlane.f32.xlu0 %v3268
      %v3270 = vpop.xlane.xlu0 %3269
      %v3271 = vsel %vm2890, %v3215, 0.0
      %3272 = vadd.xlane.f32.xlu0 %v3271
      %v3273 = vpop.xlane.xlu0 %3272
      %v3274 = vsel %vm2890, %v3217, 0.0
      %3275 = vadd.xlane.f32.xlu0 %v3274
      %v3276 = vpop.xlane.xlu0 %3275
      %v3277 = vsel %vm2890, %v3219, 0.0
      %3278 = vadd.xlane.f32.xlu0 %v3277
      %v3279 = vpop.xlane.xlu0 %3278
      %v3280 = vsel %vm2890, %v3221, 0.0
      %3281 = vadd.xlane.f32.xlu0 %v3280
      %v3282 = vpop.xlane.xlu0 %3281
      %v3283 = vsel %vm2890, %v3223, 0.0
      %3284 = vadd.xlane.f32.xlu0 %v3283
      %v3285 = vpop.xlane.xlu0 %3284
      %v3286 = vsel %vm2890, %v3225, 0.0
      %3287 = vadd.xlane.f32.xlu0 %v3286
      %v3288 = vpop.xlane.xlu0 %3287
      %v3289 = vsel %vm2890, %v3227, 0.0
      %3290 = vadd.xlane.f32.xlu0 %v3289
      %v3291 = vpop.xlane.xlu0 %3290
      %v3292 = vrcp.pop %v3246
      %v3293 = vmul.f32 %v3149, %v3292
      %v3294 = vrcp.pop %v3249
      %v3295 = vmul.f32 %v3151, %v3294
      %v3296 = vrcp.pop %v3252
      %v3297 = vmul.f32 %v3153, %v3296
      %v3298 = vrcp.pop %v3255
      %v3299 = vmul.f32 %v3155, %v3298
      %v3300 = vrcp.pop %v3258
      %v3301 = vmul.f32 %v3157, %v3300
      %v3302 = vrcp.pop %v3261
      %v3303 = vmul.f32 %v3159, %v3302
      %v3304 = vrcp.pop %v3264
      %v3305 = vmul.f32 %v3161, %v3304
      %v3306 = vrcp.pop %v3267
      %v3307 = vmul.f32 %v3163, %v3306
      %v3308 = vrcp.pop %v3270
      %v3309 = vmul.f32 %v3165, %v3308
      %v3310 = vrcp.pop %v3273
      %v3311 = vmul.f32 %v3167, %v3310
      %v3312 = vrcp.pop %v3276
      %v3313 = vmul.f32 %v3169, %v3312
      %v3314 = vrcp.pop %v3279
      %v3315 = vmul.f32 %v3171, %v3314
      %v3316 = vrcp.pop %v3282
      %v3317 = vmul.f32 %v3173, %v3316
      %v3318 = vrcp.pop %v3285
      %v3319 = vmul.f32 %v3175, %v3318
      %v3320 = vrcp.pop %v3288
      %v3321 = vmul.f32 %v3177, %v3320
      %v3322 = vrcp.pop %v3291
      %v3323 = vmul.f32 %v3179, %v3322
      %v3324 = vmul.f32 %v3293, 6.0
      %v3325 = vmul.f32 %v3295, 6.0
      %v3326 = vmul.f32 %v3297, 6.0
      %v3327 = vmul.f32 %v3299, 6.0
      %v3328 = vmul.f32 %v3301, 6.0
      %v3329 = vmul.f32 %v3303, 6.0
      %v3330 = vmul.f32 %v3305, 6.0
      %v3331 = vmul.f32 %v3307, 6.0
      %v3332 = vmul.f32 %v3309, 6.0
      %v3333 = vmul.f32 %v3311, 6.0
      %v3334 = vmul.f32 %v3313, 6.0
      %v3335 = vmul.f32 %v3315, 6.0
      %v3336 = vmul.f32 %v3317, 6.0
      %v3337 = vmul.f32 %v3319, 6.0
      %v3338 = vmul.f32 %v3321, 6.0
      %v3339 = vmul.f32 %v3323, 6.0
      %v3340 = vmax.f32 %v2828, 0.0
      %v3341 = vmax.f32 %v2831, 0.0
      %v3342 = vmax.f32 %v2836, 0.0
      %v3343 = vmax.f32 %v2839, 0.0
      %v3344 = vmax.f32 %v2844, 0.0
      %v3345 = vmax.f32 %v2847, 0.0
      %v3346 = vmax.f32 %v2852, 0.0
      %v3347 = vmax.f32 %v2855, 0.0
      %v3348 = vmax.f32 %v2860, 0.0
      %v3349 = vmax.f32 %v2863, 0.0
      %v3350 = vmax.f32 %v2868, 0.0
      %v3351 = vmax.f32 %v2871, 0.0
      %v3352 = vmax.f32 %v2876, 0.0
      %v3353 = vmax.f32 %v2879, 0.0
      %v3354 = vmax.f32 %v2884, 0.0
      %v3355 = vmax.f32 %v2887, 0.0
      %v3356 = vand.u32 2147483647, %v2828
      %v3357 = vand.u32 2147483647, %v2831
      %v3358 = vand.u32 2147483647, %v2836
      %v3359 = vand.u32 2147483647, %v2839
      %v3360 = vand.u32 2147483647, %v2844
      %v3361 = vand.u32 2147483647, %v2847
      %v3362 = vand.u32 2147483647, %v2852
      %v3363 = vand.u32 2147483647, %v2855
      %v3364 = vand.u32 2147483647, %v2860
      %v3365 = vand.u32 2147483647, %v2863
      %v3366 = vand.u32 2147483647, %v2868
      %v3367 = vand.u32 2147483647, %v2871
      %v3368 = vand.u32 2147483647, %v2876
      %v3369 = vand.u32 2147483647, %v2879
      %v3370 = vand.u32 2147483647, %v2884
      %v3371 = vand.u32 2147483647, %v2887
      %v3372 = vsub.f32 0.0, %v3356
      %v3373 = vsub.f32 0.0, %v3357
      %v3374 = vsub.f32 0.0, %v3358
      %v3375 = vsub.f32 0.0, %v3359
      %v3376 = vsub.f32 0.0, %v3360
      %v3377 = vsub.f32 0.0, %v3361
      %v3378 = vsub.f32 0.0, %v3362
      %v3379 = vsub.f32 0.0, %v3363
      %v3380 = vsub.f32 0.0, %v3364
      %v3381 = vsub.f32 0.0, %v3365
      %v3382 = vsub.f32 0.0, %v3366
      %v3383 = vsub.f32 0.0, %v3367
      %v3384 = vsub.f32 0.0, %v3368
      %v3385 = vsub.f32 0.0, %v3369
      %v3386 = vsub.f32 0.0, %v3370
      %v3387 = vsub.f32 0.0, %v3371
      %v3388 = vmul.f32 %v3372, 1.442695
      %v3389 = vpow.pop %v3388
      %v3390 = vmul.f32 %v3373, 1.442695
      %v3391 = vpow.pop %v3390
      %v3392 = vmul.f32 %v3374, 1.442695
      %v3393 = vpow.pop %v3392
      %v3394 = vmul.f32 %v3375, 1.442695
      %v3395 = vpow.pop %v3394
      %v3396 = vmul.f32 %v3376, 1.442695
      %v3397 = vpow.pop %v3396
      %v3398 = vmul.f32 %v3377, 1.442695
      %v3399 = vpow.pop %v3398
      %v3400 = vmul.f32 %v3378, 1.442695
      %v3401 = vpow.pop %v3400
      %v3402 = vmul.f32 %v3379, 1.442695
      %v3403 = vpow.pop %v3402
      %v3404 = vmul.f32 %v3380, 1.442695
      %v3405 = vpow.pop %v3404
      %v3406 = vmul.f32 %v3381, 1.442695
      %v3407 = vpow.pop %v3406
      %v3408 = vmul.f32 %v3382, 1.442695
      %v3409 = vpow.pop %v3408
      %v3410 = vmul.f32 %v3383, 1.442695
      %v3411 = vpow.pop %v3410
      %v3412 = vmul.f32 %v3384, 1.442695
      %v3413 = vpow.pop %v3412
      %v3414 = vmul.f32 %v3385, 1.442695
      %v3415 = vpow.pop %v3414
      %v3416 = vmul.f32 %v3386, 1.442695
      %v3417 = vpow.pop %v3416
      %v3418 = vmul.f32 %v3387, 1.442695
      %v3419 = vpow.pop %v3418
      %v3420 = vadd.f32 %v3389, 1.0
      %v3421 = vadd.f32 %v3391, 1.0
      %v3422 = vadd.f32 %v3393, 1.0
      %v3423 = vadd.f32 %v3395, 1.0
      %v3424 = vadd.f32 %v3397, 1.0
      %v3425 = vadd.f32 %v3399, 1.0
      %v3426 = vadd.f32 %v3401, 1.0
      %v3427 = vadd.f32 %v3403, 1.0
      %v3428 = vadd.f32 %v3405, 1.0
      %v3429 = vadd.f32 %v3407, 1.0
      %v3430 = vadd.f32 %v3409, 1.0
      %v3431 = vadd.f32 %v3411, 1.0
      %v3432 = vadd.f32 %v3413, 1.0
      %v3433 = vadd.f32 %v3415, 1.0
      %v3434 = vadd.f32 %v3417, 1.0
      %v3435 = vadd.f32 %v3419, 1.0
      %v3436 = vlog2.pop %v3420
      %v3437 = vmul.f32 %v3436, 0.6931472
      %v3438 = vlog2.pop %v3421
      %v3439 = vmul.f32 %v3438, 0.6931472
      %v3440 = vlog2.pop %v3422
      %v3441 = vmul.f32 %v3440, 0.6931472
      %v3442 = vlog2.pop %v3423
      %v3443 = vmul.f32 %v3442, 0.6931472
      %v3444 = vlog2.pop %v3424
      %v3445 = vmul.f32 %v3444, 0.6931472
      %v3446 = vlog2.pop %v3425
      %v3447 = vmul.f32 %v3446, 0.6931472
      %v3448 = vlog2.pop %v3426
      %v3449 = vmul.f32 %v3448, 0.6931472
      %v3450 = vlog2.pop %v3427
      %v3451 = vmul.f32 %v3450, 0.6931472
      %v3452 = vlog2.pop %v3428
      %v3453 = vmul.f32 %v3452, 0.6931472
      %v3454 = vlog2.pop %v3429
      %v3455 = vmul.f32 %v3454, 0.6931472
      %v3456 = vlog2.pop %v3430
      %v3457 = vmul.f32 %v3456, 0.6931472
      %v3458 = vlog2.pop %v3431
      %v3459 = vmul.f32 %v3458, 0.6931472
      %v3460 = vlog2.pop %v3432
      %v3461 = vmul.f32 %v3460, 0.6931472
      %v3462 = vlog2.pop %v3433
      %v3463 = vmul.f32 %v3462, 0.6931472
      %v3464 = vlog2.pop %v3434
      %v3465 = vmul.f32 %v3464, 0.6931472
      %v3466 = vlog2.pop %v3435
      %v3467 = vmul.f32 %v3466, 0.6931472
      %v3468 = vadd.f32 %v3340, %v3437
      %v3469 = vadd.f32 %v3341, %v3439
      %v3470 = vadd.f32 %v3342, %v3441
      %v3471 = vadd.f32 %v3343, %v3443
      %v3472 = vadd.f32 %v3344, %v3445
      %v3473 = vadd.f32 %v3345, %v3447
      %v3474 = vadd.f32 %v3346, %v3449
      %v3475 = vadd.f32 %v3347, %v3451
      %v3476 = vadd.f32 %v3348, %v3453
      %v3477 = vadd.f32 %v3349, %v3455
      %v3478 = vadd.f32 %v3350, %v3457
      %v3479 = vadd.f32 %v3351, %v3459
      %v3480 = vadd.f32 %v3352, %v3461
      %v3481 = vadd.f32 %v3353, %v3463
      %v3482 = vadd.f32 %v3354, %v3465
      %v3483 = vadd.f32 %v3355, %v3467
      %v3484 = vmul.f32 %v3067, 1.442695
      %v3485 = vpow.pop %v3484
      %v3486 = vmul.f32 %v3068, 1.442695
      %v3487 = vpow.pop %v3486
      %v3488 = vmul.f32 %v3069, 1.442695
      %v3489 = vpow.pop %v3488
      %v3490 = vmul.f32 %v3070, 1.442695
      %v3491 = vpow.pop %v3490
      %v3492 = vmul.f32 %v3071, 1.442695
      %v3493 = vpow.pop %v3492
      %v3494 = vmul.f32 %v3072, 1.442695
      %v3495 = vpow.pop %v3494
      %v3496 = vmul.f32 %v3073, 1.442695
      %v3497 = vpow.pop %v3496
      %v3498 = vmul.f32 %v3074, 1.442695
      %v3499 = vpow.pop %v3498
      %v3500 = vmul.f32 %v3075, 1.442695
      %v3501 = vpow.pop %v3500
      %v3502 = vmul.f32 %v3076, 1.442695
      %v3503 = vpow.pop %v3502
      %v3504 = vmul.f32 %v3077, 1.442695
      %v3505 = vpow.pop %v3504
      %v3506 = vmul.f32 %v3078, 1.442695
      %v3507 = vpow.pop %v3506
      %v3508 = vmul.f32 %v3079, 1.442695
      %v3509 = vpow.pop %v3508
      %v3510 = vmul.f32 %v3080, 1.442695
      %v3511 = vpow.pop %v3510
      %v3512 = vmul.f32 %v3081, 1.442695
      %v3513 = vpow.pop %v3512
      %v3514 = vmul.f32 %v3082, 1.442695
      %v3515 = vpow.pop %v3514
      %v3516 = vsel %vm2890, %v3485, 0.0
      %3517 = vadd.xlane.f32.xlu0 %v3516
      %v3518 = vpop.xlane.xlu0 %3517
      %v3519 = vsel %vm2890, %v3487, 0.0
      %3520 = vadd.xlane.f32.xlu0 %v3519
      %v3521 = vpop.xlane.xlu0 %3520
      %v3522 = vsel %vm2890, %v3489, 0.0
      %3523 = vadd.xlane.f32.xlu0 %v3522
      %v3524 = vpop.xlane.xlu0 %3523
      %v3525 = vsel %vm2890, %v3491, 0.0
      %3526 = vadd.xlane.f32.xlu0 %v3525
      %v3527 = vpop.xlane.xlu0 %3526
      %v3528 = vsel %vm2890, %v3493, 0.0
      %3529 = vadd.xlane.f32.xlu0 %v3528
      %v3530 = vpop.xlane.xlu0 %3529
      %v3531 = vsel %vm2890, %v3495, 0.0
      %3532 = vadd.xlane.f32.xlu0 %v3531
      %v3533 = vpop.xlane.xlu0 %3532
      %v3534 = vsel %vm2890, %v3497, 0.0
      %3535 = vadd.xlane.f32.xlu0 %v3534
      %v3536 = vpop.xlane.xlu0 %3535
      %v3537 = vsel %vm2890, %v3499, 0.0
      %3538 = vadd.xlane.f32.xlu0 %v3537
      %v3539 = vpop.xlane.xlu0 %3538
      %v3540 = vsel %vm2890, %v3501, 0.0
      %3541 = vadd.xlane.f32.xlu0 %v3540
      %v3542 = vpop.xlane.xlu0 %3541
      %v3543 = vsel %vm2890, %v3503, 0.0
      %3544 = vadd.xlane.f32.xlu0 %v3543
      %v3545 = vpop.xlane.xlu0 %3544
      %v3546 = vsel %vm2890, %v3505, 0.0
      %3547 = vadd.xlane.f32.xlu0 %v3546
      %v3548 = vpop.xlane.xlu0 %3547
      %v3549 = vsel %vm2890, %v3507, 0.0
      %3550 = vadd.xlane.f32.xlu0 %v3549
      %v3551 = vpop.xlane.xlu0 %3550
      %v3552 = vsel %vm2890, %v3509, 0.0
      %3553 = vadd.xlane.f32.xlu0 %v3552
      %v3554 = vpop.xlane.xlu0 %3553
      %v3555 = vsel %vm2890, %v3511, 0.0
      %3556 = vadd.xlane.f32.xlu0 %v3555
      %v3557 = vpop.xlane.xlu0 %3556
      %v3558 = vsel %vm2890, %v3513, 0.0
      %3559 = vadd.xlane.f32.xlu0 %v3558
      %v3560 = vpop.xlane.xlu0 %3559
      %v3561 = vsel %vm2890, %v3515, 0.0
      %3562 = vadd.xlane.f32.xlu0 %v3561
      %v3563 = vpop.xlane.xlu0 %3562
      %v3564 = vrcp.pop %v3518
      %v3565 = vmul.f32 %v3485, %v3564
      %v3566 = vrcp.pop %v3521
      %v3567 = vmul.f32 %v3487, %v3566
      %v3568 = vrcp.pop %v3524
      %v3569 = vmul.f32 %v3489, %v3568
      %v3570 = vrcp.pop %v3527
      %v3571 = vmul.f32 %v3491, %v3570
      %v3572 = vrcp.pop %v3530
      %v3573 = vmul.f32 %v3493, %v3572
      %v3574 = vrcp.pop %v3533
      %v3575 = vmul.f32 %v3495, %v3574
      %v3576 = vrcp.pop %v3536
      %v3577 = vmul.f32 %v3497, %v3576
      %v3578 = vrcp.pop %v3539
      %v3579 = vmul.f32 %v3499, %v3578
      %v3580 = vrcp.pop %v3542
      %v3581 = vmul.f32 %v3501, %v3580
      %v3582 = vrcp.pop %v3545
      %v3583 = vmul.f32 %v3503, %v3582
      %v3584 = vrcp.pop %v3548
      %v3585 = vmul.f32 %v3505, %v3584
      %v3586 = vrcp.pop %v3551
      %v3587 = vmul.f32 %v3507, %v3586
      %v3588 = vrcp.pop %v3554
      %v3589 = vmul.f32 %v3509, %v3588
      %v3590 = vrcp.pop %v3557
      %v3591 = vmul.f32 %v3511, %v3590
      %v3592 = vrcp.pop %v3560
      %v3593 = vmul.f32 %v3513, %v3592
      %v3594 = vrcp.pop %v3563
      %v3595 = vmul.f32 %v3515, %v3594
      %v3596 = vmul.f32 %v3565, 0.968
      %v3597 = vmul.f32 %v3567, 0.968
      %v3598 = vmul.f32 %v3569, 0.968
      %v3599 = vmul.f32 %v3571, 0.968
      %v3600 = vmul.f32 %v3573, 0.968
      %v3601 = vmul.f32 %v3575, 0.968
      %v3602 = vmul.f32 %v3577, 0.968
      %v3603 = vmul.f32 %v3579, 0.968
      %v3604 = vmul.f32 %v3581, 0.968
      %v3605 = vmul.f32 %v3583, 0.968
      %v3606 = vmul.f32 %v3585, 0.968
      %v3607 = vmul.f32 %v3587, 0.968
      %v3608 = vmul.f32 %v3589, 0.968
      %v3609 = vmul.f32 %v3591, 0.968
      %v3610 = vmul.f32 %v3593, 0.968
      %v3611 = vmul.f32 %v3595, 0.968
      %v3612 = vadd.f32 %v3596, 0.001
      %v3613 = vadd.f32 %v3597, 0.001
      %v3614 = vadd.f32 %v3598, 0.001
      %v3615 = vadd.f32 %v3599, 0.001
      %v3616 = vadd.f32 %v3600, 0.001
      %v3617 = vadd.f32 %v3601, 0.001
      %v3618 = vadd.f32 %v3602, 0.001
      %v3619 = vadd.f32 %v3603, 0.001
      %v3620 = vadd.f32 %v3604, 0.001
      %v3621 = vadd.f32 %v3605, 0.001
      %v3622 = vadd.f32 %v3606, 0.001
      %v3623 = vadd.f32 %v3607, 0.001
      %v3624 = vadd.f32 %v3608, 0.001
      %v3625 = vadd.f32 %v3609, 0.001
      %v3626 = vadd.f32 %v3610, 0.001
      %v3627 = vadd.f32 %v3611, 0.001
      %v3628 = vmul.f32 %v3324, 1.442695
      %v3629 = vpow.pop %v3628
      %v3630 = vmul.f32 %v3325, 1.442695
      %v3631 = vpow.pop %v3630
      %v3632 = vmul.f32 %v3326, 1.442695
      %v3633 = vpow.pop %v3632
      %v3634 = vmul.f32 %v3327, 1.442695
      %v3635 = vpow.pop %v3634
      %v3636 = vmul.f32 %v3328, 1.442695
      %v3637 = vpow.pop %v3636
      %v3638 = vmul.f32 %v3329, 1.442695
      %v3639 = vpow.pop %v3638
      %v3640 = vmul.f32 %v3330, 1.442695
      %v3641 = vpow.pop %v3640
      %v3642 = vmul.f32 %v3331, 1.442695
      %v3643 = vpow.pop %v3642
      %v3644 = vmul.f32 %v3332, 1.442695
      %v3645 = vpow.pop %v3644
      %v3646 = vmul.f32 %v3333, 1.442695
      %v3647 = vpow.pop %v3646
      %v3648 = vmul.f32 %v3334, 1.442695
      %v3649 = vpow.pop %v3648
      %v3650 = vmul.f32 %v3335, 1.442695
      %v3651 = vpow.pop %v3650
      %v3652 = vmul.f32 %v3336, 1.442695
      %v3653 = vpow.pop %v3652
      %v3654 = vmul.f32 %v3337, 1.442695
      %v3655 = vpow.pop %v3654
      %v3656 = vmul.f32 %v3338, 1.442695
      %v3657 = vpow.pop %v3656
      %v3658 = vmul.f32 %v3339, 1.442695
      %v3659 = vpow.pop %v3658
      %3676 = vrot.lane.b32.xlu0 %v3629, 96
      %v3677 = vpop.permute.xlu0 %3676
      %3678 = vrot.lane.b32.xlu0 %v3631, 96
      %v3679 = vpop.permute.xlu0 %3678
      %3680 = vrot.lane.b32.xlu0 %v3633, 96
      %v3681 = vpop.permute.xlu0 %3680
      %3682 = vrot.lane.b32.xlu0 %v3635, 96
      %v3683 = vpop.permute.xlu0 %3682
      %3684 = vrot.lane.b32.xlu0 %v3637, 96
      %v3685 = vpop.permute.xlu0 %3684
      %3686 = vrot.lane.b32.xlu0 %v3639, 96
      %v3687 = vpop.permute.xlu0 %3686
      %3688 = vrot.lane.b32.xlu0 %v3641, 96
      %v3689 = vpop.permute.xlu0 %3688
      %3690 = vrot.lane.b32.xlu0 %v3643, 96
      %v3691 = vpop.permute.xlu0 %3690
      %3692 = vrot.lane.b32.xlu0 %v3645, 96
      %v3693 = vpop.permute.xlu0 %3692
      %3694 = vrot.lane.b32.xlu0 %v3647, 96
      %v3695 = vpop.permute.xlu0 %3694
      %3696 = vrot.lane.b32.xlu0 %v3649, 96
      %v3697 = vpop.permute.xlu0 %3696
      %3698 = vrot.lane.b32.xlu0 %v3651, 96
      %v3699 = vpop.permute.xlu0 %3698
      %3700 = vrot.lane.b32.xlu0 %v3653, 96
      %v3701 = vpop.permute.xlu0 %3700
      %3702 = vrot.lane.b32.xlu0 %v3655, 96
      %v3703 = vpop.permute.xlu0 %3702
      %3704 = vrot.lane.b32.xlu0 %v3657, 96
      %v3705 = vpop.permute.xlu0 %3704
      %3706 = vrot.lane.b32.xlu0 %v3659, 96
      %v3707 = vpop.permute.xlu0 %3706
      %v3724 = vsel %vm2890, %v3677, 0.0
      %3725 = vadd.xlane.f32.xlu0 %v3724
      %v3726 = vpop.xlane.xlu0 %3725
      %v3727 = vsel %vm2890, %v3679, 0.0
      %3728 = vadd.xlane.f32.xlu0 %v3727
      %v3729 = vpop.xlane.xlu0 %3728
      %v3730 = vsel %vm2890, %v3681, 0.0
      %3731 = vadd.xlane.f32.xlu0 %v3730
      %v3732 = vpop.xlane.xlu0 %3731
      %v3733 = vsel %vm2890, %v3683, 0.0
      %3734 = vadd.xlane.f32.xlu0 %v3733
      %v3735 = vpop.xlane.xlu0 %3734
      %v3736 = vsel %vm2890, %v3685, 0.0
      %3737 = vadd.xlane.f32.xlu0 %v3736
      %v3738 = vpop.xlane.xlu0 %3737
      %v3739 = vsel %vm2890, %v3687, 0.0
      %3740 = vadd.xlane.f32.xlu0 %v3739
      %v3741 = vpop.xlane.xlu0 %3740
      %v3742 = vsel %vm2890, %v3689, 0.0
      %3743 = vadd.xlane.f32.xlu0 %v3742
      %v3744 = vpop.xlane.xlu0 %3743
      %v3745 = vsel %vm2890, %v3691, 0.0
      %3746 = vadd.xlane.f32.xlu0 %v3745
      %v3747 = vpop.xlane.xlu0 %3746
      %v3748 = vsel %vm2890, %v3693, 0.0
      %3749 = vadd.xlane.f32.xlu0 %v3748
      %v3750 = vpop.xlane.xlu0 %3749
      %v3751 = vsel %vm2890, %v3695, 0.0
      %3752 = vadd.xlane.f32.xlu0 %v3751
      %v3753 = vpop.xlane.xlu0 %3752
      %v3754 = vsel %vm2890, %v3697, 0.0
      %3755 = vadd.xlane.f32.xlu0 %v3754
      %v3756 = vpop.xlane.xlu0 %3755
      %v3757 = vsel %vm2890, %v3699, 0.0
      %3758 = vadd.xlane.f32.xlu0 %v3757
      %v3759 = vpop.xlane.xlu0 %3758
      %v3760 = vsel %vm2890, %v3701, 0.0
      %3761 = vadd.xlane.f32.xlu0 %v3760
      %v3762 = vpop.xlane.xlu0 %3761
      %v3763 = vsel %vm2890, %v3703, 0.0
      %3764 = vadd.xlane.f32.xlu0 %v3763
      %v3765 = vpop.xlane.xlu0 %3764
      %v3766 = vsel %vm2890, %v3705, 0.0
      %3767 = vadd.xlane.f32.xlu0 %v3766
      %v3768 = vpop.xlane.xlu0 %3767
      %v3769 = vsel %vm2890, %v3707, 0.0
      %3770 = vadd.xlane.f32.xlu0 %v3769
      %v3771 = vpop.xlane.xlu0 %3770
      %v3772 = vrcp.pop %v3726
      %v3773 = vmul.f32 %v3629, %v3772
      %v3774 = vrcp.pop %v3729
      %v3775 = vmul.f32 %v3631, %v3774
      %v3776 = vrcp.pop %v3732
      %v3777 = vmul.f32 %v3633, %v3776
      %v3778 = vrcp.pop %v3735
      %v3779 = vmul.f32 %v3635, %v3778
      %v3780 = vrcp.pop %v3738
      %v3781 = vmul.f32 %v3637, %v3780
      %v3782 = vrcp.pop %v3741
      %v3783 = vmul.f32 %v3639, %v3782
      %v3784 = vrcp.pop %v3744
      %v3785 = vmul.f32 %v3641, %v3784
      %v3786 = vrcp.pop %v3747
      %v3787 = vmul.f32 %v3643, %v3786
      %v3788 = vrcp.pop %v3750
      %v3789 = vmul.f32 %v3645, %v3788
      %v3790 = vrcp.pop %v3753
      %v3791 = vmul.f32 %v3647, %v3790
      %v3792 = vrcp.pop %v3756
      %v3793 = vmul.f32 %v3649, %v3792
      %v3794 = vrcp.pop %v3759
      %v3795 = vmul.f32 %v3651, %v3794
      %v3796 = vrcp.pop %v3762
      %v3797 = vmul.f32 %v3653, %v3796
      %v3798 = vrcp.pop %v3765
      %v3799 = vmul.f32 %v3655, %v3798
      %v3800 = vrcp.pop %v3768
      %v3801 = vmul.f32 %v3657, %v3800
      %v3802 = vrcp.pop %v3771
      %v3803 = vmul.f32 %v3659, %v3802
      %v3804 = vmul.f32 %v3773, 0.968
      %v3805 = vmul.f32 %v3775, 0.968
      %v3806 = vmul.f32 %v3777, 0.968
      %v3807 = vmul.f32 %v3779, 0.968
      %v3808 = vmul.f32 %v3781, 0.968
      %v3809 = vmul.f32 %v3783, 0.968
      %v3810 = vmul.f32 %v3785, 0.968
      %v3811 = vmul.f32 %v3787, 0.968
      %v3812 = vmul.f32 %v3789, 0.968
      %v3813 = vmul.f32 %v3791, 0.968
      %v3814 = vmul.f32 %v3793, 0.968
      %v3815 = vmul.f32 %v3795, 0.968
      %v3816 = vmul.f32 %v3797, 0.968
      %v3817 = vmul.f32 %v3799, 0.968
      %v3818 = vmul.f32 %v3801, 0.968
      %v3819 = vmul.f32 %v3803, 0.968
      %v3820 = vadd.f32 %v3804, 0.001
      %v3821 = vadd.f32 %v3805, 0.001
      %v3822 = vadd.f32 %v3806, 0.001
      %v3823 = vadd.f32 %v3807, 0.001
      %v3824 = vadd.f32 %v3808, 0.001
      %v3825 = vadd.f32 %v3809, 0.001
      %v3826 = vadd.f32 %v3810, 0.001
      %v3827 = vadd.f32 %v3811, 0.001
      %v3828 = vadd.f32 %v3812, 0.001
      %v3829 = vadd.f32 %v3813, 0.001
      %v3830 = vadd.f32 %v3814, 0.001
      %v3831 = vadd.f32 %v3815, 0.001
      %v3832 = vadd.f32 %v3816, 0.001
      %v3833 = vadd.f32 %v3817, 0.001
      %v3834 = vadd.f32 %v3818, 0.001
      %v3835 = vadd.f32 %v3819, 0.001
      %v3836 = vld [vmem:[%s6] sm:$0xff]
      %v3837 = vld [vmem:[%s6 + $0x8] sm:$0xff]
      %v3838 = vld [vmem:[%s6 + $0x10] sm:$0xff]
      %v3839 = vld [vmem:[%s6 + $0x18] sm:$0xff]
      %v3840 = vld [vmem:[%s4] sm:$0x1]
      %vm3841 = vcmp.eq.f32.partialorder %v3840, 31.0
      %v3842 = vpack.c.bf16 %v3613, %v3612
      %v3843 = vpack.c.bf16 %v3615, %v3614
      %v3844 = vpack.c.bf16 %v3617, %v3616
      %v3845 = vpack.c.bf16 %v3619, %v3618
      %v3846 = vpack.c.bf16 %v3621, %v3620
      %v3847 = vpack.c.bf16 %v3623, %v3622
      %v3848 = vpack.c.bf16 %v3625, %v3624
      %v3849 = vpack.c.bf16 %v3627, %v3626
      %v3850 = vunpack.c.l.bf16 %v3842
      %v3851 = vunpack.c.h.bf16 %v3842
      %v3852 = vunpack.c.l.bf16 %v3843
      %v3853 = vunpack.c.h.bf16 %v3843
      %v3854 = vunpack.c.l.bf16 %v3844
      %v3855 = vunpack.c.h.bf16 %v3844
      %v3856 = vunpack.c.l.bf16 %v3845
      %v3857 = vunpack.c.h.bf16 %v3845
      %v3858 = vunpack.c.l.bf16 %v3846
      %v3859 = vunpack.c.h.bf16 %v3846
      %v3860 = vunpack.c.l.bf16 %v3847
      %v3861 = vunpack.c.h.bf16 %v3847
      %v3862 = vunpack.c.l.bf16 %v3848
      %v3863 = vunpack.c.h.bf16 %v3848
      %v3864 = vunpack.c.l.bf16 %v3849
      %v3865 = vunpack.c.h.bf16 %v3849
      %v3866 = vsub.f32 %v3612, %v3850
      %v3867 = vsub.f32 %v3613, %v3851
      %v3868 = vsub.f32 %v3614, %v3852
      %v3869 = vsub.f32 %v3615, %v3853
      %v3870 = vsub.f32 %v3616, %v3854
      %v3871 = vsub.f32 %v3617, %v3855
      %v3872 = vsub.f32 %v3618, %v3856
      %v3873 = vsub.f32 %v3619, %v3857
      %v3874 = vsub.f32 %v3620, %v3858
      %v3875 = vsub.f32 %v3621, %v3859
      %v3876 = vsub.f32 %v3622, %v3860
      %v3877 = vsub.f32 %v3623, %v3861
      %v3878 = vsub.f32 %v3624, %v3862
      %v3879 = vsub.f32 %v3625, %v3863
      %v3880 = vsub.f32 %v3626, %v3864
      %v3881 = vsub.f32 %v3627, %v3865
      %v3883 = vsel %vm2890, %v3866, 0
      %v3886 = vsel %vm2890, %v3867, 0
      %v3889 = vsel %vm2890, %v3868, 0
      %v3892 = vsel %vm2890, %v3869, 0
      %v3895 = vsel %vm2890, %v3870, 0
      %v3898 = vsel %vm2890, %v3871, 0
      %v3901 = vsel %vm2890, %v3872, 0
      %v3904 = vsel %vm2890, %v3873, 0
      %v3907 = vsel %vm2890, %v3874, 0
      %v3910 = vsel %vm2890, %v3875, 0
      %v3913 = vsel %vm2890, %v3876, 0
      %v3916 = vsel %vm2890, %v3877, 0
      %v3919 = vsel %vm2890, %v3878, 0
      %v3922 = vsel %vm2890, %v3879, 0
      %v3925 = vsel %vm2890, %v3880, 0
      %v3928 = vsel %vm2890, %v3881, 0
      %3930 = vmatprep.subr.mxu0 0.0
      %3931 = vmatpush1.msra.mxu0 %v3836
      %3932 = vmatprep.subr.mxu0 0.0
      %3933 = vmatpush1.msra.mxu0 %v3837
      %3934 = vmatprep.subr.mxu0 0.0
      %3935 = vmatpush1.msra.mxu0 %v3838
      %3936 = vmatprep.subr.mxu0 0.0
      %3937 = vmatpush1.msra.mxu0 %v3839
      %3938 = vmatprep.subr.mxu0 0.0
      %3939 = vmatpush1.msra.mxu0 0.0
      %3940 = vmatprep.subr.mxu0 0.0
      %3941 = vmatpush1.msra.mxu0 0.0
      %3942 = vmatprep.subr.mxu0 0.0
      %3943 = vmatpush1.msra.mxu0 0.0
      %3944 = vmatprep.subr.mxu0 0.0
      %3945 = vmatpush1.msra.mxu0 0.0
      %3946 = vmatprep.subr.mxu0 0.0
      %3947 = vmatpush1.msra.mxu0 0.0
      %3948 = vmatprep.subr.mxu0 0.0
      %3949 = vmatpush1.msra.mxu0 0.0
      %3950 = vmatprep.subr.mxu0 0.0
      %3951 = vmatpush1.msra.mxu0 0.0
      %3952 = vmatprep.subr.mxu0 0.0
      %3953 = vmatpush1.msra.mxu0 0.0
      %3954 = vmatprep.subr.mxu0 0.0
      %3955 = vmatpush1.msra.mxu0 0.0
      %3956 = vmatprep.subr.mxu0 0.0
      %3957 = vmatpush1.msra.mxu0 0.0
      %3958 = vmatprep.subr.mxu0 0.0
      %3959 = vmatpush1.msra.mxu0 0.0
      %3960 = vmatprep.subr.mxu0 0.0
      %3961 = vmatpush1.msra.mxu0 0.0
      %3962 = vmatprep.subr.mxu0 0.0
      %3963 = vmatpush1.msra.mxu0 0.0
      %3964 = vmatprep.subr.mxu0 0.0
      %3965 = vmatpush1.msra.mxu0 0.0
      %3966 = vmatprep.subr.mxu0 0.0
      %3967 = vmatpush1.msra.mxu0 0.0
      %3968 = vmatprep.subr.mxu0 0.0
      %3969 = vmatpush1.msra.mxu0 0.0
      %3970 = vmatprep.subr.mxu0 0.0
      %3971 = vmatpush1.msra.mxu0 0.0
      %3972 = vmatprep.subr.mxu0 0.0
      %3973 = vmatpush1.msra.mxu0 0.0
      %3974 = vmatprep.subr.mxu0 0.0
      %3975 = vmatpush1.msra.mxu0 0.0
      %3976 = vmatprep.subr.mxu0 0.0
      %3977 = vmatpush1.msra.mxu0 0.0
      %3978 = vmatprep.subr.mxu0 0.0
      %3979 = vmatpush1.msra.mxu0 0.0
      %3980 = vmatprep.subr.mxu0 0.0
      %3981 = vmatpush1.msra.mxu0 0.0
      %3982 = vmatprep.subr.mxu0 0.0
      %3983 = vmatpush1.msra.mxu0 0.0
      %3984 = vmatprep.subr.mxu0 0.0
      %3985 = vmatpush1.msra.mxu0 0.0
      %3986 = vmatprep.subr.mxu0 0.0
      %3987 = vmatpush1.msra.mxu0 0.0
      %3988 = vmatprep.subr.mxu0 0.0
      %3989 = vmatpush1.msra.mxu0 0.0
      %3990 = vmatprep.subr.mxu0 0.0
      %3991 = vmatpush1.msra.mxu0 0.0
      %3992 = vmatprep.subr.mxu0 0.0
      %3993 = vmatpush1.msra.mxu0 0.0
      %3994 = vmatprep.mubr.f32.mxu0 0.0
      %3995 = vmatmul.mubr.f32.gmra.mrb[0].mxu0 %v3883
      %v3996 = vpop.f32.mrb[0].mxu0
      %v3997 = vadd.f32 0.0, %v3996
      %v3998 = vpop.f32.mrb[0].mxu0
      %3999 = vmatprep.mubr.f32.mxu0 0.0
      %4000 = vmatmul.mubr.f32.gmra.mrb[0].mxu0 %v3886
      %v4001 = vpop.f32.mrb[0].mxu0
      %v4002 = vadd.f32 0.0, %v4001
      %v4003 = vpop.f32.mrb[0].mxu0
      %4004 = vmatprep.mubr.f32.mxu0 0.0
      %4005 = vmatmul.mubr.f32.gmra.mrb[0].mxu0 %v3889
      %v4006 = vpop.f32.mrb[0].mxu0
      %v4007 = vadd.f32 0.0, %v4006
      %v4008 = vpop.f32.mrb[0].mxu0
      %4009 = vmatprep.mubr.f32.mxu0 0.0
      %4010 = vmatmul.mubr.f32.gmra.mrb[0].mxu0 %v3892
      %v4011 = vpop.f32.mrb[0].mxu0
      %v4012 = vadd.f32 0.0, %v4011
      %v4013 = vpop.f32.mrb[0].mxu0
      %4014 = vmatprep.mubr.f32.mxu0 0.0
      %4015 = vmatmul.mubr.f32.gmra.mrb[0].mxu0 %v3895
      %v4016 = vpop.f32.mrb[0].mxu0
      %v4017 = vadd.f32 0.0, %v4016
      %v4018 = vpop.f32.mrb[0].mxu0
      %4019 = vmatprep.mubr.f32.mxu0 0.0
      %4020 = vmatmul.mubr.f32.gmra.mrb[0].mxu0 %v3898
      %v4021 = vpop.f32.mrb[0].mxu0
      %v4022 = vadd.f32 0.0, %v4021
      %v4023 = vpop.f32.mrb[0].mxu0
      %4024 = vmatprep.mubr.f32.mxu0 0.0
      %4025 = vmatmul.mubr.f32.gmra.mrb[0].mxu0 %v3901
      %v4026 = vpop.f32.mrb[0].mxu0
      %v4027 = vadd.f32 0.0, %v4026
      %v4028 = vpop.f32.mrb[0].mxu0
      %4029 = vmatprep.mubr.f32.mxu0 0.0
      %4030 = vmatmul.mubr.f32.gmra.mrb[0].mxu0 %v3904
      %v4031 = vpop.f32.mrb[0].mxu0
      %v4032 = vadd.f32 0.0, %v4031
      %v4033 = vpop.f32.mrb[0].mxu0
      %4034 = vmatprep.mubr.f32.mxu0 0.0
      %4035 = vmatmul.mubr.f32.gmra.mrb[0].mxu0 %v3907
      %v4036 = vpop.f32.mrb[0].mxu0
      %v4037 = vadd.f32 0.0, %v4036
      %v4038 = vpop.f32.mrb[0].mxu0
      %4039 = vmatprep.mubr.f32.mxu0 0.0
      %4040 = vmatmul.mubr.f32.gmra.mrb[0].mxu0 %v3910
      %v4041 = vpop.f32.mrb[0].mxu0
      %v4042 = vadd.f32 0.0, %v4041
      %v4043 = vpop.f32.mrb[0].mxu0
      %4044 = vmatprep.mubr.f32.mxu0 0.0
      %4045 = vmatmul.mubr.f32.gmra.mrb[0].mxu0 %v3913
      %v4046 = vpop.f32.mrb[0].mxu0
      %v4047 = vadd.f32 0.0, %v4046
      %v4048 = vpop.f32.mrb[0].mxu0
      %4049 = vmatprep.mubr.f32.mxu0 0.0
      %4050 = vmatmul.mubr.f32.gmra.mrb[0].mxu0 %v3916
      %v4051 = vpop.f32.mrb[0].mxu0
      %v4052 = vadd.f32 0.0, %v4051
      %v4053 = vpop.f32.mrb[0].mxu0
      %4054 = vmatprep.mubr.f32.mxu0 0.0
      %4055 = vmatmul.mubr.f32.gmra.mrb[0].mxu0 %v3919
      %v4056 = vpop.f32.mrb[0].mxu0
      %v4057 = vadd.f32 0.0, %v4056
      %v4058 = vpop.f32.mrb[0].mxu0
      %4059 = vmatprep.mubr.f32.mxu0 0.0
      %4060 = vmatmul.mubr.f32.gmra.mrb[0].mxu0 %v3922
      %v4061 = vpop.f32.mrb[0].mxu0
      %v4062 = vadd.f32 0.0, %v4061
      %v4063 = vpop.f32.mrb[0].mxu0
      %4064 = vmatprep.mubr.f32.mxu0 0.0
      %4065 = vmatmul.mubr.f32.gmra.mrb[0].mxu0 %v3925
      %v4066 = vpop.f32.mrb[0].mxu0
      %v4067 = vadd.f32 0.0, %v4066
      %v4068 = vpop.f32.mrb[0].mxu0
      %4069 = vmatprep.mubr.f32.mxu0 0.0
      %4070 = vmatmul.mubr.f32.gmra.mrb[0].mxu0 %v3928
      %v4071 = vpop.f32.mrb[0].mxu0
      %v4072 = vadd.f32 0.0, %v4071
      %v4073 = vpop.f32.mrb[0].mxu0
      %4074 = vdwg.mxu0
      %v4076 = vsel %vm2890, %v3850, 0
      %v4079 = vsel %vm2890, %v3851, 0
      %v4082 = vsel %vm2890, %v3852, 0
      %v4085 = vsel %vm2890, %v3853, 0
      %v4088 = vsel %vm2890, %v3854, 0
      %v4091 = vsel %vm2890, %v3855, 0
      %v4094 = vsel %vm2890, %v3856, 0
      %v4097 = vsel %vm2890, %v3857, 0
      %v4100 = vsel %vm2890, %v3858, 0
      %v4103 = vsel %vm2890, %v3859, 0
      %v4106 = vsel %vm2890, %v3860, 0
      %v4109 = vsel %vm2890, %v3861, 0
      %v4112 = vsel %vm2890, %v3862, 0
      %v4115 = vsel %vm2890, %v3863, 0
      %v4118 = vsel %vm2890, %v3864, 0
      %v4121 = vsel %vm2890, %v3865, 0
      %4123 = vmatprep.subr.mxu0 0.0
      %4124 = vmatpush1.msra.mxu0 %v3836
      %4125 = vmatprep.subr.mxu0 0.0
      %4126 = vmatpush1.msra.mxu0 %v3837
      %4127 = vmatprep.subr.mxu0 0.0
      %4128 = vmatpush1.msra.mxu0 %v3838
      %4129 = vmatprep.subr.mxu0 0.0
      %4130 = vmatpush1.msra.mxu0 %v3839
      %4131 = vmatprep.subr.mxu0 0.0
      %4132 = vmatpush1.msra.mxu0 0.0
      %4133 = vmatprep.subr.mxu0 0.0
      %4134 = vmatpush1.msra.mxu0 0.0
      %4135 = vmatprep.subr.mxu0 0.0
      %4136 = vmatpush1.msra.mxu0 0.0
      %4137 = vmatprep.subr.mxu0 0.0
      %4138 = vmatpush1.msra.mxu0 0.0
      %4139 = vmatprep.subr.mxu0 0.0
      %4140 = vmatpush1.msra.mxu0 0.0
      %4141 = vmatprep.subr.mxu0 0.0
      %4142 = vmatpush1.msra.mxu0 0.0
      %4143 = vmatprep.subr.mxu0 0.0
      %4144 = vmatpush1.msra.mxu0 0.0
      %4145 = vmatprep.subr.mxu0 0.0
      %4146 = vmatpush1.msra.mxu0 0.0
      %4147 = vmatprep.subr.mxu0 0.0
      %4148 = vmatpush1.msra.mxu0 0.0
      %4149 = vmatprep.subr.mxu0 0.0
      %4150 = vmatpush1.msra.mxu0 0.0
      %4151 = vmatprep.subr.mxu0 0.0
      %4152 = vmatpush1.msra.mxu0 0.0
      %4153 = vmatprep.subr.mxu0 0.0
      %4154 = vmatpush1.msra.mxu0 0.0
      %4155 = vmatprep.subr.mxu0 0.0
      %4156 = vmatpush1.msra.mxu0 0.0
      %4157 = vmatprep.subr.mxu0 0.0
      %4158 = vmatpush1.msra.mxu0 0.0
      %4159 = vmatprep.subr.mxu0 0.0
      %4160 = vmatpush1.msra.mxu0 0.0
      %4161 = vmatprep.subr.mxu0 0.0
      %4162 = vmatpush1.msra.mxu0 0.0
      %4163 = vmatprep.subr.mxu0 0.0
      %4164 = vmatpush1.msra.mxu0 0.0
      %4165 = vmatprep.subr.mxu0 0.0
      %4166 = vmatpush1.msra.mxu0 0.0
      %4167 = vmatprep.subr.mxu0 0.0
      %4168 = vmatpush1.msra.mxu0 0.0
      %4169 = vmatprep.subr.mxu0 0.0
      %4170 = vmatpush1.msra.mxu0 0.0
      %4171 = vmatprep.subr.mxu0 0.0
      %4172 = vmatpush1.msra.mxu0 0.0
      %4173 = vmatprep.subr.mxu0 0.0
      %4174 = vmatpush1.msra.mxu0 0.0
      %4175 = vmatprep.subr.mxu0 0.0
      %4176 = vmatpush1.msra.mxu0 0.0
      %4177 = vmatprep.subr.mxu0 0.0
      %4178 = vmatpush1.msra.mxu0 0.0
      %4179 = vmatprep.subr.mxu0 0.0
      %4180 = vmatpush1.msra.mxu0 0.0
      %4181 = vmatprep.subr.mxu0 0.0
      %4182 = vmatpush1.msra.mxu0 0.0
      %4183 = vmatprep.subr.mxu0 0.0
      %4184 = vmatpush1.msra.mxu0 0.0
      %4185 = vmatprep.subr.mxu0 0.0
      %4186 = vmatpush1.msra.mxu0 0.0
      %4187 = vmatprep.mubr.f32.mxu0 0.0
      %4188 = vmatmul.mubr.f32.gmra.mrb[0].mxu0 %v4076
      %v4189 = vpop.f32.mrb[0].mxu0
      %v4190 = vadd.f32 %v3997, %v4189
      %v4191 = vpop.f32.mrb[0].mxu0
      %4192 = vmatprep.mubr.f32.mxu0 0.0
      %4193 = vmatmul.mubr.f32.gmra.mrb[0].mxu0 %v4079
      %v4194 = vpop.f32.mrb[0].mxu0
      %v4195 = vadd.f32 %v4002, %v4194
      %v4196 = vpop.f32.mrb[0].mxu0
      %4197 = vmatprep.mubr.f32.mxu0 0.0
      %4198 = vmatmul.mubr.f32.gmra.mrb[0].mxu0 %v4082
      %v4199 = vpop.f32.mrb[0].mxu0
      %v4200 = vadd.f32 %v4007, %v4199
      %v4201 = vpop.f32.mrb[0].mxu0
      %4202 = vmatprep.mubr.f32.mxu0 0.0
      %4203 = vmatmul.mubr.f32.gmra.mrb[0].mxu0 %v4085
      %v4204 = vpop.f32.mrb[0].mxu0
      %v4205 = vadd.f32 %v4012, %v4204
      %v4206 = vpop.f32.mrb[0].mxu0
      %4207 = vmatprep.mubr.f32.mxu0 0.0
      %4208 = vmatmul.mubr.f32.gmra.mrb[0].mxu0 %v4088
      %v4209 = vpop.f32.mrb[0].mxu0
      %v4210 = vadd.f32 %v4017, %v4209
      %v4211 = vpop.f32.mrb[0].mxu0
      %4212 = vmatprep.mubr.f32.mxu0 0.0
      %4213 = vmatmul.mubr.f32.gmra.mrb[0].mxu0 %v4091
      %v4214 = vpop.f32.mrb[0].mxu0
      %v4215 = vadd.f32 %v4022, %v4214
      %v4216 = vpop.f32.mrb[0].mxu0
      %4217 = vmatprep.mubr.f32.mxu0 0.0
      %4218 = vmatmul.mubr.f32.gmra.mrb[0].mxu0 %v4094
      %v4219 = vpop.f32.mrb[0].mxu0
      %v4220 = vadd.f32 %v4027, %v4219
      %v4221 = vpop.f32.mrb[0].mxu0
      %4222 = vmatprep.mubr.f32.mxu0 0.0
      %4223 = vmatmul.mubr.f32.gmra.mrb[0].mxu0 %v4097
      %v4224 = vpop.f32.mrb[0].mxu0
      %v4225 = vadd.f32 %v4032, %v4224
      %v4226 = vpop.f32.mrb[0].mxu0
      %4227 = vmatprep.mubr.f32.mxu0 0.0
      %4228 = vmatmul.mubr.f32.gmra.mrb[0].mxu0 %v4100
      %v4229 = vpop.f32.mrb[0].mxu0
      %v4230 = vadd.f32 %v4037, %v4229
      %v4231 = vpop.f32.mrb[0].mxu0
      %4232 = vmatprep.mubr.f32.mxu0 0.0
      %4233 = vmatmul.mubr.f32.gmra.mrb[0].mxu0 %v4103
      %v4234 = vpop.f32.mrb[0].mxu0
      %v4235 = vadd.f32 %v4042, %v4234
      %v4236 = vpop.f32.mrb[0].mxu0
      %4237 = vmatprep.mubr.f32.mxu0 0.0
      %4238 = vmatmul.mubr.f32.gmra.mrb[0].mxu0 %v4106
      %v4239 = vpop.f32.mrb[0].mxu0
      %v4240 = vadd.f32 %v4047, %v4239
      %v4241 = vpop.f32.mrb[0].mxu0
      %4242 = vmatprep.mubr.f32.mxu0 0.0
      %4243 = vmatmul.mubr.f32.gmra.mrb[0].mxu0 %v4109
      %v4244 = vpop.f32.mrb[0].mxu0
      %v4245 = vadd.f32 %v4052, %v4244
      %v4246 = vpop.f32.mrb[0].mxu0
      %4247 = vmatprep.mubr.f32.mxu0 0.0
      %4248 = vmatmul.mubr.f32.gmra.mrb[0].mxu0 %v4112
      %v4249 = vpop.f32.mrb[0].mxu0
      %v4250 = vadd.f32 %v4057, %v4249
      %v4251 = vpop.f32.mrb[0].mxu0
      %4252 = vmatprep.mubr.f32.mxu0 0.0
      %4253 = vmatmul.mubr.f32.gmra.mrb[0].mxu0 %v4115
      %v4254 = vpop.f32.mrb[0].mxu0
      %v4255 = vadd.f32 %v4062, %v4254
      %v4256 = vpop.f32.mrb[0].mxu0
      %4257 = vmatprep.mubr.f32.mxu0 0.0
      %4258 = vmatmul.mubr.f32.gmra.mrb[0].mxu0 %v4118
      %v4259 = vpop.f32.mrb[0].mxu0
      %v4260 = vadd.f32 %v4067, %v4259
      %v4261 = vpop.f32.mrb[0].mxu0
      %4262 = vmatprep.mubr.f32.mxu0 0.0
      %4263 = vmatmul.mubr.f32.gmra.mrb[0].mxu0 %v4121
      %v4264 = vpop.f32.mrb[0].mxu0
      %v4265 = vadd.f32 %v4072, %v4264
      %v4266 = vpop.f32.mrb[0].mxu0
      %4267 = vdwg.mxu0
      %v4268 = vmul.f32 %v4190, 6.0
      %v4269 = vmul.f32 %v4195, 6.0
      %v4270 = vmul.f32 %v4200, 6.0
      %v4271 = vmul.f32 %v4205, 6.0
      %v4272 = vmul.f32 %v4210, 6.0
      %v4273 = vmul.f32 %v4215, 6.0
      %v4274 = vmul.f32 %v4220, 6.0
      %v4275 = vmul.f32 %v4225, 6.0
      %v4276 = vmul.f32 %v4230, 6.0
      %v4277 = vmul.f32 %v4235, 6.0
      %v4278 = vmul.f32 %v4240, 6.0
      %v4279 = vmul.f32 %v4245, 6.0
      %v4280 = vmul.f32 %v4250, 6.0
      %v4281 = vmul.f32 %v4255, 6.0
      %v4282 = vmul.f32 %v4260, 6.0
      %v4283 = vmul.f32 %v4265, 6.0
      %v4284 = vadd.f32 %v4268, -3.0
      %v4285 = vadd.f32 %v4269, -3.0
      %v4286 = vadd.f32 %v4270, -3.0
      %v4287 = vadd.f32 %v4271, -3.0
      %v4288 = vadd.f32 %v4272, -3.0
      %v4289 = vadd.f32 %v4273, -3.0
      %v4290 = vadd.f32 %v4274, -3.0
      %v4291 = vadd.f32 %v4275, -3.0
      %v4292 = vadd.f32 %v4276, -3.0
      %v4293 = vadd.f32 %v4277, -3.0
      %v4294 = vadd.f32 %v4278, -3.0
      %v4295 = vadd.f32 %v4279, -3.0
      %v4296 = vadd.f32 %v4280, -3.0
      %v4297 = vadd.f32 %v4281, -3.0
      %v4298 = vadd.f32 %v4282, -3.0
      %v4299 = vadd.f32 %v4283, -3.0
      %v4300 = vpack.c.bf16 %v3821, %v3820
      %v4301 = vpack.c.bf16 %v3823, %v3822
      %v4302 = vpack.c.bf16 %v3825, %v3824
      %v4303 = vpack.c.bf16 %v3827, %v3826
      %v4304 = vpack.c.bf16 %v3829, %v3828
      %v4305 = vpack.c.bf16 %v3831, %v3830
      %v4306 = vpack.c.bf16 %v3833, %v3832
      %v4307 = vpack.c.bf16 %v3835, %v3834
      %v4308 = vunpack.c.l.bf16 %v4300
      %v4309 = vunpack.c.h.bf16 %v4300
      %v4310 = vunpack.c.l.bf16 %v4301
      %v4311 = vunpack.c.h.bf16 %v4301
      %v4312 = vunpack.c.l.bf16 %v4302
      %v4313 = vunpack.c.h.bf16 %v4302
      %v4314 = vunpack.c.l.bf16 %v4303
      %v4315 = vunpack.c.h.bf16 %v4303
      %v4316 = vunpack.c.l.bf16 %v4304
      %v4317 = vunpack.c.h.bf16 %v4304
      %v4318 = vunpack.c.l.bf16 %v4305
      %v4319 = vunpack.c.h.bf16 %v4305
      %v4320 = vunpack.c.l.bf16 %v4306
      %v4321 = vunpack.c.h.bf16 %v4306
      %v4322 = vunpack.c.l.bf16 %v4307
      %v4323 = vunpack.c.h.bf16 %v4307
      %v4324 = vsub.f32 %v3820, %v4308
      %v4325 = vsub.f32 %v3821, %v4309
      %v4326 = vsub.f32 %v3822, %v4310
      %v4327 = vsub.f32 %v3823, %v4311
      %v4328 = vsub.f32 %v3824, %v4312
      %v4329 = vsub.f32 %v3825, %v4313
      %v4330 = vsub.f32 %v3826, %v4314
      %v4331 = vsub.f32 %v3827, %v4315
      %v4332 = vsub.f32 %v3828, %v4316
      %v4333 = vsub.f32 %v3829, %v4317
      %v4334 = vsub.f32 %v3830, %v4318
      %v4335 = vsub.f32 %v3831, %v4319
      %v4336 = vsub.f32 %v3832, %v4320
      %v4337 = vsub.f32 %v3833, %v4321
      %v4338 = vsub.f32 %v3834, %v4322
      %v4339 = vsub.f32 %v3835, %v4323
      %4356 = vrot.lane.b32.xlu0 %v4324, 96
      %v4357 = vpop.permute.xlu0 %4356
      %4358 = vrot.lane.b32.xlu0 %v4325, 96
      %v4359 = vpop.permute.xlu0 %4358
      %4360 = vrot.lane.b32.xlu0 %v4326, 96
      %v4361 = vpop.permute.xlu0 %4360
      %4362 = vrot.lane.b32.xlu0 %v4327, 96
      %v4363 = vpop.permute.xlu0 %4362
      %4364 = vrot.lane.b32.xlu0 %v4328, 96
      %v4365 = vpop.permute.xlu0 %4364
      %4366 = vrot.lane.b32.xlu0 %v4329, 96
      %v4367 = vpop.permute.xlu0 %4366
      %4368 = vrot.lane.b32.xlu0 %v4330, 96
      %v4369 = vpop.permute.xlu0 %4368
      %4370 = vrot.lane.b32.xlu0 %v4331, 96
      %v4371 = vpop.permute.xlu0 %4370
      %4372 = vrot.lane.b32.xlu0 %v4332, 96
      %v4373 = vpop.permute.xlu0 %4372
      %4374 = vrot.lane.b32.xlu0 %v4333, 96
      %v4375 = vpop.permute.xlu0 %4374
      %4376 = vrot.lane.b32.xlu0 %v4334, 96
      %v4377 = vpop.permute.xlu0 %4376
      %4378 = vrot.lane.b32.xlu0 %v4335, 96
      %v4379 = vpop.permute.xlu0 %4378
      %4380 = vrot.lane.b32.xlu0 %v4336, 96
      %v4381 = vpop.permute.xlu0 %4380
      %4382 = vrot.lane.b32.xlu0 %v4337, 96
      %v4383 = vpop.permute.xlu0 %4382
      %4384 = vrot.lane.b32.xlu0 %v4338, 96
      %v4385 = vpop.permute.xlu0 %4384
      %4386 = vrot.lane.b32.xlu0 %v4339, 96
      %v4387 = vpop.permute.xlu0 %4386
      %v4388 = vsel %vm2890, %v4357, 0
      %v4390 = vsel %vm2890, %v4359, 0
      %v4392 = vsel %vm2890, %v4361, 0
      %v4394 = vsel %vm2890, %v4363, 0
      %v4396 = vsel %vm2890, %v4365, 0
      %v4398 = vsel %vm2890, %v4367, 0
      %v4400 = vsel %vm2890, %v4369, 0
      %v4402 = vsel %vm2890, %v4371, 0
      %v4404 = vsel %vm2890, %v4373, 0
      %v4406 = vsel %vm2890, %v4375, 0
      %v4408 = vsel %vm2890, %v4377, 0
      %v4410 = vsel %vm2890, %v4379, 0
      %v4412 = vsel %vm2890, %v4381, 0
      %v4414 = vsel %vm2890, %v4383, 0
      %v4416 = vsel %vm2890, %v4385, 0
      %v4418 = vsel %vm2890, %v4387, 0
      %4420 = vmatprep.subr.mxu0 0.0
      %4421 = vmatpush1.msra.mxu0 %v3836
      %4422 = vmatprep.subr.mxu0 0.0
      %4423 = vmatpush1.msra.mxu0 %v3837
      %4424 = vmatprep.subr.mxu0 0.0
      %4425 = vmatpush1.msra.mxu0 %v3838
      %4426 = vmatprep.subr.mxu0 0.0
      %4427 = vmatpush1.msra.mxu0 %v3839
      %4428 = vmatprep.subr.mxu0 0.0
      %4429 = vmatpush1.msra.mxu0 0.0
      %4430 = vmatprep.subr.mxu0 0.0
      %4431 = vmatpush1.msra.mxu0 0.0
      %4432 = vmatprep.subr.mxu0 0.0
      %4433 = vmatpush1.msra.mxu0 0.0
      %4434 = vmatprep.subr.mxu0 0.0
      %4435 = vmatpush1.msra.mxu0 0.0
      %4436 = vmatprep.subr.mxu0 0.0
      %4437 = vmatpush1.msra.mxu0 0.0
      %4438 = vmatprep.subr.mxu0 0.0
      %4439 = vmatpush1.msra.mxu0 0.0
      %4440 = vmatprep.subr.mxu0 0.0
      %4441 = vmatpush1.msra.mxu0 0.0
      %4442 = vmatprep.subr.mxu0 0.0
      %4443 = vmatpush1.msra.mxu0 0.0
      %4444 = vmatprep.subr.mxu0 0.0
      %4445 = vmatpush1.msra.mxu0 0.0
      %4446 = vmatprep.subr.mxu0 0.0
      %4447 = vmatpush1.msra.mxu0 0.0
      %4448 = vmatprep.subr.mxu0 0.0
      %4449 = vmatpush1.msra.mxu0 0.0
      %4450 = vmatprep.subr.mxu0 0.0
      %4451 = vmatpush1.msra.mxu0 0.0
      %4452 = vmatprep.subr.mxu0 0.0
      %4453 = vmatpush1.msra.mxu0 0.0
      %4454 = vmatprep.subr.mxu0 0.0
      %4455 = vmatpush1.msra.mxu0 0.0
      %4456 = vmatprep.subr.mxu0 0.0
      %4457 = vmatpush1.msra.mxu0 0.0
      %4458 = vmatprep.subr.mxu0 0.0
      %4459 = vmatpush1.msra.mxu0 0.0
      %4460 = vmatprep.subr.mxu0 0.0
      %4461 = vmatpush1.msra.mxu0 0.0
      %4462 = vmatprep.subr.mxu0 0.0
      %4463 = vmatpush1.msra.mxu0 0.0
      %4464 = vmatprep.subr.mxu0 0.0
      %4465 = vmatpush1.msra.mxu0 0.0
      %4466 = vmatprep.subr.mxu0 0.0
      %4467 = vmatpush1.msra.mxu0 0.0
      %4468 = vmatprep.subr.mxu0 0.0
      %4469 = vmatpush1.msra.mxu0 0.0
      %4470 = vmatprep.subr.mxu0 0.0
      %4471 = vmatpush1.msra.mxu0 0.0
      %4472 = vmatprep.subr.mxu0 0.0
      %4473 = vmatpush1.msra.mxu0 0.0
      %4474 = vmatprep.subr.mxu0 0.0
      %4475 = vmatpush1.msra.mxu0 0.0
      %4476 = vmatprep.subr.mxu0 0.0
      %4477 = vmatpush1.msra.mxu0 0.0
      %4478 = vmatprep.subr.mxu0 0.0
      %4479 = vmatpush1.msra.mxu0 0.0
      %4480 = vmatprep.subr.mxu0 0.0
      %4481 = vmatpush1.msra.mxu0 0.0
      %4482 = vmatprep.subr.mxu0 0.0
      %4483 = vmatpush1.msra.mxu0 0.0
      %4484 = vmatprep.mubr.f32.mxu0 0.0
      %4485 = vmatmul.mubr.f32.gmra.mrb[0].mxu0 %v4388
      %v4486 = vpop.f32.mrb[0].mxu0
      %v4487 = vadd.f32 0.0, %v4486
      %v4488 = vpop.f32.mrb[0].mxu0
      %4489 = vmatprep.mubr.f32.mxu0 0.0
      %4490 = vmatmul.mubr.f32.gmra.mrb[0].mxu0 %v4390
      %v4491 = vpop.f32.mrb[0].mxu0
      %v4492 = vadd.f32 0.0, %v4491
      %v4493 = vpop.f32.mrb[0].mxu0
      %4494 = vmatprep.mubr.f32.mxu0 0.0
      %4495 = vmatmul.mubr.f32.gmra.mrb[0].mxu0 %v4392
      %v4496 = vpop.f32.mrb[0].mxu0
      %v4497 = vadd.f32 0.0, %v4496
      %v4498 = vpop.f32.mrb[0].mxu0
      %4499 = vmatprep.mubr.f32.mxu0 0.0
      %4500 = vmatmul.mubr.f32.gmra.mrb[0].mxu0 %v4394
      %v4501 = vpop.f32.mrb[0].mxu0
      %v4502 = vadd.f32 0.0, %v4501
      %v4503 = vpop.f32.mrb[0].mxu0
      %4504 = vmatprep.mubr.f32.mxu0 0.0
      %4505 = vmatmul.mubr.f32.gmra.mrb[0].mxu0 %v4396
      %v4506 = vpop.f32.mrb[0].mxu0
      %v4507 = vadd.f32 0.0, %v4506
      %v4508 = vpop.f32.mrb[0].mxu0
      %4509 = vmatprep.mubr.f32.mxu0 0.0
      %4510 = vmatmul.mubr.f32.gmra.mrb[0].mxu0 %v4398
      %v4511 = vpop.f32.mrb[0].mxu0
      %v4512 = vadd.f32 0.0, %v4511
      %v4513 = vpop.f32.mrb[0].mxu0
      %4514 = vmatprep.mubr.f32.mxu0 0.0
      %4515 = vmatmul.mubr.f32.gmra.mrb[0].mxu0 %v4400
      %v4516 = vpop.f32.mrb[0].mxu0
      %v4517 = vadd.f32 0.0, %v4516
      %v4518 = vpop.f32.mrb[0].mxu0
      %4519 = vmatprep.mubr.f32.mxu0 0.0
      %4520 = vmatmul.mubr.f32.gmra.mrb[0].mxu0 %v4402
      %v4521 = vpop.f32.mrb[0].mxu0
      %v4522 = vadd.f32 0.0, %v4521
      %v4523 = vpop.f32.mrb[0].mxu0
      %4524 = vmatprep.mubr.f32.mxu0 0.0
      %4525 = vmatmul.mubr.f32.gmra.mrb[0].mxu0 %v4404
      %v4526 = vpop.f32.mrb[0].mxu0
      %v4527 = vadd.f32 0.0, %v4526
      %v4528 = vpop.f32.mrb[0].mxu0
      %4529 = vmatprep.mubr.f32.mxu0 0.0
      %4530 = vmatmul.mubr.f32.gmra.mrb[0].mxu0 %v4406
      %v4531 = vpop.f32.mrb[0].mxu0
      %v4532 = vadd.f32 0.0, %v4531
      %v4533 = vpop.f32.mrb[0].mxu0
      %4534 = vmatprep.mubr.f32.mxu0 0.0
      %4535 = vmatmul.mubr.f32.gmra.mrb[0].mxu0 %v4408
      %v4536 = vpop.f32.mrb[0].mxu0
      %v4537 = vadd.f32 0.0, %v4536
      %v4538 = vpop.f32.mrb[0].mxu0
      %4539 = vmatprep.mubr.f32.mxu0 0.0
      %4540 = vmatmul.mubr.f32.gmra.mrb[0].mxu0 %v4410
      %v4541 = vpop.f32.mrb[0].mxu0
      %v4542 = vadd.f32 0.0, %v4541
      %v4543 = vpop.f32.mrb[0].mxu0
      %4544 = vmatprep.mubr.f32.mxu0 0.0
      %4545 = vmatmul.mubr.f32.gmra.mrb[0].mxu0 %v4412
      %v4546 = vpop.f32.mrb[0].mxu0
      %v4547 = vadd.f32 0.0, %v4546
      %v4548 = vpop.f32.mrb[0].mxu0
      %4549 = vmatprep.mubr.f32.mxu0 0.0
      %4550 = vmatmul.mubr.f32.gmra.mrb[0].mxu0 %v4414
      %v4551 = vpop.f32.mrb[0].mxu0
      %v4552 = vadd.f32 0.0, %v4551
      %v4553 = vpop.f32.mrb[0].mxu0
      %4554 = vmatprep.mubr.f32.mxu0 0.0
      %4555 = vmatmul.mubr.f32.gmra.mrb[0].mxu0 %v4416
      %v4556 = vpop.f32.mrb[0].mxu0
      %v4557 = vadd.f32 0.0, %v4556
      %v4558 = vpop.f32.mrb[0].mxu0
      %4559 = vmatprep.mubr.f32.mxu0 0.0
      %4560 = vmatmul.mubr.f32.gmra.mrb[0].mxu0 %v4418
      %v4561 = vpop.f32.mrb[0].mxu0
      %v4562 = vadd.f32 0.0, %v4561
      %v4563 = vpop.f32.mrb[0].mxu0
      %4564 = vdwg.mxu0
      %4581 = vrot.lane.b32.xlu0 %v4308, 96
      %v4582 = vpop.permute.xlu0 %4581
      %4583 = vrot.lane.b32.xlu0 %v4309, 96
      %v4584 = vpop.permute.xlu0 %4583
      %4585 = vrot.lane.b32.xlu0 %v4310, 96
      %v4586 = vpop.permute.xlu0 %4585
      %4587 = vrot.lane.b32.xlu0 %v4311, 96
      %v4588 = vpop.permute.xlu0 %4587
      %4589 = vrot.lane.b32.xlu0 %v4312, 96
      %v4590 = vpop.permute.xlu0 %4589
      %4591 = vrot.lane.b32.xlu0 %v4313, 96
      %v4592 = vpop.permute.xlu0 %4591
      %4593 = vrot.lane.b32.xlu0 %v4314, 96
      %v4594 = vpop.permute.xlu0 %4593
      %4595 = vrot.lane.b32.xlu0 %v4315, 96
      %v4596 = vpop.permute.xlu0 %4595
      %4597 = vrot.lane.b32.xlu0 %v4316, 96
      %v4598 = vpop.permute.xlu0 %4597
      %4599 = vrot.lane.b32.xlu0 %v4317, 96
      %v4600 = vpop.permute.xlu0 %4599
      %4601 = vrot.lane.b32.xlu0 %v4318, 96
      %v4602 = vpop.permute.xlu0 %4601
      %4603 = vrot.lane.b32.xlu0 %v4319, 96
      %v4604 = vpop.permute.xlu0 %4603
      %4605 = vrot.lane.b32.xlu0 %v4320, 96
      %v4606 = vpop.permute.xlu0 %4605
      %4607 = vrot.lane.b32.xlu0 %v4321, 96
      %v4608 = vpop.permute.xlu0 %4607
      %4609 = vrot.lane.b32.xlu0 %v4322, 96
      %v4610 = vpop.permute.xlu0 %4609
      %4611 = vrot.lane.b32.xlu0 %v4323, 96
      %v4612 = vpop.permute.xlu0 %4611
      %v4613 = vsel %vm2890, %v4582, 0
      %v4615 = vsel %vm2890, %v4584, 0
      %v4617 = vsel %vm2890, %v4586, 0
      %v4619 = vsel %vm2890, %v4588, 0
      %v4621 = vsel %vm2890, %v4590, 0
      %v4623 = vsel %vm2890, %v4592, 0
      %v4625 = vsel %vm2890, %v4594, 0
      %v4627 = vsel %vm2890, %v4596, 0
      %v4629 = vsel %vm2890, %v4598, 0
      %v4631 = vsel %vm2890, %v4600, 0
      %v4633 = vsel %vm2890, %v4602, 0
      %v4635 = vsel %vm2890, %v4604, 0
      %v4637 = vsel %vm2890, %v4606, 0
      %v4639 = vsel %vm2890, %v4608, 0
      %v4641 = vsel %vm2890, %v4610, 0
      %v4643 = vsel %vm2890, %v4612, 0
      %4645 = vmatprep.subr.mxu0 0.0
      %4646 = vmatpush1.msra.mxu0 %v3836
      %4647 = vmatprep.subr.mxu0 0.0
      %4648 = vmatpush1.msra.mxu0 %v3837
      %4649 = vmatprep.subr.mxu0 0.0
      %4650 = vmatpush1.msra.mxu0 %v3838
      %4651 = vmatprep.subr.mxu0 0.0
      %4652 = vmatpush1.msra.mxu0 %v3839
      %4653 = vmatprep.subr.mxu0 0.0
      %4654 = vmatpush1.msra.mxu0 0.0
      %4655 = vmatprep.subr.mxu0 0.0
      %4656 = vmatpush1.msra.mxu0 0.0
      %4657 = vmatprep.subr.mxu0 0.0
      %4658 = vmatpush1.msra.mxu0 0.0
      %4659 = vmatprep.subr.mxu0 0.0
      %4660 = vmatpush1.msra.mxu0 0.0
      %4661 = vmatprep.subr.mxu0 0.0
      %4662 = vmatpush1.msra.mxu0 0.0
      %4663 = vmatprep.subr.mxu0 0.0
      %4664 = vmatpush1.msra.mxu0 0.0
      %4665 = vmatprep.subr.mxu0 0.0
      %4666 = vmatpush1.msra.mxu0 0.0
      %4667 = vmatprep.subr.mxu0 0.0
      %4668 = vmatpush1.msra.mxu0 0.0
      %4669 = vmatprep.subr.mxu0 0.0
      %4670 = vmatpush1.msra.mxu0 0.0
      %4671 = vmatprep.subr.mxu0 0.0
      %4672 = vmatpush1.msra.mxu0 0.0
      %4673 = vmatprep.subr.mxu0 0.0
      %4674 = vmatpush1.msra.mxu0 0.0
      %4675 = vmatprep.subr.mxu0 0.0
      %4676 = vmatpush1.msra.mxu0 0.0
      %4677 = vmatprep.subr.mxu0 0.0
      %4678 = vmatpush1.msra.mxu0 0.0
      %4679 = vmatprep.subr.mxu0 0.0
      %4680 = vmatpush1.msra.mxu0 0.0
      %4681 = vmatprep.subr.mxu0 0.0
      %4682 = vmatpush1.msra.mxu0 0.0
      %4683 = vmatprep.subr.mxu0 0.0
      %4684 = vmatpush1.msra.mxu0 0.0
      %4685 = vmatprep.subr.mxu0 0.0
      %4686 = vmatpush1.msra.mxu0 0.0
      %4687 = vmatprep.subr.mxu0 0.0
      %4688 = vmatpush1.msra.mxu0 0.0
      %4689 = vmatprep.subr.mxu0 0.0
      %4690 = vmatpush1.msra.mxu0 0.0
      %4691 = vmatprep.subr.mxu0 0.0
      %4692 = vmatpush1.msra.mxu0 0.0
      %4693 = vmatprep.subr.mxu0 0.0
      %4694 = vmatpush1.msra.mxu0 0.0
      %4695 = vmatprep.subr.mxu0 0.0
      %4696 = vmatpush1.msra.mxu0 0.0
      %4697 = vmatprep.subr.mxu0 0.0
      %4698 = vmatpush1.msra.mxu0 0.0
      %4699 = vmatprep.subr.mxu0 0.0
      %4700 = vmatpush1.msra.mxu0 0.0
      %4701 = vmatprep.subr.mxu0 0.0
      %4702 = vmatpush1.msra.mxu0 0.0
      %4703 = vmatprep.subr.mxu0 0.0
      %4704 = vmatpush1.msra.mxu0 0.0
      %4705 = vmatprep.subr.mxu0 0.0
      %4706 = vmatpush1.msra.mxu0 0.0
      %4707 = vmatprep.subr.mxu0 0.0
      %4708 = vmatpush1.msra.mxu0 0.0
      %4709 = vmatprep.mubr.f32.mxu0 0.0
      %4710 = vmatmul.mubr.f32.gmra.mrb[0].mxu0 %v4613
      %v4711 = vpop.f32.mrb[0].mxu0
      %v4712 = vadd.f32 %v4487, %v4711
      %v4713 = vpop.f32.mrb[0].mxu0
      %4714 = vmatprep.mubr.f32.mxu0 0.0
      %4715 = vmatmul.mubr.f32.gmra.mrb[0].mxu0 %v4615
      %v4716 = vpop.f32.mrb[0].mxu0
      %v4717 = vadd.f32 %v4492, %v4716
      %v4718 = vpop.f32.mrb[0].mxu0
      %4719 = vmatprep.mubr.f32.mxu0 0.0
      %4720 = vmatmul.mubr.f32.gmra.mrb[0].mxu0 %v4617
      %v4721 = vpop.f32.mrb[0].mxu0
      %v4722 = vadd.f32 %v4497, %v4721
      %v4723 = vpop.f32.mrb[0].mxu0
      %4724 = vmatprep.mubr.f32.mxu0 0.0
      %4725 = vmatmul.mubr.f32.gmra.mrb[0].mxu0 %v4619
      %v4726 = vpop.f32.mrb[0].mxu0
      %v4727 = vadd.f32 %v4502, %v4726
      %v4728 = vpop.f32.mrb[0].mxu0
      %4729 = vmatprep.mubr.f32.mxu0 0.0
      %4730 = vmatmul.mubr.f32.gmra.mrb[0].mxu0 %v4621
      %v4731 = vpop.f32.mrb[0].mxu0
      %v4732 = vadd.f32 %v4507, %v4731
      %v4733 = vpop.f32.mrb[0].mxu0
      %4734 = vmatprep.mubr.f32.mxu0 0.0
      %4735 = vmatmul.mubr.f32.gmra.mrb[0].mxu0 %v4623
      %v4736 = vpop.f32.mrb[0].mxu0
      %v4737 = vadd.f32 %v4512, %v4736
      %v4738 = vpop.f32.mrb[0].mxu0
      %4739 = vmatprep.mubr.f32.mxu0 0.0
      %4740 = vmatmul.mubr.f32.gmra.mrb[0].mxu0 %v4625
      %v4741 = vpop.f32.mrb[0].mxu0
      %v4742 = vadd.f32 %v4517, %v4741
      %v4743 = vpop.f32.mrb[0].mxu0
      %4744 = vmatprep.mubr.f32.mxu0 0.0
      %4745 = vmatmul.mubr.f32.gmra.mrb[0].mxu0 %v4627
      %v4746 = vpop.f32.mrb[0].mxu0
      %v4747 = vadd.f32 %v4522, %v4746
      %v4748 = vpop.f32.mrb[0].mxu0
      %4749 = vmatprep.mubr.f32.mxu0 0.0
      %4750 = vmatmul.mubr.f32.gmra.mrb[0].mxu0 %v4629
      %v4751 = vpop.f32.mrb[0].mxu0
      %v4752 = vadd.f32 %v4527, %v4751
      %v4753 = vpop.f32.mrb[0].mxu0
      %4754 = vmatprep.mubr.f32.mxu0 0.0
      %4755 = vmatmul.mubr.f32.gmra.mrb[0].mxu0 %v4631
      %v4756 = vpop.f32.mrb[0].mxu0
      %v4757 = vadd.f32 %v4532, %v4756
      %v4758 = vpop.f32.mrb[0].mxu0
      %4759 = vmatprep.mubr.f32.mxu0 0.0
      %4760 = vmatmul.mubr.f32.gmra.mrb[0].mxu0 %v4633
      %v4761 = vpop.f32.mrb[0].mxu0
      %v4762 = vadd.f32 %v4537, %v4761
      %v4763 = vpop.f32.mrb[0].mxu0
      %4764 = vmatprep.mubr.f32.mxu0 0.0
      %4765 = vmatmul.mubr.f32.gmra.mrb[0].mxu0 %v4635
      %v4766 = vpop.f32.mrb[0].mxu0
      %v4767 = vadd.f32 %v4542, %v4766
      %v4768 = vpop.f32.mrb[0].mxu0
      %4769 = vmatprep.mubr.f32.mxu0 0.0
      %4770 = vmatmul.mubr.f32.gmra.mrb[0].mxu0 %v4637
      %v4771 = vpop.f32.mrb[0].mxu0
      %v4772 = vadd.f32 %v4547, %v4771
      %v4773 = vpop.f32.mrb[0].mxu0
      %4774 = vmatprep.mubr.f32.mxu0 0.0
      %4775 = vmatmul.mubr.f32.gmra.mrb[0].mxu0 %v4639
      %v4776 = vpop.f32.mrb[0].mxu0
      %v4777 = vadd.f32 %v4552, %v4776
      %v4778 = vpop.f32.mrb[0].mxu0
      %4779 = vmatprep.mubr.f32.mxu0 0.0
      %4780 = vmatmul.mubr.f32.gmra.mrb[0].mxu0 %v4641
      %v4781 = vpop.f32.mrb[0].mxu0
      %v4782 = vadd.f32 %v4557, %v4781
      %v4783 = vpop.f32.mrb[0].mxu0
      %4784 = vmatprep.mubr.f32.mxu0 0.0
      %4785 = vmatmul.mubr.f32.gmra.mrb[0].mxu0 %v4643
      %v4786 = vpop.f32.mrb[0].mxu0
      %v4787 = vadd.f32 %v4562, %v4786
      %v4788 = vpop.f32.mrb[0].mxu0
      %4789 = vdwg.mxu0
      %v4790 = vmul.f32 %v4712, 6.0
      %v4791 = vmul.f32 %v4717, 6.0
      %v4792 = vmul.f32 %v4722, 6.0
      %v4793 = vmul.f32 %v4727, 6.0
      %v4794 = vmul.f32 %v4732, 6.0
      %v4795 = vmul.f32 %v4737, 6.0
      %v4796 = vmul.f32 %v4742, 6.0
      %v4797 = vmul.f32 %v4747, 6.0
      %v4798 = vmul.f32 %v4752, 6.0
      %v4799 = vmul.f32 %v4757, 6.0
      %v4800 = vmul.f32 %v4762, 6.0
      %v4801 = vmul.f32 %v4767, 6.0
      %v4802 = vmul.f32 %v4772, 6.0
      %v4803 = vmul.f32 %v4777, 6.0
      %v4804 = vmul.f32 %v4782, 6.0
      %v4805 = vmul.f32 %v4787, 6.0
      %v4806 = vadd.f32 %v4790, -3.0
      %v4807 = vadd.f32 %v4791, -3.0
      %v4808 = vadd.f32 %v4792, -3.0
      %v4809 = vadd.f32 %v4793, -3.0
      %v4810 = vadd.f32 %v4794, -3.0
      %v4811 = vadd.f32 %v4795, -3.0
      %v4812 = vadd.f32 %v4796, -3.0
      %v4813 = vadd.f32 %v4797, -3.0
      %v4814 = vadd.f32 %v4798, -3.0
      %v4815 = vadd.f32 %v4799, -3.0
      %v4816 = vadd.f32 %v4800, -3.0
      %v4817 = vadd.f32 %v4801, -3.0
      %v4818 = vadd.f32 %v4802, -3.0
      %v4819 = vadd.f32 %v4803, -3.0
      %v4820 = vadd.f32 %v4804, -3.0
      %v4821 = vadd.f32 %v4805, -3.0
      %v4822 = vmul.f32 %v3612, 6.0
      %v4823 = vmul.f32 %v3613, 6.0
      %v4824 = vmul.f32 %v3614, 6.0
      %v4825 = vmul.f32 %v3615, 6.0
      %v4826 = vmul.f32 %v3616, 6.0
      %v4827 = vmul.f32 %v3617, 6.0
      %v4828 = vmul.f32 %v3618, 6.0
      %v4829 = vmul.f32 %v3619, 6.0
      %v4830 = vmul.f32 %v3620, 6.0
      %v4831 = vmul.f32 %v3621, 6.0
      %v4832 = vmul.f32 %v3622, 6.0
      %v4833 = vmul.f32 %v3623, 6.0
      %v4834 = vmul.f32 %v3624, 6.0
      %v4835 = vmul.f32 %v3625, 6.0
      %v4836 = vmul.f32 %v3626, 6.0
      %v4837 = vmul.f32 %v3627, 6.0
      %v4838 = vadd.f32 %v4284, %v4822
      %v4839 = vadd.f32 %v4285, %v4823
      %v4840 = vadd.f32 %v4286, %v4824
      %v4841 = vadd.f32 %v4287, %v4825
      %v4842 = vadd.f32 %v4288, %v4826
      %v4843 = vadd.f32 %v4289, %v4827
      %v4844 = vadd.f32 %v4290, %v4828
      %v4845 = vadd.f32 %v4291, %v4829
      %v4846 = vadd.f32 %v4292, %v4830
      %v4847 = vadd.f32 %v4293, %v4831
      %v4848 = vadd.f32 %v4294, %v4832
      %v4849 = vadd.f32 %v4295, %v4833
      %v4850 = vadd.f32 %v4296, %v4834
      %v4851 = vadd.f32 %v4297, %v4835
      %v4852 = vadd.f32 %v4298, %v4836
      %v4853 = vadd.f32 %v4299, %v4837
      %v4854 = vsel %vm3841, 1, 0
      %v4855 = vlaneseq
      %v4856 = vshrl.u32 %v4855, 7
      %v4857 = vsub.s32 0, %v4856
      %v4858 = vrot.slane %v4854, %v4857
      %vm4859 = vcmp.eq.s32.totalorder %v4858, 1
      %v4860 = vsel %vm4859, 3.0, %v4838
      %v4861 = vsel %vm4859, 3.0, %v4839
      %v4862 = vsel %vm4859, 3.0, %v4840
      %v4863 = vsel %vm4859, 3.0, %v4841
      %v4864 = vsel %vm4859, 3.0, %v4842
      %v4865 = vsel %vm4859, 3.0, %v4843
      %v4866 = vsel %vm4859, 3.0, %v4844
      %v4867 = vsel %vm4859, 3.0, %v4845
      %v4868 = vsel %vm4859, 3.0, %v4846
      %v4869 = vsel %vm4859, 3.0, %v4847
      %v4870 = vsel %vm4859, 3.0, %v4848
      %v4871 = vsel %vm4859, 3.0, %v4849
      %v4872 = vsel %vm4859, 3.0, %v4850
      %v4873 = vsel %vm4859, 3.0, %v4851
      %v4874 = vsel %vm4859, 3.0, %v4852
      %v4875 = vsel %vm4859, 3.0, %v4853
      %v4876 = vmul.f32 %v3820, 6.0
      %v4877 = vmul.f32 %v3821, 6.0
      %v4878 = vmul.f32 %v3822, 6.0
      %v4879 = vmul.f32 %v3823, 6.0
      %v4880 = vmul.f32 %v3824, 6.0
      %v4881 = vmul.f32 %v3825, 6.0
      %v4882 = vmul.f32 %v3826, 6.0
      %v4883 = vmul.f32 %v3827, 6.0
      %v4884 = vmul.f32 %v3828, 6.0
      %v4885 = vmul.f32 %v3829, 6.0
      %v4886 = vmul.f32 %v3830, 6.0
      %v4887 = vmul.f32 %v3831, 6.0
      %v4888 = vmul.f32 %v3832, 6.0
      %v4889 = vmul.f32 %v3833, 6.0
      %v4890 = vmul.f32 %v3834, 6.0
      %v4891 = vmul.f32 %v3835, 6.0
      %4908 = vrot.lane.b32.xlu0 %v4876, 96
      %v4909 = vpop.permute.xlu0 %4908
      %4910 = vrot.lane.b32.xlu0 %v4877, 96
      %v4911 = vpop.permute.xlu0 %4910
      %4912 = vrot.lane.b32.xlu0 %v4878, 96
      %v4913 = vpop.permute.xlu0 %4912
      %4914 = vrot.lane.b32.xlu0 %v4879, 96
      %v4915 = vpop.permute.xlu0 %4914
      %4916 = vrot.lane.b32.xlu0 %v4880, 96
      %v4917 = vpop.permute.xlu0 %4916
      %4918 = vrot.lane.b32.xlu0 %v4881, 96
      %v4919 = vpop.permute.xlu0 %4918
      %4920 = vrot.lane.b32.xlu0 %v4882, 96
      %v4921 = vpop.permute.xlu0 %4920
      %4922 = vrot.lane.b32.xlu0 %v4883, 96
      %v4923 = vpop.permute.xlu0 %4922
      %4924 = vrot.lane.b32.xlu0 %v4884, 96
      %v4925 = vpop.permute.xlu0 %4924
      %4926 = vrot.lane.b32.xlu0 %v4885, 96
      %v4927 = vpop.permute.xlu0 %4926
      %4928 = vrot.lane.b32.xlu0 %v4886, 96
      %v4929 = vpop.permute.xlu0 %4928
      %4930 = vrot.lane.b32.xlu0 %v4887, 96
      %v4931 = vpop.permute.xlu0 %4930
      %4932 = vrot.lane.b32.xlu0 %v4888, 96
      %v4933 = vpop.permute.xlu0 %4932
      %4934 = vrot.lane.b32.xlu0 %v4889, 96
      %v4935 = vpop.permute.xlu0 %4934
      %4936 = vrot.lane.b32.xlu0 %v4890, 96
      %v4937 = vpop.permute.xlu0 %4936
      %4938 = vrot.lane.b32.xlu0 %v4891, 96
      %v4939 = vpop.permute.xlu0 %4938
      %v4956 = vadd.f32 %v4806, %v4909
      %v4957 = vadd.f32 %v4807, %v4911
      %v4958 = vadd.f32 %v4808, %v4913
      %v4959 = vadd.f32 %v4809, %v4915
      %v4960 = vadd.f32 %v4810, %v4917
      %v4961 = vadd.f32 %v4811, %v4919
      %v4962 = vadd.f32 %v4812, %v4921
      %v4963 = vadd.f32 %v4813, %v4923
      %v4964 = vadd.f32 %v4814, %v4925
      %v4965 = vadd.f32 %v4815, %v4927
      %v4966 = vadd.f32 %v4816, %v4929
      %v4967 = vadd.f32 %v4817, %v4931
      %v4968 = vadd.f32 %v4818, %v4933
      %v4969 = vadd.f32 %v4819, %v4935
      %v4970 = vadd.f32 %v4820, %v4937
      %v4971 = vadd.f32 %v4821, %v4939
      %v4972 = vsel %vm4859, 3.0, %v4956
      %v4973 = vsel %vm4859, 3.0, %v4957
      %v4974 = vsel %vm4859, 3.0, %v4958
      %v4975 = vsel %vm4859, 3.0, %v4959
      %v4976 = vsel %vm4859, 3.0, %v4960
      %v4977 = vsel %vm4859, 3.0, %v4961
      %v4978 = vsel %vm4859, 3.0, %v4962
      %v4979 = vsel %vm4859, 3.0, %v4963
      %v4980 = vsel %vm4859, 3.0, %v4964
      %v4981 = vsel %vm4859, 3.0, %v4965
      %v4982 = vsel %vm4859, 3.0, %v4966
      %v4983 = vsel %vm4859, 3.0, %v4967
      %v4984 = vsel %vm4859, 3.0, %v4968
      %v4985 = vsel %vm4859, 3.0, %v4969
      %v4986 = vsel %vm4859, 3.0, %v4970
      %v4987 = vsel %vm4859, 3.0, %v4971
      %v4988 = vsub.f32 %v4860, %v4284
      %v4989 = vsub.f32 %v4861, %v4285
      %v4990 = vsub.f32 %v4862, %v4286
      %v4991 = vsub.f32 %v4863, %v4287
      %v4992 = vsub.f32 %v4864, %v4288
      %v4993 = vsub.f32 %v4865, %v4289
      %v4994 = vsub.f32 %v4866, %v4290
      %v4995 = vsub.f32 %v4867, %v4291
      %v4996 = vsub.f32 %v4868, %v4292
      %v4997 = vsub.f32 %v4869, %v4293
      %v4998 = vsub.f32 %v4870, %v4294
      %v4999 = vsub.f32 %v4871, %v4295
      %v5000 = vsub.f32 %v4872, %v4296
      %v5001 = vsub.f32 %v4873, %v4297
      %v5002 = vsub.f32 %v4874, %v4298
      %v5003 = vsub.f32 %v4875, %v4299
      %v5004 = vsub.f32 %v4972, %v4806
      %v5005 = vsub.f32 %v4973, %v4807
      %v5006 = vsub.f32 %v4974, %v4808
      %v5007 = vsub.f32 %v4975, %v4809
      %v5008 = vsub.f32 %v4976, %v4810
      %v5009 = vsub.f32 %v4977, %v4811
      %v5010 = vsub.f32 %v4978, %v4812
      %v5011 = vsub.f32 %v4979, %v4813
      %v5012 = vsub.f32 %v4980, %v4814
      %v5013 = vsub.f32 %v4981, %v4815
      %v5014 = vsub.f32 %v4982, %v4816
      %v5015 = vsub.f32 %v4983, %v4817
      %v5016 = vsub.f32 %v4984, %v4818
      %v5017 = vsub.f32 %v4985, %v4819
      %v5018 = vsub.f32 %v4986, %v4820
      %v5019 = vsub.f32 %v4987, %v4821
      %v5020 = vrcp.pop %v4988
      %v5021 = vmul.f32 %v5004, %v5020
      %v5022 = vrcp.pop %v4989
      %v5023 = vmul.f32 %v5005, %v5022
      %v5024 = vrcp.pop %v4990
      %v5025 = vmul.f32 %v5006, %v5024
      %v5026 = vrcp.pop %v4991
      %v5027 = vmul.f32 %v5007, %v5026
      %v5028 = vrcp.pop %v4992
      %v5029 = vmul.f32 %v5008, %v5028
      %v5030 = vrcp.pop %v4993
      %v5031 = vmul.f32 %v5009, %v5030
      %v5032 = vrcp.pop %v4994
      %v5033 = vmul.f32 %v5010, %v5032
      %v5034 = vrcp.pop %v4995
      %v5035 = vmul.f32 %v5011, %v5034
      %v5036 = vrcp.pop %v4996
      %v5037 = vmul.f32 %v5012, %v5036
      %v5038 = vrcp.pop %v4997
      %v5039 = vmul.f32 %v5013, %v5038
      %v5040 = vrcp.pop %v4998
      %v5041 = vmul.f32 %v5014, %v5040
      %v5042 = vrcp.pop %v4999
      %v5043 = vmul.f32 %v5015, %v5042
      %v5044 = vrcp.pop %v5000
      %v5045 = vmul.f32 %v5016, %v5044
      %v5046 = vrcp.pop %v5001
      %v5047 = vmul.f32 %v5017, %v5046
      %v5048 = vrcp.pop %v5002
      %v5049 = vmul.f32 %v5018, %v5048
      %v5050 = vrcp.pop %v5003
      %v5051 = vmul.f32 %v5019, %v5050
      %v5052 = vmax.f32 %v3468, 0.0
      %v5053 = vmax.f32 %v3469, 0.0
      %v5054 = vmax.f32 %v3470, 0.0
      %v5055 = vmax.f32 %v3471, 0.0
      %v5056 = vmax.f32 %v3472, 0.0
      %v5057 = vmax.f32 %v3473, 0.0
      %v5058 = vmax.f32 %v3474, 0.0
      %v5059 = vmax.f32 %v3475, 0.0
      %v5060 = vmax.f32 %v3476, 0.0
      %v5061 = vmax.f32 %v3477, 0.0
      %v5062 = vmax.f32 %v3478, 0.0
      %v5063 = vmax.f32 %v3479, 0.0
      %v5064 = vmax.f32 %v3480, 0.0
      %v5065 = vmax.f32 %v3481, 0.0
      %v5066 = vmax.f32 %v3482, 0.0
      %v5067 = vmax.f32 %v3483, 0.0
      %v5068 = vand.u32 2147483647, %v3468
      %v5069 = vand.u32 2147483647, %v3469
      %v5070 = vand.u32 2147483647, %v3470
      %v5071 = vand.u32 2147483647, %v3471
      %v5072 = vand.u32 2147483647, %v3472
      %v5073 = vand.u32 2147483647, %v3473
      %v5074 = vand.u32 2147483647, %v3474
      %v5075 = vand.u32 2147483647, %v3475
      %v5076 = vand.u32 2147483647, %v3476
      %v5077 = vand.u32 2147483647, %v3477
      %v5078 = vand.u32 2147483647, %v3478
      %v5079 = vand.u32 2147483647, %v3479
      %v5080 = vand.u32 2147483647, %v3480
      %v5081 = vand.u32 2147483647, %v3481
      %v5082 = vand.u32 2147483647, %v3482
      %v5083 = vand.u32 2147483647, %v3483
      %v5084 = vsub.f32 0.0, %v5068
      %v5085 = vsub.f32 0.0, %v5069
      %v5086 = vsub.f32 0.0, %v5070
      %v5087 = vsub.f32 0.0, %v5071
      %v5088 = vsub.f32 0.0, %v5072
      %v5089 = vsub.f32 0.0, %v5073
      %v5090 = vsub.f32 0.0, %v5074
      %v5091 = vsub.f32 0.0, %v5075
      %v5092 = vsub.f32 0.0, %v5076
      %v5093 = vsub.f32 0.0, %v5077
      %v5094 = vsub.f32 0.0, %v5078
      %v5095 = vsub.f32 0.0, %v5079
      %v5096 = vsub.f32 0.0, %v5080
      %v5097 = vsub.f32 0.0, %v5081
      %v5098 = vsub.f32 0.0, %v5082
      %v5099 = vsub.f32 0.0, %v5083
      %v5100 = vmul.f32 %v5084, 1.442695
      %v5101 = vpow.pop %v5100
      %v5102 = vmul.f32 %v5085, 1.442695
      %v5103 = vpow.pop %v5102
      %v5104 = vmul.f32 %v5086, 1.442695
      %v5105 = vpow.pop %v5104
      %v5106 = vmul.f32 %v5087, 1.442695
      %v5107 = vpow.pop %v5106
      %v5108 = vmul.f32 %v5088, 1.442695
      %v5109 = vpow.pop %v5108
      %v5110 = vmul.f32 %v5089, 1.442695
      %v5111 = vpow.pop %v5110
      %v5112 = vmul.f32 %v5090, 1.442695
      %v5113 = vpow.pop %v5112
      %v5114 = vmul.f32 %v5091, 1.442695
      %v5115 = vpow.pop %v5114
      %v5116 = vmul.f32 %v5092, 1.442695
      %v5117 = vpow.pop %v5116
      %v5118 = vmul.f32 %v5093, 1.442695
      %v5119 = vpow.pop %v5118
      %v5120 = vmul.f32 %v5094, 1.442695
      %v5121 = vpow.pop %v5120
      %v5122 = vmul.f32 %v5095, 1.442695
      %v5123 = vpow.pop %v5122
      %v5124 = vmul.f32 %v5096, 1.442695
      %v5125 = vpow.pop %v5124
      %v5126 = vmul.f32 %v5097, 1.442695
      %v5127 = vpow.pop %v5126
      %v5128 = vmul.f32 %v5098, 1.442695
      %v5129 = vpow.pop %v5128
      %v5130 = vmul.f32 %v5099, 1.442695
      %v5131 = vpow.pop %v5130
      %v5132 = vadd.f32 %v5101, 1.0
      %v5133 = vadd.f32 %v5103, 1.0
      %v5134 = vadd.f32 %v5105, 1.0
      %v5135 = vadd.f32 %v5107, 1.0
      %v5136 = vadd.f32 %v5109, 1.0
      %v5137 = vadd.f32 %v5111, 1.0
      %v5138 = vadd.f32 %v5113, 1.0
      %v5139 = vadd.f32 %v5115, 1.0
      %v5140 = vadd.f32 %v5117, 1.0
      %v5141 = vadd.f32 %v5119, 1.0
      %v5142 = vadd.f32 %v5121, 1.0
      %v5143 = vadd.f32 %v5123, 1.0
      %v5144 = vadd.f32 %v5125, 1.0
      %v5145 = vadd.f32 %v5127, 1.0
      %v5146 = vadd.f32 %v5129, 1.0
      %v5147 = vadd.f32 %v5131, 1.0
      %v5148 = vlog2.pop %v5132
      %v5149 = vmul.f32 %v5148, 0.6931472
      %v5150 = vlog2.pop %v5133
      %v5151 = vmul.f32 %v5150, 0.6931472
      %v5152 = vlog2.pop %v5134
      %v5153 = vmul.f32 %v5152, 0.6931472
      %v5154 = vlog2.pop %v5135
      %v5155 = vmul.f32 %v5154, 0.6931472
      %v5156 = vlog2.pop %v5136
      %v5157 = vmul.f32 %v5156, 0.6931472
      %v5158 = vlog2.pop %v5137
      %v5159 = vmul.f32 %v5158, 0.6931472
      %v5160 = vlog2.pop %v5138
      %v5161 = vmul.f32 %v5160, 0.6931472
      %v5162 = vlog2.pop %v5139
      %v5163 = vmul.f32 %v5162, 0.6931472
      %v5164 = vlog2.pop %v5140
      %v5165 = vmul.f32 %v5164, 0.6931472
      %v5166 = vlog2.pop %v5141
      %v5167 = vmul.f32 %v5166, 0.6931472
      %v5168 = vlog2.pop %v5142
      %v5169 = vmul.f32 %v5168, 0.6931472
      %v5170 = vlog2.pop %v5143
      %v5171 = vmul.f32 %v5170, 0.6931472
      %v5172 = vlog2.pop %v5144
      %v5173 = vmul.f32 %v5172, 0.6931472
      %v5174 = vlog2.pop %v5145
      %v5175 = vmul.f32 %v5174, 0.6931472
      %v5176 = vlog2.pop %v5146
      %v5177 = vmul.f32 %v5176, 0.6931472
      %v5178 = vlog2.pop %v5147
      %v5179 = vmul.f32 %v5178, 0.6931472
      %v5180 = vadd.f32 %v5052, %v5149
      %v5181 = vadd.f32 %v5053, %v5151
      %v5182 = vadd.f32 %v5054, %v5153
      %v5183 = vadd.f32 %v5055, %v5155
      %v5184 = vadd.f32 %v5056, %v5157
      %v5185 = vadd.f32 %v5057, %v5159
      %v5186 = vadd.f32 %v5058, %v5161
      %v5187 = vadd.f32 %v5059, %v5163
      %v5188 = vadd.f32 %v5060, %v5165
      %v5189 = vadd.f32 %v5061, %v5167
      %v5190 = vadd.f32 %v5062, %v5169
      %v5191 = vadd.f32 %v5063, %v5171
      %v5192 = vadd.f32 %v5064, %v5173
      %v5193 = vadd.f32 %v5065, %v5175
      %v5194 = vadd.f32 %v5066, %v5177
      %v5195 = vadd.f32 %v5067, %v5179
      %v5196 = vadd.f32 %v5180, 0.001
      %v5197 = vadd.f32 %v5181, 0.001
      %v5198 = vadd.f32 %v5182, 0.001
      %v5199 = vadd.f32 %v5183, 0.001
      %v5200 = vadd.f32 %v5184, 0.001
      %v5201 = vadd.f32 %v5185, 0.001
      %v5202 = vadd.f32 %v5186, 0.001
      %v5203 = vadd.f32 %v5187, 0.001
      %v5204 = vadd.f32 %v5188, 0.001
      %v5205 = vadd.f32 %v5189, 0.001
      %v5206 = vadd.f32 %v5190, 0.001
      %v5207 = vadd.f32 %v5191, 0.001
      %v5208 = vadd.f32 %v5192, 0.001
      %v5209 = vadd.f32 %v5193, 0.001
      %v5210 = vadd.f32 %v5194, 0.001
      %v5211 = vadd.f32 %v5195, 0.001
      %v5212 = vmax.f32 %v2360, -3.0
      %v5213 = vmax.f32 %v2361, -3.0
      %v5214 = vmax.f32 %v2362, -3.0
      %v5215 = vmax.f32 %v2363, -3.0
      %v5216 = vmax.f32 %v2364, -3.0
      %v5217 = vmax.f32 %v2365, -3.0
      %v5218 = vmax.f32 %v2366, -3.0
      %v5219 = vmax.f32 %v2367, -3.0
      %v5220 = vmax.f32 %v2368, -3.0
      %v5221 = vmax.f32 %v2369, -3.0
      %v5222 = vmax.f32 %v2370, -3.0
      %v5223 = vmax.f32 %v2371, -3.0
      %v5224 = vmax.f32 %v2372, -3.0
      %v5225 = vmax.f32 %v2373, -3.0
      %v5226 = vmax.f32 %v2374, -3.0
      %v5227 = vmax.f32 %v2375, -3.0
      %v5228 = vmin.f32 %v5212, 3.0
      %v5229 = vmin.f32 %v5213, 3.0
      %v5230 = vmin.f32 %v5214, 3.0
      %v5231 = vmin.f32 %v5215, 3.0
      %v5232 = vmin.f32 %v5216, 3.0
      %v5233 = vmin.f32 %v5217, 3.0
      %v5234 = vmin.f32 %v5218, 3.0
      %v5235 = vmin.f32 %v5219, 3.0
      %v5236 = vmin.f32 %v5220, 3.0
      %v5237 = vmin.f32 %v5221, 3.0
      %v5238 = vmin.f32 %v5222, 3.0
      %v5239 = vmin.f32 %v5223, 3.0
      %v5240 = vmin.f32 %v5224, 3.0
      %v5241 = vmin.f32 %v5225, 3.0
      %v5242 = vmin.f32 %v5226, 3.0
      %v5243 = vmin.f32 %v5227, 3.0
      %5245 = vset.pattern.permute.xlu0 0
      %5246 = vperm.xlu0 %5245, %v5228
      %v5247 = vpop.permute.xlu0 %5246
      %5250 = vset.pattern.permute.xlu0 0
      %5251 = vperm.xlu0 %5250, %v5229
      %v5252 = vpop.permute.xlu0 %5251
      %5255 = vset.pattern.permute.xlu0 0
      %5256 = vperm.xlu0 %5255, %v5230
      %v5257 = vpop.permute.xlu0 %5256
      %5260 = vset.pattern.permute.xlu0 0
      %5261 = vperm.xlu0 %5260, %v5231
      %v5262 = vpop.permute.xlu0 %5261
      %5265 = vset.pattern.permute.xlu0 0
      %5266 = vperm.xlu0 %5265, %v5232
      %v5267 = vpop.permute.xlu0 %5266
      %5270 = vset.pattern.permute.xlu0 0
      %5271 = vperm.xlu0 %5270, %v5233
      %v5272 = vpop.permute.xlu0 %5271
      %5275 = vset.pattern.permute.xlu0 0
      %5276 = vperm.xlu0 %5275, %v5234
      %v5277 = vpop.permute.xlu0 %5276
      %5280 = vset.pattern.permute.xlu0 0
      %5281 = vperm.xlu0 %5280, %v5235
      %v5282 = vpop.permute.xlu0 %5281
      %5285 = vset.pattern.permute.xlu0 0
      %5286 = vperm.xlu0 %5285, %v5236
      %v5287 = vpop.permute.xlu0 %5286
      %5290 = vset.pattern.permute.xlu0 0
      %5291 = vperm.xlu0 %5290, %v5237
      %v5292 = vpop.permute.xlu0 %5291
      %5295 = vset.pattern.permute.xlu0 0
      %5296 = vperm.xlu0 %5295, %v5238
      %v5297 = vpop.permute.xlu0 %5296
      %5300 = vset.pattern.permute.xlu0 0
      %5301 = vperm.xlu0 %5300, %v5239
      %v5302 = vpop.permute.xlu0 %5301
      %5305 = vset.pattern.permute.xlu0 0
      %5306 = vperm.xlu0 %5305, %v5240
      %v5307 = vpop.permute.xlu0 %5306
      %5310 = vset.pattern.permute.xlu0 0
      %5311 = vperm.xlu0 %5310, %v5241
      %v5312 = vpop.permute.xlu0 %5311
      %5315 = vset.pattern.permute.xlu0 0
      %5316 = vperm.xlu0 %5315, %v5242
      %v5317 = vpop.permute.xlu0 %5316
      %5320 = vset.pattern.permute.xlu0 0
      %5321 = vperm.xlu0 %5320, %v5243
      %v5322 = vpop.permute.xlu0 %5321
      %vm5324 = vcmp.ge.f32.partialorder %v5247, %v4284
      %vm5325 = vcmp.ge.f32.partialorder %v5252, %v4285
      %vm5326 = vcmp.ge.f32.partialorder %v5257, %v4286
      %vm5327 = vcmp.ge.f32.partialorder %v5262, %v4287
      %vm5328 = vcmp.ge.f32.partialorder %v5267, %v4288
      %vm5329 = vcmp.ge.f32.partialorder %v5272, %v4289
      %vm5330 = vcmp.ge.f32.partialorder %v5277, %v4290
      %vm5331 = vcmp.ge.f32.partialorder %v5282, %v4291
      %vm5332 = vcmp.ge.f32.partialorder %v5287, %v4292
      %vm5333 = vcmp.ge.f32.partialorder %v5292, %v4293
      %vm5334 = vcmp.ge.f32.partialorder %v5297, %v4294
      %vm5335 = vcmp.ge.f32.partialorder %v5302, %v4295
      %vm5336 = vcmp.ge.f32.partialorder %v5307, %v4296
      %vm5337 = vcmp.ge.f32.partialorder %v5312, %v4297
      %vm5338 = vcmp.ge.f32.partialorder %v5317, %v4298
      %vm5339 = vcmp.ge.f32.partialorder %v5322, %v4299
      %v5340 = vsel %vm5324, 1, 0
      %v5341 = vsel %vm5325, 1, 0
      %v5342 = vsel %vm5326, 1, 0
      %v5343 = vsel %vm5327, 1, 0
      %v5344 = vsel %vm5328, 1, 0
      %v5345 = vsel %vm5329, 1, 0
      %v5346 = vsel %vm5330, 1, 0
      %v5347 = vsel %vm5331, 1, 0
      %v5348 = vsel %vm5332, 1, 0
      %v5349 = vsel %vm5333, 1, 0
      %v5350 = vsel %vm5334, 1, 0
      %v5351 = vsel %vm5335, 1, 0
      %v5352 = vsel %vm5336, 1, 0
      %v5353 = vsel %vm5337, 1, 0
      %v5354 = vsel %vm5338, 1, 0
      %v5355 = vsel %vm5339, 1, 0
      %v5356 = vcvt.s32.f32 %v5340
      %v5357 = vcvt.s32.f32 %v5341
      %v5358 = vcvt.s32.f32 %v5342
      %v5359 = vcvt.s32.f32 %v5343
      %v5360 = vcvt.s32.f32 %v5344
      %v5361 = vcvt.s32.f32 %v5345
      %v5362 = vcvt.s32.f32 %v5346
      %v5363 = vcvt.s32.f32 %v5347
      %v5364 = vcvt.s32.f32 %v5348
      %v5365 = vcvt.s32.f32 %v5349
      %v5366 = vcvt.s32.f32 %v5350
      %v5367 = vcvt.s32.f32 %v5351
      %v5368 = vcvt.s32.f32 %v5352
      %v5369 = vcvt.s32.f32 %v5353
      %v5370 = vcvt.s32.f32 %v5354
      %v5371 = vcvt.s32.f32 %v5355
      %v5372 = vsel %vm2890, %v5356, 0.0
      %5373 = vadd.xlane.f32.xlu0 %v5372
      %v5374 = vpop.xlane.xlu0 %5373
      %v5375 = vsel %vm2890, %v5357, 0.0
      %5376 = vadd.xlane.f32.xlu0 %v5375
      %v5377 = vpop.xlane.xlu0 %5376
      %v5378 = vsel %vm2890, %v5358, 0.0
      %5379 = vadd.xlane.f32.xlu0 %v5378
      %v5380 = vpop.xlane.xlu0 %5379
      %v5381 = vsel %vm2890, %v5359, 0.0
      %5382 = vadd.xlane.f32.xlu0 %v5381
      %v5383 = vpop.xlane.xlu0 %5382
      %v5384 = vsel %vm2890, %v5360, 0.0
      %5385 = vadd.xlane.f32.xlu0 %v5384
      %v5386 = vpop.xlane.xlu0 %5385
      %v5387 = vsel %vm2890, %v5361, 0.0
      %5388 = vadd.xlane.f32.xlu0 %v5387
      %v5389 = vpop.xlane.xlu0 %5388
      %v5390 = vsel %vm2890, %v5362, 0.0
      %5391 = vadd.xlane.f32.xlu0 %v5390
      %v5392 = vpop.xlane.xlu0 %5391
      %v5393 = vsel %vm2890, %v5363, 0.0
      %5394 = vadd.xlane.f32.xlu0 %v5393
      %v5395 = vpop.xlane.xlu0 %5394
      %v5396 = vsel %vm2890, %v5364, 0.0
      %5397 = vadd.xlane.f32.xlu0 %v5396
      %v5398 = vpop.xlane.xlu0 %5397
      %v5399 = vsel %vm2890, %v5365, 0.0
      %5400 = vadd.xlane.f32.xlu0 %v5399
      %v5401 = vpop.xlane.xlu0 %5400
      %v5402 = vsel %vm2890, %v5366, 0.0
      %5403 = vadd.xlane.f32.xlu0 %v5402
      %v5404 = vpop.xlane.xlu0 %5403
      %v5405 = vsel %vm2890, %v5367, 0.0
      %5406 = vadd.xlane.f32.xlu0 %v5405
      %v5407 = vpop.xlane.xlu0 %5406
      %v5408 = vsel %vm2890, %v5368, 0.0
      %5409 = vadd.xlane.f32.xlu0 %v5408
      %v5410 = vpop.xlane.xlu0 %5409
      %v5411 = vsel %vm2890, %v5369, 0.0
      %5412 = vadd.xlane.f32.xlu0 %v5411
      %v5413 = vpop.xlane.xlu0 %5412
      %v5414 = vsel %vm2890, %v5370, 0.0
      %5415 = vadd.xlane.f32.xlu0 %v5414
      %v5416 = vpop.xlane.xlu0 %5415
      %v5417 = vsel %vm2890, %v5371, 0.0
      %5418 = vadd.xlane.f32.xlu0 %v5417
      %v5419 = vpop.xlane.xlu0 %5418
      %v5420 = vsub.f32 %v5374, 1.0
      %v5421 = vsub.f32 %v5377, 1.0
      %v5422 = vsub.f32 %v5380, 1.0
      %v5423 = vsub.f32 %v5383, 1.0
      %v5424 = vsub.f32 %v5386, 1.0
      %v5425 = vsub.f32 %v5389, 1.0
      %v5426 = vsub.f32 %v5392, 1.0
      %v5427 = vsub.f32 %v5395, 1.0
      %v5428 = vsub.f32 %v5398, 1.0
      %v5429 = vsub.f32 %v5401, 1.0
      %v5430 = vsub.f32 %v5404, 1.0
      %v5431 = vsub.f32 %v5407, 1.0
      %v5432 = vsub.f32 %v5410, 1.0
      %v5433 = vsub.f32 %v5413, 1.0
      %v5434 = vsub.f32 %v5416, 1.0
      %v5435 = vsub.f32 %v5419, 1.0
      %v5437 = vlaneseq
      %v5438 = vshrl.u32 %v5437, 7
      %v5439 = vsub.s32 0, %v5438
      %v5440 = vrot.slane %v3840, %v5439
      %vm5442 = vcmp.eq.f32.partialorder %v5440, %v5420
      %vm5443 = vcmp.eq.f32.partialorder %v5440, %v5421
      %vm5444 = vcmp.eq.f32.partialorder %v5440, %v5422
      %vm5445 = vcmp.eq.f32.partialorder %v5440, %v5423
      %vm5446 = vcmp.eq.f32.partialorder %v5440, %v5424
      %vm5447 = vcmp.eq.f32.partialorder %v5440, %v5425
      %vm5448 = vcmp.eq.f32.partialorder %v5440, %v5426
      %vm5449 = vcmp.eq.f32.partialorder %v5440, %v5427
      %vm5450 = vcmp.eq.f32.partialorder %v5440, %v5428
      %vm5451 = vcmp.eq.f32.partialorder %v5440, %v5429
      %vm5452 = vcmp.eq.f32.partialorder %v5440, %v5430
      %vm5453 = vcmp.eq.f32.partialorder %v5440, %v5431
      %vm5454 = vcmp.eq.f32.partialorder %v5440, %v5432
      %vm5455 = vcmp.eq.f32.partialorder %v5440, %v5433
      %vm5456 = vcmp.eq.f32.partialorder %v5440, %v5434
      %vm5457 = vcmp.eq.f32.partialorder %v5440, %v5435
      %v5458 = vsel %vm5442, 1, 0
      %v5459 = vsel %vm5443, 1, 0
      %v5460 = vsel %vm5444, 1, 0
      %v5461 = vsel %vm5445, 1, 0
      %v5462 = vsel %vm5446, 1, 0
      %v5463 = vsel %vm5447, 1, 0
      %v5464 = vsel %vm5448, 1, 0
      %v5465 = vsel %vm5449, 1, 0
      %v5466 = vsel %vm5450, 1, 0
      %v5467 = vsel %vm5451, 1, 0
      %v5468 = vsel %vm5452, 1, 0
      %v5469 = vsel %vm5453, 1, 0
      %v5470 = vsel %vm5454, 1, 0
      %v5471 = vsel %vm5455, 1, 0
      %v5472 = vsel %vm5456, 1, 0
      %v5473 = vsel %vm5457, 1, 0
      %v5474 = vcvt.s32.f32 %v5458
      %v5475 = vcvt.s32.f32 %v5459
      %v5476 = vcvt.s32.f32 %v5460
      %v5477 = vcvt.s32.f32 %v5461
      %v5478 = vcvt.s32.f32 %v5462
      %v5479 = vcvt.s32.f32 %v5463
      %v5480 = vcvt.s32.f32 %v5464
      %v5481 = vcvt.s32.f32 %v5465
      %v5482 = vcvt.s32.f32 %v5466
      %v5483 = vcvt.s32.f32 %v5467
      %v5484 = vcvt.s32.f32 %v5468
      %v5485 = vcvt.s32.f32 %v5469
      %v5486 = vcvt.s32.f32 %v5470
      %v5487 = vcvt.s32.f32 %v5471
      %v5488 = vcvt.s32.f32 %v5472
      %v5489 = vcvt.s32.f32 %v5473
      %v5490 = vsub.f32 %v5420, 1.0
      %v5491 = vsub.f32 %v5421, 1.0
      %v5492 = vsub.f32 %v5422, 1.0
      %v5493 = vsub.f32 %v5423, 1.0
      %v5494 = vsub.f32 %v5424, 1.0
      %v5495 = vsub.f32 %v5425, 1.0
      %v5496 = vsub.f32 %v5426, 1.0
      %v5497 = vsub.f32 %v5427, 1.0
      %v5498 = vsub.f32 %v5428, 1.0
      %v5499 = vsub.f32 %v5429, 1.0
      %v5500 = vsub.f32 %v5430, 1.0
      %v5501 = vsub.f32 %v5431, 1.0
      %v5502 = vsub.f32 %v5432, 1.0
      %v5503 = vsub.f32 %v5433, 1.0
      %v5504 = vsub.f32 %v5434, 1.0
      %v5505 = vsub.f32 %v5435, 1.0
      %vm5506 = vcmp.eq.f32.partialorder %v5440, %v5490
      %vm5507 = vcmp.eq.f32.partialorder %v5440, %v5491
      %vm5508 = vcmp.eq.f32.partialorder %v5440, %v5492
      %vm5509 = vcmp.eq.f32.partialorder %v5440, %v5493
      %vm5510 = vcmp.eq.f32.partialorder %v5440, %v5494
      %vm5511 = vcmp.eq.f32.partialorder %v5440, %v5495
      %vm5512 = vcmp.eq.f32.partialorder %v5440, %v5496
      %vm5513 = vcmp.eq.f32.partialorder %v5440, %v5497
      %vm5514 = vcmp.eq.f32.partialorder %v5440, %v5498
      %vm5515 = vcmp.eq.f32.partialorder %v5440, %v5499
      %vm5516 = vcmp.eq.f32.partialorder %v5440, %v5500
      %vm5517 = vcmp.eq.f32.partialorder %v5440, %v5501
      %vm5518 = vcmp.eq.f32.partialorder %v5440, %v5502
      %vm5519 = vcmp.eq.f32.partialorder %v5440, %v5503
      %vm5520 = vcmp.eq.f32.partialorder %v5440, %v5504
      %vm5521 = vcmp.eq.f32.partialorder %v5440, %v5505
      %v5522 = vsel %vm5506, 1, 0
      %v5523 = vsel %vm5507, 1, 0
      %v5524 = vsel %vm5508, 1, 0
      %v5525 = vsel %vm5509, 1, 0
      %v5526 = vsel %vm5510, 1, 0
      %v5527 = vsel %vm5511, 1, 0
      %v5528 = vsel %vm5512, 1, 0
      %v5529 = vsel %vm5513, 1, 0
      %v5530 = vsel %vm5514, 1, 0
      %v5531 = vsel %vm5515, 1, 0
      %v5532 = vsel %vm5516, 1, 0
      %v5533 = vsel %vm5517, 1, 0
      %v5534 = vsel %vm5518, 1, 0
      %v5535 = vsel %vm5519, 1, 0
      %v5536 = vsel %vm5520, 1, 0
      %v5537 = vsel %vm5521, 1, 0
      %v5538 = vcvt.s32.f32 %v5522
      %v5539 = vcvt.s32.f32 %v5523
      %v5540 = vcvt.s32.f32 %v5524
      %v5541 = vcvt.s32.f32 %v5525
      %v5542 = vcvt.s32.f32 %v5526
      %v5543 = vcvt.s32.f32 %v5527
      %v5544 = vcvt.s32.f32 %v5528
      %v5545 = vcvt.s32.f32 %v5529
      %v5546 = vcvt.s32.f32 %v5530
      %v5547 = vcvt.s32.f32 %v5531
      %v5548 = vcvt.s32.f32 %v5532
      %v5549 = vcvt.s32.f32 %v5533
      %v5550 = vcvt.s32.f32 %v5534
      %v5551 = vcvt.s32.f32 %v5535
      %v5552 = vcvt.s32.f32 %v5536
      %v5553 = vcvt.s32.f32 %v5537
      %v5554 = vmul.f32 %v4284, %v5474
      %v5555 = vmul.f32 %v4285, %v5475
      %v5556 = vmul.f32 %v4286, %v5476
      %v5557 = vmul.f32 %v4287, %v5477
      %v5558 = vmul.f32 %v4288, %v5478
      %v5559 = vmul.f32 %v4289, %v5479
      %v5560 = vmul.f32 %v4290, %v5480
      %v5561 = vmul.f32 %v4291, %v5481
      %v5562 = vmul.f32 %v4292, %v5482
      %v5563 = vmul.f32 %v4293, %v5483
      %v5564 = vmul.f32 %v4294, %v5484
      %v5565 = vmul.f32 %v4295, %v5485
      %v5566 = vmul.f32 %v4296, %v5486
      %v5567 = vmul.f32 %v4297, %v5487
      %v5568 = vmul.f32 %v4298, %v5488
      %v5569 = vmul.f32 %v4299, %v5489
      %v5570 = vsel %vm2890, %v5554, 0.0
      %5571 = vadd.xlane.f32.xlu0 %v5570
      %v5572 = vpop.xlane.xlu0 %5571
      %v5573 = vsel %vm2890, %v5555, 0.0
      %5574 = vadd.xlane.f32.xlu0 %v5573
      %v5575 = vpop.xlane.xlu0 %5574
      %v5576 = vsel %vm2890, %v5556, 0.0
      %5577 = vadd.xlane.f32.xlu0 %v5576
      %v5578 = vpop.xlane.xlu0 %5577
      %v5579 = vsel %vm2890, %v5557, 0.0
      %5580 = vadd.xlane.f32.xlu0 %v5579
      %v5581 = vpop.xlane.xlu0 %5580
      %v5582 = vsel %vm2890, %v5558, 0.0
      %5583 = vadd.xlane.f32.xlu0 %v5582
      %v5584 = vpop.xlane.xlu0 %5583
      %v5585 = vsel %vm2890, %v5559, 0.0
      %5586 = vadd.xlane.f32.xlu0 %v5585
      %v5587 = vpop.xlane.xlu0 %5586
      %v5588 = vsel %vm2890, %v5560, 0.0
      %5589 = vadd.xlane.f32.xlu0 %v5588
      %v5590 = vpop.xlane.xlu0 %5589
      %v5591 = vsel %vm2890, %v5561, 0.0
      %5592 = vadd.xlane.f32.xlu0 %v5591
      %v5593 = vpop.xlane.xlu0 %5592
      %v5594 = vsel %vm2890, %v5562, 0.0
      %5595 = vadd.xlane.f32.xlu0 %v5594
      %v5596 = vpop.xlane.xlu0 %5595
      %v5597 = vsel %vm2890, %v5563, 0.0
      %5598 = vadd.xlane.f32.xlu0 %v5597
      %v5599 = vpop.xlane.xlu0 %5598
      %v5600 = vsel %vm2890, %v5564, 0.0
      %5601 = vadd.xlane.f32.xlu0 %v5600
      %v5602 = vpop.xlane.xlu0 %5601
      %v5603 = vsel %vm2890, %v5565, 0.0
      %5604 = vadd.xlane.f32.xlu0 %v5603
      %v5605 = vpop.xlane.xlu0 %5604
      %v5606 = vsel %vm2890, %v5566, 0.0
      %5607 = vadd.xlane.f32.xlu0 %v5606
      %v5608 = vpop.xlane.xlu0 %5607
      %v5609 = vsel %vm2890, %v5567, 0.0
      %5610 = vadd.xlane.f32.xlu0 %v5609
      %v5611 = vpop.xlane.xlu0 %5610
      %v5612 = vsel %vm2890, %v5568, 0.0
      %5613 = vadd.xlane.f32.xlu0 %v5612
      %v5614 = vpop.xlane.xlu0 %5613
      %v5615 = vsel %vm2890, %v5569, 0.0
      %5616 = vadd.xlane.f32.xlu0 %v5615
      %v5617 = vpop.xlane.xlu0 %5616
      %v5618 = vmul.f32 %v4988, %v5474
      %v5619 = vmul.f32 %v4989, %v5475
      %v5620 = vmul.f32 %v4990, %v5476
      %v5621 = vmul.f32 %v4991, %v5477
      %v5622 = vmul.f32 %v4992, %v5478
      %v5623 = vmul.f32 %v4993, %v5479
      %v5624 = vmul.f32 %v4994, %v5480
      %v5625 = vmul.f32 %v4995, %v5481
      %v5626 = vmul.f32 %v4996, %v5482
      %v5627 = vmul.f32 %v4997, %v5483
      %v5628 = vmul.f32 %v4998, %v5484
      %v5629 = vmul.f32 %v4999, %v5485
      %v5630 = vmul.f32 %v5000, %v5486
      %v5631 = vmul.f32 %v5001, %v5487
      %v5632 = vmul.f32 %v5002, %v5488
      %v5633 = vmul.f32 %v5003, %v5489
      %v5634 = vsel %vm2890, %v5618, 0.0
      %5635 = vadd.xlane.f32.xlu0 %v5634
      %v5636 = vpop.xlane.xlu0 %5635
      %v5637 = vsel %vm2890, %v5619, 0.0
      %5638 = vadd.xlane.f32.xlu0 %v5637
      %v5639 = vpop.xlane.xlu0 %5638
      %v5640 = vsel %vm2890, %v5620, 0.0
      %5641 = vadd.xlane.f32.xlu0 %v5640
      %v5642 = vpop.xlane.xlu0 %5641
      %v5643 = vsel %vm2890, %v5621, 0.0
      %5644 = vadd.xlane.f32.xlu0 %v5643
      %v5645 = vpop.xlane.xlu0 %5644
      %v5646 = vsel %vm2890, %v5622, 0.0
      %5647 = vadd.xlane.f32.xlu0 %v5646
      %v5648 = vpop.xlane.xlu0 %5647
      %v5649 = vsel %vm2890, %v5623, 0.0
      %5650 = vadd.xlane.f32.xlu0 %v5649
      %v5651 = vpop.xlane.xlu0 %5650
      %v5652 = vsel %vm2890, %v5624, 0.0
      %5653 = vadd.xlane.f32.xlu0 %v5652
      %v5654 = vpop.xlane.xlu0 %5653
      %v5655 = vsel %vm2890, %v5625, 0.0
      %5656 = vadd.xlane.f32.xlu0 %v5655
      %v5657 = vpop.xlane.xlu0 %5656
      %v5658 = vsel %vm2890, %v5626, 0.0
      %5659 = vadd.xlane.f32.xlu0 %v5658
      %v5660 = vpop.xlane.xlu0 %5659
      %v5661 = vsel %vm2890, %v5627, 0.0
      %5662 = vadd.xlane.f32.xlu0 %v5661
      %v5663 = vpop.xlane.xlu0 %5662
      %v5664 = vsel %vm2890, %v5628, 0.0
      %5665 = vadd.xlane.f32.xlu0 %v5664
      %v5666 = vpop.xlane.xlu0 %5665
      %v5667 = vsel %vm2890, %v5629, 0.0
      %5668 = vadd.xlane.f32.xlu0 %v5667
      %v5669 = vpop.xlane.xlu0 %5668
      %v5670 = vsel %vm2890, %v5630, 0.0
      %5671 = vadd.xlane.f32.xlu0 %v5670
      %v5672 = vpop.xlane.xlu0 %5671
      %v5673 = vsel %vm2890, %v5631, 0.0
      %5674 = vadd.xlane.f32.xlu0 %v5673
      %v5675 = vpop.xlane.xlu0 %5674
      %v5676 = vsel %vm2890, %v5632, 0.0
      %5677 = vadd.xlane.f32.xlu0 %v5676
      %v5678 = vpop.xlane.xlu0 %5677
      %v5679 = vsel %vm2890, %v5633, 0.0
      %5680 = vadd.xlane.f32.xlu0 %v5679
      %v5681 = vpop.xlane.xlu0 %5680
      %v5682 = vmul.f32 %v4806, %v5474
      %v5683 = vmul.f32 %v4807, %v5475
      %v5684 = vmul.f32 %v4808, %v5476
      %v5685 = vmul.f32 %v4809, %v5477
      %v5686 = vmul.f32 %v4810, %v5478
      %v5687 = vmul.f32 %v4811, %v5479
      %v5688 = vmul.f32 %v4812, %v5480
      %v5689 = vmul.f32 %v4813, %v5481
      %v5690 = vmul.f32 %v4814, %v5482
      %v5691 = vmul.f32 %v4815, %v5483
      %v5692 = vmul.f32 %v4816, %v5484
      %v5693 = vmul.f32 %v4817, %v5485
      %v5694 = vmul.f32 %v4818, %v5486
      %v5695 = vmul.f32 %v4819, %v5487
      %v5696 = vmul.f32 %v4820, %v5488
      %v5697 = vmul.f32 %v4821, %v5489
      %v5698 = vsel %vm2890, %v5682, 0.0
      %5699 = vadd.xlane.f32.xlu0 %v5698
      %v5700 = vpop.xlane.xlu0 %5699
      %v5701 = vsel %vm2890, %v5683, 0.0
      %5702 = vadd.xlane.f32.xlu0 %v5701
      %v5703 = vpop.xlane.xlu0 %5702
      %v5704 = vsel %vm2890, %v5684, 0.0
      %5705 = vadd.xlane.f32.xlu0 %v5704
      %v5706 = vpop.xlane.xlu0 %5705
      %v5707 = vsel %vm2890, %v5685, 0.0
      %5708 = vadd.xlane.f32.xlu0 %v5707
      %v5709 = vpop.xlane.xlu0 %5708
      %v5710 = vsel %vm2890, %v5686, 0.0
      %5711 = vadd.xlane.f32.xlu0 %v5710
      %v5712 = vpop.xlane.xlu0 %5711
      %v5713 = vsel %vm2890, %v5687, 0.0
      %5714 = vadd.xlane.f32.xlu0 %v5713
      %v5715 = vpop.xlane.xlu0 %5714
      %v5716 = vsel %vm2890, %v5688, 0.0
      %5717 = vadd.xlane.f32.xlu0 %v5716
      %v5718 = vpop.xlane.xlu0 %5717
      %v5719 = vsel %vm2890, %v5689, 0.0
      %5720 = vadd.xlane.f32.xlu0 %v5719
      %v5721 = vpop.xlane.xlu0 %5720
      %v5722 = vsel %vm2890, %v5690, 0.0
      %5723 = vadd.xlane.f32.xlu0 %v5722
      %v5724 = vpop.xlane.xlu0 %5723
      %v5725 = vsel %vm2890, %v5691, 0.0
      %5726 = vadd.xlane.f32.xlu0 %v5725
      %v5727 = vpop.xlane.xlu0 %5726
      %v5728 = vsel %vm2890, %v5692, 0.0
      %5729 = vadd.xlane.f32.xlu0 %v5728
      %v5730 = vpop.xlane.xlu0 %5729
      %v5731 = vsel %vm2890, %v5693, 0.0
      %5732 = vadd.xlane.f32.xlu0 %v5731
      %v5733 = vpop.xlane.xlu0 %5732
      %v5734 = vsel %vm2890, %v5694, 0.0
      %5735 = vadd.xlane.f32.xlu0 %v5734
      %v5736 = vpop.xlane.xlu0 %5735
      %v5737 = vsel %vm2890, %v5695, 0.0
      %5738 = vadd.xlane.f32.xlu0 %v5737
      %v5739 = vpop.xlane.xlu0 %5738
      %v5740 = vsel %vm2890, %v5696, 0.0
      %5741 = vadd.xlane.f32.xlu0 %v5740
      %v5742 = vpop.xlane.xlu0 %5741
      %v5743 = vsel %vm2890, %v5697, 0.0
      %5744 = vadd.xlane.f32.xlu0 %v5743
      %v5745 = vpop.xlane.xlu0 %5744
      %v5746 = vmul.f32 %v5004, %v5474
      %v5747 = vmul.f32 %v5005, %v5475
      %v5748 = vmul.f32 %v5006, %v5476
      %v5749 = vmul.f32 %v5007, %v5477
      %v5750 = vmul.f32 %v5008, %v5478
      %v5751 = vmul.f32 %v5009, %v5479
      %v5752 = vmul.f32 %v5010, %v5480
      %v5753 = vmul.f32 %v5011, %v5481
      %v5754 = vmul.f32 %v5012, %v5482
      %v5755 = vmul.f32 %v5013, %v5483
      %v5756 = vmul.f32 %v5014, %v5484
      %v5757 = vmul.f32 %v5015, %v5485
      %v5758 = vmul.f32 %v5016, %v5486
      %v5759 = vmul.f32 %v5017, %v5487
      %v5760 = vmul.f32 %v5018, %v5488
      %v5761 = vmul.f32 %v5019, %v5489
      %v5762 = vsel %vm2890, %v5746, 0.0
      %5763 = vadd.xlane.f32.xlu0 %v5762
      %v5764 = vpop.xlane.xlu0 %5763
      %v5765 = vsel %vm2890, %v5747, 0.0
      %5766 = vadd.xlane.f32.xlu0 %v5765
      %v5767 = vpop.xlane.xlu0 %5766
      %v5768 = vsel %vm2890, %v5748, 0.0
      %5769 = vadd.xlane.f32.xlu0 %v5768
      %v5770 = vpop.xlane.xlu0 %5769
      %v5771 = vsel %vm2890, %v5749, 0.0
      %5772 = vadd.xlane.f32.xlu0 %v5771
      %v5773 = vpop.xlane.xlu0 %5772
      %v5774 = vsel %vm2890, %v5750, 0.0
      %5775 = vadd.xlane.f32.xlu0 %v5774
      %v5776 = vpop.xlane.xlu0 %5775
      %v5777 = vsel %vm2890, %v5751, 0.0
      %5778 = vadd.xlane.f32.xlu0 %v5777
      %v5779 = vpop.xlane.xlu0 %5778
      %v5780 = vsel %vm2890, %v5752, 0.0
      %5781 = vadd.xlane.f32.xlu0 %v5780
      %v5782 = vpop.xlane.xlu0 %5781
      %v5783 = vsel %vm2890, %v5753, 0.0
      %5784 = vadd.xlane.f32.xlu0 %v5783
      %v5785 = vpop.xlane.xlu0 %5784
      %v5786 = vsel %vm2890, %v5754, 0.0
      %5787 = vadd.xlane.f32.xlu0 %v5786
      %v5788 = vpop.xlane.xlu0 %5787
      %v5789 = vsel %vm2890, %v5755, 0.0
      %5790 = vadd.xlane.f32.xlu0 %v5789
      %v5791 = vpop.xlane.xlu0 %5790
      %v5792 = vsel %vm2890, %v5756, 0.0
      %5793 = vadd.xlane.f32.xlu0 %v5792
      %v5794 = vpop.xlane.xlu0 %5793
      %v5795 = vsel %vm2890, %v5757, 0.0
      %5796 = vadd.xlane.f32.xlu0 %v5795
      %v5797 = vpop.xlane.xlu0 %5796
      %v5798 = vsel %vm2890, %v5758, 0.0
      %5799 = vadd.xlane.f32.xlu0 %v5798
      %v5800 = vpop.xlane.xlu0 %5799
      %v5801 = vsel %vm2890, %v5759, 0.0
      %5802 = vadd.xlane.f32.xlu0 %v5801
      %v5803 = vpop.xlane.xlu0 %5802
      %v5804 = vsel %vm2890, %v5760, 0.0
      %5805 = vadd.xlane.f32.xlu0 %v5804
      %v5806 = vpop.xlane.xlu0 %5805
      %v5807 = vsel %vm2890, %v5761, 0.0
      %5808 = vadd.xlane.f32.xlu0 %v5807
      %v5809 = vpop.xlane.xlu0 %5808
      %v5810 = vmul.f32 %v5021, %v5474
      %v5811 = vmul.f32 %v5023, %v5475
      %v5812 = vmul.f32 %v5025, %v5476
      %v5813 = vmul.f32 %v5027, %v5477
      %v5814 = vmul.f32 %v5029, %v5478
      %v5815 = vmul.f32 %v5031, %v5479
      %v5816 = vmul.f32 %v5033, %v5480
      %v5817 = vmul.f32 %v5035, %v5481
      %v5818 = vmul.f32 %v5037, %v5482
      %v5819 = vmul.f32 %v5039, %v5483
      %v5820 = vmul.f32 %v5041, %v5484
      %v5821 = vmul.f32 %v5043, %v5485
      %v5822 = vmul.f32 %v5045, %v5486
      %v5823 = vmul.f32 %v5047, %v5487
      %v5824 = vmul.f32 %v5049, %v5488
      %v5825 = vmul.f32 %v5051, %v5489
      %v5826 = vsel %vm2890, %v5810, 0.0
      %5827 = vadd.xlane.f32.xlu0 %v5826
      %v5828 = vpop.xlane.xlu0 %5827
      %v5829 = vsel %vm2890, %v5811, 0.0
      %5830 = vadd.xlane.f32.xlu0 %v5829
      %v5831 = vpop.xlane.xlu0 %5830
      %v5832 = vsel %vm2890, %v5812, 0.0
      %5833 = vadd.xlane.f32.xlu0 %v5832
      %v5834 = vpop.xlane.xlu0 %5833
      %v5835 = vsel %vm2890, %v5813, 0.0
      %5836 = vadd.xlane.f32.xlu0 %v5835
      %v5837 = vpop.xlane.xlu0 %5836
      %v5838 = vsel %vm2890, %v5814, 0.0
      %5839 = vadd.xlane.f32.xlu0 %v5838
      %v5840 = vpop.xlane.xlu0 %5839
      %v5841 = vsel %vm2890, %v5815, 0.0
      %5842 = vadd.xlane.f32.xlu0 %v5841
      %v5843 = vpop.xlane.xlu0 %5842
      %v5844 = vsel %vm2890, %v5816, 0.0
      %5845 = vadd.xlane.f32.xlu0 %v5844
      %v5846 = vpop.xlane.xlu0 %5845
      %v5847 = vsel %vm2890, %v5817, 0.0
      %5848 = vadd.xlane.f32.xlu0 %v5847
      %v5849 = vpop.xlane.xlu0 %5848
      %v5850 = vsel %vm2890, %v5818, 0.0
      %5851 = vadd.xlane.f32.xlu0 %v5850
      %v5852 = vpop.xlane.xlu0 %5851
      %v5853 = vsel %vm2890, %v5819, 0.0
      %5854 = vadd.xlane.f32.xlu0 %v5853
      %v5855 = vpop.xlane.xlu0 %5854
      %v5856 = vsel %vm2890, %v5820, 0.0
      %5857 = vadd.xlane.f32.xlu0 %v5856
      %v5858 = vpop.xlane.xlu0 %5857
      %v5859 = vsel %vm2890, %v5821, 0.0
      %5860 = vadd.xlane.f32.xlu0 %v5859
      %v5861 = vpop.xlane.xlu0 %5860
      %v5862 = vsel %vm2890, %v5822, 0.0
      %5863 = vadd.xlane.f32.xlu0 %v5862
      %v5864 = vpop.xlane.xlu0 %5863
      %v5865 = vsel %vm2890, %v5823, 0.0
      %5866 = vadd.xlane.f32.xlu0 %v5865
      %v5867 = vpop.xlane.xlu0 %5866
      %v5868 = vsel %vm2890, %v5824, 0.0
      %5869 = vadd.xlane.f32.xlu0 %v5868
      %v5870 = vpop.xlane.xlu0 %5869
      %v5871 = vsel %vm2890, %v5825, 0.0
      %5872 = vadd.xlane.f32.xlu0 %v5871
      %v5873 = vpop.xlane.xlu0 %5872
      %vm5874 = vcmp.eq.f32.partialorder %v5420, 0.0
      %vm5875 = vcmp.eq.f32.partialorder %v5421, 0.0
      %vm5876 = vcmp.eq.f32.partialorder %v5422, 0.0
      %vm5877 = vcmp.eq.f32.partialorder %v5423, 0.0
      %vm5878 = vcmp.eq.f32.partialorder %v5424, 0.0
      %vm5879 = vcmp.eq.f32.partialorder %v5425, 0.0
      %vm5880 = vcmp.eq.f32.partialorder %v5426, 0.0
      %vm5881 = vcmp.eq.f32.partialorder %v5427, 0.0
      %vm5882 = vcmp.eq.f32.partialorder %v5428, 0.0
      %vm5883 = vcmp.eq.f32.partialorder %v5429, 0.0
      %vm5884 = vcmp.eq.f32.partialorder %v5430, 0.0
      %vm5885 = vcmp.eq.f32.partialorder %v5431, 0.0
      %vm5886 = vcmp.eq.f32.partialorder %v5432, 0.0
      %vm5887 = vcmp.eq.f32.partialorder %v5433, 0.0
      %vm5888 = vcmp.eq.f32.partialorder %v5434, 0.0
      %vm5889 = vcmp.eq.f32.partialorder %v5435, 0.0
      %5906 = vrot.lane.b32.xlu0 %v5538, 64
      %v5907 = vpop.permute.xlu0 %5906
      %5908 = vrot.lane.b32.xlu0 %v5539, 64
      %v5909 = vpop.permute.xlu0 %5908
      %5910 = vrot.lane.b32.xlu0 %v5540, 64
      %v5911 = vpop.permute.xlu0 %5910
      %5912 = vrot.lane.b32.xlu0 %v5541, 64
      %v5913 = vpop.permute.xlu0 %5912
      %5914 = vrot.lane.b32.xlu0 %v5542, 64
      %v5915 = vpop.permute.xlu0 %5914
      %5916 = vrot.lane.b32.xlu0 %v5543, 64
      %v5917 = vpop.permute.xlu0 %5916
      %5918 = vrot.lane.b32.xlu0 %v5544, 64
      %v5919 = vpop.permute.xlu0 %5918
      %5920 = vrot.lane.b32.xlu0 %v5545, 64
      %v5921 = vpop.permute.xlu0 %5920
      %5922 = vrot.lane.b32.xlu0 %v5546, 64
      %v5923 = vpop.permute.xlu0 %5922
      %5924 = vrot.lane.b32.xlu0 %v5547, 64
      %v5925 = vpop.permute.xlu0 %5924
      %5926 = vrot.lane.b32.xlu0 %v5548, 64
      %v5927 = vpop.permute.xlu0 %5926
      %5928 = vrot.lane.b32.xlu0 %v5549, 64
      %v5929 = vpop.permute.xlu0 %5928
      %5930 = vrot.lane.b32.xlu0 %v5550, 64
      %v5931 = vpop.permute.xlu0 %5930
      %5932 = vrot.lane.b32.xlu0 %v5551, 64
      %v5933 = vpop.permute.xlu0 %5932
      %5934 = vrot.lane.b32.xlu0 %v5552, 64
      %v5935 = vpop.permute.xlu0 %5934
      %5936 = vrot.lane.b32.xlu0 %v5553, 64
      %v5937 = vpop.permute.xlu0 %5936
      %v5954 = vmul.f32 %v5196, %v5907
      %v5955 = vmul.f32 %v5197, %v5909
      %v5956 = vmul.f32 %v5198, %v5911
      %v5957 = vmul.f32 %v5199, %v5913
      %v5958 = vmul.f32 %v5200, %v5915
      %v5959 = vmul.f32 %v5201, %v5917
      %v5960 = vmul.f32 %v5202, %v5919
      %v5961 = vmul.f32 %v5203, %v5921
      %v5962 = vmul.f32 %v5204, %v5923
      %v5963 = vmul.f32 %v5205, %v5925
      %v5964 = vmul.f32 %v5206, %v5927
      %v5965 = vmul.f32 %v5207, %v5929
      %v5966 = vmul.f32 %v5208, %v5931
      %v5967 = vmul.f32 %v5209, %v5933
      %v5968 = vmul.f32 %v5210, %v5935
      %v5969 = vmul.f32 %v5211, %v5937
      %5986 = vrot.lane.b32.xlu0 %v5954, 64
      %v5987 = vpop.permute.xlu0 %5986
      %5988 = vrot.lane.b32.xlu0 %v5955, 64
      %v5989 = vpop.permute.xlu0 %5988
      %5990 = vrot.lane.b32.xlu0 %v5956, 64
      %v5991 = vpop.permute.xlu0 %5990
      %5992 = vrot.lane.b32.xlu0 %v5957, 64
      %v5993 = vpop.permute.xlu0 %5992
      %5994 = vrot.lane.b32.xlu0 %v5958, 64
      %v5995 = vpop.permute.xlu0 %5994
      %5996 = vrot.lane.b32.xlu0 %v5959, 64
      %v5997 = vpop.permute.xlu0 %5996
      %5998 = vrot.lane.b32.xlu0 %v5960, 64
      %v5999 = vpop.permute.xlu0 %5998
      %6000 = vrot.lane.b32.xlu0 %v5961, 64
      %v6001 = vpop.permute.xlu0 %6000
      %6002 = vrot.lane.b32.xlu0 %v5962, 64
      %v6003 = vpop.permute.xlu0 %6002
      %6004 = vrot.lane.b32.xlu0 %v5963, 64
      %v6005 = vpop.permute.xlu0 %6004
      %6006 = vrot.lane.b32.xlu0 %v5964, 64
      %v6007 = vpop.permute.xlu0 %6006
      %6008 = vrot.lane.b32.xlu0 %v5965, 64
      %v6009 = vpop.permute.xlu0 %6008
      %6010 = vrot.lane.b32.xlu0 %v5966, 64
      %v6011 = vpop.permute.xlu0 %6010
      %6012 = vrot.lane.b32.xlu0 %v5967, 64
      %v6013 = vpop.permute.xlu0 %6012
      %6014 = vrot.lane.b32.xlu0 %v5968, 64
      %v6015 = vpop.permute.xlu0 %6014
      %6016 = vrot.lane.b32.xlu0 %v5969, 64
      %v6017 = vpop.permute.xlu0 %6016
      %v6034 = vsel %vm2890, %v5987, 0.0
      %6035 = vadd.xlane.f32.xlu0 %v6034
      %v6036 = vpop.xlane.xlu0 %6035
      %v6037 = vsel %vm2890, %v5989, 0.0
      %6038 = vadd.xlane.f32.xlu0 %v6037
      %v6039 = vpop.xlane.xlu0 %6038
      %v6040 = vsel %vm2890, %v5991, 0.0
      %6041 = vadd.xlane.f32.xlu0 %v6040
      %v6042 = vpop.xlane.xlu0 %6041
      %v6043 = vsel %vm2890, %v5993, 0.0
      %6044 = vadd.xlane.f32.xlu0 %v6043
      %v6045 = vpop.xlane.xlu0 %6044
      %v6046 = vsel %vm2890, %v5995, 0.0
      %6047 = vadd.xlane.f32.xlu0 %v6046
      %v6048 = vpop.xlane.xlu0 %6047
      %v6049 = vsel %vm2890, %v5997, 0.0
      %6050 = vadd.xlane.f32.xlu0 %v6049
      %v6051 = vpop.xlane.xlu0 %6050
      %v6052 = vsel %vm2890, %v5999, 0.0
      %6053 = vadd.xlane.f32.xlu0 %v6052
      %v6054 = vpop.xlane.xlu0 %6053
      %v6055 = vsel %vm2890, %v6001, 0.0
      %6056 = vadd.xlane.f32.xlu0 %v6055
      %v6057 = vpop.xlane.xlu0 %6056
      %v6058 = vsel %vm2890, %v6003, 0.0
      %6059 = vadd.xlane.f32.xlu0 %v6058
      %v6060 = vpop.xlane.xlu0 %6059
      %v6061 = vsel %vm2890, %v6005, 0.0
      %6062 = vadd.xlane.f32.xlu0 %v6061
      %v6063 = vpop.xlane.xlu0 %6062
      %v6064 = vsel %vm2890, %v6007, 0.0
      %6065 = vadd.xlane.f32.xlu0 %v6064
      %v6066 = vpop.xlane.xlu0 %6065
      %v6067 = vsel %vm2890, %v6009, 0.0
      %6068 = vadd.xlane.f32.xlu0 %v6067
      %v6069 = vpop.xlane.xlu0 %6068
      %v6070 = vsel %vm2890, %v6011, 0.0
      %6071 = vadd.xlane.f32.xlu0 %v6070
      %v6072 = vpop.xlane.xlu0 %6071
      %v6073 = vsel %vm2890, %v6013, 0.0
      %6074 = vadd.xlane.f32.xlu0 %v6073
      %v6075 = vpop.xlane.xlu0 %6074
      %v6076 = vsel %vm2890, %v6015, 0.0
      %6077 = vadd.xlane.f32.xlu0 %v6076
      %v6078 = vpop.xlane.xlu0 %6077
      %v6079 = vsel %vm2890, %v6017, 0.0
      %6080 = vadd.xlane.f32.xlu0 %v6079
      %v6081 = vpop.xlane.xlu0 %6080
      %v6082 = vsel %vm5874, 1.0, %v6036
      %v6083 = vsel %vm5875, 1.0, %v6039
      %v6084 = vsel %vm5876, 1.0, %v6042
      %v6085 = vsel %vm5877, 1.0, %v6045
      %v6086 = vsel %vm5878, 1.0, %v6048
      %v6087 = vsel %vm5879, 1.0, %v6051
      %v6088 = vsel %vm5880, 1.0, %v6054
      %v6089 = vsel %vm5881, 1.0, %v6057
      %v6090 = vsel %vm5882, 1.0, %v6060
      %v6091 = vsel %vm5883, 1.0, %v6063
      %v6092 = vsel %vm5884, 1.0, %v6066
      %v6093 = vsel %vm5885, 1.0, %v6069
      %v6094 = vsel %vm5886, 1.0, %v6072
      %v6095 = vsel %vm5887, 1.0, %v6075
      %v6096 = vsel %vm5888, 1.0, %v6078
      %v6097 = vsel %vm5889, 1.0, %v6081
      %vm6098 = vcmp.eq.f32.partialorder %v5420, 31.0
      %vm6099 = vcmp.eq.f32.partialorder %v5421, 31.0
      %vm6100 = vcmp.eq.f32.partialorder %v5422, 31.0
      %vm6101 = vcmp.eq.f32.partialorder %v5423, 31.0
      %vm6102 = vcmp.eq.f32.partialorder %v5424, 31.0
      %vm6103 = vcmp.eq.f32.partialorder %v5425, 31.0
      %vm6104 = vcmp.eq.f32.partialorder %v5426, 31.0
      %vm6105 = vcmp.eq.f32.partialorder %v5427, 31.0
      %vm6106 = vcmp.eq.f32.partialorder %v5428, 31.0
      %vm6107 = vcmp.eq.f32.partialorder %v5429, 31.0
      %vm6108 = vcmp.eq.f32.partialorder %v5430, 31.0
      %vm6109 = vcmp.eq.f32.partialorder %v5431, 31.0
      %vm6110 = vcmp.eq.f32.partialorder %v5432, 31.0
      %vm6111 = vcmp.eq.f32.partialorder %v5433, 31.0
      %vm6112 = vcmp.eq.f32.partialorder %v5434, 31.0
      %vm6113 = vcmp.eq.f32.partialorder %v5435, 31.0
      %6130 = vrot.lane.b32.xlu0 %v5474, 64
      %v6131 = vpop.permute.xlu0 %6130
      %6132 = vrot.lane.b32.xlu0 %v5475, 64
      %v6133 = vpop.permute.xlu0 %6132
      %6134 = vrot.lane.b32.xlu0 %v5476, 64
      %v6135 = vpop.permute.xlu0 %6134
      %6136 = vrot.lane.b32.xlu0 %v5477, 64
      %v6137 = vpop.permute.xlu0 %6136
      %6138 = vrot.lane.b32.xlu0 %v5478, 64
      %v6139 = vpop.permute.xlu0 %6138
      %6140 = vrot.lane.b32.xlu0 %v5479, 64
      %v6141 = vpop.permute.xlu0 %6140
      %6142 = vrot.lane.b32.xlu0 %v5480, 64
      %v6143 = vpop.permute.xlu0 %6142
      %6144 = vrot.lane.b32.xlu0 %v5481, 64
      %v6145 = vpop.permute.xlu0 %6144
      %6146 = vrot.lane.b32.xlu0 %v5482, 64
      %v6147 = vpop.permute.xlu0 %6146
      %6148 = vrot.lane.b32.xlu0 %v5483, 64
      %v6149 = vpop.permute.xlu0 %6148
      %6150 = vrot.lane.b32.xlu0 %v5484, 64
      %v6151 = vpop.permute.xlu0 %6150
      %6152 = vrot.lane.b32.xlu0 %v5485, 64
      %v6153 = vpop.permute.xlu0 %6152
      %6154 = vrot.lane.b32.xlu0 %v5486, 64
      %v6155 = vpop.permute.xlu0 %6154
      %6156 = vrot.lane.b32.xlu0 %v5487, 64
      %v6157 = vpop.permute.xlu0 %6156
      %6158 = vrot.lane.b32.xlu0 %v5488, 64
      %v6159 = vpop.permute.xlu0 %6158
      %6160 = vrot.lane.b32.xlu0 %v5489, 64
      %v6161 = vpop.permute.xlu0 %6160
      %v6178 = vmul.f32 %v5196, %v6131
      %v6179 = vmul.f32 %v5197, %v6133
      %v6180 = vmul.f32 %v5198, %v6135
      %v6181 = vmul.f32 %v5199, %v6137
      %v6182 = vmul.f32 %v5200, %v6139
      %v6183 = vmul.f32 %v5201, %v6141
      %v6184 = vmul.f32 %v5202, %v6143
      %v6185 = vmul.f32 %v5203, %v6145
      %v6186 = vmul.f32 %v5204, %v6147
      %v6187 = vmul.f32 %v5205, %v6149
      %v6188 = vmul.f32 %v5206, %v6151
      %v6189 = vmul.f32 %v5207, %v6153
      %v6190 = vmul.f32 %v5208, %v6155
      %v6191 = vmul.f32 %v5209, %v6157
      %v6192 = vmul.f32 %v5210, %v6159
      %v6193 = vmul.f32 %v5211, %v6161
      %6210 = vrot.lane.b32.xlu0 %v6178, 64
      %v6211 = vpop.permute.xlu0 %6210
      %6212 = vrot.lane.b32.xlu0 %v6179, 64
      %v6213 = vpop.permute.xlu0 %6212
      %6214 = vrot.lane.b32.xlu0 %v6180, 64
      %v6215 = vpop.permute.xlu0 %6214
      %6216 = vrot.lane.b32.xlu0 %v6181, 64
      %v6217 = vpop.permute.xlu0 %6216
      %6218 = vrot.lane.b32.xlu0 %v6182, 64
      %v6219 = vpop.permute.xlu0 %6218
      %6220 = vrot.lane.b32.xlu0 %v6183, 64
      %v6221 = vpop.permute.xlu0 %6220
      %6222 = vrot.lane.b32.xlu0 %v6184, 64
      %v6223 = vpop.permute.xlu0 %6222
      %6224 = vrot.lane.b32.xlu0 %v6185, 64
      %v6225 = vpop.permute.xlu0 %6224
      %6226 = vrot.lane.b32.xlu0 %v6186, 64
      %v6227 = vpop.permute.xlu0 %6226
      %6228 = vrot.lane.b32.xlu0 %v6187, 64
      %v6229 = vpop.permute.xlu0 %6228
      %6230 = vrot.lane.b32.xlu0 %v6188, 64
      %v6231 = vpop.permute.xlu0 %6230
      %6232 = vrot.lane.b32.xlu0 %v6189, 64
      %v6233 = vpop.permute.xlu0 %6232
      %6234 = vrot.lane.b32.xlu0 %v6190, 64
      %v6235 = vpop.permute.xlu0 %6234
      %6236 = vrot.lane.b32.xlu0 %v6191, 64
      %v6237 = vpop.permute.xlu0 %6236
      %6238 = vrot.lane.b32.xlu0 %v6192, 64
      %v6239 = vpop.permute.xlu0 %6238
      %6240 = vrot.lane.b32.xlu0 %v6193, 64
      %v6241 = vpop.permute.xlu0 %6240
      %v6258 = vsel %vm2890, %v6211, 0.0
      %6259 = vadd.xlane.f32.xlu0 %v6258
      %v6260 = vpop.xlane.xlu0 %6259
      %v6261 = vsel %vm2890, %v6213, 0.0
      %6262 = vadd.xlane.f32.xlu0 %v6261
      %v6263 = vpop.xlane.xlu0 %6262
      %v6264 = vsel %vm2890, %v6215, 0.0
      %6265 = vadd.xlane.f32.xlu0 %v6264
      %v6266 = vpop.xlane.xlu0 %6265
      %v6267 = vsel %vm2890, %v6217, 0.0
      %6268 = vadd.xlane.f32.xlu0 %v6267
      %v6269 = vpop.xlane.xlu0 %6268
      %v6270 = vsel %vm2890, %v6219, 0.0
      %6271 = vadd.xlane.f32.xlu0 %v6270
      %v6272 = vpop.xlane.xlu0 %6271
      %v6273 = vsel %vm2890, %v6221, 0.0
      %6274 = vadd.xlane.f32.xlu0 %v6273
      %v6275 = vpop.xlane.xlu0 %6274
      %v6276 = vsel %vm2890, %v6223, 0.0
      %6277 = vadd.xlane.f32.xlu0 %v6276
      %v6278 = vpop.xlane.xlu0 %6277
      %v6279 = vsel %vm2890, %v6225, 0.0
      %6280 = vadd.xlane.f32.xlu0 %v6279
      %v6281 = vpop.xlane.xlu0 %6280
      %v6282 = vsel %vm2890, %v6227, 0.0
      %6283 = vadd.xlane.f32.xlu0 %v6282
      %v6284 = vpop.xlane.xlu0 %6283
      %v6285 = vsel %vm2890, %v6229, 0.0
      %6286 = vadd.xlane.f32.xlu0 %v6285
      %v6287 = vpop.xlane.xlu0 %6286
      %v6288 = vsel %vm2890, %v6231, 0.0
      %6289 = vadd.xlane.f32.xlu0 %v6288
      %v6290 = vpop.xlane.xlu0 %6289
      %v6291 = vsel %vm2890, %v6233, 0.0
      %6292 = vadd.xlane.f32.xlu0 %v6291
      %v6293 = vpop.xlane.xlu0 %6292
      %v6294 = vsel %vm2890, %v6235, 0.0
      %6295 = vadd.xlane.f32.xlu0 %v6294
      %v6296 = vpop.xlane.xlu0 %6295
      %v6297 = vsel %vm2890, %v6237, 0.0
      %6298 = vadd.xlane.f32.xlu0 %v6297
      %v6299 = vpop.xlane.xlu0 %6298
      %v6300 = vsel %vm2890, %v6239, 0.0
      %6301 = vadd.xlane.f32.xlu0 %v6300
      %v6302 = vpop.xlane.xlu0 %6301
      %v6303 = vsel %vm2890, %v6241, 0.0
      %6304 = vadd.xlane.f32.xlu0 %v6303
      %v6305 = vpop.xlane.xlu0 %6304
      %v6306 = vsel %vm6098, 1.0, %v6260
      %v6307 = vsel %vm6099, 1.0, %v6263
      %v6308 = vsel %vm6100, 1.0, %v6266
      %v6309 = vsel %vm6101, 1.0, %v6269
      %v6310 = vsel %vm6102, 1.0, %v6272
      %v6311 = vsel %vm6103, 1.0, %v6275
      %v6312 = vsel %vm6104, 1.0, %v6278
      %v6313 = vsel %vm6105, 1.0, %v6281
      %v6314 = vsel %vm6106, 1.0, %v6284
      %v6315 = vsel %vm6107, 1.0, %v6287
      %v6316 = vsel %vm6108, 1.0, %v6290
      %v6317 = vsel %vm6109, 1.0, %v6293
      %v6318 = vsel %vm6110, 1.0, %v6296
      %v6319 = vsel %vm6111, 1.0, %v6299
      %v6320 = vsel %vm6112, 1.0, %v6302
      %v6321 = vsel %vm6113, 1.0, %v6305
      %v6322 = vsub.f32 %v5228, %v5572
      %v6323 = vsub.f32 %v5229, %v5575
      %v6324 = vsub.f32 %v5230, %v5578
      %v6325 = vsub.f32 %v5231, %v5581
      %v6326 = vsub.f32 %v5232, %v5584
      %v6327 = vsub.f32 %v5233, %v5587
      %v6328 = vsub.f32 %v5234, %v5590
      %v6329 = vsub.f32 %v5235, %v5593
      %v6330 = vsub.f32 %v5236, %v5596
      %v6331 = vsub.f32 %v5237, %v5599
      %v6332 = vsub.f32 %v5238, %v5602
      %v6333 = vsub.f32 %v5239, %v5605
      %v6334 = vsub.f32 %v5240, %v5608
      %v6335 = vsub.f32 %v5241, %v5611
      %v6336 = vsub.f32 %v5242, %v5614
      %v6337 = vsub.f32 %v5243, %v5617
      %v6338 = vrcp.pop %v5636
      %v6339 = vmul.f32 %v6322, %v6338
      %v6340 = vrcp.pop %v5639
      %v6341 = vmul.f32 %v6323, %v6340
      %v6342 = vrcp.pop %v5642
      %v6343 = vmul.f32 %v6324, %v6342
      %v6344 = vrcp.pop %v5645
      %v6345 = vmul.f32 %v6325, %v6344
      %v6346 = vrcp.pop %v5648
      %v6347 = vmul.f32 %v6326, %v6346
      %v6348 = vrcp.pop %v5651
      %v6349 = vmul.f32 %v6327, %v6348
      %v6350 = vrcp.pop %v5654
      %v6351 = vmul.f32 %v6328, %v6350
      %v6352 = vrcp.pop %v5657
      %v6353 = vmul.f32 %v6329, %v6352
      %v6354 = vrcp.pop %v5660
      %v6355 = vmul.f32 %v6330, %v6354
      %v6356 = vrcp.pop %v5663
      %v6357 = vmul.f32 %v6331, %v6356
      %v6358 = vrcp.pop %v5666
      %v6359 = vmul.f32 %v6332, %v6358
      %v6360 = vrcp.pop %v5669
      %v6361 = vmul.f32 %v6333, %v6360
      %v6362 = vrcp.pop %v5672
      %v6363 = vmul.f32 %v6334, %v6362
      %v6364 = vrcp.pop %v5675
      %v6365 = vmul.f32 %v6335, %v6364
      %v6366 = vrcp.pop %v5678
      %v6367 = vmul.f32 %v6336, %v6366
      %v6368 = vrcp.pop %v5681
      %v6369 = vmul.f32 %v6337, %v6368
      %v6370 = vsub.f32 1.0, %v6339
      %v6371 = vsub.f32 1.0, %v6341
      %v6372 = vsub.f32 1.0, %v6343
      %v6373 = vsub.f32 1.0, %v6345
      %v6374 = vsub.f32 1.0, %v6347
      %v6375 = vsub.f32 1.0, %v6349
      %v6376 = vsub.f32 1.0, %v6351
      %v6377 = vsub.f32 1.0, %v6353
      %v6378 = vsub.f32 1.0, %v6355
      %v6379 = vsub.f32 1.0, %v6357
      %v6380 = vsub.f32 1.0, %v6359
      %v6381 = vsub.f32 1.0, %v6361
      %v6382 = vsub.f32 1.0, %v6363
      %v6383 = vsub.f32 1.0, %v6365
      %v6384 = vsub.f32 1.0, %v6367
      %v6385 = vsub.f32 1.0, %v6369
      %v6386 = vmul.f32 %v6339, %v6370
      %v6387 = vmul.f32 %v6341, %v6371
      %v6388 = vmul.f32 %v6343, %v6372
      %v6389 = vmul.f32 %v6345, %v6373
      %v6390 = vmul.f32 %v6347, %v6374
      %v6391 = vmul.f32 %v6349, %v6375
      %v6392 = vmul.f32 %v6351, %v6376
      %v6393 = vmul.f32 %v6353, %v6377
      %v6394 = vmul.f32 %v6355, %v6378
      %v6395 = vmul.f32 %v6357, %v6379
      %v6396 = vmul.f32 %v6359, %v6380
      %v6397 = vmul.f32 %v6361, %v6381
      %v6398 = vmul.f32 %v6363, %v6382
      %v6399 = vmul.f32 %v6365, %v6383
      %v6400 = vmul.f32 %v6367, %v6384
      %v6401 = vmul.f32 %v6369, %v6385
      %v6402 = vmul.f32 %v5828, %v6339
      %v6403 = vmul.f32 %v5831, %v6341
      %v6404 = vmul.f32 %v5834, %v6343
      %v6405 = vmul.f32 %v5837, %v6345
      %v6406 = vmul.f32 %v5840, %v6347
      %v6407 = vmul.f32 %v5843, %v6349
      %v6408 = vmul.f32 %v5846, %v6351
      %v6409 = vmul.f32 %v5849, %v6353
      %v6410 = vmul.f32 %v5852, %v6355
      %v6411 = vmul.f32 %v5855, %v6357
      %v6412 = vmul.f32 %v5858, %v6359
      %v6413 = vmul.f32 %v5861, %v6361
      %v6414 = vmul.f32 %v5864, %v6363
      %v6415 = vmul.f32 %v5867, %v6365
      %v6416 = vmul.f32 %v5870, %v6367
      %v6417 = vmul.f32 %v5873, %v6369
      %v6418 = vmul.f32 %v6402, %v6339
      %v6419 = vmul.f32 %v6403, %v6341
      %v6420 = vmul.f32 %v6404, %v6343
      %v6421 = vmul.f32 %v6405, %v6345
      %v6422 = vmul.f32 %v6406, %v6347
      %v6423 = vmul.f32 %v6407, %v6349
      %v6424 = vmul.f32 %v6408, %v6351
      %v6425 = vmul.f32 %v6409, %v6353
      %v6426 = vmul.f32 %v6410, %v6355
      %v6427 = vmul.f32 %v6411, %v6357
      %v6428 = vmul.f32 %v6412, %v6359
      %v6429 = vmul.f32 %v6413, %v6361
      %v6430 = vmul.f32 %v6414, %v6363
      %v6431 = vmul.f32 %v6415, %v6365
      %v6432 = vmul.f32 %v6416, %v6367
      %v6433 = vmul.f32 %v6417, %v6369
      %v6434 = vmul.f32 %v6082, %v6386
      %v6435 = vmul.f32 %v6083, %v6387
      %v6436 = vmul.f32 %v6084, %v6388
      %v6437 = vmul.f32 %v6085, %v6389
      %v6438 = vmul.f32 %v6086, %v6390
      %v6439 = vmul.f32 %v6087, %v6391
      %v6440 = vmul.f32 %v6088, %v6392
      %v6441 = vmul.f32 %v6089, %v6393
      %v6442 = vmul.f32 %v6090, %v6394
      %v6443 = vmul.f32 %v6091, %v6395
      %v6444 = vmul.f32 %v6092, %v6396
      %v6445 = vmul.f32 %v6093, %v6397
      %v6446 = vmul.f32 %v6094, %v6398
      %v6447 = vmul.f32 %v6095, %v6399
      %v6448 = vmul.f32 %v6096, %v6400
      %v6449 = vmul.f32 %v6097, %v6401
      %v6450 = vadd.f32 %v6418, %v6434
      %v6451 = vadd.f32 %v6419, %v6435
      %v6452 = vadd.f32 %v6420, %v6436
      %v6453 = vadd.f32 %v6421, %v6437
      %v6454 = vadd.f32 %v6422, %v6438
      %v6455 = vadd.f32 %v6423, %v6439
      %v6456 = vadd.f32 %v6424, %v6440
      %v6457 = vadd.f32 %v6425, %v6441
      %v6458 = vadd.f32 %v6426, %v6442
      %v6459 = vadd.f32 %v6427, %v6443
      %v6460 = vadd.f32 %v6428, %v6444
      %v6461 = vadd.f32 %v6429, %v6445
      %v6462 = vadd.f32 %v6430, %v6446
      %v6463 = vadd.f32 %v6431, %v6447
      %v6464 = vadd.f32 %v6432, %v6448
      %v6465 = vadd.f32 %v6433, %v6449
      %v6466 = vmul.f32 %v5764, %v6450
      %v6467 = vmul.f32 %v5767, %v6451
      %v6468 = vmul.f32 %v5770, %v6452
      %v6469 = vmul.f32 %v5773, %v6453
      %v6470 = vmul.f32 %v5776, %v6454
      %v6471 = vmul.f32 %v5779, %v6455
      %v6472 = vmul.f32 %v5782, %v6456
      %v6473 = vmul.f32 %v5785, %v6457
      %v6474 = vmul.f32 %v5788, %v6458
      %v6475 = vmul.f32 %v5791, %v6459
      %v6476 = vmul.f32 %v5794, %v6460
      %v6477 = vmul.f32 %v5797, %v6461
      %v6478 = vmul.f32 %v5800, %v6462
      %v6479 = vmul.f32 %v5803, %v6463
      %v6480 = vmul.f32 %v5806, %v6464
      %v6481 = vmul.f32 %v5809, %v6465
      %v6482 = vadd.f32 %v6082, %v6306
      %v6483 = vadd.f32 %v6083, %v6307
      %v6484 = vadd.f32 %v6084, %v6308
      %v6485 = vadd.f32 %v6085, %v6309
      %v6486 = vadd.f32 %v6086, %v6310
      %v6487 = vadd.f32 %v6087, %v6311
      %v6488 = vadd.f32 %v6088, %v6312
      %v6489 = vadd.f32 %v6089, %v6313
      %v6490 = vadd.f32 %v6090, %v6314
      %v6491 = vadd.f32 %v6091, %v6315
      %v6492 = vadd.f32 %v6092, %v6316
      %v6493 = vadd.f32 %v6093, %v6317
      %v6494 = vadd.f32 %v6094, %v6318
      %v6495 = vadd.f32 %v6095, %v6319
      %v6496 = vadd.f32 %v6096, %v6320
      %v6497 = vadd.f32 %v6097, %v6321
      %v6498 = vmul.f32 %v5828, 2.0
      %v6499 = vmul.f32 %v5831, 2.0
      %v6500 = vmul.f32 %v5834, 2.0
      %v6501 = vmul.f32 %v5837, 2.0
      %v6502 = vmul.f32 %v5840, 2.0
      %v6503 = vmul.f32 %v5843, 2.0
      %v6504 = vmul.f32 %v5846, 2.0
      %v6505 = vmul.f32 %v5849, 2.0
      %v6506 = vmul.f32 %v5852, 2.0
      %v6507 = vmul.f32 %v5855, 2.0
      %v6508 = vmul.f32 %v5858, 2.0
      %v6509 = vmul.f32 %v5861, 2.0
      %v6510 = vmul.f32 %v5864, 2.0
      %v6511 = vmul.f32 %v5867, 2.0
      %v6512 = vmul.f32 %v5870, 2.0
      %v6513 = vmul.f32 %v5873, 2.0
      %v6514 = vsub.f32 %v6482, %v6498
      %v6515 = vsub.f32 %v6483, %v6499
      %v6516 = vsub.f32 %v6484, %v6500
      %v6517 = vsub.f32 %v6485, %v6501
      %v6518 = vsub.f32 %v6486, %v6502
      %v6519 = vsub.f32 %v6487, %v6503
      %v6520 = vsub.f32 %v6488, %v6504
      %v6521 = vsub.f32 %v6489, %v6505
      %v6522 = vsub.f32 %v6490, %v6506
      %v6523 = vsub.f32 %v6491, %v6507
      %v6524 = vsub.f32 %v6492, %v6508
      %v6525 = vsub.f32 %v6493, %v6509
      %v6526 = vsub.f32 %v6494, %v6510
      %v6527 = vsub.f32 %v6495, %v6511
      %v6528 = vsub.f32 %v6496, %v6512
      %v6529 = vsub.f32 %v6497, %v6513
      %v6530 = vmul.f32 %v6514, %v6386
      %v6531 = vmul.f32 %v6515, %v6387
      %v6532 = vmul.f32 %v6516, %v6388
      %v6533 = vmul.f32 %v6517, %v6389
      %v6534 = vmul.f32 %v6518, %v6390
      %v6535 = vmul.f32 %v6519, %v6391
      %v6536 = vmul.f32 %v6520, %v6392
      %v6537 = vmul.f32 %v6521, %v6393
      %v6538 = vmul.f32 %v6522, %v6394
      %v6539 = vmul.f32 %v6523, %v6395
      %v6540 = vmul.f32 %v6524, %v6396
      %v6541 = vmul.f32 %v6525, %v6397
      %v6542 = vmul.f32 %v6526, %v6398
      %v6543 = vmul.f32 %v6527, %v6399
      %v6544 = vmul.f32 %v6528, %v6400
      %v6545 = vmul.f32 %v6529, %v6401
      %v6546 = vadd.f32 %v5828, %v6530
      %v6547 = vadd.f32 %v5831, %v6531
      %v6548 = vadd.f32 %v5834, %v6532
      %v6549 = vadd.f32 %v5837, %v6533
      %v6550 = vadd.f32 %v5840, %v6534
      %v6551 = vadd.f32 %v5843, %v6535
      %v6552 = vadd.f32 %v5846, %v6536
      %v6553 = vadd.f32 %v5849, %v6537
      %v6554 = vadd.f32 %v5852, %v6538
      %v6555 = vadd.f32 %v5855, %v6539
      %v6556 = vadd.f32 %v5858, %v6540
      %v6557 = vadd.f32 %v5861, %v6541
      %v6558 = vadd.f32 %v5864, %v6542
      %v6559 = vadd.f32 %v5867, %v6543
      %v6560 = vadd.f32 %v5870, %v6544
      %v6561 = vadd.f32 %v5873, %v6545
      %v6562 = vrcp.pop %v6546
      %v6563 = vmul.f32 %v6466, %v6562
      %v6564 = vrcp.pop %v6547
      %v6565 = vmul.f32 %v6467, %v6564
      %v6566 = vrcp.pop %v6548
      %v6567 = vmul.f32 %v6468, %v6566
      %v6568 = vrcp.pop %v6549
      %v6569 = vmul.f32 %v6469, %v6568
      %v6570 = vrcp.pop %v6550
      %v6571 = vmul.f32 %v6470, %v6570
      %v6572 = vrcp.pop %v6551
      %v6573 = vmul.f32 %v6471, %v6572
      %v6574 = vrcp.pop %v6552
      %v6575 = vmul.f32 %v6472, %v6574
      %v6576 = vrcp.pop %v6553
      %v6577 = vmul.f32 %v6473, %v6576
      %v6578 = vrcp.pop %v6554
      %v6579 = vmul.f32 %v6474, %v6578
      %v6580 = vrcp.pop %v6555
      %v6581 = vmul.f32 %v6475, %v6580
      %v6582 = vrcp.pop %v6556
      %v6583 = vmul.f32 %v6476, %v6582
      %v6584 = vrcp.pop %v6557
      %v6585 = vmul.f32 %v6477, %v6584
      %v6586 = vrcp.pop %v6558
      %v6587 = vmul.f32 %v6478, %v6586
      %v6588 = vrcp.pop %v6559
      %v6589 = vmul.f32 %v6479, %v6588
      %v6590 = vrcp.pop %v6560
      %v6591 = vmul.f32 %v6480, %v6590
      %v6592 = vrcp.pop %v6561
      %v6593 = vmul.f32 %v6481, %v6592
      %v6594 = vadd.f32 %v5700, %v6563
      %v6595 = vadd.f32 %v5703, %v6565
      %v6596 = vadd.f32 %v5706, %v6567
      %v6597 = vadd.f32 %v5709, %v6569
      %v6598 = vadd.f32 %v5712, %v6571
      %v6599 = vadd.f32 %v5715, %v6573
      %v6600 = vadd.f32 %v5718, %v6575
      %v6601 = vadd.f32 %v5721, %v6577
      %v6602 = vadd.f32 %v5724, %v6579
      %v6603 = vadd.f32 %v5727, %v6581
      %v6604 = vadd.f32 %v5730, %v6583
      %v6605 = vadd.f32 %v5733, %v6585
      %v6606 = vadd.f32 %v5736, %v6587
      %v6607 = vadd.f32 %v5739, %v6589
      %v6608 = vadd.f32 %v5742, %v6591
      %v6609 = vadd.f32 %v5745, %v6593
      %v6610 = vmul.f32 %v5828, %v5828
      %v6611 = vmul.f32 %v5831, %v5831
      %v6612 = vmul.f32 %v5834, %v5834
      %v6613 = vmul.f32 %v5837, %v5837
      %v6614 = vmul.f32 %v5840, %v5840
      %v6615 = vmul.f32 %v5843, %v5843
      %v6616 = vmul.f32 %v5846, %v5846
      %v6617 = vmul.f32 %v5849, %v5849
      %v6618 = vmul.f32 %v5852, %v5852
      %v6619 = vmul.f32 %v5855, %v5855
      %v6620 = vmul.f32 %v5858, %v5858
      %v6621 = vmul.f32 %v5861, %v5861
      %v6622 = vmul.f32 %v5864, %v5864
      %v6623 = vmul.f32 %v5867, %v5867
      %v6624 = vmul.f32 %v5870, %v5870
      %v6625 = vmul.f32 %v5873, %v5873
      %v6626 = vmul.f32 %v6306, %v6339
      %v6627 = vmul.f32 %v6307, %v6341
      %v6628 = vmul.f32 %v6308, %v6343
      %v6629 = vmul.f32 %v6309, %v6345
      %v6630 = vmul.f32 %v6310, %v6347
      %v6631 = vmul.f32 %v6311, %v6349
      %v6632 = vmul.f32 %v6312, %v6351
      %v6633 = vmul.f32 %v6313, %v6353
      %v6634 = vmul.f32 %v6314, %v6355
      %v6635 = vmul.f32 %v6315, %v6357
      %v6636 = vmul.f32 %v6316, %v6359
      %v6637 = vmul.f32 %v6317, %v6361
      %v6638 = vmul.f32 %v6318, %v6363
      %v6639 = vmul.f32 %v6319, %v6365
      %v6640 = vmul.f32 %v6320, %v6367
      %v6641 = vmul.f32 %v6321, %v6369
      %v6642 = vmul.f32 %v6626, %v6339
      %v6643 = vmul.f32 %v6627, %v6341
      %v6644 = vmul.f32 %v6628, %v6343
      %v6645 = vmul.f32 %v6629, %v6345
      %v6646 = vmul.f32 %v6630, %v6347
      %v6647 = vmul.f32 %v6631, %v6349
      %v6648 = vmul.f32 %v6632, %v6351
      %v6649 = vmul.f32 %v6633, %v6353
      %v6650 = vmul.f32 %v6634, %v6355
      %v6651 = vmul.f32 %v6635, %v6357
      %v6652 = vmul.f32 %v6636, %v6359
      %v6653 = vmul.f32 %v6637, %v6361
      %v6654 = vmul.f32 %v6638, %v6363
      %v6655 = vmul.f32 %v6639, %v6365
      %v6656 = vmul.f32 %v6640, %v6367
      %v6657 = vmul.f32 %v6641, %v6369
      %v6658 = vmul.f32 %v6498, %v6386
      %v6659 = vmul.f32 %v6499, %v6387
      %v6660 = vmul.f32 %v6500, %v6388
      %v6661 = vmul.f32 %v6501, %v6389
      %v6662 = vmul.f32 %v6502, %v6390
      %v6663 = vmul.f32 %v6503, %v6391
      %v6664 = vmul.f32 %v6504, %v6392
      %v6665 = vmul.f32 %v6505, %v6393
      %v6666 = vmul.f32 %v6506, %v6394
      %v6667 = vmul.f32 %v6507, %v6395
      %v6668 = vmul.f32 %v6508, %v6396
      %v6669 = vmul.f32 %v6509, %v6397
      %v6670 = vmul.f32 %v6510, %v6398
      %v6671 = vmul.f32 %v6511, %v6399
      %v6672 = vmul.f32 %v6512, %v6400
      %v6673 = vmul.f32 %v6513, %v6401
      %v6674 = vadd.f32 %v6642, %v6658
      %v6675 = vadd.f32 %v6643, %v6659
      %v6676 = vadd.f32 %v6644, %v6660
      %v6677 = vadd.f32 %v6645, %v6661
      %v6678 = vadd.f32 %v6646, %v6662
      %v6679 = vadd.f32 %v6647, %v6663
      %v6680 = vadd.f32 %v6648, %v6664
      %v6681 = vadd.f32 %v6649, %v6665
      %v6682 = vadd.f32 %v6650, %v6666
      %v6683 = vadd.f32 %v6651, %v6667
      %v6684 = vadd.f32 %v6652, %v6668
      %v6685 = vadd.f32 %v6653, %v6669
      %v6686 = vadd.f32 %v6654, %v6670
      %v6687 = vadd.f32 %v6655, %v6671
      %v6688 = vadd.f32 %v6656, %v6672
      %v6689 = vadd.f32 %v6657, %v6673
      %v6690 = vmul.f32 %v6082, %v6370
      %v6691 = vmul.f32 %v6083, %v6371
      %v6692 = vmul.f32 %v6084, %v6372
      %v6693 = vmul.f32 %v6085, %v6373
      %v6694 = vmul.f32 %v6086, %v6374
      %v6695 = vmul.f32 %v6087, %v6375
      %v6696 = vmul.f32 %v6088, %v6376
      %v6697 = vmul.f32 %v6089, %v6377
      %v6698 = vmul.f32 %v6090, %v6378
      %v6699 = vmul.f32 %v6091, %v6379
      %v6700 = vmul.f32 %v6092, %v6380
      %v6701 = vmul.f32 %v6093, %v6381
      %v6702 = vmul.f32 %v6094, %v6382
      %v6703 = vmul.f32 %v6095, %v6383
      %v6704 = vmul.f32 %v6096, %v6384
      %v6705 = vmul.f32 %v6097, %v6385
      %v6706 = vmul.f32 %v6690, %v6370
      %v6707 = vmul.f32 %v6691, %v6371
      %v6708 = vmul.f32 %v6692, %v6372
      %v6709 = vmul.f32 %v6693, %v6373
      %v6710 = vmul.f32 %v6694, %v6374
      %v6711 = vmul.f32 %v6695, %v6375
      %v6712 = vmul.f32 %v6696, %v6376
      %v6713 = vmul.f32 %v6697, %v6377
      %v6714 = vmul.f32 %v6698, %v6378
      %v6715 = vmul.f32 %v6699, %v6379
      %v6716 = vmul.f32 %v6700, %v6380
      %v6717 = vmul.f32 %v6701, %v6381
      %v6718 = vmul.f32 %v6702, %v6382
      %v6719 = vmul.f32 %v6703, %v6383
      %v6720 = vmul.f32 %v6704, %v6384
      %v6721 = vmul.f32 %v6705, %v6385
      %v6722 = vadd.f32 %v6674, %v6706
      %v6723 = vadd.f32 %v6675, %v6707
      %v6724 = vadd.f32 %v6676, %v6708
      %v6725 = vadd.f32 %v6677, %v6709
      %v6726 = vadd.f32 %v6678, %v6710
      %v6727 = vadd.f32 %v6679, %v6711
      %v6728 = vadd.f32 %v6680, %v6712
      %v6729 = vadd.f32 %v6681, %v6713
      %v6730 = vadd.f32 %v6682, %v6714
      %v6731 = vadd.f32 %v6683, %v6715
      %v6732 = vadd.f32 %v6684, %v6716
      %v6733 = vadd.f32 %v6685, %v6717
      %v6734 = vadd.f32 %v6686, %v6718
      %v6735 = vadd.f32 %v6687, %v6719
      %v6736 = vadd.f32 %v6688, %v6720
      %v6737 = vadd.f32 %v6689, %v6721
      %v6738 = vmul.f32 %v6610, %v6722
      %v6739 = vmul.f32 %v6611, %v6723
      %v6740 = vmul.f32 %v6612, %v6724
      %v6741 = vmul.f32 %v6613, %v6725
      %v6742 = vmul.f32 %v6614, %v6726
      %v6743 = vmul.f32 %v6615, %v6727
      %v6744 = vmul.f32 %v6616, %v6728
      %v6745 = vmul.f32 %v6617, %v6729
      %v6746 = vmul.f32 %v6618, %v6730
      %v6747 = vmul.f32 %v6619, %v6731
      %v6748 = vmul.f32 %v6620, %v6732
      %v6749 = vmul.f32 %v6621, %v6733
      %v6750 = vmul.f32 %v6622, %v6734
      %v6751 = vmul.f32 %v6623, %v6735
      %v6752 = vmul.f32 %v6624, %v6736
      %v6753 = vmul.f32 %v6625, %v6737
      %v6754 = vmul.f32 %v6546, %v6546
      %v6755 = vmul.f32 %v6547, %v6547
      %v6756 = vmul.f32 %v6548, %v6548
      %v6757 = vmul.f32 %v6549, %v6549
      %v6758 = vmul.f32 %v6550, %v6550
      %v6759 = vmul.f32 %v6551, %v6551
      %v6760 = vmul.f32 %v6552, %v6552
      %v6761 = vmul.f32 %v6553, %v6553
      %v6762 = vmul.f32 %v6554, %v6554
      %v6763 = vmul.f32 %v6555, %v6555
      %v6764 = vmul.f32 %v6556, %v6556
      %v6765 = vmul.f32 %v6557, %v6557
      %v6766 = vmul.f32 %v6558, %v6558
      %v6767 = vmul.f32 %v6559, %v6559
      %v6768 = vmul.f32 %v6560, %v6560
      %v6769 = vmul.f32 %v6561, %v6561
      %v6770 = vrcp.pop %v6754
      %v6771 = vmul.f32 %v6738, %v6770
      %v6772 = vrcp.pop %v6755
      %v6773 = vmul.f32 %v6739, %v6772
      %v6774 = vrcp.pop %v6756
      %v6775 = vmul.f32 %v6740, %v6774
      %v6776 = vrcp.pop %v6757
      %v6777 = vmul.f32 %v6741, %v6776
      %v6778 = vrcp.pop %v6758
      %v6779 = vmul.f32 %v6742, %v6778
      %v6780 = vrcp.pop %v6759
      %v6781 = vmul.f32 %v6743, %v6780
      %v6782 = vrcp.pop %v6760
      %v6783 = vmul.f32 %v6744, %v6782
      %v6784 = vrcp.pop %v6761
      %v6785 = vmul.f32 %v6745, %v6784
      %v6786 = vrcp.pop %v6762
      %v6787 = vmul.f32 %v6746, %v6786
      %v6788 = vrcp.pop %v6763
      %v6789 = vmul.f32 %v6747, %v6788
      %v6790 = vrcp.pop %v6764
      %v6791 = vmul.f32 %v6748, %v6790
      %v6792 = vrcp.pop %v6765
      %v6793 = vmul.f32 %v6749, %v6792
      %v6794 = vrcp.pop %v6766
      %v6795 = vmul.f32 %v6750, %v6794
      %v6796 = vrcp.pop %v6767
      %v6797 = vmul.f32 %v6751, %v6796
      %v6798 = vrcp.pop %v6768
      %v6799 = vmul.f32 %v6752, %v6798
      %v6800 = vrcp.pop %v6769
      %v6801 = vmul.f32 %v6753, %v6800
      %v6802 = vlog2.pop %v6771
      %v6803 = vmul.f32 %v6802, 0.6931472
      %v6804 = vlog2.pop %v6773
      %v6805 = vmul.f32 %v6804, 0.6931472
      %v6806 = vlog2.pop %v6775
      %v6807 = vmul.f32 %v6806, 0.6931472
      %v6808 = vlog2.pop %v6777
      %v6809 = vmul.f32 %v6808, 0.6931472
      %v6810 = vlog2.pop %v6779
      %v6811 = vmul.f32 %v6810, 0.6931472
      %v6812 = vlog2.pop %v6781
      %v6813 = vmul.f32 %v6812, 0.6931472
      %v6814 = vlog2.pop %v6783
      %v6815 = vmul.f32 %v6814, 0.6931472
      %v6816 = vlog2.pop %v6785
      %v6817 = vmul.f32 %v6816, 0.6931472
      %v6818 = vlog2.pop %v6787
      %v6819 = vmul.f32 %v6818, 0.6931472
      %v6820 = vlog2.pop %v6789
      %v6821 = vmul.f32 %v6820, 0.6931472
      %v6822 = vlog2.pop %v6791
      %v6823 = vmul.f32 %v6822, 0.6931472
      %v6824 = vlog2.pop %v6793
      %v6825 = vmul.f32 %v6824, 0.6931472
      %v6826 = vlog2.pop %v6795
      %v6827 = vmul.f32 %v6826, 0.6931472
      %v6828 = vlog2.pop %v6797
      %v6829 = vmul.f32 %v6828, 0.6931472
      %v6830 = vlog2.pop %v6799
      %v6831 = vmul.f32 %v6830, 0.6931472
      %v6832 = vlog2.pop %v6801
      %v6833 = vmul.f32 %v6832, 0.6931472
      %vm6834 = vcmp.ge.f32.partialorder %v2360, -3.0
      %vm6835 = vcmp.ge.f32.partialorder %v2361, -3.0
      %vm6836 = vcmp.ge.f32.partialorder %v2362, -3.0
      %vm6837 = vcmp.ge.f32.partialorder %v2363, -3.0
      %vm6838 = vcmp.ge.f32.partialorder %v2364, -3.0
      %vm6839 = vcmp.ge.f32.partialorder %v2365, -3.0
      %vm6840 = vcmp.ge.f32.partialorder %v2366, -3.0
      %vm6841 = vcmp.ge.f32.partialorder %v2367, -3.0
      %vm6842 = vcmp.ge.f32.partialorder %v2368, -3.0
      %vm6843 = vcmp.ge.f32.partialorder %v2369, -3.0
      %vm6844 = vcmp.ge.f32.partialorder %v2370, -3.0
      %vm6845 = vcmp.ge.f32.partialorder %v2371, -3.0
      %vm6846 = vcmp.ge.f32.partialorder %v2372, -3.0
      %vm6847 = vcmp.ge.f32.partialorder %v2373, -3.0
      %vm6848 = vcmp.ge.f32.partialorder %v2374, -3.0
      %vm6849 = vcmp.ge.f32.partialorder %v2375, -3.0
      %vm6850 = vcmp.le.f32.partialorder %v2360, 3.0
      %vm6851 = vcmp.le.f32.partialorder %v2361, 3.0
      %vm6852 = vcmp.le.f32.partialorder %v2362, 3.0
      %vm6853 = vcmp.le.f32.partialorder %v2363, 3.0
      %vm6854 = vcmp.le.f32.partialorder %v2364, 3.0
      %vm6855 = vcmp.le.f32.partialorder %v2365, 3.0
      %vm6856 = vcmp.le.f32.partialorder %v2366, 3.0
      %vm6857 = vcmp.le.f32.partialorder %v2367, 3.0
      %vm6858 = vcmp.le.f32.partialorder %v2368, 3.0
      %vm6859 = vcmp.le.f32.partialorder %v2369, 3.0
      %vm6860 = vcmp.le.f32.partialorder %v2370, 3.0
      %vm6861 = vcmp.le.f32.partialorder %v2371, 3.0
      %vm6862 = vcmp.le.f32.partialorder %v2372, 3.0
      %vm6863 = vcmp.le.f32.partialorder %v2373, 3.0
      %vm6864 = vcmp.le.f32.partialorder %v2374, 3.0
      %vm6865 = vcmp.le.f32.partialorder %v2375, 3.0
      %vm6866 = vmand %vm6834, %vm6850
      %vm6867 = vmand %vm6835, %vm6851
      %vm6868 = vmand %vm6836, %vm6852
      %vm6869 = vmand %vm6837, %vm6853
      %vm6870 = vmand %vm6838, %vm6854
      %vm6871 = vmand %vm6839, %vm6855
      %vm6872 = vmand %vm6840, %vm6856
      %vm6873 = vmand %vm6841, %vm6857
      %vm6874 = vmand %vm6842, %vm6858
      %vm6875 = vmand %vm6843, %vm6859
      %vm6876 = vmand %vm6844, %vm6860
      %vm6877 = vmand %vm6845, %vm6861
      %vm6878 = vmand %vm6846, %vm6862
      %vm6879 = vmand %vm6847, %vm6863
      %vm6880 = vmand %vm6848, %vm6864
      %vm6881 = vmand %vm6849, %vm6865
      %v6882 = vsel %vm6866, %v6594, %v2360
      %v6883 = vsel %vm6867, %v6595, %v2361
      %v6884 = vsel %vm6868, %v6596, %v2362
      %v6885 = vsel %vm6869, %v6597, %v2363
      %v6886 = vsel %vm6870, %v6598, %v2364
      %v6887 = vsel %vm6871, %v6599, %v2365
      %v6888 = vsel %vm6872, %v6600, %v2366
      %v6889 = vsel %vm6873, %v6601, %v2367
      %v6890 = vsel %vm6874, %v6602, %v2368
      %v6891 = vsel %vm6875, %v6603, %v2369
      %v6892 = vsel %vm6876, %v6604, %v2370
      %v6893 = vsel %vm6877, %v6605, %v2371
      %v6894 = vsel %vm6878, %v6606, %v2372
      %v6895 = vsel %vm6879, %v6607, %v2373
      %v6896 = vsel %vm6880, %v6608, %v2374
      %v6897 = vsel %vm6881, %v6609, %v2375
      %v6898 = vsel %vm6866, %v6803, 0.0
      %v6899 = vsel %vm6867, %v6805, 0.0
      %v6900 = vsel %vm6868, %v6807, 0.0
      %v6901 = vsel %vm6869, %v6809, 0.0
      %v6902 = vsel %vm6870, %v6811, 0.0
      %v6903 = vsel %vm6871, %v6813, 0.0
      %v6904 = vsel %vm6872, %v6815, 0.0
      %v6905 = vsel %vm6873, %v6817, 0.0
      %v6906 = vsel %vm6874, %v6819, 0.0
      %v6907 = vsel %vm6875, %v6821, 0.0
      %v6908 = vsel %vm6876, %v6823, 0.0
      %v6909 = vsel %vm6877, %v6825, 0.0
      %v6910 = vsel %vm6878, %v6827, 0.0
      %v6911 = vsel %vm6879, %v6829, 0.0
      %v6912 = vsel %vm6880, %v6831, 0.0
      %v6913 = vsel %vm6881, %v6833, 0.0
      %v6914 = vld [vmem:[%s5] sm:$0x1]
      %v6915 = vstv %s31
      %vm6916 = vcmp.eq.s32.totalorder %v6914, %v6915
      %v6917 = vsel %vm6916, 1, 0
      %v6918 = vlaneseq
      %v6919 = vshrl.u32 %v6918, 7
      %v6920 = vsub.s32 0, %v6919
      %v6921 = vrot.slane %v6917, %v6920
      %vm6922 = vcmp.eq.s32.totalorder %v6921, 1
      %6924 = vset.pattern.permute.xlu0 0
      %6925 = vperm.xlu0 %6924, %v6882
      %v6926 = vpop.permute.xlu0 %6925
      %6929 = vset.pattern.permute.xlu0 0
      %6930 = vperm.xlu0 %6929, %v6883
      %v6931 = vpop.permute.xlu0 %6930
      %6934 = vset.pattern.permute.xlu0 0
      %6935 = vperm.xlu0 %6934, %v6884
      %v6936 = vpop.permute.xlu0 %6935
      %6939 = vset.pattern.permute.xlu0 0
      %6940 = vperm.xlu0 %6939, %v6885
      %v6941 = vpop.permute.xlu0 %6940
      %6944 = vset.pattern.permute.xlu0 0
      %6945 = vperm.xlu0 %6944, %v6886
      %v6946 = vpop.permute.xlu0 %6945
      %6949 = vset.pattern.permute.xlu0 0
      %6950 = vperm.xlu0 %6949, %v6887
      %v6951 = vpop.permute.xlu0 %6950
      %6954 = vset.pattern.permute.xlu0 0
      %6955 = vperm.xlu0 %6954, %v6888
      %v6956 = vpop.permute.xlu0 %6955
      %6959 = vset.pattern.permute.xlu0 0
      %6960 = vperm.xlu0 %6959, %v6889
      %v6961 = vpop.permute.xlu0 %6960
      %6964 = vset.pattern.permute.xlu0 0
      %6965 = vperm.xlu0 %6964, %v6890
      %v6966 = vpop.permute.xlu0 %6965
      %6969 = vset.pattern.permute.xlu0 0
      %6970 = vperm.xlu0 %6969, %v6891
      %v6971 = vpop.permute.xlu0 %6970
      %6974 = vset.pattern.permute.xlu0 0
      %6975 = vperm.xlu0 %6974, %v6892
      %v6976 = vpop.permute.xlu0 %6975
      %6979 = vset.pattern.permute.xlu0 0
      %6980 = vperm.xlu0 %6979, %v6893
      %v6981 = vpop.permute.xlu0 %6980
      %6984 = vset.pattern.permute.xlu0 0
      %6985 = vperm.xlu0 %6984, %v6894
      %v6986 = vpop.permute.xlu0 %6985
      %6989 = vset.pattern.permute.xlu0 0
      %6990 = vperm.xlu0 %6989, %v6895
      %v6991 = vpop.permute.xlu0 %6990
      %6994 = vset.pattern.permute.xlu0 0
      %6995 = vperm.xlu0 %6994, %v6896
      %v6996 = vpop.permute.xlu0 %6995
      %6999 = vset.pattern.permute.xlu0 0
      %7000 = vperm.xlu0 %6999, %v6897
      %v7001 = vpop.permute.xlu0 %7000
      %v7003 = vsel %vm6922, %v6926, 0.0
      %v7004 = vsel %vm6922, %v6931, 0.0
      %v7005 = vsel %vm6922, %v6936, 0.0
      %v7006 = vsel %vm6922, %v6941, 0.0
      %v7007 = vsel %vm6922, %v6946, 0.0
      %v7008 = vsel %vm6922, %v6951, 0.0
      %v7009 = vsel %vm6922, %v6956, 0.0
      %v7010 = vsel %vm6922, %v6961, 0.0
      %v7011 = vsel %vm6922, %v6966, 0.0
      %v7012 = vsel %vm6922, %v6971, 0.0
      %v7013 = vsel %vm6922, %v6976, 0.0
      %v7014 = vsel %vm6922, %v6981, 0.0
      %v7015 = vsel %vm6922, %v6986, 0.0
      %v7016 = vsel %vm6922, %v6991, 0.0
      %v7017 = vsel %vm6922, %v6996, 0.0
      %v7018 = vsel %vm6922, %v7001, 0.0
      %p7019 = scmp.eq.s32.totalorder %s31, 0
      // Predicated region
      $region73: #{tpu_custom_call.1} parent=71 // pred_check
        %p7020 = pneg %p7019
      $region74: #{tpu_custom_call.1} parent=71 // pred_check_branch
        %7022 = sbr.rel (%p7020) target = $region76
      $region75: #{tpu_custom_call.1} parent=71 // pred_region
        %vm7023 = vcmask 31744
        %7024 = vst.msk [vmem:[%s641] sm:$0xff] %vm7023, %v7003
        %7025 = vst.msk [vmem:[%s641 + $0x8] sm:$0xff] %vm7023, %v7004
        %7026 = vst.msk [vmem:[%s641 + $0x10] sm:$0xff] %vm7023, %v7005
        %7027 = vst.msk [vmem:[%s641 + $0x18] sm:$0xff] %vm7023, %v7006
        %7028 = vst.msk [vmem:[%s641 + $0x20] sm:$0xff] %vm7023, %v7007
        %7029 = vst.msk [vmem:[%s641 + $0x28] sm:$0xff] %vm7023, %v7008
        %7030 = vst.msk [vmem:[%s641 + $0x30] sm:$0xff] %vm7023, %v7009
        %7031 = vst.msk [vmem:[%s641 + $0x38] sm:$0xff] %vm7023, %v7010
        %7032 = vst.msk [vmem:[%s641 + $0x40] sm:$0xff] %vm7023, %v7011
        %7033 = vst.msk [vmem:[%s641 + $0x48] sm:$0xff] %vm7023, %v7012
        %7034 = vst.msk [vmem:[%s641 + $0x50] sm:$0xff] %vm7023, %v7013
        %7035 = vst.msk [vmem:[%s641 + $0x58] sm:$0xff] %vm7023, %v7014
        %7036 = vst.msk [vmem:[%s641 + $0x60] sm:$0xff] %vm7023, %v7015
        %7037 = vst.msk [vmem:[%s641 + $0x68] sm:$0xff] %vm7023, %v7016
        %7038 = vst.msk [vmem:[%s641 + $0x70] sm:$0xff] %vm7023, %v7017
        %7039 = vst.msk [vmem:[%s641 + $0x78] sm:$0xff] %vm7023, %v7018
        %vm7040 = vcmask 7168
        %7041 = vst.msk [vmem:[%s647] sm:$0xff] %vm7040, %v6898
        %7042 = vst.msk [vmem:[%s647 + $0x8] sm:$0xff] %vm7040, %v6899
        %7043 = vst.msk [vmem:[%s647 + $0x10] sm:$0xff] %vm7040, %v6900
        %7044 = vst.msk [vmem:[%s647 + $0x18] sm:$0xff] %vm7040, %v6901
        %7045 = vst.msk [vmem:[%s647 + $0x20] sm:$0xff] %vm7040, %v6902
        %7046 = vst.msk [vmem:[%s647 + $0x28] sm:$0xff] %vm7040, %v6903
        %7047 = vst.msk [vmem:[%s647 + $0x30] sm:$0xff] %vm7040, %v6904
        %7048 = vst.msk [vmem:[%s647 + $0x38] sm:$0xff] %vm7040, %v6905
        %7049 = vst.msk [vmem:[%s647 + $0x40] sm:$0xff] %vm7040, %v6906
        %7050 = vst.msk [vmem:[%s647 + $0x48] sm:$0xff] %vm7040, %v6907
        %7051 = vst.msk [vmem:[%s647 + $0x50] sm:$0xff] %vm7040, %v6908
        %7052 = vst.msk [vmem:[%s647 + $0x58] sm:$0xff] %vm7040, %v6909
        %7053 = vst.msk [vmem:[%s647 + $0x60] sm:$0xff] %vm7040, %v6910
        %7054 = vst.msk [vmem:[%s647 + $0x68] sm:$0xff] %vm7040, %v6911
        %7055 = vst.msk [vmem:[%s647 + $0x70] sm:$0xff] %vm7040, %v6912
        %7056 = vst.msk [vmem:[%s647 + $0x78] sm:$0xff] %vm7040, %v6913
      $region76: #{tpu_custom_call.1} parent=71 // pred_fallthru
        _
      %p7057 = scmp.gt.s32.totalorder %s31, 0
      // Predicated region
      $region77: #{tpu_custom_call.1} parent=71 // pred_check
        %p7058 = pneg %p7057
      $region78: #{tpu_custom_call.1} parent=71 // pred_check_branch
        %7060 = sbr.rel (%p7058) target = $region80
      $region79: #{tpu_custom_call.1} parent=71 // pred_region
        %v7061 = vld [vmem:[%s641] sm:$0xff]
        %v7062 = vld [vmem:[%s641 + $0x8] sm:$0xff]
        %v7063 = vld [vmem:[%s641 + $0x10] sm:$0xff]
        %v7064 = vld [vmem:[%s641 + $0x18] sm:$0xff]
        %v7065 = vld [vmem:[%s641 + $0x20] sm:$0xff]
        %v7066 = vld [vmem:[%s641 + $0x28] sm:$0xff]
        %v7067 = vld [vmem:[%s641 + $0x30] sm:$0xff]
        %v7068 = vld [vmem:[%s641 + $0x38] sm:$0xff]
        %v7069 = vld [vmem:[%s641 + $0x40] sm:$0xff]
        %v7070 = vld [vmem:[%s641 + $0x48] sm:$0xff]
        %v7071 = vld [vmem:[%s641 + $0x50] sm:$0xff]
        %v7072 = vld [vmem:[%s641 + $0x58] sm:$0xff]
        %v7073 = vld [vmem:[%s641 + $0x60] sm:$0xff]
        %v7074 = vld [vmem:[%s641 + $0x68] sm:$0xff]
        %v7075 = vld [vmem:[%s641 + $0x70] sm:$0xff]
        %v7076 = vld [vmem:[%s641 + $0x78] sm:$0xff]
        %v7077 = vadd.f32 %v7061, %v7003
        %v7078 = vadd.f32 %v7062, %v7004
        %v7079 = vadd.f32 %v7063, %v7005
        %v7080 = vadd.f32 %v7064, %v7006
        %v7081 = vadd.f32 %v7065, %v7007
        %v7082 = vadd.f32 %v7066, %v7008
        %v7083 = vadd.f32 %v7067, %v7009
        %v7084 = vadd.f32 %v7068, %v7010
        %v7085 = vadd.f32 %v7069, %v7011
        %v7086 = vadd.f32 %v7070, %v7012
        %v7087 = vadd.f32 %v7071, %v7013
        %v7088 = vadd.f32 %v7072, %v7014
        %v7089 = vadd.f32 %v7073, %v7015
        %v7090 = vadd.f32 %v7074, %v7016
        %v7091 = vadd.f32 %v7075, %v7017
        %v7092 = vadd.f32 %v7076, %v7018
        %vm7093 = vcmask 31744
        %7094 = vst.msk [vmem:[%s641] sm:$0xff] %vm7093, %v7077
        %7095 = vst.msk [vmem:[%s641 + $0x8] sm:$0xff] %vm7093, %v7078
        %7096 = vst.msk [vmem:[%s641 + $0x10] sm:$0xff] %vm7093, %v7079
        %7097 = vst.msk [vmem:[%s641 + $0x18] sm:$0xff] %vm7093, %v7080
        %7098 = vst.msk [vmem:[%s641 + $0x20] sm:$0xff] %vm7093, %v7081
        %7099 = vst.msk [vmem:[%s641 + $0x28] sm:$0xff] %vm7093, %v7082
        %7100 = vst.msk [vmem:[%s641 + $0x30] sm:$0xff] %vm7093, %v7083
        %7101 = vst.msk [vmem:[%s641 + $0x38] sm:$0xff] %vm7093, %v7084
        %7102 = vst.msk [vmem:[%s641 + $0x40] sm:$0xff] %vm7093, %v7085
        %7103 = vst.msk [vmem:[%s641 + $0x48] sm:$0xff] %vm7093, %v7086
        %7104 = vst.msk [vmem:[%s641 + $0x50] sm:$0xff] %vm7093, %v7087
        %7105 = vst.msk [vmem:[%s641 + $0x58] sm:$0xff] %vm7093, %v7088
        %7106 = vst.msk [vmem:[%s641 + $0x60] sm:$0xff] %vm7093, %v7089
        %7107 = vst.msk [vmem:[%s641 + $0x68] sm:$0xff] %vm7093, %v7090
        %7108 = vst.msk [vmem:[%s641 + $0x70] sm:$0xff] %vm7093, %v7091
        %7109 = vst.msk [vmem:[%s641 + $0x78] sm:$0xff] %vm7093, %v7092
        %v7110 = vld [vmem:[%s647] sm:$0xff]
        %v7111 = vld [vmem:[%s647 + $0x8] sm:$0xff]
        %v7112 = vld [vmem:[%s647 + $0x10] sm:$0xff]
        %v7113 = vld [vmem:[%s647 + $0x18] sm:$0xff]
        %v7114 = vld [vmem:[%s647 + $0x20] sm:$0xff]
        %v7115 = vld [vmem:[%s647 + $0x28] sm:$0xff]
        %v7116 = vld [vmem:[%s647 + $0x30] sm:$0xff]
        %v7117 = vld [vmem:[%s647 + $0x38] sm:$0xff]
        %v7118 = vld [vmem:[%s647 + $0x40] sm:$0xff]
        %v7119 = vld [vmem:[%s647 + $0x48] sm:$0xff]
        %v7120 = vld [vmem:[%s647 + $0x50] sm:$0xff]
        %v7121 = vld [vmem:[%s647 + $0x58] sm:$0xff]
        %v7122 = vld [vmem:[%s647 + $0x60] sm:$0xff]
        %v7123 = vld [vmem:[%s647 + $0x68] sm:$0xff]
        %v7124 = vld [vmem:[%s647 + $0x70] sm:$0xff]
        %v7125 = vld [vmem:[%s647 + $0x78] sm:$0xff]
        %v7126 = vadd.f32 %v7110, %v6898
        %v7127 = vadd.f32 %v7111, %v6899
        %v7128 = vadd.f32 %v7112, %v6900
        %v7129 = vadd.f32 %v7113, %v6901
        %v7130 = vadd.f32 %v7114, %v6902
        %v7131 = vadd.f32 %v7115, %v6903
        %v7132 = vadd.f32 %v7116, %v6904
        %v7133 = vadd.f32 %v7117, %v6905
        %v7134 = vadd.f32 %v7118, %v6906
        %v7135 = vadd.f32 %v7119, %v6907
        %v7136 = vadd.f32 %v7120, %v6908
        %v7137 = vadd.f32 %v7121, %v6909
        %v7138 = vadd.f32 %v7122, %v6910
        %v7139 = vadd.f32 %v7123, %v6911
        %v7140 = vadd.f32 %v7124, %v6912
        %v7141 = vadd.f32 %v7125, %v6913
        %vm7142 = vcmask 7168
        %7143 = vst.msk [vmem:[%s647] sm:$0xff] %vm7142, %v7126
        %7144 = vst.msk [vmem:[%s647 + $0x8] sm:$0xff] %vm7142, %v7127
        %7145 = vst.msk [vmem:[%s647 + $0x10] sm:$0xff] %vm7142, %v7128
        %7146 = vst.msk [vmem:[%s647 + $0x18] sm:$0xff] %vm7142, %v7129
        %7147 = vst.msk [vmem:[%s647 + $0x20] sm:$0xff] %vm7142, %v7130
        %7148 = vst.msk [vmem:[%s647 + $0x28] sm:$0xff] %vm7142, %v7131
        %7149 = vst.msk [vmem:[%s647 + $0x30] sm:$0xff] %vm7142, %v7132
        %7150 = vst.msk [vmem:[%s647 + $0x38] sm:$0xff] %vm7142, %v7133
        %7151 = vst.msk [vmem:[%s647 + $0x40] sm:$0xff] %vm7142, %v7134
        %7152 = vst.msk [vmem:[%s647 + $0x48] sm:$0xff] %vm7142, %v7135
        %7153 = vst.msk [vmem:[%s647 + $0x50] sm:$0xff] %vm7142, %v7136
        %7154 = vst.msk [vmem:[%s647 + $0x58] sm:$0xff] %vm7142, %v7137
        %7155 = vst.msk [vmem:[%s647 + $0x60] sm:$0xff] %vm7142, %v7138
        %7156 = vst.msk [vmem:[%s647 + $0x68] sm:$0xff] %vm7142, %v7139
        %7157 = vst.msk [vmem:[%s647 + $0x70] sm:$0xff] %vm7142, %v7140
        %7158 = vst.msk [vmem:[%s647 + $0x78] sm:$0xff] %vm7142, %v7141
      $region80: #{tpu_custom_call.1} parent=71 // pred_fallthru
        _
      %s7159 = smul.u32 16, %s30
      %p7160 = scmp.lt.s32.totalorder %s7159, 15
      %s7161 = scalar_select %p7160, %s7159, 15
      %s7162 = smul.addr %s7161, 8
      %s7163 = scalar_lea.vmem %s13, %s7162
      %s7164 = smul.u32 16, %s30
      %p7165 = scmp.lt.s32.totalorder %s7164, 15
      %s7166 = scalar_select %p7165, %s7164, 15
      %s7167 = smul.addr %s7166, 8
      %s7168 = scalar_lea.vmem %s14, %s7167
      // Predicated region
      $region81: #{tpu_custom_call.1} parent=71 // pred_check
        %p7169 = pneg %p376
      $region82: #{tpu_custom_call.1} parent=71 // pred_check_branch
        %7171 = sbr.rel (%p7169) target = $region84
      $region83: #{tpu_custom_call.1} parent=71 // pred_region
        %s7172 = smul.u32 16, %s30
      $region84: #{tpu_custom_call.1} parent=71 // pred_fallthru
        _
      // Predicated region
      $region85: #{tpu_custom_call.1} parent=71 // pred_check
        %p7173 = pneg %p402
      $region86: #{tpu_custom_call.1} parent=71 // pred_check_branch
        %7175 = sbr.rel (%p7173) target = $region88
      $region87: #{tpu_custom_call.1} parent=71 // pred_region
        %s7176 = smul.u32 16, %s30
      $region88: #{tpu_custom_call.1} parent=71 // pred_fallthru
        _
      // Predicated region
      $region89: #{tpu_custom_call.1} parent=71 // pred_check
        %p7177 = pneg %p376
      $region90: #{tpu_custom_call.1} parent=71 // pred_check_branch
        %7179 = sbr.rel (%p7177) target = $region92
      $region91: #{tpu_custom_call.1} parent=71 // pred_region
        %s7180 = smul.u32 16, %s30
        %p7181 = scmp.lt.s32.totalorder %s7180, 15
        %s7182 = scalar_select %p7181, %s7180, 15
        %s7183 = smul.addr %s7182, 8
        %s7184 = scalar_lea.vmem %s13, %s7183
      $region92: #{tpu_custom_call.1} parent=71 // pred_fallthru
        _
      // Predicated region
      $region93: #{tpu_custom_call.1} parent=71 // pred_check
        %p7185 = pneg %p402
      $region94: #{tpu_custom_call.1} parent=71 // pred_check_branch
        %7187 = sbr.rel (%p7185) target = $region96
      $region95: #{tpu_custom_call.1} parent=71 // pred_region
        %s7188 = smul.u32 16, %s30
        %p7189 = scmp.lt.s32.totalorder %s7188, 15
        %s7190 = scalar_select %p7189, %s7188, 15
        %s7191 = smul.addr %s7190, 8
        %s7192 = scalar_lea.vmem %s14, %s7191
      $region96: #{tpu_custom_call.1} parent=71 // pred_fallthru
        _
    $region72: #{tpu_custom_call.1} parent=5 // pred_fallthru
      _
    %p7193 = scmp.le.s32.totalorder 2, %s21
    // Predicated region
    $region97: #{tpu_custom_call.1} parent=5 // pred_check
      %p7194 = pneg %p7193
    $region98: #{tpu_custom_call.1} parent=5 // pred_check_branch
      %7196 = sbr.rel (%p7194) target = $region100
    $region99: #{tpu_custom_call.1} parent=5 // pred_region
      %s7197 = ssub.s32 %s21, 2
    $region100: #{tpu_custom_call.1} parent=5 // pred_fallthru
      _
  $region6: #{tpu_custom_call.1} parent=0 // loop_footer
    %s25 = sadd.s32 1, %s21
  $region7: #{tpu_custom_call.1} parent=0 // loop_footer_branch
    %20 = sbr.rel target = $region3
  $region8: #{tpu_custom_call.1} parent=0 // loop_exit
    _

</llo_original>
